<compile_context>
chip_gen: v6e
topology: v6e:2x2x1
jax: 0.10.0
libtpu: 0.0.40
codegen_flags: <defaults>
</compile_context>

<pallas_src>
import jax
import jax.numpy as jnp
from jax import lax
from jax.experimental import pallas as pl
from jax.experimental.pallas import tpu as pltpu


# ----------------------------------------------------------------------------
# helpers
# ----------------------------------------------------------------------------
def _layernorm(x, w, b, eps=1e-6):
    # two-pass mean/var (numerically robust for deep residual streams)
    mu = jnp.mean(x, axis=-1, keepdims=True)
    xc = x - mu
    var = jnp.mean(xc * xc, axis=-1, keepdims=True)
    return xc * lax.rsqrt(var + eps) * w + b


def nchw_to_tokens(x):
    b, c, h, w = x.shape
    return jnp.transpose(x, (0, 2, 3, 1)).reshape(b, h * w, c)


def box_xyxy_to_cxcywh(box):
    x0, y0, x1, y1 = box[..., 0], box[..., 1], box[..., 2], box[..., 3]
    return jnp.stack([(x0 + x1) * 0.5, (y0 + y1) * 0.5, x1 - x0, y1 - y0], axis=-1)


def _vmem_capacity_bytes():
    try:
        return int(pltpu.get_tpu_info().vmem_capacity_bytes)
    except Exception:
        return 64 << 20  # conservative fallback (v7x per-TC physical VMEM)


# ----------------------------------------------------------------------------
# Pallas kernel 1: full encoder (all `depth` transformer blocks), one call.
# grid = (B, depth); weights stacked on a leading depth axis and streamed.
# ----------------------------------------------------------------------------
def make_encoder_kernel(num_heads, depth):
    def kernel(x_ref, ln1w, ln1b, wqkv, bqkv, wproj, bproj,
               ln2w, ln2b, w1, b1, w2, b2, o_ref, acc_ref):
        l = pl.program_id(1)

        @pl.when(l == 0)
        def _():
            acc_ref[...] = x_ref[0].astype(jnp.float32)

        x = acc_ref[...]                                     # (N, C) f32
        n, c = x.shape
        h_ = num_heads
        d = c // h_
        scale = 1.0 / (float(d) ** 0.5)

        # --- multi-head self-attention (pre-LN), fused QKV projection ---
        xn = _layernorm(x, ln1w[0], ln1b[0]).astype(jnp.bfloat16)        # (N, C)
        qkv = jnp.dot(xn, wqkv[0],
                      preferred_element_type=jnp.float32) + bqkv[0]      # (N, 3C) f32
        q = (qkv[:, :c] * scale).astype(jnp.bfloat16)
        k = qkv[:, c:2 * c].astype(jnp.bfloat16)
        v = qkv[:, 2 * c:].astype(jnp.bfloat16)
        # heads as leading batch dim only for the short (d-deep) score/PV matmuls
        q = jnp.transpose(q.reshape(n, h_, d), (1, 0, 2))                # (H,N,d)
        k = jnp.transpose(k.reshape(n, h_, d), (1, 0, 2))
        v = jnp.transpose(v.reshape(n, h_, d), (1, 0, 2))

        att = jnp.einsum('hnd,hmd->hnm', q, k,
                         preferred_element_type=jnp.float32)             # (H,N,N)
        m = jnp.max(att, axis=-1, keepdims=True)
        p = jnp.exp(att - m)
        inv_z = pl.reciprocal(jnp.sum(p, axis=-1, keepdims=True), approx=True)
        p = (p * inv_z).astype(jnp.bfloat16)

        o = jnp.einsum('hnm,hmd->hnd', p, v,
                       preferred_element_type=jnp.float32)               # (H,N,d)
        # fuse the head reduction into a single (N,C)x(C,C) output projection
        o = jnp.transpose(o.astype(jnp.bfloat16), (1, 0, 2)).reshape(n, c)
        x = x + jnp.dot(o, wproj[0],
                        preferred_element_type=jnp.float32) + bproj[0]

        # --- MLP (pre-LN) ---
        xn2 = _layernorm(x, ln2w[0], ln2b[0]).astype(jnp.bfloat16)
        h1 = jnp.dot(xn2, w1[0], preferred_element_type=jnp.float32) + b1[0]
        h1 = jax.nn.gelu(h1).astype(jnp.bfloat16)            # tanh approx -> EUP
        x = x + jnp.dot(h1, w2[0], preferred_element_type=jnp.float32) + b2[0]

        acc_ref[...] = x

        @pl.when(l == depth - 1)
        def _():
            o_ref[0] = x.astype(o_ref.dtype)

    return kernel


_ENC_WEIGHT_KEYS = ("ln1w", "ln1b", "wqkv", "bqkv", "wproj", "bproj",
                    "ln2w", "ln2b", "w1", "b1", "w2", "b2")


def _layer_spec(shape):
    """Stacked per-layer weight: leading dim = depth, block = one layer slice."""
    rank = len(shape)
    block = (1,) + tuple(shape[1:])
    return pl.BlockSpec(block, lambda b, l, _r=rank: (l,) + (0,) * (_r - 1))


def encoder_forward(x, params, num_heads):
    """x: (B, N, C) joint [inherent_template | template | search] tokens."""
    B, N, C = x.shape
    weights = [params[k] for k in _ENC_WEIGHT_KEYS]
    depth = weights[0].shape[0]
    hidden = params["w1"].shape[-1]
    H = num_heads

    # explicit VMEM budget: one layer's weights (double-buffered for weight
    # streaming across the depth axis) + activations + real intermediates.
    layer_w_bytes = sum(int(a.size) * a.dtype.itemsize for a in weights) // depth
    act_bytes = N * C * 4
    inter_bytes = (N * 3 * C * 4 + 3 * N * C * 2          # qkv f32 + q/k/v bf16
                   + H * N * N * 6                        # att f32 + p bf16
                   + N * hidden * 6                       # mlp hidden f32 + bf16
                   + 6 * N * C * 4)                       # norm / proj / o temps
    est = 2 * layer_w_bytes + 4 * act_bytes + inter_bytes + (4 << 20)
    vmem_limit = int(min(max(est, 8 << 20), int(_vmem_capacity_bytes() * 0.75)))

    # TODO(synk): on v7x (2 TensorCores) with B == 1, add a second "parallel"
    # grid axis (e.g. split heads into two groups) so both cores are used.
    return pl.pallas_call(
        make_encoder_kernel(num_heads, depth),
        out_shape=jax.ShapeDtypeStruct((B, N, C), x.dtype),
        grid=(B, depth),
        in_specs=[pl.BlockSpec((1, N, C), lambda b, l: (b, 0, 0))]
                 + [_layer_spec(w.shape) for w in weights],
        out_specs=pl.BlockSpec((1, N, C), lambda b, l: (b, 0, 0)),
        scratch_shapes=[pltpu.VMEM((N, C), jnp.float32)],
        compiler_params=pltpu.CompilerParams(
            dimension_semantics=("parallel", "arbitrary"),
            vmem_limit_bytes=vmem_limit),
    )(x, *weights)


# ----------------------------------------------------------------------------
# Pallas kernel 2: CORNER head (channel towers + spatial soft-argmax).
# Reads (B, Ns, C) tokens directly (no wrapper-side transpose).
# ----------------------------------------------------------------------------
def make_corner_head_kernel(Hs, Ws):
    ns = Hs * Ws

    def kernel(x_ref, wtl1, btl1, wtl2, btl2, wtl3, btl3,
               wbr1, bbr1, wbr2, bbr2, wbr3, bbr3, box_ref):
        x = x_ref[0].astype(jnp.bfloat16)                    # (Ns, C)

        # normalized coordinate grids generated in-kernel (index / W convention)
        idx = lax.broadcasted_iota(jnp.float32, (ns, 1), 0)
        cy_row = jnp.floor(idx * (1.0 / float(Ws)))
        cx = (idx - cy_row * float(Ws)) * (1.0 / float(Ws))
        cy = cy_row * (1.0 / float(Hs))

        def tower(w1, b1, w2, b2, w3, b3):
            h = jnp.dot(x, w1[...], preferred_element_type=jnp.float32) + b1[...]
            h = jnp.maximum(h, 0.0).astype(jnp.bfloat16)     # (Ns, c2)
            h = jnp.dot(h, w2[...], preferred_element_type=jnp.float32) + b2[...]
            h = jnp.maximum(h, 0.0)                          # (Ns, c4) f32
            # width-1 projection as VPU multiply + lane reduce (no 1-wide matmul)
            return jnp.sum(h * w3[...], axis=-1, keepdims=True) + b3[...]  # (Ns,1)

        def soft_argmax(score):
            m = jnp.max(score, axis=0, keepdims=True)
            p = jnp.exp(score - m)
            z = jnp.sum(p, axis=0, keepdims=True)
            ex = jnp.sum(p * cx, axis=0, keepdims=True) / z   # exact divide
            ey = jnp.sum(p * cy, axis=0, keepdims=True) / z
            return ex, ey                                     # (1, 1) each

        x_tl, y_tl = soft_argmax(tower(wtl1, btl1, wtl2, btl2, wtl3, btl3))
        x_br, y_br = soft_argmax(tower(wbr1, bbr1, wbr2, bbr2, wbr3, bbr3))

        # lane-dense 128-wide output slab (unmasked store); sliced to 4 outside.
        lane = lax.broadcasted_iota(jnp.int32, (1, 128), 1)
        box = (jnp.where(lane == 0, x_tl, 0.0) + jnp.where(lane == 1, y_tl, 0.0)
               + jnp.where(lane == 2, x_br, 0.0) + jnp.where(lane == 3, y_br, 0.0))
        box_ref[0] = box

    return kernel


def corner_head(s_tok, p, Hs, Ws):
    """s_tok: (B, Ns, C) search tokens; returns (B, 1, 4) xyxy in [0, 1]."""
    B, Ns, C = s_tok.shape
    weights = [p[k] for k in ("wtl1", "btl1", "wtl2", "btl2", "wtl3", "btl3",
                              "wbr1", "bbr1", "wbr2", "bbr2", "wbr3", "bbr3")]

    def _full_spec(shape):
        rank = len(shape)
        return pl.BlockSpec(shape, lambda b, _r=rank: (0,) * _r)

    out = pl.pallas_call(
        make_corner_head_kernel(Hs, Ws),
        out_shape=jax.ShapeDtypeStruct((B, 1, 128), jnp.float32),
        grid=(B,),
        in_specs=[pl.BlockSpec((1, Ns, C), lambda b: (b, 0, 0))]
                 + [_full_spec(w.shape) for w in weights],
        out_specs=pl.BlockSpec((1, 1, 128), lambda b: (b, 0, 0)),
        compiler_params=pltpu.CompilerParams(dimension_semantics=("parallel",)),
    )(s_tok, *weights)
    return out[:, :, :4]


# ----------------------------------------------------------------------------
# ROMTrack (JAX/Pallas version)
# ----------------------------------------------------------------------------
class ROMTrackPallas:
    def __init__(self, params, head_type="CORNER", depth=2, num_heads=4):
        assert head_type == "CORNER"
        # TODO(synk): CENTER head type and forward_stage2's deepcopy/no_grad
        # variation-token pipeline are not implemented (external modules).
        self.params = params
        self.head_type = head_type
        self.depth = depth
        self.num_heads = num_heads

    def forward(self, template, inherent_template, search):
        # squeeze optional leading num_images dim, as in the PyTorch module
        if template.ndim == 5:
            template = template[0]
        if inherent_template.ndim == 5:
            inherent_template = inherent_template[0]
        if search.ndim == 5:
            search = search[0]

        _, _, Ht, Wt = template.shape
        _, _, Hs, Ws = search.shape
        Nt = Ht * Wt

        t = nchw_to_tokens(template)
        it = nchw_to_tokens(inherent_template)
        s = nchw_to_tokens(search)

        # concat ONCE: the reference's per-layer split/re-concat is the identity
        # permutation; the joint sequence stays VMEM-resident across all layers
        # inside the single fused encoder pallas_call.
        x = jnp.concatenate([it, t, s], axis=1)
        x = encoder_forward(x, self.params["blocks"], self.num_heads)
        s = x[:, 2 * Nt:]

        # NOTE: the PyTorch `forward` runs the box head and discards its return
        # value; we return it here so the result can be checked.
        return self.forward_box_head(s, Hs, Ws)

    def forward_box_head(self, s_tok, Hs, Ws):
        b = s_tok.shape[0]
        box_xyxy = corner_head(s_tok, self.params["head"], Hs, Ws)   # (b, 1, 4)
        outputs_coord = box_xyxy_to_cxcywh(box_xyxy)
        outputs_coord_new = outputs_coord.reshape(b, 1, 4)
        out = {"pred_boxes": outputs_coord_new}
        return out, outputs_coord_new


# ----------------------------------------------------------------------------
# deterministic parameter init (matmul weights stored bf16, rest f32).
# Per-layer encoder weights stacked on a leading `depth` axis for streaming.
# ----------------------------------------------------------------------------
def _init(key, shape, dtype=jnp.float32, scale=0.02):
    return (scale * jax.random.normal(key, shape, jnp.float32)).astype(dtype)


def init_params(key, C, depth, num_heads, mlp_ratio=4):
    hidden = C * mlp_ratio
    c2, c4 = C // 2, C // 4
    key, kq, kp, k1, k2 = jax.random.split(key, 5)
    blocks = dict(
        ln1w=jnp.ones((depth, 1, C), jnp.float32),
        ln1b=jnp.zeros((depth, 1, C), jnp.float32),
        # fused qkv projection: columns laid out [Q_all_heads | K_all | V_all]
        wqkv=_init(kq, (depth, C, 3 * C), jnp.bfloat16),
        bqkv=jnp.zeros((depth, 1, 3 * C), jnp.float32),
        wproj=_init(kp, (depth, C, C), jnp.bfloat16),
        bproj=jnp.zeros((depth, 1, C), jnp.float32),
        ln2w=jnp.ones((depth, 1, C), jnp.float32),
        ln2b=jnp.zeros((depth, 1, C), jnp.float32),
        w1=_init(k1, (depth, C, hidden), jnp.bfloat16),
        b1=jnp.zeros((depth, 1, hidden), jnp.float32),
        w2=_init(k2, (depth, hidden, C), jnp.bfloat16),
        b2=jnp.zeros((depth, 1, C), jnp.float32),
    )
    key, h0, h1, h2, h3, h4, h5 = jax.random.split(key, 7)
    head = dict(
        wtl1=_init(h0, (C, c2), jnp.bfloat16), btl1=jnp.zeros((1, c2), jnp.float32),
        wtl2=_init(h1, (c2, c4), jnp.bfloat16), btl2=jnp.zeros((1, c4), jnp.float32),
        wtl3=_init(h2, (1, c4), jnp.float32), btl3=jnp.zeros((1, 1), jnp.float32),
        wbr1=_init(h3, (C, c2), jnp.bfloat16), bbr1=jnp.zeros((1, c2), jnp.float32),
        wbr2=_init(h4, (c2, c4), jnp.bfloat16), bbr2=jnp.zeros((1, c4), jnp.float32),
        wbr3=_init(h5, (1, c4), jnp.float32), bbr3=jnp.zeros((1, 1), jnp.float32),
    )
    return dict(blocks=blocks, head=head)


# ----------------------------------------------------------------------------
if __name__ == "__main__":
    key = jax.random.PRNGKey(0)
    B, C = 2, 32
    Ht = Wt = 4          # template feature map 4x4  -> 16 tokens
    Hs = Ws = 8          # search   feature map 8x8  -> 64 tokens
    depth = 2            # small depth for the demo (module default is 12)
    num_heads = 4

    kp, kt, ki, ks = jax.random.split(key, 4)
    params = init_params(kp, C=C, depth=depth, num_heads=num_heads)

    # 5-D inputs (num_images, b, c, h, w) to exercise the squeeze path
    template = jax.random.normal(kt, (1, B, C, Ht, Wt), jnp.float32)
    inherent_template = jax.random.normal(ki, (1, B, C, Ht, Wt), jnp.float32)
    search = jax.random.normal(ks, (1, B, C, Hs, Ws), jnp.float32)

    model = ROMTrackPallas(params, head_type="CORNER", depth=depth, num_heads=num_heads)
    out, coords = model.forward(template, inherent_template, search)
    coords = jax.block_until_ready(coords)

    assert coords.shape == (B, 1, 4)
    assert out["pred_boxes"].shape == (B, 1, 4)
    assert bool(jnp.all(jnp.isfinite(coords)))
    print("KERNEL_OK")
</pallas_src>

<mosaic_0001>
module attributes {stable_mosaic.version = 11 : i64} {
  func.func @kernel(%arg0: i32, %arg1: i32, %arg2: memref<1x96x32xf32, #tpu.memory_space<vmem>>, %arg3: memref<1x1x32xf32, #tpu.memory_space<vmem>>, %arg4: memref<1x1x32xf32, #tpu.memory_space<vmem>>, %arg5: memref<1x32x96xbf16, #tpu.memory_space<vmem>>, %arg6: memref<1x1x96xf32, #tpu.memory_space<vmem>>, %arg7: memref<1x32x32xbf16, #tpu.memory_space<vmem>>, %arg8: memref<1x1x32xf32, #tpu.memory_space<vmem>>, %arg9: memref<1x1x32xf32, #tpu.memory_space<vmem>>, %arg10: memref<1x1x32xf32, #tpu.memory_space<vmem>>, %arg11: memref<1x32x128xbf16, #tpu.memory_space<vmem>>, %arg12: memref<1x1x128xf32, #tpu.memory_space<vmem>>, %arg13: memref<1x128x32xbf16, #tpu.memory_space<vmem>>, %arg14: memref<1x1x32xf32, #tpu.memory_space<vmem>>, %arg15: memref<1x96x32xf32, #tpu.memory_space<vmem>>, %arg16: memref<96x32xf32, #tpu.memory_space<vmem>>) attributes {dimension_semantics = [#tpu.dimension_semantics<parallel>, #tpu.dimension_semantics<arbitrary>], iteration_bounds = array<i64: 2, 2>, scalar_prefetch = 0 : i64, scratch_operands = 1 : i64, tpu.core_type = #tpu.core_type<tc>, window_params = [{transform_indices = @transform_0, window_bounds = array<i64: 1, 96, 32>}, {transform_indices = @transform_1, window_bounds = array<i64: 1, 1, 32>}, {transform_indices = @transform_2, window_bounds = array<i64: 1, 1, 32>}, {transform_indices = @transform_3, window_bounds = array<i64: 1, 32, 96>}, {transform_indices = @transform_4, window_bounds = array<i64: 1, 1, 96>}, {transform_indices = @transform_5, window_bounds = array<i64: 1, 32, 32>}, {transform_indices = @transform_6, window_bounds = array<i64: 1, 1, 32>}, {transform_indices = @transform_7, window_bounds = array<i64: 1, 1, 32>}, {transform_indices = @transform_8, window_bounds = array<i64: 1, 1, 32>}, {transform_indices = @transform_9, window_bounds = array<i64: 1, 32, 128>}, {transform_indices = @transform_10, window_bounds = array<i64: 1, 1, 128>}, {transform_indices = @transform_11, window_bounds = array<i64: 1, 128, 32>}, {transform_indices = @transform_12, window_bounds = array<i64: 1, 1, 32>}, {transform_indices = @transform_13, window_bounds = array<i64: 1, 96, 32>}]} {
    %c0_i32 = arith.constant 0 : i32
    %0 = arith.cmpi eq, %arg1, %c0_i32 : i32
    %1 = arith.extui %0 : i1 to i32
    %c0_i32_0 = arith.constant 0 : i32
    %2 = arith.cmpi ne, %1, %c0_i32_0 : i32
    scf.if %2 {
      %c0_63 = arith.constant 0 : index
      %c0_64 = arith.constant 0 : index
      %c0_65 = arith.constant 0 : index
      %132 = vector.load %arg2[%c0_63, %c0_64, %c0_65] : memref<1x96x32xf32, #tpu.memory_space<vmem>>, vector<1x96x32xf32>
      %133 = vector.shape_cast %132 : vector<1x96x32xf32> to vector<96x32xf32>
      %c0_66 = arith.constant 0 : index
      %c0_67 = arith.constant 0 : index
      %134 = vector.load %arg16[%c0_66, %c0_67] : memref<96x32xf32, #tpu.memory_space<vmem>>, vector<96x32xf32>
      tpu.vector_store %arg16[%c0_66, %c0_67], %133 {strides = array<i32>} : memref<96x32xf32, #tpu.memory_space<vmem>>, vector<96x32xf32>,
    } else {
    }
    %c0 = arith.constant 0 : index
    %c0_1 = arith.constant 0 : index
    %3 = vector.load %arg16[%c0, %c0_1] : memref<96x32xf32, #tpu.memory_space<vmem>>, vector<96x32xf32>
    %c0_2 = arith.constant 0 : index
    %c0_3 = arith.constant 0 : index
    %c0_4 = arith.constant 0 : index
    %4 = vector.load %arg3[%c0_2, %c0_3, %c0_4] : memref<1x1x32xf32, #tpu.memory_space<vmem>>, vector<1x1x32xf32>
    %5 = vector.shape_cast %4 : vector<1x1x32xf32> to vector<1x32xf32>
    %c0_5 = arith.constant 0 : index
    %c0_6 = arith.constant 0 : index
    %c0_7 = arith.constant 0 : index
    %6 = vector.load %arg4[%c0_5, %c0_6, %c0_7] : memref<1x1x32xf32, #tpu.memory_space<vmem>>, vector<1x1x32xf32>
    %7 = vector.shape_cast %6 : vector<1x1x32xf32> to vector<1x32xf32>
    %cst = arith.constant dense<0.000000e+00> : vector<96xf32>
    %8 = vector.multi_reduction <add>, %3, %cst [1] : vector<96x32xf32> to vector<96xf32>
    %9 = vector.shape_cast %8 : vector<96xf32> to vector<96x1xf32>
    %cst_8 = arith.constant 3.200000e+01 : f32
    %10 = vector.broadcast %cst_8 : f32 to vector<96x1xf32>
    %11 = arith.divf %9, %10 : vector<96x1xf32>
    %12 = vector.broadcast %11 : vector<96x1xf32> to vector<96x32xf32>
    %13 = arith.subf %3, %12 : vector<96x32xf32>
    %14 = arith.mulf %13, %13 : vector<96x32xf32>
    %cst_9 = arith.constant dense<0.000000e+00> : vector<96xf32>
    %15 = vector.multi_reduction <add>, %14, %cst_9 [1] : vector<96x32xf32> to vector<96xf32>
    %16 = vector.shape_cast %15 : vector<96xf32> to vector<96x1xf32>
    %cst_10 = arith.constant 3.200000e+01 : f32
    %17 = vector.broadcast %cst_10 : f32 to vector<96x1xf32>
    %18 = arith.divf %16, %17 : vector<96x1xf32>
    %cst_11 = arith.constant 9.99999997E-7 : f32
    %19 = vector.broadcast %cst_11 : f32 to vector<96x1xf32>
    %20 = arith.addf %18, %19 : vector<96x1xf32>
    %21 = math.rsqrt %20 : vector<96x1xf32>
    %22 = vector.broadcast %21 : vector<96x1xf32> to vector<96x32xf32>
    %23 = arith.mulf %13, %22 : vector<96x32xf32>
    %24 = vector.broadcast %5 : vector<1x32xf32> to vector<96x32xf32>
    %25 = arith.mulf %23, %24 : vector<96x32xf32>
    %26 = vector.broadcast %7 : vector<1x32xf32> to vector<96x32xf32>
    %27 = arith.addf %25, %26 : vector<96x32xf32>
    %28 = arith.truncf %27 : vector<96x32xf32> to vector<96x32xbf16>
    %c0_12 = arith.constant 0 : index
    %c0_13 = arith.constant 0 : index
    %c0_14 = arith.constant 0 : index
    %29 = vector.load %arg5[%c0_12, %c0_13, %c0_14] : memref<1x32x96xbf16, #tpu.memory_space<vmem>>, vector<1x32x96xbf16>
    %30 = vector.shape_cast %29 : vector<1x32x96xbf16> to vector<32x96xbf16>
    %cst_15 = arith.constant dense<0.000000e+00> : vector<96x96xf32>
    %31 = tpu.matmul %28, %30, %cst_15 {dimension_numbers = #tpu.dot_dimension_numbers<[1], [0], [0], [1], [0, 0, 1, 1], [], []>} : vector<96x32xbf16>, vector<32x96xbf16>, vector<96x96xf32> -> vector<96x96xf32>
    %c0_16 = arith.constant 0 : index
    %c0_17 = arith.constant 0 : index
    %c0_18 = arith.constant 0 : index
    %32 = vector.load %arg6[%c0_16, %c0_17, %c0_18] : memref<1x1x96xf32, #tpu.memory_space<vmem>>, vector<1x1x96xf32>
    %33 = vector.shape_cast %32 : vector<1x1x96xf32> to vector<1x96xf32>
    %34 = vector.broadcast %33 : vector<1x96xf32> to vector<96x96xf32>
    %35 = arith.addf %31, %34 : vector<96x96xf32>
    %36 = vector.extract_strided_slice %35 {offsets = [0, 0], sizes = [96, 32], strides = [1, 1]} : vector<96x96xf32> to vector<96x32xf32>
    %cst_19 = arith.constant 0.353553385 : f32
    %37 = vector.broadcast %cst_19 : f32 to vector<96x32xf32>
    %38 = arith.mulf %36, %37 : vector<96x32xf32>
    %39 = arith.truncf %38 : vector<96x32xf32> to vector<96x32xbf16>
    %40 = vector.extract_strided_slice %35 {offsets = [0, 32], sizes = [96, 32], strides = [1, 1]} : vector<96x96xf32> to vector<96x32xf32>
    %41 = arith.truncf %40 : vector<96x32xf32> to vector<96x32xbf16>
    %42 = vector.extract_strided_slice %35 {offsets = [0, 64], sizes = [96, 32], strides = [1, 1]} : vector<96x96xf32> to vector<96x32xf32>
    %43 = arith.truncf %42 : vector<96x32xf32> to vector<96x32xbf16>
    %44 = vector.shape_cast %39 : vector<96x32xbf16> to vector<96x4x8xbf16>
    %45 = tpu.transpose %44, [1, 0, 2] : vector<96x4x8xbf16> -> vector<4x96x8xbf16>
    %46 = vector.shape_cast %41 : vector<96x32xbf16> to vector<96x4x8xbf16>
    %47 = tpu.transpose %46, [1, 0, 2] : vector<96x4x8xbf16> -> vector<4x96x8xbf16>
    %48 = vector.shape_cast %43 : vector<96x32xbf16> to vector<96x4x8xbf16>
    %49 = tpu.transpose %48, [1, 0, 2] : vector<96x4x8xbf16> -> vector<4x96x8xbf16>
    "tpu.trace_start"() <{level = 10 : i32, message = "hnd,hmd->hnm"}> : () -> ()
    %cst_20 = arith.constant dense<0.000000e+00> : vector<4x96x96xf32>
    %50 = tpu.matmul %45, %47, %cst_20 {dimension_numbers = #tpu.dot_dimension_numbers<[2], [2], [1], [1], [0, 0, 0, 1, 1, 1], [0], [0]>} : vector<4x96x8xbf16>, vector<4x96x8xbf16>, vector<4x96x96xf32> -> vector<4x96x96xf32>
    "tpu.trace_stop"() : () -> ()
    %cst_21 = arith.constant dense<0xFF800000> : vector<4x96xf32>
    %51 = vector.multi_reduction <maximumf>, %50, %cst_21 [2] : vector<4x96x96xf32> to vector<4x96xf32>
    %52 = vector.shape_cast %51 : vector<4x96xf32> to vector<4x96x1xf32>
    %53 = vector.broadcast %52 : vector<4x96x1xf32> to vector<4x96x96xf32>
    %54 = arith.subf %50, %53 : vector<4x96x96xf32>
    %55 = math.exp %54 : vector<4x96x96xf32>
    %cst_22 = arith.constant dense<0.000000e+00> : vector<4x96xf32>
    %56 = vector.multi_reduction <add>, %55, %cst_22 [2] : vector<4x96x96xf32> to vector<4x96xf32>
    %57 = vector.shape_cast %56 : vector<4x96xf32> to vector<4x96x1xf32>
    %58 = tpu.reciprocal %57 {approx = true} : vector<4x96x1xf32> -> vector<4x96x1xf32>
    %59 = vector.broadcast %58 : vector<4x96x1xf32> to vector<4x96x96xf32>
    %60 = arith.mulf %55, %59 : vector<4x96x96xf32>
    %61 = arith.truncf %60 : vector<4x96x96xf32> to vector<4x96x96xbf16>
    "tpu.trace_start"() <{level = 10 : i32, message = "hnm,hmd->hnd"}> : () -> ()
    %cst_23 = arith.constant dense<0.000000e+00> : vector<4x96x8xf32>
    %62 = tpu.matmul %61, %49, %cst_23 {dimension_numbers = #tpu.dot_dimension_numbers<[2], [1], [1], [2], [0, 0, 0, 1, 1, 2], [0], [0]>} : vector<4x96x96xbf16>, vector<4x96x8xbf16>, vector<4x96x8xf32> -> vector<4x96x8xf32>
    "tpu.trace_stop"() : () -> ()
    %63 = arith.truncf %62 : vector<4x96x8xf32> to vector<4x96x8xbf16>
    %64 = tpu.transpose %63, [1, 0, 2] : vector<4x96x8xbf16> -> vector<96x4x8xbf16>
    %65 = vector.shape_cast %64 : vector<96x4x8xbf16> to vector<96x32xbf16>
    %c0_24 = arith.constant 0 : index
    %c0_25 = arith.constant 0 : index
    %c0_26 = arith.constant 0 : index
    %66 = vector.load %arg7[%c0_24, %c0_25, %c0_26] : memref<1x32x32xbf16, #tpu.memory_space<vmem>>, vector<1x32x32xbf16>
    %67 = vector.shape_cast %66 : vector<1x32x32xbf16> to vector<32x32xbf16>
    %cst_27 = arith.constant dense<0.000000e+00> : vector<96x32xf32>
    %68 = tpu.matmul %65, %67, %cst_27 {dimension_numbers = #tpu.dot_dimension_numbers<[1], [0], [0], [1], [0, 0, 1, 1], [], []>} : vector<96x32xbf16>, vector<32x32xbf16>, vector<96x32xf32> -> vector<96x32xf32>
    %69 = arith.addf %3, %68 : vector<96x32xf32>
    %c0_28 = arith.constant 0 : index
    %c0_29 = arith.constant 0 : index
    %c0_30 = arith.constant 0 : index
    %70 = vector.load %arg8[%c0_28, %c0_29, %c0_30] : memref<1x1x32xf32, #tpu.memory_space<vmem>>, vector<1x1x32xf32>
    %71 = vector.shape_cast %70 : vector<1x1x32xf32> to vector<1x32xf32>
    %72 = vector.broadcast %71 : vector<1x32xf32> to vector<96x32xf32>
    %73 = arith.addf %69, %72 : vector<96x32xf32>
    %c0_31 = arith.constant 0 : index
    %c0_32 = arith.constant 0 : index
    %c0_33 = arith.constant 0 : index
    %74 = vector.load %arg9[%c0_31, %c0_32, %c0_33] : memref<1x1x32xf32, #tpu.memory_space<vmem>>, vector<1x1x32xf32>
    %75 = vector.shape_cast %74 : vector<1x1x32xf32> to vector<1x32xf32>
    %c0_34 = arith.constant 0 : index
    %c0_35 = arith.constant 0 : index
    %c0_36 = arith.constant 0 : index
    %76 = vector.load %arg10[%c0_34, %c0_35, %c0_36] : memref<1x1x32xf32, #tpu.memory_space<vmem>>, vector<1x1x32xf32>
    %77 = vector.shape_cast %76 : vector<1x1x32xf32> to vector<1x32xf32>
    %cst_37 = arith.constant dense<0.000000e+00> : vector<96xf32>
    %78 = vector.multi_reduction <add>, %73, %cst_37 [1] : vector<96x32xf32> to vector<96xf32>
    %79 = vector.shape_cast %78 : vector<96xf32> to vector<96x1xf32>
    %cst_38 = arith.constant 3.200000e+01 : f32
    %80 = vector.broadcast %cst_38 : f32 to vector<96x1xf32>
    %81 = arith.divf %79, %80 : vector<96x1xf32>
    %82 = vector.broadcast %81 : vector<96x1xf32> to vector<96x32xf32>
    %83 = arith.subf %73, %82 : vector<96x32xf32>
    %84 = arith.mulf %83, %83 : vector<96x32xf32>
    %cst_39 = arith.constant dense<0.000000e+00> : vector<96xf32>
    %85 = vector.multi_reduction <add>, %84, %cst_39 [1] : vector<96x32xf32> to vector<96xf32>
    %86 = vector.shape_cast %85 : vector<96xf32> to vector<96x1xf32>
    %cst_40 = arith.constant 3.200000e+01 : f32
    %87 = vector.broadcast %cst_40 : f32 to vector<96x1xf32>
    %88 = arith.divf %86, %87 : vector<96x1xf32>
    %cst_41 = arith.constant 9.99999997E-7 : f32
    %89 = vector.broadcast %cst_41 : f32 to vector<96x1xf32>
    %90 = arith.addf %88, %89 : vector<96x1xf32>
    %91 = math.rsqrt %90 : vector<96x1xf32>
    %92 = vector.broadcast %91 : vector<96x1xf32> to vector<96x32xf32>
    %93 = arith.mulf %83, %92 : vector<96x32xf32>
    %94 = vector.broadcast %75 : vector<1x32xf32> to vector<96x32xf32>
    %95 = arith.mulf %93, %94 : vector<96x32xf32>
    %96 = vector.broadcast %77 : vector<1x32xf32> to vector<96x32xf32>
    %97 = arith.addf %95, %96 : vector<96x32xf32>
    %98 = arith.truncf %97 : vector<96x32xf32> to vector<96x32xbf16>
    %c0_42 = arith.constant 0 : index
    %c0_43 = arith.constant 0 : index
    %c0_44 = arith.constant 0 : index
    %99 = vector.load %arg11[%c0_42, %c0_43, %c0_44] : memref<1x32x128xbf16, #tpu.memory_space<vmem>>, vector<1x32x128xbf16>
    %100 = vector.shape_cast %99 : vector<1x32x128xbf16> to vector<32x128xbf16>
    %cst_45 = arith.constant dense<0.000000e+00> : vector<96x128xf32>
    %101 = tpu.matmul %98, %100, %cst_45 {dimension_numbers = #tpu.dot_dimension_numbers<[1], [0], [0], [1], [0, 0, 1, 1], [], []>} : vector<96x32xbf16>, vector<32x128xbf16>, vector<96x128xf32> -> vector<96x128xf32>
    %c0_46 = arith.constant 0 : index
    %c0_47 = arith.constant 0 : index
    %c0_48 = arith.constant 0 : index
    %102 = vector.load %arg12[%c0_46, %c0_47, %c0_48] : memref<1x1x128xf32, #tpu.memory_space<vmem>>, vector<1x1x128xf32>
    %103 = vector.shape_cast %102 : vector<1x1x128xf32> to vector<1x128xf32>
    %104 = vector.broadcast %103 : vector<1x128xf32> to vector<96x128xf32>
    %105 = arith.addf %101, %104 : vector<96x128xf32>
    %106 = arith.mulf %105, %105 : vector<96x128xf32>
    %107 = arith.mulf %105, %106 : vector<96x128xf32>
    %cst_49 = arith.constant 4.471500e-02 : f32
    %108 = vector.broadcast %cst_49 : f32 to vector<96x128xf32>
    %109 = arith.mulf %108, %107 : vector<96x128xf32>
    %110 = arith.addf %105, %109 : vector<96x128xf32>
    %cst_50 = arith.constant 0.797884583 : f32
    %111 = vector.broadcast %cst_50 : f32 to vector<96x128xf32>
    %112 = arith.mulf %111, %110 : vector<96x128xf32>
    %113 = math.tanh %112 : vector<96x128xf32>
    %cst_51 = arith.constant 1.000000e+00 : f32
    %114 = vector.broadcast %cst_51 : f32 to vector<96x128xf32>
    %115 = arith.addf %114, %113 : vector<96x128xf32>
    %cst_52 = arith.constant 5.000000e-01 : f32
    %116 = vector.broadcast %cst_52 : f32 to vector<96x128xf32>
    %117 = arith.mulf %116, %115 : vector<96x128xf32>
    %118 = arith.mulf %105, %117 : vector<96x128xf32>
    %119 = arith.truncf %118 : vector<96x128xf32> to vector<96x128xbf16>
    %c0_53 = arith.constant 0 : index
    %c0_54 = arith.constant 0 : index
    %c0_55 = arith.constant 0 : index
    %120 = vector.load %arg13[%c0_53, %c0_54, %c0_55] : memref<1x128x32xbf16, #tpu.memory_space<vmem>>, vector<1x128x32xbf16>
    %121 = vector.shape_cast %120 : vector<1x128x32xbf16> to vector<128x32xbf16>
    %cst_56 = arith.constant dense<0.000000e+00> : vector<96x32xf32>
    %122 = tpu.matmul %119, %121, %cst_56 {dimension_numbers = #tpu.dot_dimension_numbers<[1], [0], [0], [1], [0, 0, 1, 1], [], []>} : vector<96x128xbf16>, vector<128x32xbf16>, vector<96x32xf32> -> vector<96x32xf32>
    %123 = arith.addf %73, %122 : vector<96x32xf32>
    %c0_57 = arith.constant 0 : index
    %c0_58 = arith.constant 0 : index
    %c0_59 = arith.constant 0 : index
    %124 = vector.load %arg14[%c0_57, %c0_58, %c0_59] : memref<1x1x32xf32, #tpu.memory_space<vmem>>, vector<1x1x32xf32>
    %125 = vector.shape_cast %124 : vector<1x1x32xf32> to vector<1x32xf32>
    %126 = vector.broadcast %125 : vector<1x32xf32> to vector<96x32xf32>
    %127 = arith.addf %123, %126 : vector<96x32xf32>
    %c0_60 = arith.constant 0 : index
    %c0_61 = arith.constant 0 : index
    %128 = vector.load %arg16[%c0_60, %c0_61] : memref<96x32xf32, #tpu.memory_space<vmem>>, vector<96x32xf32>
    tpu.vector_store %arg16[%c0_60, %c0_61], %127 {strides = array<i32>} : memref<96x32xf32, #tpu.memory_space<vmem>>, vector<96x32xf32>,
    %c1_i32 = arith.constant 1 : i32
    %129 = arith.cmpi eq, %arg1, %c1_i32 : i32
    %130 = arith.extui %129 : i1 to i32
    %c0_i32_62 = arith.constant 0 : i32
    %131 = arith.cmpi ne, %130, %c0_i32_62 : i32
    scf.if %131 {
      %c0_63 = arith.constant 0 : index
      %c0_64 = arith.constant 0 : index
      %c0_65 = arith.constant 0 : index
      %132 = vector.load %arg15[%c0_63, %c0_64, %c0_65] : memref<1x96x32xf32, #tpu.memory_space<vmem>>, vector<1x96x32xf32>
      %133 = vector.shape_cast %132 : vector<1x96x32xf32> to vector<96x32xf32>
      %134 = vector.shape_cast %127 : vector<96x32xf32> to vector<1x96x32xf32>
      tpu.vector_store %arg15[%c0_63, %c0_64, %c0_65], %134 {strides = array<i32>} : memref<1x96x32xf32, #tpu.memory_space<vmem>>, vector<1x96x32xf32>,
    } else {
    }
    return
  }
  func.func @transform_0(%arg0: i32, %arg1: i32) -> (i32, i32, i32) {
    %c0_i32 = arith.constant 0 : i32
    %c0_i32_0 = arith.constant 0 : i32
    %c0_i32_1 = arith.constant 0 : i32
    return %arg0, %c0_i32, %c0_i32_0 : i32, i32, i32
  }
  func.func @transform_1(%arg0: i32, %arg1: i32) -> (i32, i32, i32) {
    %c0_i32 = arith.constant 0 : i32
    %c0_i32_0 = arith.constant 0 : i32
    %c0_i32_1 = arith.constant 0 : i32
    return %arg1, %c0_i32, %c0_i32_0 : i32, i32, i32
  }
  func.func @transform_2(%arg0: i32, %arg1: i32) -> (i32, i32, i32) {
    %c0_i32 = arith.constant 0 : i32
    %c0_i32_0 = arith.constant 0 : i32
    %c0_i32_1 = arith.constant 0 : i32
    return %arg1, %c0_i32, %c0_i32_0 : i32, i32, i32
  }
  func.func @transform_3(%arg0: i32, %arg1: i32) -> (i32, i32, i32) {
    %c0_i32 = arith.constant 0 : i32
    %c0_i32_0 = arith.constant 0 : i32
    %c0_i32_1 = arith.constant 0 : i32
    return %arg1, %c0_i32, %c0_i32_0 : i32, i32, i32
  }
  func.func @transform_4(%arg0: i32, %arg1: i32) -> (i32, i32, i32) {
    %c0_i32 = arith.constant 0 : i32
    %c0_i32_0 = arith.constant 0 : i32
    %c0_i32_1 = arith.constant 0 : i32
    return %arg1, %c0_i32, %c0_i32_0 : i32, i32, i32
  }
  func.func @transform_5(%arg0: i32, %arg1: i32) -> (i32, i32, i32) {
    %c0_i32 = arith.constant 0 : i32
    %c0_i32_0 = arith.constant 0 : i32
    %c0_i32_1 = arith.constant 0 : i32
    return %arg1, %c0_i32, %c0_i32_0 : i32, i32, i32
  }
  func.func @transform_6(%arg0: i32, %arg1: i32) -> (i32, i32, i32) {
    %c0_i32 = arith.constant 0 : i32
    %c0_i32_0 = arith.constant 0 : i32
    %c0_i32_1 = arith.constant 0 : i32
    return %arg1, %c0_i32, %c0_i32_0 : i32, i32, i32
  }
  func.func @transform_7(%arg0: i32, %arg1: i32) -> (i32, i32, i32) {
    %c0_i32 = arith.constant 0 : i32
    %c0_i32_0 = arith.constant 0 : i32
    %c0_i32_1 = arith.constant 0 : i32
    return %arg1, %c0_i32, %c0_i32_0 : i32, i32, i32
  }
  func.func @transform_8(%arg0: i32, %arg1: i32) -> (i32, i32, i32) {
    %c0_i32 = arith.constant 0 : i32
    %c0_i32_0 = arith.constant 0 : i32
    %c0_i32_1 = arith.constant 0 : i32
    return %arg1, %c0_i32, %c0_i32_0 : i32, i32, i32
  }
  func.func @transform_9(%arg0: i32, %arg1: i32) -> (i32, i32, i32) {
    %c0_i32 = arith.constant 0 : i32
    %c0_i32_0 = arith.constant 0 : i32
    %c0_i32_1 = arith.constant 0 : i32
    return %arg1, %c0_i32, %c0_i32_0 : i32, i32, i32
  }
  func.func @transform_10(%arg0: i32, %arg1: i32) -> (i32, i32, i32) {
    %c0_i32 = arith.constant 0 : i32
    %c0_i32_0 = arith.constant 0 : i32
    %c0_i32_1 = arith.constant 0 : i32
    return %arg1, %c0_i32, %c0_i32_0 : i32, i32, i32
  }
  func.func @transform_11(%arg0: i32, %arg1: i32) -> (i32, i32, i32) {
    %c0_i32 = arith.constant 0 : i32
    %c0_i32_0 = arith.constant 0 : i32
    %c0_i32_1 = arith.constant 0 : i32
    return %arg1, %c0_i32, %c0_i32_0 : i32, i32, i32
  }
  func.func @transform_12(%arg0: i32, %arg1: i32) -> (i32, i32, i32) {
    %c0_i32 = arith.constant 0 : i32
    %c0_i32_0 = arith.constant 0 : i32
    %c0_i32_1 = arith.constant 0 : i32
    return %arg1, %c0_i32, %c0_i32_0 : i32, i32, i32
  }
  func.func @transform_13(%arg0: i32, %arg1: i32) -> (i32, i32, i32) {
    %c0_i32 = arith.constant 0 : i32
    %c0_i32_0 = arith.constant 0 : i32
    %c0_i32_1 = arith.constant 0 : i32
    return %arg0, %c0_i32, %c0_i32_0 : i32, i32, i32
  }
}

</mosaic_0001>

<llo_original>
// kernel: tpu_custom_call.1
$region0: #{tpu_custom_call.1}
  #allocation0 [shape = 'u32[]', space=smem, size = 0x4, offset = 0x4, fixed_abs, tag = 'smem constant byte address 0x4 - core index']
  #allocation1 [shape = 'u32[144,128]{1,0:T(1,128)}', space=vmem, size = 0x12000, scoped, tag = 'internal scratch']
  #allocation2 [shape = 'f32[96,32]{1,0:T(8,128)}', space=vmem, size = 0xc000, scoped, tag = 'scratch operand']
  %s0 = inlined_call_operand.vmem [shape: f32[2,96,32], index: 0, kind: input, shape index: {}]
  %s1 = inlined_call_operand.vmem [shape: f32[2,1,32], index: 1, kind: input, shape index: {}]
  %s2 = inlined_call_operand.vmem [shape: f32[2,1,32], index: 2, kind: input, shape index: {}]
  %s3 = inlined_call_operand.vmem [shape: bf16[2,32,96], index: 3, kind: input, shape index: {}]
  %s4 = inlined_call_operand.vmem [shape: f32[2,1,96], index: 4, kind: input, shape index: {}]
  %s5 = inlined_call_operand.vmem [shape: bf16[2,32,32], index: 5, kind: input, shape index: {}]
  %s6 = inlined_call_operand.vmem [shape: f32[2,1,32], index: 6, kind: input, shape index: {}]
  %s7 = inlined_call_operand.vmem [shape: f32[2,1,32], index: 7, kind: input, shape index: {}]
  %s8 = inlined_call_operand.vmem [shape: f32[2,1,32], index: 8, kind: input, shape index: {}]
  %s9 = inlined_call_operand.vmem [shape: bf16[2,32,128], index: 9, kind: input, shape index: {}]
  %s10 = inlined_call_operand.vmem [shape: f32[2,1,128], index: 10, kind: input, shape index: {}]
  %s11 = inlined_call_operand.vmem [shape: bf16[2,128,32], index: 11, kind: input, shape index: {}]
  %s12 = inlined_call_operand.vmem [shape: f32[2,1,32], index: 12, kind: input, shape index: {}]
  %s13 = inlined_call_operand.vmem [shape: f32[2,96,32], index: 13, kind: output, shape index: {}]
  %s14 = sld [smem:[#allocation0]]
  $region93: #{tpu_custom_call.1} parent=0
    _
  %s16 = ssub.s32 1, %s14
  %s17 = scalar_select 0, %s16, %s14
  loop: start=0, step=1, limit=6
  $region2: #{tpu_custom_call.1} parent=0 // loop_pre_header
    _
  $region3: #{tpu_custom_call.1} parent=0 // loop_header
    %s19 = sphi 0, %s23
    %p20 = scmp.ge.s32.totalorder %s19, 6
    %s26 = sphi 0, %s38
    %s27 = sphi 0, %s34
    %s28 = sphi 0, %s26
    %s29 = sphi 0, %s27
    %s30 = sphi 0, %s28
    %s31 = sphi 0, %s29
    %s41 = sphi 0, %s43
    %s44 = sphi 0, %s41
    %s45 = sphi 0, %s44
    %s61 = sphi 0, %s45
    %s67 = sphi 0, %s69
    %s70 = sphi 0, %s67
    %s71 = sphi 0, %s70
    %s87 = sphi 0, %s71
    %s93 = sphi 0, %s95
    %s96 = sphi 0, %s93
    %s97 = sphi 0, %s96
    %s113 = sphi 0, %s97
    %s119 = sphi 0, %s121
    %s122 = sphi 0, %s119
    %s123 = sphi 0, %s122
    %s139 = sphi 0, %s123
    %s145 = sphi 0, %s147
    %s148 = sphi 0, %s145
    %s149 = sphi 0, %s148
    %s165 = sphi 0, %s149
    %s171 = sphi 0, %s173
    %s174 = sphi 0, %s171
    %s175 = sphi 0, %s174
    %s191 = sphi 0, %s175
    %s197 = sphi 0, %s199
    %s200 = sphi 0, %s197
    %s201 = sphi 0, %s200
    %s217 = sphi 0, %s201
    %s223 = sphi 0, %s225
    %s226 = sphi 0, %s223
    %s227 = sphi 0, %s226
    %s243 = sphi 0, %s227
    %s249 = sphi 0, %s251
    %s252 = sphi 0, %s249
    %s253 = sphi 0, %s252
    %s269 = sphi 0, %s253
    %s275 = sphi 0, %s277
    %s278 = sphi 0, %s275
    %s279 = sphi 0, %s278
    %s295 = sphi 0, %s279
    %s301 = sphi 0, %s303
    %s304 = sphi 0, %s301
    %s305 = sphi 0, %s304
    %s321 = sphi 0, %s305
    %s327 = sphi 0, %s329
    %s330 = sphi 0, %s327
    %s331 = sphi 0, %s330
    %s347 = sphi 0, %s331
    %s353 = sphi 0, %s355
    %s356 = sphi 0, %s353
    %s357 = sphi 0, %s356
    %s373 = sphi 0, %s357
    %s379 = sphi 0, %s381
    %s382 = sphi 0, %s379
    %s383 = sphi 0, %s382
    %s399 = sphi 0, %s383
  $region4: #{tpu_custom_call.1} parent=0 // loop_header_branch
    %22 = sbr.rel (%p20) target = $region8
  $region5: #{tpu_custom_call.1} parent=0 // loop_body
    %s24 = ssub.s32 %s19, 1
    %s25 = ssub.s32 %s19, 2
    %s32 = sadd.s32 1, %s27
    %p33 = scmp.ge.s32.totalorder %s32, 2
    %s34 = scalar_select %p33, 0, %s32
    %s35 = sadd.s32 1, %s26
    %s36 = scalar_select %p33, %s35, %s26
    %p37 = scmp.ge.s32.totalorder %s36, 2
    %s38 = scalar_select %p37, 0, %s36
    %s39 = ssub.s32 %s26, %s38
    %p40 = scmp.eq.s32.totalorder %s39, 0
    %s42 = sadd.s32 %s41, 1
    %s43 = scalar_select %p40, %s41, %s42
    %p46 = pneg %p40
    %p47 = scmp.eq.s32.totalorder %s19, 3
    %p48 = por %p46, %p47
    %p49 = scmp.ne.s32.totalorder %s41, %s44
    %p50 = scmp.eq.s32.totalorder %s19, 0
    %p51 = por %p49, %p50
    %p52 = scmp.ne.s32.totalorder %s41, %s44
    %p53 = scmp.eq.s32.totalorder %s24, 3
    %p54 = por %p52, %p53
    %p55 = scmp.ne.s32.totalorder %s44, %s45
    %p56 = scmp.eq.s32.totalorder %s24, 0
    %p57 = por %p55, %p56
    %p58 = scmp.ne.s32.totalorder %s44, %s45
    %p59 = scmp.eq.s32.totalorder %s25, 3
    %p60 = por %p58, %p59
    %p62 = scmp.ne.s32.totalorder %s45, %s61
    %p63 = scmp.eq.s32.totalorder %s25, 0
    %p64 = por %p62, %p63
    %s65 = ssub.s32 %s27, %s34
    %p66 = scmp.eq.s32.totalorder %s65, 0
    %s68 = sadd.s32 %s67, 1
    %s69 = scalar_select %p66, %s67, %s68
    %p72 = pneg %p66
    %p73 = scmp.eq.s32.totalorder %s19, 3
    %p74 = por %p72, %p73
    %p75 = scmp.ne.s32.totalorder %s67, %s70
    %p76 = scmp.eq.s32.totalorder %s19, 0
    %p77 = por %p75, %p76
    %p78 = scmp.ne.s32.totalorder %s67, %s70
    %p79 = scmp.eq.s32.totalorder %s24, 3
    %p80 = por %p78, %p79
    %p81 = scmp.ne.s32.totalorder %s70, %s71
    %p82 = scmp.eq.s32.totalorder %s24, 0
    %p83 = por %p81, %p82
    %p84 = scmp.ne.s32.totalorder %s70, %s71
    %p85 = scmp.eq.s32.totalorder %s25, 3
    %p86 = por %p84, %p85
    %p88 = scmp.ne.s32.totalorder %s71, %s87
    %p89 = scmp.eq.s32.totalorder %s25, 0
    %p90 = por %p88, %p89
    %s91 = ssub.s32 %s27, %s34
    %p92 = scmp.eq.s32.totalorder %s91, 0
    %s94 = sadd.s32 %s93, 1
    %s95 = scalar_select %p92, %s93, %s94
    %p98 = pneg %p92
    %p99 = scmp.eq.s32.totalorder %s19, 3
    %p100 = por %p98, %p99
    %p101 = scmp.ne.s32.totalorder %s93, %s96
    %p102 = scmp.eq.s32.totalorder %s19, 0
    %p103 = por %p101, %p102
    %p104 = scmp.ne.s32.totalorder %s93, %s96
    %p105 = scmp.eq.s32.totalorder %s24, 3
    %p106 = por %p104, %p105
    %p107 = scmp.ne.s32.totalorder %s96, %s97
    %p108 = scmp.eq.s32.totalorder %s24, 0
    %p109 = por %p107, %p108
    %p110 = scmp.ne.s32.totalorder %s96, %s97
    %p111 = scmp.eq.s32.totalorder %s25, 3
    %p112 = por %p110, %p111
    %p114 = scmp.ne.s32.totalorder %s97, %s113
    %p115 = scmp.eq.s32.totalorder %s25, 0
    %p116 = por %p114, %p115
    %s117 = ssub.s32 %s27, %s34
    %p118 = scmp.eq.s32.totalorder %s117, 0
    %s120 = sadd.s32 %s119, 1
    %s121 = scalar_select %p118, %s119, %s120
    %p124 = pneg %p118
    %p125 = scmp.eq.s32.totalorder %s19, 3
    %p126 = por %p124, %p125
    %p127 = scmp.ne.s32.totalorder %s119, %s122
    %p128 = scmp.eq.s32.totalorder %s19, 0
    %p129 = por %p127, %p128
    %p130 = scmp.ne.s32.totalorder %s119, %s122
    %p131 = scmp.eq.s32.totalorder %s24, 3
    %p132 = por %p130, %p131
    %p133 = scmp.ne.s32.totalorder %s122, %s123
    %p134 = scmp.eq.s32.totalorder %s24, 0
    %p135 = por %p133, %p134
    %p136 = scmp.ne.s32.totalorder %s122, %s123
    %p137 = scmp.eq.s32.totalorder %s25, 3
    %p138 = por %p136, %p137
    %p140 = scmp.ne.s32.totalorder %s123, %s139
    %p141 = scmp.eq.s32.totalorder %s25, 0
    %p142 = por %p140, %p141
    %s143 = ssub.s32 %s27, %s34
    %p144 = scmp.eq.s32.totalorder %s143, 0
    %s146 = sadd.s32 %s145, 1
    %s147 = scalar_select %p144, %s145, %s146
    %p150 = pneg %p144
    %p151 = scmp.eq.s32.totalorder %s19, 3
    %p152 = por %p150, %p151
    %p153 = scmp.ne.s32.totalorder %s145, %s148
    %p154 = scmp.eq.s32.totalorder %s19, 0
    %p155 = por %p153, %p154
    %p156 = scmp.ne.s32.totalorder %s145, %s148
    %p157 = scmp.eq.s32.totalorder %s24, 3
    %p158 = por %p156, %p157
    %p159 = scmp.ne.s32.totalorder %s148, %s149
    %p160 = scmp.eq.s32.totalorder %s24, 0
    %p161 = por %p159, %p160
    %p162 = scmp.ne.s32.totalorder %s148, %s149
    %p163 = scmp.eq.s32.totalorder %s25, 3
    %p164 = por %p162, %p163
    %p166 = scmp.ne.s32.totalorder %s149, %s165
    %p167 = scmp.eq.s32.totalorder %s25, 0
    %p168 = por %p166, %p167
    %s169 = ssub.s32 %s27, %s34
    %p170 = scmp.eq.s32.totalorder %s169, 0
    %s172 = sadd.s32 %s171, 1
    %s173 = scalar_select %p170, %s171, %s172
    %p176 = pneg %p170
    %p177 = scmp.eq.s32.totalorder %s19, 3
    %p178 = por %p176, %p177
    %p179 = scmp.ne.s32.totalorder %s171, %s174
    %p180 = scmp.eq.s32.totalorder %s19, 0
    %p181 = por %p179, %p180
    %p182 = scmp.ne.s32.totalorder %s171, %s174
    %p183 = scmp.eq.s32.totalorder %s24, 3
    %p184 = por %p182, %p183
    %p185 = scmp.ne.s32.totalorder %s174, %s175
    %p186 = scmp.eq.s32.totalorder %s24, 0
    %p187 = por %p185, %p186
    %p188 = scmp.ne.s32.totalorder %s174, %s175
    %p189 = scmp.eq.s32.totalorder %s25, 3
    %p190 = por %p188, %p189
    %p192 = scmp.ne.s32.totalorder %s175, %s191
    %p193 = scmp.eq.s32.totalorder %s25, 0
    %p194 = por %p192, %p193
    %s195 = ssub.s32 %s27, %s34
    %p196 = scmp.eq.s32.totalorder %s195, 0
    %s198 = sadd.s32 %s197, 1
    %s199 = scalar_select %p196, %s197, %s198
    %p202 = pneg %p196
    %p203 = scmp.eq.s32.totalorder %s19, 3
    %p204 = por %p202, %p203
    %p205 = scmp.ne.s32.totalorder %s197, %s200
    %p206 = scmp.eq.s32.totalorder %s19, 0
    %p207 = por %p205, %p206
    %p208 = scmp.ne.s32.totalorder %s197, %s200
    %p209 = scmp.eq.s32.totalorder %s24, 3
    %p210 = por %p208, %p209
    %p211 = scmp.ne.s32.totalorder %s200, %s201
    %p212 = scmp.eq.s32.totalorder %s24, 0
    %p213 = por %p211, %p212
    %p214 = scmp.ne.s32.totalorder %s200, %s201
    %p215 = scmp.eq.s32.totalorder %s25, 3
    %p216 = por %p214, %p215
    %p218 = scmp.ne.s32.totalorder %s201, %s217
    %p219 = scmp.eq.s32.totalorder %s25, 0
    %p220 = por %p218, %p219
    %s221 = ssub.s32 %s27, %s34
    %p222 = scmp.eq.s32.totalorder %s221, 0
    %s224 = sadd.s32 %s223, 1
    %s225 = scalar_select %p222, %s223, %s224
    %p228 = pneg %p222
    %p229 = scmp.eq.s32.totalorder %s19, 3
    %p230 = por %p228, %p229
    %p231 = scmp.ne.s32.totalorder %s223, %s226
    %p232 = scmp.eq.s32.totalorder %s19, 0
    %p233 = por %p231, %p232
    %p234 = scmp.ne.s32.totalorder %s223, %s226
    %p235 = scmp.eq.s32.totalorder %s24, 3
    %p236 = por %p234, %p235
    %p237 = scmp.ne.s32.totalorder %s226, %s227
    %p238 = scmp.eq.s32.totalorder %s24, 0
    %p239 = por %p237, %p238
    %p240 = scmp.ne.s32.totalorder %s226, %s227
    %p241 = scmp.eq.s32.totalorder %s25, 3
    %p242 = por %p240, %p241
    %p244 = scmp.ne.s32.totalorder %s227, %s243
    %p245 = scmp.eq.s32.totalorder %s25, 0
    %p246 = por %p244, %p245
    %s247 = ssub.s32 %s27, %s34
    %p248 = scmp.eq.s32.totalorder %s247, 0
    %s250 = sadd.s32 %s249, 1
    %s251 = scalar_select %p248, %s249, %s250
    %p254 = pneg %p248
    %p255 = scmp.eq.s32.totalorder %s19, 3
    %p256 = por %p254, %p255
    %p257 = scmp.ne.s32.totalorder %s249, %s252
    %p258 = scmp.eq.s32.totalorder %s19, 0
    %p259 = por %p257, %p258
    %p260 = scmp.ne.s32.totalorder %s249, %s252
    %p261 = scmp.eq.s32.totalorder %s24, 3
    %p262 = por %p260, %p261
    %p263 = scmp.ne.s32.totalorder %s252, %s253
    %p264 = scmp.eq.s32.totalorder %s24, 0
    %p265 = por %p263, %p264
    %p266 = scmp.ne.s32.totalorder %s252, %s253
    %p267 = scmp.eq.s32.totalorder %s25, 3
    %p268 = por %p266, %p267
    %p270 = scmp.ne.s32.totalorder %s253, %s269
    %p271 = scmp.eq.s32.totalorder %s25, 0
    %p272 = por %p270, %p271
    %s273 = ssub.s32 %s27, %s34
    %p274 = scmp.eq.s32.totalorder %s273, 0
    %s276 = sadd.s32 %s275, 1
    %s277 = scalar_select %p274, %s275, %s276
    %p280 = pneg %p274
    %p281 = scmp.eq.s32.totalorder %s19, 3
    %p282 = por %p280, %p281
    %p283 = scmp.ne.s32.totalorder %s275, %s278
    %p284 = scmp.eq.s32.totalorder %s19, 0
    %p285 = por %p283, %p284
    %p286 = scmp.ne.s32.totalorder %s275, %s278
    %p287 = scmp.eq.s32.totalorder %s24, 3
    %p288 = por %p286, %p287
    %p289 = scmp.ne.s32.totalorder %s278, %s279
    %p290 = scmp.eq.s32.totalorder %s24, 0
    %p291 = por %p289, %p290
    %p292 = scmp.ne.s32.totalorder %s278, %s279
    %p293 = scmp.eq.s32.totalorder %s25, 3
    %p294 = por %p292, %p293
    %p296 = scmp.ne.s32.totalorder %s279, %s295
    %p297 = scmp.eq.s32.totalorder %s25, 0
    %p298 = por %p296, %p297
    %s299 = ssub.s32 %s27, %s34
    %p300 = scmp.eq.s32.totalorder %s299, 0
    %s302 = sadd.s32 %s301, 1
    %s303 = scalar_select %p300, %s301, %s302
    %p306 = pneg %p300
    %p307 = scmp.eq.s32.totalorder %s19, 3
    %p308 = por %p306, %p307
    %p309 = scmp.ne.s32.totalorder %s301, %s304
    %p310 = scmp.eq.s32.totalorder %s19, 0
    %p311 = por %p309, %p310
    %p312 = scmp.ne.s32.totalorder %s301, %s304
    %p313 = scmp.eq.s32.totalorder %s24, 3
    %p314 = por %p312, %p313
    %p315 = scmp.ne.s32.totalorder %s304, %s305
    %p316 = scmp.eq.s32.totalorder %s24, 0
    %p317 = por %p315, %p316
    %p318 = scmp.ne.s32.totalorder %s304, %s305
    %p319 = scmp.eq.s32.totalorder %s25, 3
    %p320 = por %p318, %p319
    %p322 = scmp.ne.s32.totalorder %s305, %s321
    %p323 = scmp.eq.s32.totalorder %s25, 0
    %p324 = por %p322, %p323
    %s325 = ssub.s32 %s27, %s34
    %p326 = scmp.eq.s32.totalorder %s325, 0
    %s328 = sadd.s32 %s327, 1
    %s329 = scalar_select %p326, %s327, %s328
    %p332 = pneg %p326
    %p333 = scmp.eq.s32.totalorder %s19, 3
    %p334 = por %p332, %p333
    %p335 = scmp.ne.s32.totalorder %s327, %s330
    %p336 = scmp.eq.s32.totalorder %s19, 0
    %p337 = por %p335, %p336
    %p338 = scmp.ne.s32.totalorder %s327, %s330
    %p339 = scmp.eq.s32.totalorder %s24, 3
    %p340 = por %p338, %p339
    %p341 = scmp.ne.s32.totalorder %s330, %s331
    %p342 = scmp.eq.s32.totalorder %s24, 0
    %p343 = por %p341, %p342
    %p344 = scmp.ne.s32.totalorder %s330, %s331
    %p345 = scmp.eq.s32.totalorder %s25, 3
    %p346 = por %p344, %p345
    %p348 = scmp.ne.s32.totalorder %s331, %s347
    %p349 = scmp.eq.s32.totalorder %s25, 0
    %p350 = por %p348, %p349
    %s351 = ssub.s32 %s27, %s34
    %p352 = scmp.eq.s32.totalorder %s351, 0
    %s354 = sadd.s32 %s353, 1
    %s355 = scalar_select %p352, %s353, %s354
    %p358 = pneg %p352
    %p359 = scmp.eq.s32.totalorder %s19, 3
    %p360 = por %p358, %p359
    %p361 = scmp.ne.s32.totalorder %s353, %s356
    %p362 = scmp.eq.s32.totalorder %s19, 0
    %p363 = por %p361, %p362
    %p364 = scmp.ne.s32.totalorder %s353, %s356
    %p365 = scmp.eq.s32.totalorder %s24, 3
    %p366 = por %p364, %p365
    %p367 = scmp.ne.s32.totalorder %s356, %s357
    %p368 = scmp.eq.s32.totalorder %s24, 0
    %p369 = por %p367, %p368
    %p370 = scmp.ne.s32.totalorder %s356, %s357
    %p371 = scmp.eq.s32.totalorder %s25, 3
    %p372 = por %p370, %p371
    %p374 = scmp.ne.s32.totalorder %s357, %s373
    %p375 = scmp.eq.s32.totalorder %s25, 0
    %p376 = por %p374, %p375
    %s377 = ssub.s32 %s26, %s38
    %p378 = scmp.eq.s32.totalorder %s377, 0
    %s380 = sadd.s32 %s379, 1
    %s381 = scalar_select %p378, %s379, %s380
    %p384 = pneg %p378
    %p385 = scmp.eq.s32.totalorder %s19, 3
    %p386 = por %p384, %p385
    %p387 = scmp.ne.s32.totalorder %s379, %s382
    %p388 = scmp.eq.s32.totalorder %s19, 0
    %p389 = por %p387, %p388
    %p390 = scmp.ne.s32.totalorder %s379, %s382
    %p391 = scmp.eq.s32.totalorder %s24, 3
    %p392 = por %p390, %p391
    %p393 = scmp.ne.s32.totalorder %s382, %s383
    %p394 = scmp.eq.s32.totalorder %s24, 0
    %p395 = por %p393, %p394
    %p396 = scmp.ne.s32.totalorder %s382, %s383
    %p397 = scmp.eq.s32.totalorder %s25, 3
    %p398 = por %p396, %p397
    %p400 = scmp.ne.s32.totalorder %s383, %s399
    %p401 = scmp.eq.s32.totalorder %s25, 0
    %p402 = por %p400, %p401
    %p403 = scmp.le.s32.totalorder 1, %s19
    %p404 = scmp.lt.s32.totalorder %s19, 5
    %p405 = pnand %p403, %p404
    %p406 = pneg %p405
    // Predicated region
    $region9: #{tpu_custom_call.1} parent=5 // pred_check
      _
    $region10: #{tpu_custom_call.1} parent=5 // pred_check_branch
      %408 = sbr.rel (%p405) target = $region12
    $region11: #{tpu_custom_call.1} parent=5 // pred_region
      %s409 = ssub.s32 %s19, 1
    $region12: #{tpu_custom_call.1} parent=5 // pred_fallthru
      _
    %p410 = scmp.lt.s32.totalorder %s19, 4
    // Predicated region
    $region13: #{tpu_custom_call.1} parent=5 // pred_check
      %p411 = pneg %p410
    $region14: #{tpu_custom_call.1} parent=5 // pred_check_branch
      %413 = sbr.rel (%p411) target = $region16
    $region15: #{tpu_custom_call.1} parent=5 // pred_region
      // Predicated region
      $region17: #{tpu_custom_call.1} parent=15 // pred_check
        %p414 = pneg %p51
      $region18: #{tpu_custom_call.1} parent=15 // pred_check_branch
        %416 = sbr.rel (%p414) target = $region20
      $region19: #{tpu_custom_call.1} parent=15 // pred_region
        %p417 = scmp.lt.s32.totalorder %s26, 1
        %s418 = scalar_select %p417, %s26, 1
        %s419 = smul.addr %s418, 12
        %s420 = smul.addr %s419, 8
        %s421 = scalar_lea.vmem %s0, %s420
      $region20: #{tpu_custom_call.1} parent=15 // pred_fallthru
        _
      // Predicated region
      $region21: #{tpu_custom_call.1} parent=15 // pred_check
        %p422 = pneg %p77
      $region22: #{tpu_custom_call.1} parent=15 // pred_check_branch
        %424 = sbr.rel (%p422) target = $region24
      $region23: #{tpu_custom_call.1} parent=15 // pred_region
        %p425 = scmp.lt.s32.totalorder %s27, 1
        %s426 = scalar_select %p425, %s27, 1
        %s427 = scalar_lea.vmem %s1, %s426
      $region24: #{tpu_custom_call.1} parent=15 // pred_fallthru
        _
      // Predicated region
      $region25: #{tpu_custom_call.1} parent=15 // pred_check
        %p428 = pneg %p103
      $region26: #{tpu_custom_call.1} parent=15 // pred_check_branch
        %430 = sbr.rel (%p428) target = $region28
      $region27: #{tpu_custom_call.1} parent=15 // pred_region
        %p431 = scmp.lt.s32.totalorder %s27, 1
        %s432 = scalar_select %p431, %s27, 1
        %s433 = scalar_lea.vmem %s2, %s432
      $region28: #{tpu_custom_call.1} parent=15 // pred_fallthru
        _
      // Predicated region
      $region29: #{tpu_custom_call.1} parent=15 // pred_check
        %p434 = pneg %p129
      $region30: #{tpu_custom_call.1} parent=15 // pred_check_branch
        %436 = sbr.rel (%p434) target = $region32
      $region31: #{tpu_custom_call.1} parent=15 // pred_region
        %p437 = scmp.lt.s32.totalorder %s27, 1
        %s438 = scalar_select %p437, %s27, 1
        %s439 = smul.addr %s438, 4
        %s440 = smul.addr %s439, 4
        %s441 = scalar_lea.vmem %s3, %s440
      $region32: #{tpu_custom_call.1} parent=15 // pred_fallthru
        _
      // Predicated region
      $region33: #{tpu_custom_call.1} parent=15 // pred_check
        %p442 = pneg %p155
      $region34: #{tpu_custom_call.1} parent=15 // pred_check_branch
        %444 = sbr.rel (%p442) target = $region36
      $region35: #{tpu_custom_call.1} parent=15 // pred_region
        %p445 = scmp.lt.s32.totalorder %s27, 1
        %s446 = scalar_select %p445, %s27, 1
        %s447 = scalar_lea.vmem %s4, %s446
      $region36: #{tpu_custom_call.1} parent=15 // pred_fallthru
        _
      // Predicated region
      $region37: #{tpu_custom_call.1} parent=15 // pred_check
        %p448 = pneg %p181
      $region38: #{tpu_custom_call.1} parent=15 // pred_check_branch
        %450 = sbr.rel (%p448) target = $region40
      $region39: #{tpu_custom_call.1} parent=15 // pred_region
        %p451 = scmp.lt.s32.totalorder %s27, 1
        %s452 = scalar_select %p451, %s27, 1
        %s453 = smul.addr %s452, 4
        %s454 = smul.addr %s453, 4
        %s455 = scalar_lea.vmem %s5, %s454
      $region40: #{tpu_custom_call.1} parent=15 // pred_fallthru
        _
      // Predicated region
      $region41: #{tpu_custom_call.1} parent=15 // pred_check
        %p456 = pneg %p207
      $region42: #{tpu_custom_call.1} parent=15 // pred_check_branch
        %458 = sbr.rel (%p456) target = $region44
      $region43: #{tpu_custom_call.1} parent=15 // pred_region
        %p459 = scmp.lt.s32.totalorder %s27, 1
        %s460 = scalar_select %p459, %s27, 1
        %s461 = scalar_lea.vmem %s6, %s460
      $region44: #{tpu_custom_call.1} parent=15 // pred_fallthru
        _
      // Predicated region
      $region45: #{tpu_custom_call.1} parent=15 // pred_check
        %p462 = pneg %p233
      $region46: #{tpu_custom_call.1} parent=15 // pred_check_branch
        %464 = sbr.rel (%p462) target = $region48
      $region47: #{tpu_custom_call.1} parent=15 // pred_region
        %p465 = scmp.lt.s32.totalorder %s27, 1
        %s466 = scalar_select %p465, %s27, 1
        %s467 = scalar_lea.vmem %s7, %s466
      $region48: #{tpu_custom_call.1} parent=15 // pred_fallthru
        _
      // Predicated region
      $region49: #{tpu_custom_call.1} parent=15 // pred_check
        %p468 = pneg %p259
      $region50: #{tpu_custom_call.1} parent=15 // pred_check_branch
        %470 = sbr.rel (%p468) target = $region52
      $region51: #{tpu_custom_call.1} parent=15 // pred_region
        %p471 = scmp.lt.s32.totalorder %s27, 1
        %s472 = scalar_select %p471, %s27, 1
        %s473 = scalar_lea.vmem %s8, %s472
      $region52: #{tpu_custom_call.1} parent=15 // pred_fallthru
        _
      // Predicated region
      $region53: #{tpu_custom_call.1} parent=15 // pred_check
        %p474 = pneg %p285
      $region54: #{tpu_custom_call.1} parent=15 // pred_check_branch
        %476 = sbr.rel (%p474) target = $region56
      $region55: #{tpu_custom_call.1} parent=15 // pred_region
        %p477 = scmp.lt.s32.totalorder %s27, 1
        %s478 = scalar_select %p477, %s27, 1
        %s479 = smul.addr %s478, 4
        %s480 = smul.addr %s479, 4
        %s481 = scalar_lea.vmem %s9, %s480
      $region56: #{tpu_custom_call.1} parent=15 // pred_fallthru
        _
      // Predicated region
      $region57: #{tpu_custom_call.1} parent=15 // pred_check
        %p482 = pneg %p311
      $region58: #{tpu_custom_call.1} parent=15 // pred_check_branch
        %484 = sbr.rel (%p482) target = $region60
      $region59: #{tpu_custom_call.1} parent=15 // pred_region
        %p485 = scmp.lt.s32.totalorder %s27, 1
        %s486 = scalar_select %p485, %s27, 1
        %s487 = scalar_lea.vmem %s10, %s486
      $region60: #{tpu_custom_call.1} parent=15 // pred_fallthru
        _
      // Predicated region
      $region61: #{tpu_custom_call.1} parent=15 // pred_check
        %p488 = pneg %p337
      $region62: #{tpu_custom_call.1} parent=15 // pred_check_branch
        %490 = sbr.rel (%p488) target = $region64
      $region63: #{tpu_custom_call.1} parent=15 // pred_region
        %p491 = scmp.lt.s32.totalorder %s27, 1
        %s492 = scalar_select %p491, %s27, 1
        %s493 = smul.addr %s492, 16
        %s494 = smul.addr %s493, 4
        %s495 = scalar_lea.vmem %s11, %s494
      $region64: #{tpu_custom_call.1} parent=15 // pred_fallthru
        _
      // Predicated region
      $region65: #{tpu_custom_call.1} parent=15 // pred_check
        %p496 = pneg %p363
      $region66: #{tpu_custom_call.1} parent=15 // pred_check_branch
        %498 = sbr.rel (%p496) target = $region68
      $region67: #{tpu_custom_call.1} parent=15 // pred_region
        %p499 = scmp.lt.s32.totalorder %s27, 1
        %s500 = scalar_select %p499, %s27, 1
        %s501 = scalar_lea.vmem %s12, %s500
      $region68: #{tpu_custom_call.1} parent=15 // pred_fallthru
        _
    $region16: #{tpu_custom_call.1} parent=5 // pred_fallthru
      _
    %p502 = scmp.le.s32.totalorder 1, %s19
    %p503 = scmp.lt.s32.totalorder %s19, 5
    %p504 = pnand %p502, %p503
    %p505 = pneg %p504
    // Predicated region
    $region69: #{tpu_custom_call.1} parent=5 // pred_check
      _
    $region70: #{tpu_custom_call.1} parent=5 // pred_check_branch
      %507 = sbr.rel (%p504) target = $region72
    $region71: #{tpu_custom_call.1} parent=5 // pred_region
      %s508 = ssub.s32 %s19, 1
      %p509 = scmp.lt.s32.totalorder %s28, 1
      %s510 = scalar_select %p509, %s28, 1
      %s511 = smul.addr %s510, 12
      %s512 = smul.addr %s511, 8
      %s513 = scalar_lea.vmem %s0, %s512
      %p514 = pneg %p57
      %p515 = pneg %p54
      %p516 = scmp.lt.s32.totalorder %s29, 1
      %s517 = scalar_select %p516, %s29, 1
      %s518 = scalar_lea.vmem %s1, %s517
      %p519 = pneg %p83
      %p520 = pneg %p80
      %p521 = scmp.lt.s32.totalorder %s29, 1
      %s522 = scalar_select %p521, %s29, 1
      %s523 = scalar_lea.vmem %s2, %s522
      %p524 = pneg %p109
      %p525 = pneg %p106
      %p526 = scmp.lt.s32.totalorder %s29, 1
      %s527 = scalar_select %p526, %s29, 1
      %s528 = smul.addr %s527, 4
      %s529 = smul.addr %s528, 4
      %s530 = scalar_lea.vmem %s3, %s529
      %p531 = pneg %p135
      %p532 = pneg %p132
      %p533 = scmp.lt.s32.totalorder %s29, 1
      %s534 = scalar_select %p533, %s29, 1
      %s535 = scalar_lea.vmem %s4, %s534
      %p536 = pneg %p161
      %p537 = pneg %p158
      %p538 = scmp.lt.s32.totalorder %s29, 1
      %s539 = scalar_select %p538, %s29, 1
      %s540 = smul.addr %s539, 4
      %s541 = smul.addr %s540, 4
      %s542 = scalar_lea.vmem %s5, %s541
      %p543 = pneg %p187
      %p544 = pneg %p184
      %p545 = scmp.lt.s32.totalorder %s29, 1
      %s546 = scalar_select %p545, %s29, 1
      %s547 = scalar_lea.vmem %s6, %s546
      %p548 = pneg %p213
      %p549 = pneg %p210
      %p550 = scmp.lt.s32.totalorder %s29, 1
      %s551 = scalar_select %p550, %s29, 1
      %s552 = scalar_lea.vmem %s7, %s551
      %p553 = pneg %p239
      %p554 = pneg %p236
      %p555 = scmp.lt.s32.totalorder %s29, 1
      %s556 = scalar_select %p555, %s29, 1
      %s557 = scalar_lea.vmem %s8, %s556
      %p558 = pneg %p265
      %p559 = pneg %p262
      %p560 = scmp.lt.s32.totalorder %s29, 1
      %s561 = scalar_select %p560, %s29, 1
      %s562 = smul.addr %s561, 4
      %s563 = smul.addr %s562, 4
      %s564 = scalar_lea.vmem %s9, %s563
      %p565 = pneg %p291
      %p566 = pneg %p288
      %p567 = scmp.lt.s32.totalorder %s29, 1
      %s568 = scalar_select %p567, %s29, 1
      %s569 = scalar_lea.vmem %s10, %s568
      %p570 = pneg %p317
      %p571 = pneg %p314
      %p572 = scmp.lt.s32.totalorder %s29, 1
      %s573 = scalar_select %p572, %s29, 1
      %s574 = smul.addr %s573, 16
      %s575 = smul.addr %s574, 4
      %s576 = scalar_lea.vmem %s11, %s575
      %p577 = pneg %p343
      %p578 = pneg %p340
      %p579 = scmp.lt.s32.totalorder %s29, 1
      %s580 = scalar_select %p579, %s29, 1
      %s581 = scalar_lea.vmem %s12, %s580
      %p582 = pneg %p369
      %p583 = pneg %p366
      %p584 = pneg %p395
      %p585 = pneg %p392
      %p586 = scmp.lt.s32.totalorder %s28, 1
      %s587 = scalar_select %p586, %s28, 1
      %s588 = smul.addr %s587, 12
      %s589 = smul.addr %s588, 8
      %s590 = scalar_lea.vmem %s13, %s589
      %p591 = scmp.lt.s32.totalorder %s28, 1
      %s592 = scalar_select %p591, %s28, 1
      %s593 = smul.addr %s592, 12
      %s594 = smul.addr %s593, 8
      %s595 = scalar_lea.vmem %s0, %s594
      %p596 = scmp.lt.s32.totalorder %s29, 1
      %s597 = scalar_select %p596, %s29, 1
      %s598 = scalar_lea.vmem %s1, %s597
      %p599 = scmp.lt.s32.totalorder %s29, 1
      %s600 = scalar_select %p599, %s29, 1
      %s601 = scalar_lea.vmem %s2, %s600
      %p602 = scmp.lt.s32.totalorder %s29, 1
      %s603 = scalar_select %p602, %s29, 1
      %s604 = smul.addr %s603, 4
      %s605 = smul.addr %s604, 4
      %s606 = scalar_lea.vmem %s3, %s605
      %p607 = scmp.lt.s32.totalorder %s29, 1
      %s608 = scalar_select %p607, %s29, 1
      %s609 = scalar_lea.vmem %s4, %s608
      %p610 = scmp.lt.s32.totalorder %s29, 1
      %s611 = scalar_select %p610, %s29, 1
      %s612 = smul.addr %s611, 4
      %s613 = smul.addr %s612, 4
      %s614 = scalar_lea.vmem %s5, %s613
      %p615 = scmp.lt.s32.totalorder %s29, 1
      %s616 = scalar_select %p615, %s29, 1
      %s617 = scalar_lea.vmem %s6, %s616
      %p618 = scmp.lt.s32.totalorder %s29, 1
      %s619 = scalar_select %p618, %s29, 1
      %s620 = scalar_lea.vmem %s7, %s619
      %p621 = scmp.lt.s32.totalorder %s29, 1
      %s622 = scalar_select %p621, %s29, 1
      %s623 = scalar_lea.vmem %s8, %s622
      %p624 = scmp.lt.s32.totalorder %s29, 1
      %s625 = scalar_select %p624, %s29, 1
      %s626 = smul.addr %s625, 4
      %s627 = smul.addr %s626, 4
      %s628 = scalar_lea.vmem %s9, %s627
      %p629 = scmp.lt.s32.totalorder %s29, 1
      %s630 = scalar_select %p629, %s29, 1
      %s631 = scalar_lea.vmem %s10, %s630
      %p632 = scmp.lt.s32.totalorder %s29, 1
      %s633 = scalar_select %p632, %s29, 1
      %s634 = smul.addr %s633, 16
      %s635 = smul.addr %s634, 4
      %s636 = scalar_lea.vmem %s11, %s635
      %p637 = scmp.lt.s32.totalorder %s29, 1
      %s638 = scalar_select %p637, %s29, 1
      %s639 = scalar_lea.vmem %s12, %s638
      %p640 = scmp.lt.s32.totalorder %s28, 1
      %s641 = scalar_select %p640, %s28, 1
      %s642 = smul.addr %s641, 12
      %s643 = smul.addr %s642, 8
      %s644 = scalar_lea.vmem %s13, %s643
      %p646 = scmp.eq.s32.totalorder %s29, 0
      // Predicated region
      $region73: #{tpu_custom_call.1} parent=71 // pred_check
        %p647 = pneg %p646
      $region74: #{tpu_custom_call.1} parent=71 // pred_check_branch
        %649 = sbr.rel (%p647) target = $region76
      $region75: #{tpu_custom_call.1} parent=71 // pred_region
        %v650 = vld [vmem:[%s595] sm:$0xff]
        %v651 = vld [vmem:[%s595 + $0x8] sm:$0xff]
        %v652 = vld [vmem:[%s595 + $0x10] sm:$0xff]
        %v653 = vld [vmem:[%s595 + $0x18] sm:$0xff]
        %v654 = vld [vmem:[%s595 + $0x20] sm:$0xff]
        %v655 = vld [vmem:[%s595 + $0x28] sm:$0xff]
        %v656 = vld [vmem:[%s595 + $0x30] sm:$0xff]
        %v657 = vld [vmem:[%s595 + $0x38] sm:$0xff]
        %v658 = vld [vmem:[%s595 + $0x40] sm:$0xff]
        %v659 = vld [vmem:[%s595 + $0x48] sm:$0xff]
        %v660 = vld [vmem:[%s595 + $0x50] sm:$0xff]
        %v661 = vld [vmem:[%s595 + $0x58] sm:$0xff]
        %vm662 = vcmask 261120
        %663 = vst.msk [vmem:[#allocation2] sm:$0xff] %vm662, %v650
        %664 = vst.msk [vmem:[#allocation2 + $0x8] sm:$0xff] %vm662, %v651
        %665 = vst.msk [vmem:[#allocation2 + $0x10] sm:$0xff] %vm662, %v652
        %666 = vst.msk [vmem:[#allocation2 + $0x18] sm:$0xff] %vm662, %v653
        %667 = vst.msk [vmem:[#allocation2 + $0x20] sm:$0xff] %vm662, %v654
        %668 = vst.msk [vmem:[#allocation2 + $0x28] sm:$0xff] %vm662, %v655
        %669 = vst.msk [vmem:[#allocation2 + $0x30] sm:$0xff] %vm662, %v656
        %670 = vst.msk [vmem:[#allocation2 + $0x38] sm:$0xff] %vm662, %v657
        %671 = vst.msk [vmem:[#allocation2 + $0x40] sm:$0xff] %vm662, %v658
        %672 = vst.msk [vmem:[#allocation2 + $0x48] sm:$0xff] %vm662, %v659
        %673 = vst.msk [vmem:[#allocation2 + $0x50] sm:$0xff] %vm662, %v660
        %674 = vst.msk [vmem:[#allocation2 + $0x58] sm:$0xff] %vm662, %v661
      $region76: #{tpu_custom_call.1} parent=71 // pred_fallthru
        _
      %v675 = vld [vmem:[#allocation2] sm:$0xff]
      %v676 = vld [vmem:[#allocation2 + $0x8] sm:$0xff]
      %v677 = vld [vmem:[#allocation2 + $0x10] sm:$0xff]
      %v678 = vld [vmem:[#allocation2 + $0x18] sm:$0xff]
      %v679 = vld [vmem:[#allocation2 + $0x20] sm:$0xff]
      %v680 = vld [vmem:[#allocation2 + $0x28] sm:$0xff]
      %v681 = vld [vmem:[#allocation2 + $0x30] sm:$0xff]
      %v682 = vld [vmem:[#allocation2 + $0x38] sm:$0xff]
      %v683 = vld [vmem:[#allocation2 + $0x40] sm:$0xff]
      %v684 = vld [vmem:[#allocation2 + $0x48] sm:$0xff]
      %v685 = vld [vmem:[#allocation2 + $0x50] sm:$0xff]
      %v686 = vld [vmem:[#allocation2 + $0x58] sm:$0xff]
      %v687 = vld [vmem:[%s598] sm:$0x1]
      %v688 = vld [vmem:[%s601] sm:$0x1]
      %vm689 = vcmask 261120
      %v690 = vsel %vm689, %v675, 0.0
      %691 = vadd.xlane.f32.xlu0 %v690
      %v692 = vpop.xlane.xlu0 %691
      %v693 = vsel %vm689, %v676, 0.0
      %694 = vadd.xlane.f32.xlu0 %v693
      %v695 = vpop.xlane.xlu0 %694
      %v696 = vsel %vm689, %v677, 0.0
      %697 = vadd.xlane.f32.xlu0 %v696
      %v698 = vpop.xlane.xlu0 %697
      %v699 = vsel %vm689, %v678, 0.0
      %700 = vadd.xlane.f32.xlu0 %v699
      %v701 = vpop.xlane.xlu0 %700
      %v702 = vsel %vm689, %v679, 0.0
      %703 = vadd.xlane.f32.xlu0 %v702
      %v704 = vpop.xlane.xlu0 %703
      %v705 = vsel %vm689, %v680, 0.0
      %706 = vadd.xlane.f32.xlu0 %v705
      %v707 = vpop.xlane.xlu0 %706
      %v708 = vsel %vm689, %v681, 0.0
      %709 = vadd.xlane.f32.xlu0 %v708
      %v710 = vpop.xlane.xlu0 %709
      %v711 = vsel %vm689, %v682, 0.0
      %712 = vadd.xlane.f32.xlu0 %v711
      %v713 = vpop.xlane.xlu0 %712
      %v714 = vsel %vm689, %v683, 0.0
      %715 = vadd.xlane.f32.xlu0 %v714
      %v716 = vpop.xlane.xlu0 %715
      %v717 = vsel %vm689, %v684, 0.0
      %718 = vadd.xlane.f32.xlu0 %v717
      %v719 = vpop.xlane.xlu0 %718
      %v720 = vsel %vm689, %v685, 0.0
      %721 = vadd.xlane.f32.xlu0 %v720
      %v722 = vpop.xlane.xlu0 %721
      %v723 = vsel %vm689, %v686, 0.0
      %724 = vadd.xlane.f32.xlu0 %v723
      %v725 = vpop.xlane.xlu0 %724
      %v726 = vrcp.pop 32.0
      %v727 = vmul.f32 %v692, %v726
      %v728 = vmul.f32 %v695, %v726
      %v729 = vmul.f32 %v698, %v726
      %v730 = vmul.f32 %v701, %v726
      %v731 = vmul.f32 %v704, %v726
      %v732 = vmul.f32 %v707, %v726
      %v733 = vmul.f32 %v710, %v726
      %v734 = vmul.f32 %v713, %v726
      %v735 = vmul.f32 %v716, %v726
      %v736 = vmul.f32 %v719, %v726
      %v737 = vmul.f32 %v722, %v726
      %v738 = vmul.f32 %v725, %v726
      %v739 = vsub.f32 %v675, %v727
      %v740 = vsub.f32 %v676, %v728
      %v741 = vsub.f32 %v677, %v729
      %v742 = vsub.f32 %v678, %v730
      %v743 = vsub.f32 %v679, %v731
      %v744 = vsub.f32 %v680, %v732
      %v745 = vsub.f32 %v681, %v733
      %v746 = vsub.f32 %v682, %v734
      %v747 = vsub.f32 %v683, %v735
      %v748 = vsub.f32 %v684, %v736
      %v749 = vsub.f32 %v685, %v737
      %v750 = vsub.f32 %v686, %v738
      %v751 = vmul.f32 %v739, %v739
      %v752 = vmul.f32 %v740, %v740
      %v753 = vmul.f32 %v741, %v741
      %v754 = vmul.f32 %v742, %v742
      %v755 = vmul.f32 %v743, %v743
      %v756 = vmul.f32 %v744, %v744
      %v757 = vmul.f32 %v745, %v745
      %v758 = vmul.f32 %v746, %v746
      %v759 = vmul.f32 %v747, %v747
      %v760 = vmul.f32 %v748, %v748
      %v761 = vmul.f32 %v749, %v749
      %v762 = vmul.f32 %v750, %v750
      %v763 = vsel %vm689, %v751, 0.0
      %764 = vadd.xlane.f32.xlu0 %v763
      %v765 = vpop.xlane.xlu0 %764
      %v766 = vsel %vm689, %v752, 0.0
      %767 = vadd.xlane.f32.xlu0 %v766
      %v768 = vpop.xlane.xlu0 %767
      %v769 = vsel %vm689, %v753, 0.0
      %770 = vadd.xlane.f32.xlu0 %v769
      %v771 = vpop.xlane.xlu0 %770
      %v772 = vsel %vm689, %v754, 0.0
      %773 = vadd.xlane.f32.xlu0 %v772
      %v774 = vpop.xlane.xlu0 %773
      %v775 = vsel %vm689, %v755, 0.0
      %776 = vadd.xlane.f32.xlu0 %v775
      %v777 = vpop.xlane.xlu0 %776
      %v778 = vsel %vm689, %v756, 0.0
      %779 = vadd.xlane.f32.xlu0 %v778
      %v780 = vpop.xlane.xlu0 %779
      %v781 = vsel %vm689, %v757, 0.0
      %782 = vadd.xlane.f32.xlu0 %v781
      %v783 = vpop.xlane.xlu0 %782
      %v784 = vsel %vm689, %v758, 0.0
      %785 = vadd.xlane.f32.xlu0 %v784
      %v786 = vpop.xlane.xlu0 %785
      %v787 = vsel %vm689, %v759, 0.0
      %788 = vadd.xlane.f32.xlu0 %v787
      %v789 = vpop.xlane.xlu0 %788
      %v790 = vsel %vm689, %v760, 0.0
      %791 = vadd.xlane.f32.xlu0 %v790
      %v792 = vpop.xlane.xlu0 %791
      %v793 = vsel %vm689, %v761, 0.0
      %794 = vadd.xlane.f32.xlu0 %v793
      %v795 = vpop.xlane.xlu0 %794
      %v796 = vsel %vm689, %v762, 0.0
      %797 = vadd.xlane.f32.xlu0 %v796
      %v798 = vpop.xlane.xlu0 %797
      %v799 = vmul.f32 %v765, %v726
      %v800 = vmul.f32 %v768, %v726
      %v801 = vmul.f32 %v771, %v726
      %v802 = vmul.f32 %v774, %v726
      %v803 = vmul.f32 %v777, %v726
      %v804 = vmul.f32 %v780, %v726
      %v805 = vmul.f32 %v783, %v726
      %v806 = vmul.f32 %v786, %v726
      %v807 = vmul.f32 %v789, %v726
      %v808 = vmul.f32 %v792, %v726
      %v809 = vmul.f32 %v795, %v726
      %v810 = vmul.f32 %v798, %v726
      %v811 = vadd.f32 %v799, 1e-06
      %v812 = vadd.f32 %v800, 1e-06
      %v813 = vadd.f32 %v801, 1e-06
      %v814 = vadd.f32 %v802, 1e-06
      %v815 = vadd.f32 %v803, 1e-06
      %v816 = vadd.f32 %v804, 1e-06
      %v817 = vadd.f32 %v805, 1e-06
      %v818 = vadd.f32 %v806, 1e-06
      %v819 = vadd.f32 %v807, 1e-06
      %v820 = vadd.f32 %v808, 1e-06
      %v821 = vadd.f32 %v809, 1e-06
      %v822 = vadd.f32 %v810, 1e-06
      %v823 = vrsqrt.pop %v811
      %v824 = vrsqrt.pop %v812
      %v825 = vrsqrt.pop %v813
      %v826 = vrsqrt.pop %v814
      %v827 = vrsqrt.pop %v815
      %v828 = vrsqrt.pop %v816
      %v829 = vrsqrt.pop %v817
      %v830 = vrsqrt.pop %v818
      %v831 = vrsqrt.pop %v819
      %v832 = vrsqrt.pop %v820
      %v833 = vrsqrt.pop %v821
      %v834 = vrsqrt.pop %v822
      %v835 = vmul.f32 %v739, %v823
      %v836 = vmul.f32 %v740, %v824
      %v837 = vmul.f32 %v741, %v825
      %v838 = vmul.f32 %v742, %v826
      %v839 = vmul.f32 %v743, %v827
      %v840 = vmul.f32 %v744, %v828
      %v841 = vmul.f32 %v745, %v829
      %v842 = vmul.f32 %v746, %v830
      %v843 = vmul.f32 %v747, %v831
      %v844 = vmul.f32 %v748, %v832
      %v845 = vmul.f32 %v749, %v833
      %v846 = vmul.f32 %v750, %v834
      %v848 = vlaneseq
      %v849 = vshrl.u32 %v848, 7
      %v850 = vsub.s32 0, %v849
      %v851 = vrot.slane %v687, %v850
      %v853 = vmul.f32 %v835, %v851
      %v854 = vmul.f32 %v836, %v851
      %v855 = vmul.f32 %v837, %v851
      %v856 = vmul.f32 %v838, %v851
      %v857 = vmul.f32 %v839, %v851
      %v858 = vmul.f32 %v840, %v851
      %v859 = vmul.f32 %v841, %v851
      %v860 = vmul.f32 %v842, %v851
      %v861 = vmul.f32 %v843, %v851
      %v862 = vmul.f32 %v844, %v851
      %v863 = vmul.f32 %v845, %v851
      %v864 = vmul.f32 %v846, %v851
      %v866 = vlaneseq
      %v867 = vshrl.u32 %v866, 7
      %v868 = vsub.s32 0, %v867
      %v869 = vrot.slane %v688, %v868
      %v871 = vadd.f32 %v853, %v869
      %v872 = vadd.f32 %v854, %v869
      %v873 = vadd.f32 %v855, %v869
      %v874 = vadd.f32 %v856, %v869
      %v875 = vadd.f32 %v857, %v869
      %v876 = vadd.f32 %v858, %v869
      %v877 = vadd.f32 %v859, %v869
      %v878 = vadd.f32 %v860, %v869
      %v879 = vadd.f32 %v861, %v869
      %v880 = vadd.f32 %v862, %v869
      %v881 = vadd.f32 %v863, %v869
      %v882 = vadd.f32 %v864, %v869
      %v883 = vpack.c.bf16 %v872, %v871
      %v884 = vpack.c.bf16 %v874, %v873
      %v885 = vpack.c.bf16 %v876, %v875
      %v886 = vpack.c.bf16 %v878, %v877
      %v887 = vpack.c.bf16 %v880, %v879
      %v888 = vpack.c.bf16 %v882, %v881
      %v889 = vld [vmem:[%s606] sm:$0xf]
      %v890 = vld [vmem:[%s606 + $0x4] sm:$0xf]
      %v891 = vld [vmem:[%s606 + $0x8] sm:$0xf]
      %v892 = vld [vmem:[%s606 + $0xc] sm:$0xf]
      %v893 = vld [vmem:[%s609] sm:$0x1]
      %v895 = vlaneseq
      %v896 = vshrl.u32 %v895, 7
      %v897 = vsub.s32 0, %v896
      %v898 = vrot.slane %v893, %v897
      %v904 = vunpack.c.l.b16 %v889
      %v905 = vunpack.c.l.b16 %v890
      %v906 = vunpack.c.l.b16 %v891
      %v907 = vunpack.c.l.b16 %v892
      %v908 = vpack.c.b16 %v905, %v904
      %v909 = vpack.c.b16 %v907, %v906
      %v913 = vsel %vm689, %v883, 0
      %v916 = vsel %vm689, %v884, 0
      %v919 = vsel %vm689, %v885, 0
      %v922 = vsel %vm689, %v886, 0
      %v925 = vsel %vm689, %v887, 0
      %v928 = vsel %vm689, %v888, 0
      %930 = vmatprep.subr.bf16.mxu0 0
      %931 = vmatpush1.bf16.msra.mxu0 0
      %932 = vmatprep.subr.bf16.mxu0 0
      %933 = vmatpush1.bf16.msra.mxu0 0
      %934 = vmatprep.subr.bf16.mxu0 0
      %935 = vmatpush1.bf16.msra.mxu0 0
      %936 = vmatprep.subr.bf16.mxu0 0
      %937 = vmatpush1.bf16.msra.mxu0 0
      %938 = vmatprep.subr.bf16.mxu0 0
      %939 = vmatpush1.bf16.msra.mxu0 0
      %940 = vmatprep.subr.bf16.mxu0 0
      %941 = vmatpush1.bf16.msra.mxu0 0
      %942 = vmatprep.subr.bf16.mxu0 0
      %943 = vmatpush1.bf16.msra.mxu0 %v909
      %944 = vmatprep.subr.bf16.mxu0 0
      %945 = vmatpush1.bf16.msra.mxu0 %v908
      %946 = vmatprep.subr.bf16.mxu0 0
      %947 = vmatpush2.bf16.msra.mxu0 0
      %948 = vmatprep.subr.bf16.mxu0 0
      %949 = vmatpush2.bf16.msra.mxu0 0
      %950 = vmatprep.subr.bf16.mxu0 0
      %951 = vmatpush2.bf16.msra.mxu0 0
      %952 = vmatprep.subr.bf16.mxu0 0
      %953 = vmatpush2.bf16.msra.mxu0 0
      %954 = vmatprep.subr.bf16.mxu0 0
      %955 = vmatpush2.bf16.msra.mxu0 0
      %956 = vmatprep.subr.bf16.mxu0 0
      %957 = vmatpush2.bf16.msra.mxu0 0
      %958 = vmatprep.subr.bf16.mxu0 0
      %959 = vmatpush2.bf16.msra.mxu0 0
      %960 = vmatprep.subr.bf16.mxu0 0
      %961 = vmatpush2.bf16.msra.mxu0 0
      %962 = vmatprep.mubr.bf16.mxu0 0
      %963 = vmatmul.mubr.bf16.gmra.mxu0 %v913
      %v964 = vpop.f32.mrf.mxu0
      %v965 = vadd.f32 %v898, %v964
      %v966 = vpop.f32.mrf.mxu0
      %v967 = vpop.f32.mrf.mxu0
      %v968 = vadd.f32 %v898, %v967
      %v969 = vpop.f32.mrf.mxu0
      %970 = vmatprep.mubr.bf16.mxu0 0
      %971 = vmatmul.mubr.bf16.gmra.mxu0 %v916
      %v972 = vpop.f32.mrf.mxu0
      %v973 = vadd.f32 %v898, %v972
      %v974 = vpop.f32.mrf.mxu0
      %v975 = vpop.f32.mrf.mxu0
      %v976 = vadd.f32 %v898, %v975
      %v977 = vpop.f32.mrf.mxu0
      %978 = vmatprep.mubr.bf16.mxu0 0
      %979 = vmatmul.mubr.bf16.gmra.mxu0 %v919
      %v980 = vpop.f32.mrf.mxu0
      %v981 = vadd.f32 %v898, %v980
      %v982 = vpop.f32.mrf.mxu0
      %v983 = vpop.f32.mrf.mxu0
      %v984 = vadd.f32 %v898, %v983
      %v985 = vpop.f32.mrf.mxu0
      %986 = vmatprep.mubr.bf16.mxu0 0
      %987 = vmatmul.mubr.bf16.gmra.mxu0 %v922
      %v988 = vpop.f32.mrf.mxu0
      %v989 = vadd.f32 %v898, %v988
      %v990 = vpop.f32.mrf.mxu0
      %v991 = vpop.f32.mrf.mxu0
      %v992 = vadd.f32 %v898, %v991
      %v993 = vpop.f32.mrf.mxu0
      %994 = vmatprep.mubr.bf16.mxu0 0
      %995 = vmatmul.mubr.bf16.gmra.mxu0 %v925
      %v996 = vpop.f32.mrf.mxu0
      %v997 = vadd.f32 %v898, %v996
      %v998 = vpop.f32.mrf.mxu0
      %v999 = vpop.f32.mrf.mxu0
      %v1000 = vadd.f32 %v898, %v999
      %v1001 = vpop.f32.mrf.mxu0
      %1002 = vmatprep.mubr.bf16.mxu0 0
      %1003 = vmatmul.mubr.bf16.gmra.mxu0 %v928
      %v1004 = vpop.f32.mrf.mxu0
      %v1005 = vadd.f32 %v898, %v1004
      %v1006 = vpop.f32.mrf.mxu0
      %v1007 = vpop.f32.mrf.mxu0
      %v1008 = vadd.f32 %v898, %v1007
      %v1009 = vpop.f32.mrf.mxu0
      %1010 = vdwg.mxu0
      %v1011 = vmul.f32 %v965, 0.35355338
      %v1012 = vmul.f32 %v968, 0.35355338
      %v1013 = vmul.f32 %v973, 0.35355338
      %v1014 = vmul.f32 %v976, 0.35355338
      %v1015 = vmul.f32 %v981, 0.35355338
      %v1016 = vmul.f32 %v984, 0.35355338
      %v1017 = vmul.f32 %v989, 0.35355338
      %v1018 = vmul.f32 %v992, 0.35355338
      %v1019 = vmul.f32 %v997, 0.35355338
      %v1020 = vmul.f32 %v1000, 0.35355338
      %v1021 = vmul.f32 %v1005, 0.35355338
      %v1022 = vmul.f32 %v1008, 0.35355338
      %v1023 = vpack.c.bf16 %v1012, %v1011
      %v1024 = vpack.c.bf16 %v1014, %v1013
      %v1025 = vpack.c.bf16 %v1016, %v1015
      %v1026 = vpack.c.bf16 %v1018, %v1017
      %v1027 = vpack.c.bf16 %v1020, %v1019
      %v1028 = vpack.c.bf16 %v1022, %v1021
      %v1029 = vpack.c.bf16 %v968, %v965
      %v1030 = vpack.c.bf16 %v976, %v973
      %v1031 = vpack.c.bf16 %v984, %v981
      %v1032 = vpack.c.bf16 %v992, %v989
      %v1033 = vpack.c.bf16 %v1000, %v997
      %v1034 = vpack.c.bf16 %v1008, %v1005
      %1041 = vrot.lane.b32.xlu0 %v1023, 120
      %v1042 = vpop.permute.xlu0 %1041
      %1043 = vrot.lane.b32.xlu0 %v1024, 120
      %v1044 = vpop.permute.xlu0 %1043
      %1045 = vrot.lane.b32.xlu0 %v1025, 120
      %v1046 = vpop.permute.xlu0 %1045
      %1047 = vrot.lane.b32.xlu0 %v1026, 120
      %v1048 = vpop.permute.xlu0 %1047
      %1049 = vrot.lane.b32.xlu0 %v1027, 120
      %v1050 = vpop.permute.xlu0 %1049
      %1051 = vrot.lane.b32.xlu0 %v1028, 120
      %v1052 = vpop.permute.xlu0 %1051
      %1053 = vrot.lane.b32.xlu0 %v1023, 112
      %v1054 = vpop.permute.xlu0 %1053
      %1055 = vrot.lane.b32.xlu0 %v1024, 112
      %v1056 = vpop.permute.xlu0 %1055
      %1057 = vrot.lane.b32.xlu0 %v1025, 112
      %v1058 = vpop.permute.xlu0 %1057
      %1059 = vrot.lane.b32.xlu0 %v1026, 112
      %v1060 = vpop.permute.xlu0 %1059
      %1061 = vrot.lane.b32.xlu0 %v1027, 112
      %v1062 = vpop.permute.xlu0 %1061
      %1063 = vrot.lane.b32.xlu0 %v1028, 112
      %v1064 = vpop.permute.xlu0 %1063
      %1065 = vrot.lane.b32.xlu0 %v1023, 104
      %v1066 = vpop.permute.xlu0 %1065
      %1067 = vrot.lane.b32.xlu0 %v1024, 104
      %v1068 = vpop.permute.xlu0 %1067
      %1069 = vrot.lane.b32.xlu0 %v1025, 104
      %v1070 = vpop.permute.xlu0 %1069
      %1071 = vrot.lane.b32.xlu0 %v1026, 104
      %v1072 = vpop.permute.xlu0 %1071
      %1073 = vrot.lane.b32.xlu0 %v1027, 104
      %v1074 = vpop.permute.xlu0 %1073
      %1075 = vrot.lane.b32.xlu0 %v1028, 104
      %v1076 = vpop.permute.xlu0 %1075
      %v1079 = vpack.i.b16 %v1042, %v1023
      %v1081 = vshrl.u32 %v1023, 16
      %v1082 = vshrl.u32 %v1042, 16
      %v1083 = vpack.i.b16 %v1082, %v1081
      %v1087 = vpack.i.b16 %v1066, %v1054
      %v1089 = vshrl.u32 %v1054, 16
      %v1090 = vshrl.u32 %v1066, 16
      %v1091 = vpack.i.b16 %v1090, %v1089
      %v1094 = vpack.i.b16 0, 0
      %v1096 = vshrl.u32 0, 16
      %v1097 = vpack.i.b16 %v1096, %v1096
      %v1101 = vpack.i.b16 %v1044, %v1024
      %v1103 = vshrl.u32 %v1024, 16
      %v1104 = vshrl.u32 %v1044, 16
      %v1105 = vpack.i.b16 %v1104, %v1103
      %v1109 = vpack.i.b16 %v1068, %v1056
      %v1111 = vshrl.u32 %v1056, 16
      %v1112 = vshrl.u32 %v1068, 16
      %v1113 = vpack.i.b16 %v1112, %v1111
      %v1117 = vpack.i.b16 %v1046, %v1025
      %v1119 = vshrl.u32 %v1025, 16
      %v1120 = vshrl.u32 %v1046, 16
      %v1121 = vpack.i.b16 %v1120, %v1119
      %v1125 = vpack.i.b16 %v1070, %v1058
      %v1127 = vshrl.u32 %v1058, 16
      %v1128 = vshrl.u32 %v1070, 16
      %v1129 = vpack.i.b16 %v1128, %v1127
      %v1133 = vpack.i.b16 %v1048, %v1026
      %v1135 = vshrl.u32 %v1026, 16
      %v1136 = vshrl.u32 %v1048, 16
      %v1137 = vpack.i.b16 %v1136, %v1135
      %v1141 = vpack.i.b16 %v1072, %v1060
      %v1143 = vshrl.u32 %v1060, 16
      %v1144 = vshrl.u32 %v1072, 16
      %v1145 = vpack.i.b16 %v1144, %v1143
      %v1149 = vpack.i.b16 %v1050, %v1027
      %v1151 = vshrl.u32 %v1027, 16
      %v1152 = vshrl.u32 %v1050, 16
      %v1153 = vpack.i.b16 %v1152, %v1151
      %v1157 = vpack.i.b16 %v1074, %v1062
      %v1159 = vshrl.u32 %v1062, 16
      %v1160 = vshrl.u32 %v1074, 16
      %v1161 = vpack.i.b16 %v1160, %v1159
      %v1165 = vpack.i.b16 %v1052, %v1028
      %v1167 = vshrl.u32 %v1028, 16
      %v1168 = vshrl.u32 %v1052, 16
      %v1169 = vpack.i.b16 %v1168, %v1167
      %v1173 = vpack.i.b16 %v1076, %v1064
      %v1175 = vshrl.u32 %v1064, 16
      %v1176 = vshrl.u32 %v1076, 16
      %v1177 = vpack.i.b16 %v1176, %v1175
      %v1179 = vcombine.high %v1079, %v1094
      %v1181 = vunpack.c.l.s4 1983009808
      %v1182 = vunpack.c.0.s8 %v1181
      %v1183 = vlaneseq
      %v1184 = vshrl.u32 %v1183, 7
      %v1185 = vsub.s32 %v1182, %v1184
      %v1186 = vrot.slane %v1079, %v1185
      %v1188 = vunpack.c.l.s4 1983009808
      %v1189 = vunpack.c.0.s8 %v1188
      %v1190 = vlaneseq
      %v1191 = vshrl.u32 %v1190, 7
      %v1192 = vsub.s32 %v1189, %v1191
      %v1193 = vrot.slane %v1179, %v1192
      %v1194 = vcombine.high %v1087, %v1094
      %v1196 = vunpack.c.l.s4 1983009808
      %v1197 = vunpack.c.0.s8 %v1196
      %v1198 = vlaneseq
      %v1199 = vshrl.u32 %v1198, 7
      %v1200 = vsub.s32 %v1197, %v1199
      %v1201 = vrot.slane %v1087, %v1200
      %v1203 = vunpack.c.l.s4 1983009808
      %v1204 = vunpack.c.0.s8 %v1203
      %v1205 = vlaneseq
      %v1206 = vshrl.u32 %v1205, 7
      %v1207 = vsub.s32 %v1204, %v1206
      %v1208 = vrot.slane %v1194, %v1207
      %v1209 = vcombine.low %v1186, %v1201
      %v1210 = vcombine.high %v1186, %v1201
      %v1212 = vunpack.c.l.s4 1934713408
      %v1213 = vunpack.c.0.s8 %v1212
      %v1214 = vlaneseq
      %v1215 = vshrl.u32 %v1214, 7
      %v1216 = vsub.s32 %v1213, %v1215
      %v1217 = vrot.slane %v1209, %v1216
      %v1219 = vunpack.c.l.s4 1934713408
      %v1220 = vunpack.c.0.s8 %v1219
      %v1221 = vlaneseq
      %v1222 = vshrl.u32 %v1221, 7
      %v1223 = vsub.s32 %v1220, %v1222
      %v1224 = vrot.slane %v1210, %v1223
      %v1225 = vcombine.low %v1193, %v1208
      %v1226 = vcombine.high %v1193, %v1208
      %v1228 = vunpack.c.l.s4 1934713408
      %v1229 = vunpack.c.0.s8 %v1228
      %v1230 = vlaneseq
      %v1231 = vshrl.u32 %v1230, 7
      %v1232 = vsub.s32 %v1229, %v1231
      %v1233 = vrot.slane %v1225, %v1232
      %v1235 = vunpack.c.l.s4 1934713408
      %v1236 = vunpack.c.0.s8 %v1235
      %v1237 = vlaneseq
      %v1238 = vshrl.u32 %v1237, 7
      %v1239 = vsub.s32 %v1236, %v1238
      %v1240 = vrot.slane %v1226, %v1239
      %v1241 = vcombine.high %v1217, 0
      %v1242 = vcombine.high %v1224, 0
      %v1243 = vcombine.high %v1233, 0
      %v1244 = vcombine.high %v1240, 0
      %v1245 = vcombine.high %v1083, %v1097
      %v1247 = vunpack.c.l.s4 1983009808
      %v1248 = vunpack.c.0.s8 %v1247
      %v1249 = vlaneseq
      %v1250 = vshrl.u32 %v1249, 7
      %v1251 = vsub.s32 %v1248, %v1250
      %v1252 = vrot.slane %v1083, %v1251
      %v1254 = vunpack.c.l.s4 1983009808
      %v1255 = vunpack.c.0.s8 %v1254
      %v1256 = vlaneseq
      %v1257 = vshrl.u32 %v1256, 7
      %v1258 = vsub.s32 %v1255, %v1257
      %v1259 = vrot.slane %v1245, %v1258
      %v1260 = vcombine.high %v1091, %v1097
      %v1262 = vunpack.c.l.s4 1983009808
      %v1263 = vunpack.c.0.s8 %v1262
      %v1264 = vlaneseq
      %v1265 = vshrl.u32 %v1264, 7
      %v1266 = vsub.s32 %v1263, %v1265
      %v1267 = vrot.slane %v1091, %v1266
      %v1269 = vunpack.c.l.s4 1983009808
      %v1270 = vunpack.c.0.s8 %v1269
      %v1271 = vlaneseq
      %v1272 = vshrl.u32 %v1271, 7
      %v1273 = vsub.s32 %v1270, %v1272
      %v1274 = vrot.slane %v1260, %v1273
      %v1275 = vcombine.low %v1252, %v1267
      %v1276 = vcombine.high %v1252, %v1267
      %v1278 = vunpack.c.l.s4 1934713408
      %v1279 = vunpack.c.0.s8 %v1278
      %v1280 = vlaneseq
      %v1281 = vshrl.u32 %v1280, 7
      %v1282 = vsub.s32 %v1279, %v1281
      %v1283 = vrot.slane %v1275, %v1282
      %v1285 = vunpack.c.l.s4 1934713408
      %v1286 = vunpack.c.0.s8 %v1285
      %v1287 = vlaneseq
      %v1288 = vshrl.u32 %v1287, 7
      %v1289 = vsub.s32 %v1286, %v1288
      %v1290 = vrot.slane %v1276, %v1289
      %v1291 = vcombine.low %v1259, %v1274
      %v1292 = vcombine.high %v1259, %v1274
      %v1294 = vunpack.c.l.s4 1934713408
      %v1295 = vunpack.c.0.s8 %v1294
      %v1296 = vlaneseq
      %v1297 = vshrl.u32 %v1296, 7
      %v1298 = vsub.s32 %v1295, %v1297
      %v1299 = vrot.slane %v1291, %v1298
      %v1301 = vunpack.c.l.s4 1934713408
      %v1302 = vunpack.c.0.s8 %v1301
      %v1303 = vlaneseq
      %v1304 = vshrl.u32 %v1303, 7
      %v1305 = vsub.s32 %v1302, %v1304
      %v1306 = vrot.slane %v1292, %v1305
      %v1307 = vcombine.high %v1283, 0
      %v1308 = vcombine.high %v1290, 0
      %v1309 = vcombine.high %v1299, 0
      %v1310 = vcombine.high %v1306, 0
      %v1311 = vcombine.high %v1101, %v1094
      %v1313 = vunpack.c.l.s4 1983009808
      %v1314 = vunpack.c.0.s8 %v1313
      %v1315 = vlaneseq
      %v1316 = vshrl.u32 %v1315, 7
      %v1317 = vsub.s32 %v1314, %v1316
      %v1318 = vrot.slane %v1101, %v1317
      %v1320 = vunpack.c.l.s4 1983009808
      %v1321 = vunpack.c.0.s8 %v1320
      %v1322 = vlaneseq
      %v1323 = vshrl.u32 %v1322, 7
      %v1324 = vsub.s32 %v1321, %v1323
      %v1325 = vrot.slane %v1311, %v1324
      %v1326 = vcombine.high %v1109, %v1094
      %v1328 = vunpack.c.l.s4 1983009808
      %v1329 = vunpack.c.0.s8 %v1328
      %v1330 = vlaneseq
      %v1331 = vshrl.u32 %v1330, 7
      %v1332 = vsub.s32 %v1329, %v1331
      %v1333 = vrot.slane %v1109, %v1332
      %v1335 = vunpack.c.l.s4 1983009808
      %v1336 = vunpack.c.0.s8 %v1335
      %v1337 = vlaneseq
      %v1338 = vshrl.u32 %v1337, 7
      %v1339 = vsub.s32 %v1336, %v1338
      %v1340 = vrot.slane %v1326, %v1339
      %v1341 = vcombine.low %v1318, %v1333
      %v1342 = vcombine.high %v1318, %v1333
      %v1344 = vunpack.c.l.s4 1934713408
      %v1345 = vunpack.c.0.s8 %v1344
      %v1346 = vlaneseq
      %v1347 = vshrl.u32 %v1346, 7
      %v1348 = vsub.s32 %v1345, %v1347
      %v1349 = vrot.slane %v1341, %v1348
      %v1351 = vunpack.c.l.s4 1934713408
      %v1352 = vunpack.c.0.s8 %v1351
      %v1353 = vlaneseq
      %v1354 = vshrl.u32 %v1353, 7
      %v1355 = vsub.s32 %v1352, %v1354
      %v1356 = vrot.slane %v1342, %v1355
      %v1357 = vcombine.low %v1325, %v1340
      %v1358 = vcombine.high %v1325, %v1340
      %v1360 = vunpack.c.l.s4 1934713408
      %v1361 = vunpack.c.0.s8 %v1360
      %v1362 = vlaneseq
      %v1363 = vshrl.u32 %v1362, 7
      %v1364 = vsub.s32 %v1361, %v1363
      %v1365 = vrot.slane %v1357, %v1364
      %v1367 = vunpack.c.l.s4 1934713408
      %v1368 = vunpack.c.0.s8 %v1367
      %v1369 = vlaneseq
      %v1370 = vshrl.u32 %v1369, 7
      %v1371 = vsub.s32 %v1368, %v1370
      %v1372 = vrot.slane %v1358, %v1371
      %v1373 = vcombine.high %v1349, 0
      %v1374 = vcombine.high %v1356, 0
      %v1375 = vcombine.high %v1365, 0
      %v1376 = vcombine.high %v1372, 0
      %v1377 = vcombine.high %v1105, %v1097
      %v1379 = vunpack.c.l.s4 1983009808
      %v1380 = vunpack.c.0.s8 %v1379
      %v1381 = vlaneseq
      %v1382 = vshrl.u32 %v1381, 7
      %v1383 = vsub.s32 %v1380, %v1382
      %v1384 = vrot.slane %v1105, %v1383
      %v1386 = vunpack.c.l.s4 1983009808
      %v1387 = vunpack.c.0.s8 %v1386
      %v1388 = vlaneseq
      %v1389 = vshrl.u32 %v1388, 7
      %v1390 = vsub.s32 %v1387, %v1389
      %v1391 = vrot.slane %v1377, %v1390
      %v1392 = vcombine.high %v1113, %v1097
      %v1394 = vunpack.c.l.s4 1983009808
      %v1395 = vunpack.c.0.s8 %v1394
      %v1396 = vlaneseq
      %v1397 = vshrl.u32 %v1396, 7
      %v1398 = vsub.s32 %v1395, %v1397
      %v1399 = vrot.slane %v1113, %v1398
      %v1401 = vunpack.c.l.s4 1983009808
      %v1402 = vunpack.c.0.s8 %v1401
      %v1403 = vlaneseq
      %v1404 = vshrl.u32 %v1403, 7
      %v1405 = vsub.s32 %v1402, %v1404
      %v1406 = vrot.slane %v1392, %v1405
      %v1407 = vcombine.low %v1384, %v1399
      %v1408 = vcombine.high %v1384, %v1399
      %v1410 = vunpack.c.l.s4 1934713408
      %v1411 = vunpack.c.0.s8 %v1410
      %v1412 = vlaneseq
      %v1413 = vshrl.u32 %v1412, 7
      %v1414 = vsub.s32 %v1411, %v1413
      %v1415 = vrot.slane %v1407, %v1414
      %v1417 = vunpack.c.l.s4 1934713408
      %v1418 = vunpack.c.0.s8 %v1417
      %v1419 = vlaneseq
      %v1420 = vshrl.u32 %v1419, 7
      %v1421 = vsub.s32 %v1418, %v1420
      %v1422 = vrot.slane %v1408, %v1421
      %v1423 = vcombine.low %v1391, %v1406
      %v1424 = vcombine.high %v1391, %v1406
      %v1426 = vunpack.c.l.s4 1934713408
      %v1427 = vunpack.c.0.s8 %v1426
      %v1428 = vlaneseq
      %v1429 = vshrl.u32 %v1428, 7
      %v1430 = vsub.s32 %v1427, %v1429
      %v1431 = vrot.slane %v1423, %v1430
      %v1433 = vunpack.c.l.s4 1934713408
      %v1434 = vunpack.c.0.s8 %v1433
      %v1435 = vlaneseq
      %v1436 = vshrl.u32 %v1435, 7
      %v1437 = vsub.s32 %v1434, %v1436
      %v1438 = vrot.slane %v1424, %v1437
      %v1439 = vcombine.high %v1415, 0
      %v1440 = vcombine.high %v1422, 0
      %v1441 = vcombine.high %v1431, 0
      %v1442 = vcombine.high %v1438, 0
      %v1443 = vcombine.high %v1117, %v1094
      %v1445 = vunpack.c.l.s4 1983009808
      %v1446 = vunpack.c.0.s8 %v1445
      %v1447 = vlaneseq
      %v1448 = vshrl.u32 %v1447, 7
      %v1449 = vsub.s32 %v1446, %v1448
      %v1450 = vrot.slane %v1117, %v1449
      %v1452 = vunpack.c.l.s4 1983009808
      %v1453 = vunpack.c.0.s8 %v1452
      %v1454 = vlaneseq
      %v1455 = vshrl.u32 %v1454, 7
      %v1456 = vsub.s32 %v1453, %v1455
      %v1457 = vrot.slane %v1443, %v1456
      %v1458 = vcombine.high %v1125, %v1094
      %v1460 = vunpack.c.l.s4 1983009808
      %v1461 = vunpack.c.0.s8 %v1460
      %v1462 = vlaneseq
      %v1463 = vshrl.u32 %v1462, 7
      %v1464 = vsub.s32 %v1461, %v1463
      %v1465 = vrot.slane %v1125, %v1464
      %v1467 = vunpack.c.l.s4 1983009808
      %v1468 = vunpack.c.0.s8 %v1467
      %v1469 = vlaneseq
      %v1470 = vshrl.u32 %v1469, 7
      %v1471 = vsub.s32 %v1468, %v1470
      %v1472 = vrot.slane %v1458, %v1471
      %v1473 = vcombine.low %v1450, %v1465
      %v1474 = vcombine.high %v1450, %v1465
      %v1476 = vunpack.c.l.s4 1934713408
      %v1477 = vunpack.c.0.s8 %v1476
      %v1478 = vlaneseq
      %v1479 = vshrl.u32 %v1478, 7
      %v1480 = vsub.s32 %v1477, %v1479
      %v1481 = vrot.slane %v1473, %v1480
      %v1483 = vunpack.c.l.s4 1934713408
      %v1484 = vunpack.c.0.s8 %v1483
      %v1485 = vlaneseq
      %v1486 = vshrl.u32 %v1485, 7
      %v1487 = vsub.s32 %v1484, %v1486
      %v1488 = vrot.slane %v1474, %v1487
      %v1489 = vcombine.low %v1457, %v1472
      %v1490 = vcombine.high %v1457, %v1472
      %v1492 = vunpack.c.l.s4 1934713408
      %v1493 = vunpack.c.0.s8 %v1492
      %v1494 = vlaneseq
      %v1495 = vshrl.u32 %v1494, 7
      %v1496 = vsub.s32 %v1493, %v1495
      %v1497 = vrot.slane %v1489, %v1496
      %v1499 = vunpack.c.l.s4 1934713408
      %v1500 = vunpack.c.0.s8 %v1499
      %v1501 = vlaneseq
      %v1502 = vshrl.u32 %v1501, 7
      %v1503 = vsub.s32 %v1500, %v1502
      %v1504 = vrot.slane %v1490, %v1503
      %v1505 = vcombine.high %v1481, 0
      %v1506 = vcombine.high %v1488, 0
      %v1507 = vcombine.high %v1497, 0
      %v1508 = vcombine.high %v1504, 0
      %v1509 = vcombine.high %v1121, %v1097
      %v1511 = vunpack.c.l.s4 1983009808
      %v1512 = vunpack.c.0.s8 %v1511
      %v1513 = vlaneseq
      %v1514 = vshrl.u32 %v1513, 7
      %v1515 = vsub.s32 %v1512, %v1514
      %v1516 = vrot.slane %v1121, %v1515
      %v1518 = vunpack.c.l.s4 1983009808
      %v1519 = vunpack.c.0.s8 %v1518
      %v1520 = vlaneseq
      %v1521 = vshrl.u32 %v1520, 7
      %v1522 = vsub.s32 %v1519, %v1521
      %v1523 = vrot.slane %v1509, %v1522
      %v1524 = vcombine.high %v1129, %v1097
      %v1526 = vunpack.c.l.s4 1983009808
      %v1527 = vunpack.c.0.s8 %v1526
      %v1528 = vlaneseq
      %v1529 = vshrl.u32 %v1528, 7
      %v1530 = vsub.s32 %v1527, %v1529
      %v1531 = vrot.slane %v1129, %v1530
      %v1533 = vunpack.c.l.s4 1983009808
      %v1534 = vunpack.c.0.s8 %v1533
      %v1535 = vlaneseq
      %v1536 = vshrl.u32 %v1535, 7
      %v1537 = vsub.s32 %v1534, %v1536
      %v1538 = vrot.slane %v1524, %v1537
      %v1539 = vcombine.low %v1516, %v1531
      %v1540 = vcombine.high %v1516, %v1531
      %v1542 = vunpack.c.l.s4 1934713408
      %v1543 = vunpack.c.0.s8 %v1542
      %v1544 = vlaneseq
      %v1545 = vshrl.u32 %v1544, 7
      %v1546 = vsub.s32 %v1543, %v1545
      %v1547 = vrot.slane %v1539, %v1546
      %v1549 = vunpack.c.l.s4 1934713408
      %v1550 = vunpack.c.0.s8 %v1549
      %v1551 = vlaneseq
      %v1552 = vshrl.u32 %v1551, 7
      %v1553 = vsub.s32 %v1550, %v1552
      %v1554 = vrot.slane %v1540, %v1553
      %v1555 = vcombine.low %v1523, %v1538
      %v1556 = vcombine.high %v1523, %v1538
      %v1558 = vunpack.c.l.s4 1934713408
      %v1559 = vunpack.c.0.s8 %v1558
      %v1560 = vlaneseq
      %v1561 = vshrl.u32 %v1560, 7
      %v1562 = vsub.s32 %v1559, %v1561
      %v1563 = vrot.slane %v1555, %v1562
      %v1565 = vunpack.c.l.s4 1934713408
      %v1566 = vunpack.c.0.s8 %v1565
      %v1567 = vlaneseq
      %v1568 = vshrl.u32 %v1567, 7
      %v1569 = vsub.s32 %v1566, %v1568
      %v1570 = vrot.slane %v1556, %v1569
      %v1571 = vcombine.high %v1547, 0
      %v1572 = vcombine.high %v1554, 0
      %v1573 = vcombine.high %v1563, 0
      %v1574 = vcombine.high %v1570, 0
      %v1575 = vcombine.high %v1133, %v1094
      %v1577 = vunpack.c.l.s4 1983009808
      %v1578 = vunpack.c.0.s8 %v1577
      %v1579 = vlaneseq
      %v1580 = vshrl.u32 %v1579, 7
      %v1581 = vsub.s32 %v1578, %v1580
      %v1582 = vrot.slane %v1133, %v1581
      %v1584 = vunpack.c.l.s4 1983009808
      %v1585 = vunpack.c.0.s8 %v1584
      %v1586 = vlaneseq
      %v1587 = vshrl.u32 %v1586, 7
      %v1588 = vsub.s32 %v1585, %v1587
      %v1589 = vrot.slane %v1575, %v1588
      %v1590 = vcombine.high %v1141, %v1094
      %v1592 = vunpack.c.l.s4 1983009808
      %v1593 = vunpack.c.0.s8 %v1592
      %v1594 = vlaneseq
      %v1595 = vshrl.u32 %v1594, 7
      %v1596 = vsub.s32 %v1593, %v1595
      %v1597 = vrot.slane %v1141, %v1596
      %v1599 = vunpack.c.l.s4 1983009808
      %v1600 = vunpack.c.0.s8 %v1599
      %v1601 = vlaneseq
      %v1602 = vshrl.u32 %v1601, 7
      %v1603 = vsub.s32 %v1600, %v1602
      %v1604 = vrot.slane %v1590, %v1603
      %v1605 = vcombine.low %v1582, %v1597
      %v1606 = vcombine.high %v1582, %v1597
      %v1608 = vunpack.c.l.s4 1934713408
      %v1609 = vunpack.c.0.s8 %v1608
      %v1610 = vlaneseq
      %v1611 = vshrl.u32 %v1610, 7
      %v1612 = vsub.s32 %v1609, %v1611
      %v1613 = vrot.slane %v1605, %v1612
      %v1615 = vunpack.c.l.s4 1934713408
      %v1616 = vunpack.c.0.s8 %v1615
      %v1617 = vlaneseq
      %v1618 = vshrl.u32 %v1617, 7
      %v1619 = vsub.s32 %v1616, %v1618
      %v1620 = vrot.slane %v1606, %v1619
      %v1621 = vcombine.low %v1589, %v1604
      %v1622 = vcombine.high %v1589, %v1604
      %v1624 = vunpack.c.l.s4 1934713408
      %v1625 = vunpack.c.0.s8 %v1624
      %v1626 = vlaneseq
      %v1627 = vshrl.u32 %v1626, 7
      %v1628 = vsub.s32 %v1625, %v1627
      %v1629 = vrot.slane %v1621, %v1628
      %v1631 = vunpack.c.l.s4 1934713408
      %v1632 = vunpack.c.0.s8 %v1631
      %v1633 = vlaneseq
      %v1634 = vshrl.u32 %v1633, 7
      %v1635 = vsub.s32 %v1632, %v1634
      %v1636 = vrot.slane %v1622, %v1635
      %v1637 = vcombine.high %v1613, 0
      %v1638 = vcombine.high %v1620, 0
      %v1639 = vcombine.high %v1629, 0
      %v1640 = vcombine.high %v1636, 0
      %v1641 = vcombine.high %v1137, %v1097
      %v1643 = vunpack.c.l.s4 1983009808
      %v1644 = vunpack.c.0.s8 %v1643
      %v1645 = vlaneseq
      %v1646 = vshrl.u32 %v1645, 7
      %v1647 = vsub.s32 %v1644, %v1646
      %v1648 = vrot.slane %v1137, %v1647
      %v1650 = vunpack.c.l.s4 1983009808
      %v1651 = vunpack.c.0.s8 %v1650
      %v1652 = vlaneseq
      %v1653 = vshrl.u32 %v1652, 7
      %v1654 = vsub.s32 %v1651, %v1653
      %v1655 = vrot.slane %v1641, %v1654
      %v1656 = vcombine.high %v1145, %v1097
      %v1658 = vunpack.c.l.s4 1983009808
      %v1659 = vunpack.c.0.s8 %v1658
      %v1660 = vlaneseq
      %v1661 = vshrl.u32 %v1660, 7
      %v1662 = vsub.s32 %v1659, %v1661
      %v1663 = vrot.slane %v1145, %v1662
      %v1665 = vunpack.c.l.s4 1983009808
      %v1666 = vunpack.c.0.s8 %v1665
      %v1667 = vlaneseq
      %v1668 = vshrl.u32 %v1667, 7
      %v1669 = vsub.s32 %v1666, %v1668
      %v1670 = vrot.slane %v1656, %v1669
      %v1671 = vcombine.low %v1648, %v1663
      %v1672 = vcombine.high %v1648, %v1663
      %v1674 = vunpack.c.l.s4 1934713408
      %v1675 = vunpack.c.0.s8 %v1674
      %v1676 = vlaneseq
      %v1677 = vshrl.u32 %v1676, 7
      %v1678 = vsub.s32 %v1675, %v1677
      %v1679 = vrot.slane %v1671, %v1678
      %v1681 = vunpack.c.l.s4 1934713408
      %v1682 = vunpack.c.0.s8 %v1681
      %v1683 = vlaneseq
      %v1684 = vshrl.u32 %v1683, 7
      %v1685 = vsub.s32 %v1682, %v1684
      %v1686 = vrot.slane %v1672, %v1685
      %v1687 = vcombine.low %v1655, %v1670
      %v1688 = vcombine.high %v1655, %v1670
      %v1690 = vunpack.c.l.s4 1934713408
      %v1691 = vunpack.c.0.s8 %v1690
      %v1692 = vlaneseq
      %v1693 = vshrl.u32 %v1692, 7
      %v1694 = vsub.s32 %v1691, %v1693
      %v1695 = vrot.slane %v1687, %v1694
      %v1697 = vunpack.c.l.s4 1934713408
      %v1698 = vunpack.c.0.s8 %v1697
      %v1699 = vlaneseq
      %v1700 = vshrl.u32 %v1699, 7
      %v1701 = vsub.s32 %v1698, %v1700
      %v1702 = vrot.slane %v1688, %v1701
      %v1703 = vcombine.high %v1679, 0
      %v1704 = vcombine.high %v1686, 0
      %v1705 = vcombine.high %v1695, 0
      %v1706 = vcombine.high %v1702, 0
      %v1707 = vcombine.high %v1149, %v1094
      %v1709 = vunpack.c.l.s4 1983009808
      %v1710 = vunpack.c.0.s8 %v1709
      %v1711 = vlaneseq
      %v1712 = vshrl.u32 %v1711, 7
      %v1713 = vsub.s32 %v1710, %v1712
      %v1714 = vrot.slane %v1149, %v1713
      %v1716 = vunpack.c.l.s4 1983009808
      %v1717 = vunpack.c.0.s8 %v1716
      %v1718 = vlaneseq
      %v1719 = vshrl.u32 %v1718, 7
      %v1720 = vsub.s32 %v1717, %v1719
      %v1721 = vrot.slane %v1707, %v1720
      %v1722 = vcombine.high %v1157, %v1094
      %v1724 = vunpack.c.l.s4 1983009808
      %v1725 = vunpack.c.0.s8 %v1724
      %v1726 = vlaneseq
      %v1727 = vshrl.u32 %v1726, 7
      %v1728 = vsub.s32 %v1725, %v1727
      %v1729 = vrot.slane %v1157, %v1728
      %v1731 = vunpack.c.l.s4 1983009808
      %v1732 = vunpack.c.0.s8 %v1731
      %v1733 = vlaneseq
      %v1734 = vshrl.u32 %v1733, 7
      %v1735 = vsub.s32 %v1732, %v1734
      %v1736 = vrot.slane %v1722, %v1735
      %v1737 = vcombine.low %v1714, %v1729
      %v1738 = vcombine.high %v1714, %v1729
      %v1740 = vunpack.c.l.s4 1934713408
      %v1741 = vunpack.c.0.s8 %v1740
      %v1742 = vlaneseq
      %v1743 = vshrl.u32 %v1742, 7
      %v1744 = vsub.s32 %v1741, %v1743
      %v1745 = vrot.slane %v1737, %v1744
      %v1747 = vunpack.c.l.s4 1934713408
      %v1748 = vunpack.c.0.s8 %v1747
      %v1749 = vlaneseq
      %v1750 = vshrl.u32 %v1749, 7
      %v1751 = vsub.s32 %v1748, %v1750
      %v1752 = vrot.slane %v1738, %v1751
      %v1753 = vcombine.low %v1721, %v1736
      %v1754 = vcombine.high %v1721, %v1736
      %v1756 = vunpack.c.l.s4 1934713408
      %v1757 = vunpack.c.0.s8 %v1756
      %v1758 = vlaneseq
      %v1759 = vshrl.u32 %v1758, 7
      %v1760 = vsub.s32 %v1757, %v1759
      %v1761 = vrot.slane %v1753, %v1760
      %v1763 = vunpack.c.l.s4 1934713408
      %v1764 = vunpack.c.0.s8 %v1763
      %v1765 = vlaneseq
      %v1766 = vshrl.u32 %v1765, 7
      %v1767 = vsub.s32 %v1764, %v1766
      %v1768 = vrot.slane %v1754, %v1767
      %v1769 = vcombine.high %v1745, 0
      %v1770 = vcombine.high %v1752, 0
      %v1771 = vcombine.high %v1761, 0
      %v1772 = vcombine.high %v1768, 0
      %v1773 = vcombine.high %v1153, %v1097
      %v1775 = vunpack.c.l.s4 1983009808
      %v1776 = vunpack.c.0.s8 %v1775
      %v1777 = vlaneseq
      %v1778 = vshrl.u32 %v1777, 7
      %v1779 = vsub.s32 %v1776, %v1778
      %v1780 = vrot.slane %v1153, %v1779
      %v1782 = vunpack.c.l.s4 1983009808
      %v1783 = vunpack.c.0.s8 %v1782
      %v1784 = vlaneseq
      %v1785 = vshrl.u32 %v1784, 7
      %v1786 = vsub.s32 %v1783, %v1785
      %v1787 = vrot.slane %v1773, %v1786
      %v1788 = vcombine.high %v1161, %v1097
      %v1790 = vunpack.c.l.s4 1983009808
      %v1791 = vunpack.c.0.s8 %v1790
      %v1792 = vlaneseq
      %v1793 = vshrl.u32 %v1792, 7
      %v1794 = vsub.s32 %v1791, %v1793
      %v1795 = vrot.slane %v1161, %v1794
      %v1797 = vunpack.c.l.s4 1983009808
      %v1798 = vunpack.c.0.s8 %v1797
      %v1799 = vlaneseq
      %v1800 = vshrl.u32 %v1799, 7
      %v1801 = vsub.s32 %v1798, %v1800
      %v1802 = vrot.slane %v1788, %v1801
      %v1803 = vcombine.low %v1780, %v1795
      %v1804 = vcombine.high %v1780, %v1795
      %v1806 = vunpack.c.l.s4 1934713408
      %v1807 = vunpack.c.0.s8 %v1806
      %v1808 = vlaneseq
      %v1809 = vshrl.u32 %v1808, 7
      %v1810 = vsub.s32 %v1807, %v1809
      %v1811 = vrot.slane %v1803, %v1810
      %v1813 = vunpack.c.l.s4 1934713408
      %v1814 = vunpack.c.0.s8 %v1813
      %v1815 = vlaneseq
      %v1816 = vshrl.u32 %v1815, 7
      %v1817 = vsub.s32 %v1814, %v1816
      %v1818 = vrot.slane %v1804, %v1817
      %v1819 = vcombine.low %v1787, %v1802
      %v1820 = vcombine.high %v1787, %v1802
      %v1822 = vunpack.c.l.s4 1934713408
      %v1823 = vunpack.c.0.s8 %v1822
      %v1824 = vlaneseq
      %v1825 = vshrl.u32 %v1824, 7
      %v1826 = vsub.s32 %v1823, %v1825
      %v1827 = vrot.slane %v1819, %v1826
      %v1829 = vunpack.c.l.s4 1934713408
      %v1830 = vunpack.c.0.s8 %v1829
      %v1831 = vlaneseq
      %v1832 = vshrl.u32 %v1831, 7
      %v1833 = vsub.s32 %v1830, %v1832
      %v1834 = vrot.slane %v1820, %v1833
      %v1835 = vcombine.high %v1811, 0
      %v1836 = vcombine.high %v1818, 0
      %v1837 = vcombine.high %v1827, 0
      %v1838 = vcombine.high %v1834, 0
      %v1839 = vcombine.high %v1165, %v1094
      %v1841 = vunpack.c.l.s4 1983009808
      %v1842 = vunpack.c.0.s8 %v1841
      %v1843 = vlaneseq
      %v1844 = vshrl.u32 %v1843, 7
      %v1845 = vsub.s32 %v1842, %v1844
      %v1846 = vrot.slane %v1165, %v1845
      %v1848 = vunpack.c.l.s4 1983009808
      %v1849 = vunpack.c.0.s8 %v1848
      %v1850 = vlaneseq
      %v1851 = vshrl.u32 %v1850, 7
      %v1852 = vsub.s32 %v1849, %v1851
      %v1853 = vrot.slane %v1839, %v1852
      %v1854 = vcombine.high %v1173, %v1094
      %v1856 = vunpack.c.l.s4 1983009808
      %v1857 = vunpack.c.0.s8 %v1856
      %v1858 = vlaneseq
      %v1859 = vshrl.u32 %v1858, 7
      %v1860 = vsub.s32 %v1857, %v1859
      %v1861 = vrot.slane %v1173, %v1860
      %v1863 = vunpack.c.l.s4 1983009808
      %v1864 = vunpack.c.0.s8 %v1863
      %v1865 = vlaneseq
      %v1866 = vshrl.u32 %v1865, 7
      %v1867 = vsub.s32 %v1864, %v1866
      %v1868 = vrot.slane %v1854, %v1867
      %v1869 = vcombine.low %v1846, %v1861
      %v1870 = vcombine.high %v1846, %v1861
      %v1872 = vunpack.c.l.s4 1934713408
      %v1873 = vunpack.c.0.s8 %v1872
      %v1874 = vlaneseq
      %v1875 = vshrl.u32 %v1874, 7
      %v1876 = vsub.s32 %v1873, %v1875
      %v1877 = vrot.slane %v1869, %v1876
      %v1879 = vunpack.c.l.s4 1934713408
      %v1880 = vunpack.c.0.s8 %v1879
      %v1881 = vlaneseq
      %v1882 = vshrl.u32 %v1881, 7
      %v1883 = vsub.s32 %v1880, %v1882
      %v1884 = vrot.slane %v1870, %v1883
      %v1885 = vcombine.low %v1853, %v1868
      %v1886 = vcombine.high %v1853, %v1868
      %v1888 = vunpack.c.l.s4 1934713408
      %v1889 = vunpack.c.0.s8 %v1888
      %v1890 = vlaneseq
      %v1891 = vshrl.u32 %v1890, 7
      %v1892 = vsub.s32 %v1889, %v1891
      %v1893 = vrot.slane %v1885, %v1892
      %v1895 = vunpack.c.l.s4 1934713408
      %v1896 = vunpack.c.0.s8 %v1895
      %v1897 = vlaneseq
      %v1898 = vshrl.u32 %v1897, 7
      %v1899 = vsub.s32 %v1896, %v1898
      %v1900 = vrot.slane %v1886, %v1899
      %v1901 = vcombine.high %v1877, 0
      %v1902 = vcombine.high %v1884, 0
      %v1903 = vcombine.high %v1893, 0
      %v1904 = vcombine.high %v1900, 0
      %v1905 = vcombine.high %v1169, %v1097
      %v1907 = vunpack.c.l.s4 1983009808
      %v1908 = vunpack.c.0.s8 %v1907
      %v1909 = vlaneseq
      %v1910 = vshrl.u32 %v1909, 7
      %v1911 = vsub.s32 %v1908, %v1910
      %v1912 = vrot.slane %v1169, %v1911
      %v1914 = vunpack.c.l.s4 1983009808
      %v1915 = vunpack.c.0.s8 %v1914
      %v1916 = vlaneseq
      %v1917 = vshrl.u32 %v1916, 7
      %v1918 = vsub.s32 %v1915, %v1917
      %v1919 = vrot.slane %v1905, %v1918
      %v1920 = vcombine.high %v1177, %v1097
      %v1922 = vunpack.c.l.s4 1983009808
      %v1923 = vunpack.c.0.s8 %v1922
      %v1924 = vlaneseq
      %v1925 = vshrl.u32 %v1924, 7
      %v1926 = vsub.s32 %v1923, %v1925
      %v1927 = vrot.slane %v1177, %v1926
      %v1929 = vunpack.c.l.s4 1983009808
      %v1930 = vunpack.c.0.s8 %v1929
      %v1931 = vlaneseq
      %v1932 = vshrl.u32 %v1931, 7
      %v1933 = vsub.s32 %v1930, %v1932
      %v1934 = vrot.slane %v1920, %v1933
      %v1935 = vcombine.low %v1912, %v1927
      %v1936 = vcombine.high %v1912, %v1927
      %v1938 = vunpack.c.l.s4 1934713408
      %v1939 = vunpack.c.0.s8 %v1938
      %v1940 = vlaneseq
      %v1941 = vshrl.u32 %v1940, 7
      %v1942 = vsub.s32 %v1939, %v1941
      %v1943 = vrot.slane %v1935, %v1942
      %v1945 = vunpack.c.l.s4 1934713408
      %v1946 = vunpack.c.0.s8 %v1945
      %v1947 = vlaneseq
      %v1948 = vshrl.u32 %v1947, 7
      %v1949 = vsub.s32 %v1946, %v1948
      %v1950 = vrot.slane %v1936, %v1949
      %v1951 = vcombine.low %v1919, %v1934
      %v1952 = vcombine.high %v1919, %v1934
      %v1954 = vunpack.c.l.s4 1934713408
      %v1955 = vunpack.c.0.s8 %v1954
      %v1956 = vlaneseq
      %v1957 = vshrl.u32 %v1956, 7
      %v1958 = vsub.s32 %v1955, %v1957
      %v1959 = vrot.slane %v1951, %v1958
      %v1961 = vunpack.c.l.s4 1934713408
      %v1962 = vunpack.c.0.s8 %v1961
      %v1963 = vlaneseq
      %v1964 = vshrl.u32 %v1963, 7
      %v1965 = vsub.s32 %v1962, %v1964
      %v1966 = vrot.slane %v1952, %v1965
      %v1967 = vcombine.high %v1943, 0
      %v1968 = vcombine.high %v1950, 0
      %v1969 = vcombine.high %v1959, 0
      %v1970 = vcombine.high %v1966, 0
      %v1971 = vcombine.low %v1217, %v1224
      %v1973 = vunpack.c.l.s4 1983009808
      %v1974 = vunpack.c.0.s8 %v1973
      %v1975 = vlaneseq
      %v1976 = vshrl.u32 %v1975, 7
      %v1977 = vsub.s32 %v1974, %v1976
      %v1978 = vrot.slane %v1971, %v1977
      %v1979 = vcombine.low %v1241, %v1242
      %v1981 = vunpack.c.l.s4 1983009808
      %v1982 = vunpack.c.0.s8 %v1981
      %v1983 = vlaneseq
      %v1984 = vshrl.u32 %v1983, 7
      %v1985 = vsub.s32 %v1982, %v1984
      %v1986 = vrot.slane %v1979, %v1985
      %v1987 = vcombine.low %v1233, %v1240
      %v1989 = vunpack.c.l.s4 1983009808
      %v1990 = vunpack.c.0.s8 %v1989
      %v1991 = vlaneseq
      %v1992 = vshrl.u32 %v1991, 7
      %v1993 = vsub.s32 %v1990, %v1992
      %v1994 = vrot.slane %v1987, %v1993
      %v1995 = vcombine.low %v1243, %v1244
      %v1997 = vunpack.c.l.s4 1983009808
      %v1998 = vunpack.c.0.s8 %v1997
      %v1999 = vlaneseq
      %v2000 = vshrl.u32 %v1999, 7
      %v2001 = vsub.s32 %v1998, %v2000
      %v2002 = vrot.slane %v1995, %v2001
      %v2003 = vcombine.low %v1978, %v1986
      %v2005 = vunpack.c.l.s4 1934713408
      %v2006 = vunpack.c.0.s8 %v2005
      %v2007 = vlaneseq
      %v2008 = vshrl.u32 %v2007, 7
      %v2009 = vsub.s32 %v2006, %v2008
      %v2010 = vrot.slane %v2003, %v2009
      %v2011 = vcombine.low %v1994, %v2002
      %v2013 = vunpack.c.l.s4 1934713408
      %v2014 = vunpack.c.0.s8 %v2013
      %v2015 = vlaneseq
      %v2016 = vshrl.u32 %v2015, 7
      %v2017 = vsub.s32 %v2014, %v2016
      %v2018 = vrot.slane %v2011, %v2017
      %v2019 = vcombine.low %v2010, %v2018
      %v2020 = vcombine.high %v2010, %v2018
      %v2021 = vcombine.low %v1283, %v1290
      %v2023 = vunpack.c.l.s4 1983009808
      %v2024 = vunpack.c.0.s8 %v2023
      %v2025 = vlaneseq
      %v2026 = vshrl.u32 %v2025, 7
      %v2027 = vsub.s32 %v2024, %v2026
      %v2028 = vrot.slane %v2021, %v2027
      %v2029 = vcombine.low %v1307, %v1308
      %v2031 = vunpack.c.l.s4 1983009808
      %v2032 = vunpack.c.0.s8 %v2031
      %v2033 = vlaneseq
      %v2034 = vshrl.u32 %v2033, 7
      %v2035 = vsub.s32 %v2032, %v2034
      %v2036 = vrot.slane %v2029, %v2035
      %v2037 = vcombine.low %v1299, %v1306
      %v2039 = vunpack.c.l.s4 1983009808
      %v2040 = vunpack.c.0.s8 %v2039
      %v2041 = vlaneseq
      %v2042 = vshrl.u32 %v2041, 7
      %v2043 = vsub.s32 %v2040, %v2042
      %v2044 = vrot.slane %v2037, %v2043
      %v2045 = vcombine.low %v1309, %v1310
      %v2047 = vunpack.c.l.s4 1983009808
      %v2048 = vunpack.c.0.s8 %v2047
      %v2049 = vlaneseq
      %v2050 = vshrl.u32 %v2049, 7
      %v2051 = vsub.s32 %v2048, %v2050
      %v2052 = vrot.slane %v2045, %v2051
      %v2053 = vcombine.low %v2028, %v2036
      %v2055 = vunpack.c.l.s4 1934713408
      %v2056 = vunpack.c.0.s8 %v2055
      %v2057 = vlaneseq
      %v2058 = vshrl.u32 %v2057, 7
      %v2059 = vsub.s32 %v2056, %v2058
      %v2060 = vrot.slane %v2053, %v2059
      %v2061 = vcombine.low %v2044, %v2052
      %v2063 = vunpack.c.l.s4 1934713408
      %v2064 = vunpack.c.0.s8 %v2063
      %v2065 = vlaneseq
      %v2066 = vshrl.u32 %v2065, 7
      %v2067 = vsub.s32 %v2064, %v2066
      %v2068 = vrot.slane %v2061, %v2067
      %v2069 = vcombine.low %v2060, %v2068
      %v2070 = vcombine.high %v2060, %v2068
      %v2071 = vcombine.low %v1349, %v1356
      %v2073 = vunpack.c.l.s4 1983009808
      %v2074 = vunpack.c.0.s8 %v2073
      %v2075 = vlaneseq
      %v2076 = vshrl.u32 %v2075, 7
      %v2077 = vsub.s32 %v2074, %v2076
      %v2078 = vrot.slane %v2071, %v2077
      %v2079 = vcombine.low %v1373, %v1374
      %v2081 = vunpack.c.l.s4 1983009808
      %v2082 = vunpack.c.0.s8 %v2081
      %v2083 = vlaneseq
      %v2084 = vshrl.u32 %v2083, 7
      %v2085 = vsub.s32 %v2082, %v2084
      %v2086 = vrot.slane %v2079, %v2085
      %v2087 = vcombine.low %v1365, %v1372
      %v2089 = vunpack.c.l.s4 1983009808
      %v2090 = vunpack.c.0.s8 %v2089
      %v2091 = vlaneseq
      %v2092 = vshrl.u32 %v2091, 7
      %v2093 = vsub.s32 %v2090, %v2092
      %v2094 = vrot.slane %v2087, %v2093
      %v2095 = vcombine.low %v1375, %v1376
      %v2097 = vunpack.c.l.s4 1983009808
      %v2098 = vunpack.c.0.s8 %v2097
      %v2099 = vlaneseq
      %v2100 = vshrl.u32 %v2099, 7
      %v2101 = vsub.s32 %v2098, %v2100
      %v2102 = vrot.slane %v2095, %v2101
      %v2103 = vcombine.low %v2078, %v2086
      %v2105 = vunpack.c.l.s4 1934713408
      %v2106 = vunpack.c.0.s8 %v2105
      %v2107 = vlaneseq
      %v2108 = vshrl.u32 %v2107, 7
      %v2109 = vsub.s32 %v2106, %v2108
      %v2110 = vrot.slane %v2103, %v2109
      %v2111 = vcombine.low %v2094, %v2102
      %v2113 = vunpack.c.l.s4 1934713408
      %v2114 = vunpack.c.0.s8 %v2113
      %v2115 = vlaneseq
      %v2116 = vshrl.u32 %v2115, 7
      %v2117 = vsub.s32 %v2114, %v2116
      %v2118 = vrot.slane %v2111, %v2117
      %v2119 = vcombine.low %v2110, %v2118
      %v2120 = vcombine.high %v2110, %v2118
      %v2121 = vcombine.low %v1415, %v1422
      %v2123 = vunpack.c.l.s4 1983009808
      %v2124 = vunpack.c.0.s8 %v2123
      %v2125 = vlaneseq
      %v2126 = vshrl.u32 %v2125, 7
      %v2127 = vsub.s32 %v2124, %v2126
      %v2128 = vrot.slane %v2121, %v2127
      %v2129 = vcombine.low %v1439, %v1440
      %v2131 = vunpack.c.l.s4 1983009808
      %v2132 = vunpack.c.0.s8 %v2131
      %v2133 = vlaneseq
      %v2134 = vshrl.u32 %v2133, 7
      %v2135 = vsub.s32 %v2132, %v2134
      %v2136 = vrot.slane %v2129, %v2135
      %v2137 = vcombine.low %v1431, %v1438
      %v2139 = vunpack.c.l.s4 1983009808
      %v2140 = vunpack.c.0.s8 %v2139
      %v2141 = vlaneseq
      %v2142 = vshrl.u32 %v2141, 7
      %v2143 = vsub.s32 %v2140, %v2142
      %v2144 = vrot.slane %v2137, %v2143
      %v2145 = vcombine.low %v1441, %v1442
      %v2147 = vunpack.c.l.s4 1983009808
      %v2148 = vunpack.c.0.s8 %v2147
      %v2149 = vlaneseq
      %v2150 = vshrl.u32 %v2149, 7
      %v2151 = vsub.s32 %v2148, %v2150
      %v2152 = vrot.slane %v2145, %v2151
      %v2153 = vcombine.low %v2128, %v2136
      %v2155 = vunpack.c.l.s4 1934713408
      %v2156 = vunpack.c.0.s8 %v2155
      %v2157 = vlaneseq
      %v2158 = vshrl.u32 %v2157, 7
      %v2159 = vsub.s32 %v2156, %v2158
      %v2160 = vrot.slane %v2153, %v2159
      %v2161 = vcombine.low %v2144, %v2152
      %v2163 = vunpack.c.l.s4 1934713408
      %v2164 = vunpack.c.0.s8 %v2163
      %v2165 = vlaneseq
      %v2166 = vshrl.u32 %v2165, 7
      %v2167 = vsub.s32 %v2164, %v2166
      %v2168 = vrot.slane %v2161, %v2167
      %v2169 = vcombine.low %v2160, %v2168
      %v2170 = vcombine.high %v2160, %v2168
      %v2171 = vcombine.low %v1481, %v1488
      %v2173 = vunpack.c.l.s4 1983009808
      %v2174 = vunpack.c.0.s8 %v2173
      %v2175 = vlaneseq
      %v2176 = vshrl.u32 %v2175, 7
      %v2177 = vsub.s32 %v2174, %v2176
      %v2178 = vrot.slane %v2171, %v2177
      %v2179 = vcombine.low %v1505, %v1506
      %v2181 = vunpack.c.l.s4 1983009808
      %v2182 = vunpack.c.0.s8 %v2181
      %v2183 = vlaneseq
      %v2184 = vshrl.u32 %v2183, 7
      %v2185 = vsub.s32 %v2182, %v2184
      %v2186 = vrot.slane %v2179, %v2185
      %v2187 = vcombine.low %v1497, %v1504
      %v2189 = vunpack.c.l.s4 1983009808
      %v2190 = vunpack.c.0.s8 %v2189
      %v2191 = vlaneseq
      %v2192 = vshrl.u32 %v2191, 7
      %v2193 = vsub.s32 %v2190, %v2192
      %v2194 = vrot.slane %v2187, %v2193
      %v2195 = vcombine.low %v1507, %v1508
      %v2197 = vunpack.c.l.s4 1983009808
      %v2198 = vunpack.c.0.s8 %v2197
      %v2199 = vlaneseq
      %v2200 = vshrl.u32 %v2199, 7
      %v2201 = vsub.s32 %v2198, %v2200
      %v2202 = vrot.slane %v2195, %v2201
      %v2203 = vcombine.low %v2178, %v2186
      %v2205 = vunpack.c.l.s4 1934713408
      %v2206 = vunpack.c.0.s8 %v2205
      %v2207 = vlaneseq
      %v2208 = vshrl.u32 %v2207, 7
      %v2209 = vsub.s32 %v2206, %v2208
      %v2210 = vrot.slane %v2203, %v2209
      %v2211 = vcombine.low %v2194, %v2202
      %v2213 = vunpack.c.l.s4 1934713408
      %v2214 = vunpack.c.0.s8 %v2213
      %v2215 = vlaneseq
      %v2216 = vshrl.u32 %v2215, 7
      %v2217 = vsub.s32 %v2214, %v2216
      %v2218 = vrot.slane %v2211, %v2217
      %v2219 = vcombine.low %v2210, %v2218
      %v2220 = vcombine.high %v2210, %v2218
      %v2221 = vcombine.low %v1547, %v1554
      %v2223 = vunpack.c.l.s4 1983009808
      %v2224 = vunpack.c.0.s8 %v2223
      %v2225 = vlaneseq
      %v2226 = vshrl.u32 %v2225, 7
      %v2227 = vsub.s32 %v2224, %v2226
      %v2228 = vrot.slane %v2221, %v2227
      %v2229 = vcombine.low %v1571, %v1572
      %v2231 = vunpack.c.l.s4 1983009808
      %v2232 = vunpack.c.0.s8 %v2231
      %v2233 = vlaneseq
      %v2234 = vshrl.u32 %v2233, 7
      %v2235 = vsub.s32 %v2232, %v2234
      %v2236 = vrot.slane %v2229, %v2235
      %v2237 = vcombine.low %v1563, %v1570
      %v2239 = vunpack.c.l.s4 1983009808
      %v2240 = vunpack.c.0.s8 %v2239
      %v2241 = vlaneseq
      %v2242 = vshrl.u32 %v2241, 7
      %v2243 = vsub.s32 %v2240, %v2242
      %v2244 = vrot.slane %v2237, %v2243
      %v2245 = vcombine.low %v1573, %v1574
      %v2247 = vunpack.c.l.s4 1983009808
      %v2248 = vunpack.c.0.s8 %v2247
      %v2249 = vlaneseq
      %v2250 = vshrl.u32 %v2249, 7
      %v2251 = vsub.s32 %v2248, %v2250
      %v2252 = vrot.slane %v2245, %v2251
      %v2253 = vcombine.low %v2228, %v2236
      %v2255 = vunpack.c.l.s4 1934713408
      %v2256 = vunpack.c.0.s8 %v2255
      %v2257 = vlaneseq
      %v2258 = vshrl.u32 %v2257, 7
      %v2259 = vsub.s32 %v2256, %v2258
      %v2260 = vrot.slane %v2253, %v2259
      %v2261 = vcombine.low %v2244, %v2252
      %v2263 = vunpack.c.l.s4 1934713408
      %v2264 = vunpack.c.0.s8 %v2263
      %v2265 = vlaneseq
      %v2266 = vshrl.u32 %v2265, 7
      %v2267 = vsub.s32 %v2264, %v2266
      %v2268 = vrot.slane %v2261, %v2267
      %v2269 = vcombine.low %v2260, %v2268
      %v2270 = vcombine.high %v2260, %v2268
      %v2271 = vcombine.low %v1613, %v1620
      %v2273 = vunpack.c.l.s4 1983009808
      %v2274 = vunpack.c.0.s8 %v2273
      %v2275 = vlaneseq
      %v2276 = vshrl.u32 %v2275, 7
      %v2277 = vsub.s32 %v2274, %v2276
      %v2278 = vrot.slane %v2271, %v2277
      %v2279 = vcombine.low %v1637, %v1638
      %v2281 = vunpack.c.l.s4 1983009808
      %v2282 = vunpack.c.0.s8 %v2281
      %v2283 = vlaneseq
      %v2284 = vshrl.u32 %v2283, 7
      %v2285 = vsub.s32 %v2282, %v2284
      %v2286 = vrot.slane %v2279, %v2285
      %v2287 = vcombine.low %v1629, %v1636
      %v2289 = vunpack.c.l.s4 1983009808
      %v2290 = vunpack.c.0.s8 %v2289
      %v2291 = vlaneseq
      %v2292 = vshrl.u32 %v2291, 7
      %v2293 = vsub.s32 %v2290, %v2292
      %v2294 = vrot.slane %v2287, %v2293
      %v2295 = vcombine.low %v1639, %v1640
      %v2297 = vunpack.c.l.s4 1983009808
      %v2298 = vunpack.c.0.s8 %v2297
      %v2299 = vlaneseq
      %v2300 = vshrl.u32 %v2299, 7
      %v2301 = vsub.s32 %v2298, %v2300
      %v2302 = vrot.slane %v2295, %v2301
      %v2303 = vcombine.low %v2278, %v2286
      %v2305 = vunpack.c.l.s4 1934713408
      %v2306 = vunpack.c.0.s8 %v2305
      %v2307 = vlaneseq
      %v2308 = vshrl.u32 %v2307, 7
      %v2309 = vsub.s32 %v2306, %v2308
      %v2310 = vrot.slane %v2303, %v2309
      %v2311 = vcombine.low %v2294, %v2302
      %v2313 = vunpack.c.l.s4 1934713408
      %v2314 = vunpack.c.0.s8 %v2313
      %v2315 = vlaneseq
      %v2316 = vshrl.u32 %v2315, 7
      %v2317 = vsub.s32 %v2314, %v2316
      %v2318 = vrot.slane %v2311, %v2317
      %v2319 = vcombine.low %v2310, %v2318
      %v2320 = vcombine.high %v2310, %v2318
      %v2321 = vcombine.low %v1679, %v1686
      %v2323 = vunpack.c.l.s4 1983009808
      %v2324 = vunpack.c.0.s8 %v2323
      %v2325 = vlaneseq
      %v2326 = vshrl.u32 %v2325, 7
      %v2327 = vsub.s32 %v2324, %v2326
      %v2328 = vrot.slane %v2321, %v2327
      %v2329 = vcombine.low %v1703, %v1704
      %v2331 = vunpack.c.l.s4 1983009808
      %v2332 = vunpack.c.0.s8 %v2331
      %v2333 = vlaneseq
      %v2334 = vshrl.u32 %v2333, 7
      %v2335 = vsub.s32 %v2332, %v2334
      %v2336 = vrot.slane %v2329, %v2335
      %v2337 = vcombine.low %v1695, %v1702
      %v2339 = vunpack.c.l.s4 1983009808
      %v2340 = vunpack.c.0.s8 %v2339
      %v2341 = vlaneseq
      %v2342 = vshrl.u32 %v2341, 7
      %v2343 = vsub.s32 %v2340, %v2342
      %v2344 = vrot.slane %v2337, %v2343
      %v2345 = vcombine.low %v1705, %v1706
      %v2347 = vunpack.c.l.s4 1983009808
      %v2348 = vunpack.c.0.s8 %v2347
      %v2349 = vlaneseq
      %v2350 = vshrl.u32 %v2349, 7
      %v2351 = vsub.s32 %v2348, %v2350
      %v2352 = vrot.slane %v2345, %v2351
      %v2353 = vcombine.low %v2328, %v2336
      %v2355 = vunpack.c.l.s4 1934713408
      %v2356 = vunpack.c.0.s8 %v2355
      %v2357 = vlaneseq
      %v2358 = vshrl.u32 %v2357, 7
      %v2359 = vsub.s32 %v2356, %v2358
      %v2360 = vrot.slane %v2353, %v2359
      %v2361 = vcombine.low %v2344, %v2352
      %v2363 = vunpack.c.l.s4 1934713408
      %v2364 = vunpack.c.0.s8 %v2363
      %v2365 = vlaneseq
      %v2366 = vshrl.u32 %v2365, 7
      %v2367 = vsub.s32 %v2364, %v2366
      %v2368 = vrot.slane %v2361, %v2367
      %v2369 = vcombine.low %v2360, %v2368
      %v2370 = vcombine.high %v2360, %v2368
      %v2371 = vcombine.low %v1745, %v1752
      %v2373 = vunpack.c.l.s4 1983009808
      %v2374 = vunpack.c.0.s8 %v2373
      %v2375 = vlaneseq
      %v2376 = vshrl.u32 %v2375, 7
      %v2377 = vsub.s32 %v2374, %v2376
      %v2378 = vrot.slane %v2371, %v2377
      %v2379 = vcombine.low %v1769, %v1770
      %v2381 = vunpack.c.l.s4 1983009808
      %v2382 = vunpack.c.0.s8 %v2381
      %v2383 = vlaneseq
      %v2384 = vshrl.u32 %v2383, 7
      %v2385 = vsub.s32 %v2382, %v2384
      %v2386 = vrot.slane %v2379, %v2385
      %v2387 = vcombine.low %v1761, %v1768
      %v2389 = vunpack.c.l.s4 1983009808
      %v2390 = vunpack.c.0.s8 %v2389
      %v2391 = vlaneseq
      %v2392 = vshrl.u32 %v2391, 7
      %v2393 = vsub.s32 %v2390, %v2392
      %v2394 = vrot.slane %v2387, %v2393
      %v2395 = vcombine.low %v1771, %v1772
      %v2397 = vunpack.c.l.s4 1983009808
      %v2398 = vunpack.c.0.s8 %v2397
      %v2399 = vlaneseq
      %v2400 = vshrl.u32 %v2399, 7
      %v2401 = vsub.s32 %v2398, %v2400
      %v2402 = vrot.slane %v2395, %v2401
      %v2403 = vcombine.low %v2378, %v2386
      %v2405 = vunpack.c.l.s4 1934713408
      %v2406 = vunpack.c.0.s8 %v2405
      %v2407 = vlaneseq
      %v2408 = vshrl.u32 %v2407, 7
      %v2409 = vsub.s32 %v2406, %v2408
      %v2410 = vrot.slane %v2403, %v2409
      %v2411 = vcombine.low %v2394, %v2402
      %v2413 = vunpack.c.l.s4 1934713408
      %v2414 = vunpack.c.0.s8 %v2413
      %v2415 = vlaneseq
      %v2416 = vshrl.u32 %v2415, 7
      %v2417 = vsub.s32 %v2414, %v2416
      %v2418 = vrot.slane %v2411, %v2417
      %v2419 = vcombine.low %v2410, %v2418
      %v2420 = vcombine.high %v2410, %v2418
      %v2421 = vcombine.low %v1811, %v1818
      %v2423 = vunpack.c.l.s4 1983009808
      %v2424 = vunpack.c.0.s8 %v2423
      %v2425 = vlaneseq
      %v2426 = vshrl.u32 %v2425, 7
      %v2427 = vsub.s32 %v2424, %v2426
      %v2428 = vrot.slane %v2421, %v2427
      %v2429 = vcombine.low %v1835, %v1836
      %v2431 = vunpack.c.l.s4 1983009808
      %v2432 = vunpack.c.0.s8 %v2431
      %v2433 = vlaneseq
      %v2434 = vshrl.u32 %v2433, 7
      %v2435 = vsub.s32 %v2432, %v2434
      %v2436 = vrot.slane %v2429, %v2435
      %v2437 = vcombine.low %v1827, %v1834
      %v2439 = vunpack.c.l.s4 1983009808
      %v2440 = vunpack.c.0.s8 %v2439
      %v2441 = vlaneseq
      %v2442 = vshrl.u32 %v2441, 7
      %v2443 = vsub.s32 %v2440, %v2442
      %v2444 = vrot.slane %v2437, %v2443
      %v2445 = vcombine.low %v1837, %v1838
      %v2447 = vunpack.c.l.s4 1983009808
      %v2448 = vunpack.c.0.s8 %v2447
      %v2449 = vlaneseq
      %v2450 = vshrl.u32 %v2449, 7
      %v2451 = vsub.s32 %v2448, %v2450
      %v2452 = vrot.slane %v2445, %v2451
      %v2453 = vcombine.low %v2428, %v2436
      %v2455 = vunpack.c.l.s4 1934713408
      %v2456 = vunpack.c.0.s8 %v2455
      %v2457 = vlaneseq
      %v2458 = vshrl.u32 %v2457, 7
      %v2459 = vsub.s32 %v2456, %v2458
      %v2460 = vrot.slane %v2453, %v2459
      %v2461 = vcombine.low %v2444, %v2452
      %v2463 = vunpack.c.l.s4 1934713408
      %v2464 = vunpack.c.0.s8 %v2463
      %v2465 = vlaneseq
      %v2466 = vshrl.u32 %v2465, 7
      %v2467 = vsub.s32 %v2464, %v2466
      %v2468 = vrot.slane %v2461, %v2467
      %v2469 = vcombine.low %v2460, %v2468
      %v2470 = vcombine.high %v2460, %v2468
      %v2471 = vcombine.low %v1877, %v1884
      %v2473 = vunpack.c.l.s4 1983009808
      %v2474 = vunpack.c.0.s8 %v2473
      %v2475 = vlaneseq
      %v2476 = vshrl.u32 %v2475, 7
      %v2477 = vsub.s32 %v2474, %v2476
      %v2478 = vrot.slane %v2471, %v2477
      %v2479 = vcombine.low %v1901, %v1902
      %v2481 = vunpack.c.l.s4 1983009808
      %v2482 = vunpack.c.0.s8 %v2481
      %v2483 = vlaneseq
      %v2484 = vshrl.u32 %v2483, 7
      %v2485 = vsub.s32 %v2482, %v2484
      %v2486 = vrot.slane %v2479, %v2485
      %v2487 = vcombine.low %v1893, %v1900
      %v2489 = vunpack.c.l.s4 1983009808
      %v2490 = vunpack.c.0.s8 %v2489
      %v2491 = vlaneseq
      %v2492 = vshrl.u32 %v2491, 7
      %v2493 = vsub.s32 %v2490, %v2492
      %v2494 = vrot.slane %v2487, %v2493
      %v2495 = vcombine.low %v1903, %v1904
      %v2497 = vunpack.c.l.s4 1983009808
      %v2498 = vunpack.c.0.s8 %v2497
      %v2499 = vlaneseq
      %v2500 = vshrl.u32 %v2499, 7
      %v2501 = vsub.s32 %v2498, %v2500
      %v2502 = vrot.slane %v2495, %v2501
      %v2503 = vcombine.low %v2478, %v2486
      %v2505 = vunpack.c.l.s4 1934713408
      %v2506 = vunpack.c.0.s8 %v2505
      %v2507 = vlaneseq
      %v2508 = vshrl.u32 %v2507, 7
      %v2509 = vsub.s32 %v2506, %v2508
      %v2510 = vrot.slane %v2503, %v2509
      %v2511 = vcombine.low %v2494, %v2502
      %v2513 = vunpack.c.l.s4 1934713408
      %v2514 = vunpack.c.0.s8 %v2513
      %v2515 = vlaneseq
      %v2516 = vshrl.u32 %v2515, 7
      %v2517 = vsub.s32 %v2514, %v2516
      %v2518 = vrot.slane %v2511, %v2517
      %v2519 = vcombine.low %v2510, %v2518
      %v2520 = vcombine.high %v2510, %v2518
      %v2521 = vcombine.low %v1943, %v1950
      %v2523 = vunpack.c.l.s4 1983009808
      %v2524 = vunpack.c.0.s8 %v2523
      %v2525 = vlaneseq
      %v2526 = vshrl.u32 %v2525, 7
      %v2527 = vsub.s32 %v2524, %v2526
      %v2528 = vrot.slane %v2521, %v2527
      %v2529 = vcombine.low %v1967, %v1968
      %v2531 = vunpack.c.l.s4 1983009808
      %v2532 = vunpack.c.0.s8 %v2531
      %v2533 = vlaneseq
      %v2534 = vshrl.u32 %v2533, 7
      %v2535 = vsub.s32 %v2532, %v2534
      %v2536 = vrot.slane %v2529, %v2535
      %v2537 = vcombine.low %v1959, %v1966
      %v2539 = vunpack.c.l.s4 1983009808
      %v2540 = vunpack.c.0.s8 %v2539
      %v2541 = vlaneseq
      %v2542 = vshrl.u32 %v2541, 7
      %v2543 = vsub.s32 %v2540, %v2542
      %v2544 = vrot.slane %v2537, %v2543
      %v2545 = vcombine.low %v1969, %v1970
      %v2547 = vunpack.c.l.s4 1983009808
      %v2548 = vunpack.c.0.s8 %v2547
      %v2549 = vlaneseq
      %v2550 = vshrl.u32 %v2549, 7
      %v2551 = vsub.s32 %v2548, %v2550
      %v2552 = vrot.slane %v2545, %v2551
      %v2553 = vcombine.low %v2528, %v2536
      %v2555 = vunpack.c.l.s4 1934713408
      %v2556 = vunpack.c.0.s8 %v2555
      %v2557 = vlaneseq
      %v2558 = vshrl.u32 %v2557, 7
      %v2559 = vsub.s32 %v2556, %v2558
      %v2560 = vrot.slane %v2553, %v2559
      %v2561 = vcombine.low %v2544, %v2552
      %v2563 = vunpack.c.l.s4 1934713408
      %v2564 = vunpack.c.0.s8 %v2563
      %v2565 = vlaneseq
      %v2566 = vshrl.u32 %v2565, 7
      %v2567 = vsub.s32 %v2564, %v2566
      %v2568 = vrot.slane %v2561, %v2567
      %v2569 = vcombine.low %v2560, %v2568
      %v2570 = vcombine.high %v2560, %v2568
      %v2573 = vpack.i.b16 %v2069, %v2019
      %v2574 = vshrl.u32 %v2019, 16
      %v2575 = vshrl.u32 %v2069, 16
      %v2576 = vpack.i.b16 %v2575, %v2574
      %v2579 = vpack.i.b16 %v2070, %v2020
      %v2580 = vshrl.u32 %v2020, 16
      %v2581 = vshrl.u32 %v2070, 16
      %v2582 = vpack.i.b16 %v2581, %v2580
      %v2585 = vpack.i.b16 %v2169, %v2119
      %v2586 = vshrl.u32 %v2119, 16
      %v2587 = vshrl.u32 %v2169, 16
      %v2588 = vpack.i.b16 %v2587, %v2586
      %v2591 = vpack.i.b16 %v2170, %v2120
      %v2592 = vshrl.u32 %v2120, 16
      %v2593 = vshrl.u32 %v2170, 16
      %v2594 = vpack.i.b16 %v2593, %v2592
      %v2597 = vpack.i.b16 %v2269, %v2219
      %v2598 = vshrl.u32 %v2219, 16
      %v2599 = vshrl.u32 %v2269, 16
      %v2600 = vpack.i.b16 %v2599, %v2598
      %v2603 = vpack.i.b16 %v2270, %v2220
      %v2604 = vshrl.u32 %v2220, 16
      %v2605 = vshrl.u32 %v2270, 16
      %v2606 = vpack.i.b16 %v2605, %v2604
      %v2609 = vpack.i.b16 %v2369, %v2319
      %v2610 = vshrl.u32 %v2319, 16
      %v2611 = vshrl.u32 %v2369, 16
      %v2612 = vpack.i.b16 %v2611, %v2610
      %v2615 = vpack.i.b16 %v2370, %v2320
      %v2616 = vshrl.u32 %v2320, 16
      %v2617 = vshrl.u32 %v2370, 16
      %v2618 = vpack.i.b16 %v2617, %v2616
      %v2621 = vpack.i.b16 %v2469, %v2419
      %v2622 = vshrl.u32 %v2419, 16
      %v2623 = vshrl.u32 %v2469, 16
      %v2624 = vpack.i.b16 %v2623, %v2622
      %v2627 = vpack.i.b16 %v2470, %v2420
      %v2628 = vshrl.u32 %v2420, 16
      %v2629 = vshrl.u32 %v2470, 16
      %v2630 = vpack.i.b16 %v2629, %v2628
      %v2633 = vpack.i.b16 %v2569, %v2519
      %v2634 = vshrl.u32 %v2519, 16
      %v2635 = vshrl.u32 %v2569, 16
      %v2636 = vpack.i.b16 %v2635, %v2634
      %v2639 = vpack.i.b16 %v2570, %v2520
      %v2640 = vshrl.u32 %v2520, 16
      %v2641 = vshrl.u32 %v2570, 16
      %v2642 = vpack.i.b16 %v2641, %v2640
      %2649 = vrot.lane.b32.xlu0 %v1029, 120
      %v2650 = vpop.permute.xlu0 %2649
      %2651 = vrot.lane.b32.xlu0 %v1030, 120
      %v2652 = vpop.permute.xlu0 %2651
      %2653 = vrot.lane.b32.xlu0 %v1031, 120
      %v2654 = vpop.permute.xlu0 %2653
      %2655 = vrot.lane.b32.xlu0 %v1032, 120
      %v2656 = vpop.permute.xlu0 %2655
      %2657 = vrot.lane.b32.xlu0 %v1033, 120
      %v2658 = vpop.permute.xlu0 %2657
      %2659 = vrot.lane.b32.xlu0 %v1034, 120
      %v2660 = vpop.permute.xlu0 %2659
      %2661 = vrot.lane.b32.xlu0 %v1029, 112
      %v2662 = vpop.permute.xlu0 %2661
      %2663 = vrot.lane.b32.xlu0 %v1030, 112
      %v2664 = vpop.permute.xlu0 %2663
      %2665 = vrot.lane.b32.xlu0 %v1031, 112
      %v2666 = vpop.permute.xlu0 %2665
      %2667 = vrot.lane.b32.xlu0 %v1032, 112
      %v2668 = vpop.permute.xlu0 %2667
      %2669 = vrot.lane.b32.xlu0 %v1033, 112
      %v2670 = vpop.permute.xlu0 %2669
      %2671 = vrot.lane.b32.xlu0 %v1034, 112
      %v2672 = vpop.permute.xlu0 %2671
      %2673 = vrot.lane.b32.xlu0 %v1029, 104
      %v2674 = vpop.permute.xlu0 %2673
      %2675 = vrot.lane.b32.xlu0 %v1030, 104
      %v2676 = vpop.permute.xlu0 %2675
      %2677 = vrot.lane.b32.xlu0 %v1031, 104
      %v2678 = vpop.permute.xlu0 %2677
      %2679 = vrot.lane.b32.xlu0 %v1032, 104
      %v2680 = vpop.permute.xlu0 %2679
      %2681 = vrot.lane.b32.xlu0 %v1033, 104
      %v2682 = vpop.permute.xlu0 %2681
      %2683 = vrot.lane.b32.xlu0 %v1034, 104
      %v2684 = vpop.permute.xlu0 %2683
      %2685 = vrot.lane.b32.xlu0 %v1029, 96
      %v2686 = vpop.permute.xlu0 %2685
      %2687 = vrot.lane.b32.xlu0 %v1030, 96
      %v2688 = vpop.permute.xlu0 %2687
      %2689 = vrot.lane.b32.xlu0 %v1031, 96
      %v2690 = vpop.permute.xlu0 %2689
      %2691 = vrot.lane.b32.xlu0 %v1032, 96
      %v2692 = vpop.permute.xlu0 %2691
      %2693 = vrot.lane.b32.xlu0 %v1033, 96
      %v2694 = vpop.permute.xlu0 %2693
      %2695 = vrot.lane.b32.xlu0 %v1034, 96
      %v2696 = vpop.permute.xlu0 %2695
      %2697 = vrot.lane.b32.xlu0 %v2650, 96
      %v2698 = vpop.permute.xlu0 %2697
      %2699 = vrot.lane.b32.xlu0 %v2652, 96
      %v2700 = vpop.permute.xlu0 %2699
      %2701 = vrot.lane.b32.xlu0 %v2654, 96
      %v2702 = vpop.permute.xlu0 %2701
      %2703 = vrot.lane.b32.xlu0 %v2656, 96
      %v2704 = vpop.permute.xlu0 %2703
      %2705 = vrot.lane.b32.xlu0 %v2658, 96
      %v2706 = vpop.permute.xlu0 %2705
      %2707 = vrot.lane.b32.xlu0 %v2660, 96
      %v2708 = vpop.permute.xlu0 %2707
      %2709 = vrot.lane.b32.xlu0 %v2662, 96
      %v2710 = vpop.permute.xlu0 %2709
      %2711 = vrot.lane.b32.xlu0 %v2664, 96
      %v2712 = vpop.permute.xlu0 %2711
      %2713 = vrot.lane.b32.xlu0 %v2666, 96
      %v2714 = vpop.permute.xlu0 %2713
      %2715 = vrot.lane.b32.xlu0 %v2668, 96
      %v2716 = vpop.permute.xlu0 %2715
      %2717 = vrot.lane.b32.xlu0 %v2670, 96
      %v2718 = vpop.permute.xlu0 %2717
      %2719 = vrot.lane.b32.xlu0 %v2672, 96
      %v2720 = vpop.permute.xlu0 %2719
      %2721 = vrot.lane.b32.xlu0 %v2674, 96
      %v2722 = vpop.permute.xlu0 %2721
      %2723 = vrot.lane.b32.xlu0 %v2676, 96
      %v2724 = vpop.permute.xlu0 %2723
      %2725 = vrot.lane.b32.xlu0 %v2678, 96
      %v2726 = vpop.permute.xlu0 %2725
      %2727 = vrot.lane.b32.xlu0 %v2680, 96
      %v2728 = vpop.permute.xlu0 %2727
      %2729 = vrot.lane.b32.xlu0 %v2682, 96
      %v2730 = vpop.permute.xlu0 %2729
      %2731 = vrot.lane.b32.xlu0 %v2684, 96
      %v2732 = vpop.permute.xlu0 %2731
      %v2735 = vpack.i.b16 %v2698, %v2686
      %v2737 = vshrl.u32 %v2686, 16
      %v2738 = vshrl.u32 %v2698, 16
      %v2739 = vpack.i.b16 %v2738, %v2737
      %v2743 = vpack.i.b16 %v2722, %v2710
      %v2745 = vshrl.u32 %v2710, 16
      %v2746 = vshrl.u32 %v2722, 16
      %v2747 = vpack.i.b16 %v2746, %v2745
      %v2751 = vpack.i.b16 %v2700, %v2688
      %v2753 = vshrl.u32 %v2688, 16
      %v2754 = vshrl.u32 %v2700, 16
      %v2755 = vpack.i.b16 %v2754, %v2753
      %v2759 = vpack.i.b16 %v2724, %v2712
      %v2761 = vshrl.u32 %v2712, 16
      %v2762 = vshrl.u32 %v2724, 16
      %v2763 = vpack.i.b16 %v2762, %v2761
      %v2767 = vpack.i.b16 %v2702, %v2690
      %v2769 = vshrl.u32 %v2690, 16
      %v2770 = vshrl.u32 %v2702, 16
      %v2771 = vpack.i.b16 %v2770, %v2769
      %v2775 = vpack.i.b16 %v2726, %v2714
      %v2777 = vshrl.u32 %v2714, 16
      %v2778 = vshrl.u32 %v2726, 16
      %v2779 = vpack.i.b16 %v2778, %v2777
      %v2783 = vpack.i.b16 %v2704, %v2692
      %v2785 = vshrl.u32 %v2692, 16
      %v2786 = vshrl.u32 %v2704, 16
      %v2787 = vpack.i.b16 %v2786, %v2785
      %v2791 = vpack.i.b16 %v2728, %v2716
      %v2793 = vshrl.u32 %v2716, 16
      %v2794 = vshrl.u32 %v2728, 16
      %v2795 = vpack.i.b16 %v2794, %v2793
      %v2799 = vpack.i.b16 %v2706, %v2694
      %v2801 = vshrl.u32 %v2694, 16
      %v2802 = vshrl.u32 %v2706, 16
      %v2803 = vpack.i.b16 %v2802, %v2801
      %v2807 = vpack.i.b16 %v2730, %v2718
      %v2809 = vshrl.u32 %v2718, 16
      %v2810 = vshrl.u32 %v2730, 16
      %v2811 = vpack.i.b16 %v2810, %v2809
      %v2815 = vpack.i.b16 %v2708, %v2696
      %v2817 = vshrl.u32 %v2696, 16
      %v2818 = vshrl.u32 %v2708, 16
      %v2819 = vpack.i.b16 %v2818, %v2817
      %v2823 = vpack.i.b16 %v2732, %v2720
      %v2825 = vshrl.u32 %v2720, 16
      %v2826 = vshrl.u32 %v2732, 16
      %v2827 = vpack.i.b16 %v2826, %v2825
      %v2829 = vcombine.high %v2735, %v1094
      %v2831 = vunpack.c.l.s4 1983009808
      %v2832 = vunpack.c.0.s8 %v2831
      %v2833 = vlaneseq
      %v2834 = vshrl.u32 %v2833, 7
      %v2835 = vsub.s32 %v2832, %v2834
      %v2836 = vrot.slane %v2735, %v2835
      %v2838 = vunpack.c.l.s4 1983009808
      %v2839 = vunpack.c.0.s8 %v2838
      %v2840 = vlaneseq
      %v2841 = vshrl.u32 %v2840, 7
      %v2842 = vsub.s32 %v2839, %v2841
      %v2843 = vrot.slane %v2829, %v2842
      %v2844 = vcombine.high %v2743, %v1094
      %v2846 = vunpack.c.l.s4 1983009808
      %v2847 = vunpack.c.0.s8 %v2846
      %v2848 = vlaneseq
      %v2849 = vshrl.u32 %v2848, 7
      %v2850 = vsub.s32 %v2847, %v2849
      %v2851 = vrot.slane %v2743, %v2850
      %v2853 = vunpack.c.l.s4 1983009808
      %v2854 = vunpack.c.0.s8 %v2853
      %v2855 = vlaneseq
      %v2856 = vshrl.u32 %v2855, 7
      %v2857 = vsub.s32 %v2854, %v2856
      %v2858 = vrot.slane %v2844, %v2857
      %v2859 = vcombine.low %v2836, %v2851
      %v2860 = vcombine.high %v2836, %v2851
      %v2862 = vunpack.c.l.s4 1934713408
      %v2863 = vunpack.c.0.s8 %v2862
      %v2864 = vlaneseq
      %v2865 = vshrl.u32 %v2864, 7
      %v2866 = vsub.s32 %v2863, %v2865
      %v2867 = vrot.slane %v2859, %v2866
      %v2869 = vunpack.c.l.s4 1934713408
      %v2870 = vunpack.c.0.s8 %v2869
      %v2871 = vlaneseq
      %v2872 = vshrl.u32 %v2871, 7
      %v2873 = vsub.s32 %v2870, %v2872
      %v2874 = vrot.slane %v2860, %v2873
      %v2875 = vcombine.low %v2843, %v2858
      %v2876 = vcombine.high %v2843, %v2858
      %v2878 = vunpack.c.l.s4 1934713408
      %v2879 = vunpack.c.0.s8 %v2878
      %v2880 = vlaneseq
      %v2881 = vshrl.u32 %v2880, 7
      %v2882 = vsub.s32 %v2879, %v2881
      %v2883 = vrot.slane %v2875, %v2882
      %v2885 = vunpack.c.l.s4 1934713408
      %v2886 = vunpack.c.0.s8 %v2885
      %v2887 = vlaneseq
      %v2888 = vshrl.u32 %v2887, 7
      %v2889 = vsub.s32 %v2886, %v2888
      %v2890 = vrot.slane %v2876, %v2889
      %v2891 = vcombine.high %v2867, 0
      %v2892 = vcombine.high %v2874, 0
      %v2893 = vcombine.high %v2883, 0
      %v2894 = vcombine.high %v2890, 0
      %v2895 = vcombine.high %v2739, %v1097
      %v2897 = vunpack.c.l.s4 1983009808
      %v2898 = vunpack.c.0.s8 %v2897
      %v2899 = vlaneseq
      %v2900 = vshrl.u32 %v2899, 7
      %v2901 = vsub.s32 %v2898, %v2900
      %v2902 = vrot.slane %v2739, %v2901
      %v2904 = vunpack.c.l.s4 1983009808
      %v2905 = vunpack.c.0.s8 %v2904
      %v2906 = vlaneseq
      %v2907 = vshrl.u32 %v2906, 7
      %v2908 = vsub.s32 %v2905, %v2907
      %v2909 = vrot.slane %v2895, %v2908
      %v2910 = vcombine.high %v2747, %v1097
      %v2912 = vunpack.c.l.s4 1983009808
      %v2913 = vunpack.c.0.s8 %v2912
      %v2914 = vlaneseq
      %v2915 = vshrl.u32 %v2914, 7
      %v2916 = vsub.s32 %v2913, %v2915
      %v2917 = vrot.slane %v2747, %v2916
      %v2919 = vunpack.c.l.s4 1983009808
      %v2920 = vunpack.c.0.s8 %v2919
      %v2921 = vlaneseq
      %v2922 = vshrl.u32 %v2921, 7
      %v2923 = vsub.s32 %v2920, %v2922
      %v2924 = vrot.slane %v2910, %v2923
      %v2925 = vcombine.low %v2902, %v2917
      %v2926 = vcombine.high %v2902, %v2917
      %v2928 = vunpack.c.l.s4 1934713408
      %v2929 = vunpack.c.0.s8 %v2928
      %v2930 = vlaneseq
      %v2931 = vshrl.u32 %v2930, 7
      %v2932 = vsub.s32 %v2929, %v2931
      %v2933 = vrot.slane %v2925, %v2932
      %v2935 = vunpack.c.l.s4 1934713408
      %v2936 = vunpack.c.0.s8 %v2935
      %v2937 = vlaneseq
      %v2938 = vshrl.u32 %v2937, 7
      %v2939 = vsub.s32 %v2936, %v2938
      %v2940 = vrot.slane %v2926, %v2939
      %v2941 = vcombine.low %v2909, %v2924
      %v2942 = vcombine.high %v2909, %v2924
      %v2944 = vunpack.c.l.s4 1934713408
      %v2945 = vunpack.c.0.s8 %v2944
      %v2946 = vlaneseq
      %v2947 = vshrl.u32 %v2946, 7
      %v2948 = vsub.s32 %v2945, %v2947
      %v2949 = vrot.slane %v2941, %v2948
      %v2951 = vunpack.c.l.s4 1934713408
      %v2952 = vunpack.c.0.s8 %v2951
      %v2953 = vlaneseq
      %v2954 = vshrl.u32 %v2953, 7
      %v2955 = vsub.s32 %v2952, %v2954
      %v2956 = vrot.slane %v2942, %v2955
      %v2957 = vcombine.high %v2933, 0
      %v2958 = vcombine.high %v2940, 0
      %v2959 = vcombine.high %v2949, 0
      %v2960 = vcombine.high %v2956, 0
      %v2961 = vcombine.high %v2751, %v1094
      %v2963 = vunpack.c.l.s4 1983009808
      %v2964 = vunpack.c.0.s8 %v2963
      %v2965 = vlaneseq
      %v2966 = vshrl.u32 %v2965, 7
      %v2967 = vsub.s32 %v2964, %v2966
      %v2968 = vrot.slane %v2751, %v2967
      %v2970 = vunpack.c.l.s4 1983009808
      %v2971 = vunpack.c.0.s8 %v2970
      %v2972 = vlaneseq
      %v2973 = vshrl.u32 %v2972, 7
      %v2974 = vsub.s32 %v2971, %v2973
      %v2975 = vrot.slane %v2961, %v2974
      %v2976 = vcombine.high %v2759, %v1094
      %v2978 = vunpack.c.l.s4 1983009808
      %v2979 = vunpack.c.0.s8 %v2978
      %v2980 = vlaneseq
      %v2981 = vshrl.u32 %v2980, 7
      %v2982 = vsub.s32 %v2979, %v2981
      %v2983 = vrot.slane %v2759, %v2982
      %v2985 = vunpack.c.l.s4 1983009808
      %v2986 = vunpack.c.0.s8 %v2985
      %v2987 = vlaneseq
      %v2988 = vshrl.u32 %v2987, 7
      %v2989 = vsub.s32 %v2986, %v2988
      %v2990 = vrot.slane %v2976, %v2989
      %v2991 = vcombine.low %v2968, %v2983
      %v2992 = vcombine.high %v2968, %v2983
      %v2994 = vunpack.c.l.s4 1934713408
      %v2995 = vunpack.c.0.s8 %v2994
      %v2996 = vlaneseq
      %v2997 = vshrl.u32 %v2996, 7
      %v2998 = vsub.s32 %v2995, %v2997
      %v2999 = vrot.slane %v2991, %v2998
      %v3001 = vunpack.c.l.s4 1934713408
      %v3002 = vunpack.c.0.s8 %v3001
      %v3003 = vlaneseq
      %v3004 = vshrl.u32 %v3003, 7
      %v3005 = vsub.s32 %v3002, %v3004
      %v3006 = vrot.slane %v2992, %v3005
      %v3007 = vcombine.low %v2975, %v2990
      %v3008 = vcombine.high %v2975, %v2990
      %v3010 = vunpack.c.l.s4 1934713408
      %v3011 = vunpack.c.0.s8 %v3010
      %v3012 = vlaneseq
      %v3013 = vshrl.u32 %v3012, 7
      %v3014 = vsub.s32 %v3011, %v3013
      %v3015 = vrot.slane %v3007, %v3014
      %v3017 = vunpack.c.l.s4 1934713408
      %v3018 = vunpack.c.0.s8 %v3017
      %v3019 = vlaneseq
      %v3020 = vshrl.u32 %v3019, 7
      %v3021 = vsub.s32 %v3018, %v3020
      %v3022 = vrot.slane %v3008, %v3021
      %v3023 = vcombine.high %v2999, 0
      %v3024 = vcombine.high %v3006, 0
      %v3025 = vcombine.high %v3015, 0
      %v3026 = vcombine.high %v3022, 0
      %v3027 = vcombine.high %v2755, %v1097
      %v3029 = vunpack.c.l.s4 1983009808
      %v3030 = vunpack.c.0.s8 %v3029
      %v3031 = vlaneseq
      %v3032 = vshrl.u32 %v3031, 7
      %v3033 = vsub.s32 %v3030, %v3032
      %v3034 = vrot.slane %v2755, %v3033
      %v3036 = vunpack.c.l.s4 1983009808
      %v3037 = vunpack.c.0.s8 %v3036
      %v3038 = vlaneseq
      %v3039 = vshrl.u32 %v3038, 7
      %v3040 = vsub.s32 %v3037, %v3039
      %v3041 = vrot.slane %v3027, %v3040
      %v3042 = vcombine.high %v2763, %v1097
      %v3044 = vunpack.c.l.s4 1983009808
      %v3045 = vunpack.c.0.s8 %v3044
      %v3046 = vlaneseq
      %v3047 = vshrl.u32 %v3046, 7
      %v3048 = vsub.s32 %v3045, %v3047
      %v3049 = vrot.slane %v2763, %v3048
      %v3051 = vunpack.c.l.s4 1983009808
      %v3052 = vunpack.c.0.s8 %v3051
      %v3053 = vlaneseq
      %v3054 = vshrl.u32 %v3053, 7
      %v3055 = vsub.s32 %v3052, %v3054
      %v3056 = vrot.slane %v3042, %v3055
      %v3057 = vcombine.low %v3034, %v3049
      %v3058 = vcombine.high %v3034, %v3049
      %v3060 = vunpack.c.l.s4 1934713408
      %v3061 = vunpack.c.0.s8 %v3060
      %v3062 = vlaneseq
      %v3063 = vshrl.u32 %v3062, 7
      %v3064 = vsub.s32 %v3061, %v3063
      %v3065 = vrot.slane %v3057, %v3064
      %v3067 = vunpack.c.l.s4 1934713408
      %v3068 = vunpack.c.0.s8 %v3067
      %v3069 = vlaneseq
      %v3070 = vshrl.u32 %v3069, 7
      %v3071 = vsub.s32 %v3068, %v3070
      %v3072 = vrot.slane %v3058, %v3071
      %v3073 = vcombine.low %v3041, %v3056
      %v3074 = vcombine.high %v3041, %v3056
      %v3076 = vunpack.c.l.s4 1934713408
      %v3077 = vunpack.c.0.s8 %v3076
      %v3078 = vlaneseq
      %v3079 = vshrl.u32 %v3078, 7
      %v3080 = vsub.s32 %v3077, %v3079
      %v3081 = vrot.slane %v3073, %v3080
      %v3083 = vunpack.c.l.s4 1934713408
      %v3084 = vunpack.c.0.s8 %v3083
      %v3085 = vlaneseq
      %v3086 = vshrl.u32 %v3085, 7
      %v3087 = vsub.s32 %v3084, %v3086
      %v3088 = vrot.slane %v3074, %v3087
      %v3089 = vcombine.high %v3065, 0
      %v3090 = vcombine.high %v3072, 0
      %v3091 = vcombine.high %v3081, 0
      %v3092 = vcombine.high %v3088, 0
      %v3093 = vcombine.high %v2767, %v1094
      %v3095 = vunpack.c.l.s4 1983009808
      %v3096 = vunpack.c.0.s8 %v3095
      %v3097 = vlaneseq
      %v3098 = vshrl.u32 %v3097, 7
      %v3099 = vsub.s32 %v3096, %v3098
      %v3100 = vrot.slane %v2767, %v3099
      %v3102 = vunpack.c.l.s4 1983009808
      %v3103 = vunpack.c.0.s8 %v3102
      %v3104 = vlaneseq
      %v3105 = vshrl.u32 %v3104, 7
      %v3106 = vsub.s32 %v3103, %v3105
      %v3107 = vrot.slane %v3093, %v3106
      %v3108 = vcombine.high %v2775, %v1094
      %v3110 = vunpack.c.l.s4 1983009808
      %v3111 = vunpack.c.0.s8 %v3110
      %v3112 = vlaneseq
      %v3113 = vshrl.u32 %v3112, 7
      %v3114 = vsub.s32 %v3111, %v3113
      %v3115 = vrot.slane %v2775, %v3114
      %v3117 = vunpack.c.l.s4 1983009808
      %v3118 = vunpack.c.0.s8 %v3117
      %v3119 = vlaneseq
      %v3120 = vshrl.u32 %v3119, 7
      %v3121 = vsub.s32 %v3118, %v3120
      %v3122 = vrot.slane %v3108, %v3121
      %v3123 = vcombine.low %v3100, %v3115
      %v3124 = vcombine.high %v3100, %v3115
      %v3126 = vunpack.c.l.s4 1934713408
      %v3127 = vunpack.c.0.s8 %v3126
      %v3128 = vlaneseq
      %v3129 = vshrl.u32 %v3128, 7
      %v3130 = vsub.s32 %v3127, %v3129
      %v3131 = vrot.slane %v3123, %v3130
      %v3133 = vunpack.c.l.s4 1934713408
      %v3134 = vunpack.c.0.s8 %v3133
      %v3135 = vlaneseq
      %v3136 = vshrl.u32 %v3135, 7
      %v3137 = vsub.s32 %v3134, %v3136
      %v3138 = vrot.slane %v3124, %v3137
      %v3139 = vcombine.low %v3107, %v3122
      %v3140 = vcombine.high %v3107, %v3122
      %v3142 = vunpack.c.l.s4 1934713408
      %v3143 = vunpack.c.0.s8 %v3142
      %v3144 = vlaneseq
      %v3145 = vshrl.u32 %v3144, 7
      %v3146 = vsub.s32 %v3143, %v3145
      %v3147 = vrot.slane %v3139, %v3146
      %v3149 = vunpack.c.l.s4 1934713408
      %v3150 = vunpack.c.0.s8 %v3149
      %v3151 = vlaneseq
      %v3152 = vshrl.u32 %v3151, 7
      %v3153 = vsub.s32 %v3150, %v3152
      %v3154 = vrot.slane %v3140, %v3153
      %v3155 = vcombine.high %v3131, 0
      %v3156 = vcombine.high %v3138, 0
      %v3157 = vcombine.high %v3147, 0
      %v3158 = vcombine.high %v3154, 0
      %v3159 = vcombine.high %v2771, %v1097
      %v3161 = vunpack.c.l.s4 1983009808
      %v3162 = vunpack.c.0.s8 %v3161
      %v3163 = vlaneseq
      %v3164 = vshrl.u32 %v3163, 7
      %v3165 = vsub.s32 %v3162, %v3164
      %v3166 = vrot.slane %v2771, %v3165
      %v3168 = vunpack.c.l.s4 1983009808
      %v3169 = vunpack.c.0.s8 %v3168
      %v3170 = vlaneseq
      %v3171 = vshrl.u32 %v3170, 7
      %v3172 = vsub.s32 %v3169, %v3171
      %v3173 = vrot.slane %v3159, %v3172
      %v3174 = vcombine.high %v2779, %v1097
      %v3176 = vunpack.c.l.s4 1983009808
      %v3177 = vunpack.c.0.s8 %v3176
      %v3178 = vlaneseq
      %v3179 = vshrl.u32 %v3178, 7
      %v3180 = vsub.s32 %v3177, %v3179
      %v3181 = vrot.slane %v2779, %v3180
      %v3183 = vunpack.c.l.s4 1983009808
      %v3184 = vunpack.c.0.s8 %v3183
      %v3185 = vlaneseq
      %v3186 = vshrl.u32 %v3185, 7
      %v3187 = vsub.s32 %v3184, %v3186
      %v3188 = vrot.slane %v3174, %v3187
      %v3189 = vcombine.low %v3166, %v3181
      %v3190 = vcombine.high %v3166, %v3181
      %v3192 = vunpack.c.l.s4 1934713408
      %v3193 = vunpack.c.0.s8 %v3192
      %v3194 = vlaneseq
      %v3195 = vshrl.u32 %v3194, 7
      %v3196 = vsub.s32 %v3193, %v3195
      %v3197 = vrot.slane %v3189, %v3196
      %v3199 = vunpack.c.l.s4 1934713408
      %v3200 = vunpack.c.0.s8 %v3199
      %v3201 = vlaneseq
      %v3202 = vshrl.u32 %v3201, 7
      %v3203 = vsub.s32 %v3200, %v3202
      %v3204 = vrot.slane %v3190, %v3203
      %v3205 = vcombine.low %v3173, %v3188
      %v3206 = vcombine.high %v3173, %v3188
      %v3208 = vunpack.c.l.s4 1934713408
      %v3209 = vunpack.c.0.s8 %v3208
      %v3210 = vlaneseq
      %v3211 = vshrl.u32 %v3210, 7
      %v3212 = vsub.s32 %v3209, %v3211
      %v3213 = vrot.slane %v3205, %v3212
      %v3215 = vunpack.c.l.s4 1934713408
      %v3216 = vunpack.c.0.s8 %v3215
      %v3217 = vlaneseq
      %v3218 = vshrl.u32 %v3217, 7
      %v3219 = vsub.s32 %v3216, %v3218
      %v3220 = vrot.slane %v3206, %v3219
      %v3221 = vcombine.high %v3197, 0
      %v3222 = vcombine.high %v3204, 0
      %v3223 = vcombine.high %v3213, 0
      %v3224 = vcombine.high %v3220, 0
      %v3225 = vcombine.high %v2783, %v1094
      %v3227 = vunpack.c.l.s4 1983009808
      %v3228 = vunpack.c.0.s8 %v3227
      %v3229 = vlaneseq
      %v3230 = vshrl.u32 %v3229, 7
      %v3231 = vsub.s32 %v3228, %v3230
      %v3232 = vrot.slane %v2783, %v3231
      %v3234 = vunpack.c.l.s4 1983009808
      %v3235 = vunpack.c.0.s8 %v3234
      %v3236 = vlaneseq
      %v3237 = vshrl.u32 %v3236, 7
      %v3238 = vsub.s32 %v3235, %v3237
      %v3239 = vrot.slane %v3225, %v3238
      %v3240 = vcombine.high %v2791, %v1094
      %v3242 = vunpack.c.l.s4 1983009808
      %v3243 = vunpack.c.0.s8 %v3242
      %v3244 = vlaneseq
      %v3245 = vshrl.u32 %v3244, 7
      %v3246 = vsub.s32 %v3243, %v3245
      %v3247 = vrot.slane %v2791, %v3246
      %v3249 = vunpack.c.l.s4 1983009808
      %v3250 = vunpack.c.0.s8 %v3249
      %v3251 = vlaneseq
      %v3252 = vshrl.u32 %v3251, 7
      %v3253 = vsub.s32 %v3250, %v3252
      %v3254 = vrot.slane %v3240, %v3253
      %v3255 = vcombine.low %v3232, %v3247
      %v3256 = vcombine.high %v3232, %v3247
      %v3258 = vunpack.c.l.s4 1934713408
      %v3259 = vunpack.c.0.s8 %v3258
      %v3260 = vlaneseq
      %v3261 = vshrl.u32 %v3260, 7
      %v3262 = vsub.s32 %v3259, %v3261
      %v3263 = vrot.slane %v3255, %v3262
      %v3265 = vunpack.c.l.s4 1934713408
      %v3266 = vunpack.c.0.s8 %v3265
      %v3267 = vlaneseq
      %v3268 = vshrl.u32 %v3267, 7
      %v3269 = vsub.s32 %v3266, %v3268
      %v3270 = vrot.slane %v3256, %v3269
      %v3271 = vcombine.low %v3239, %v3254
      %v3272 = vcombine.high %v3239, %v3254
      %v3274 = vunpack.c.l.s4 1934713408
      %v3275 = vunpack.c.0.s8 %v3274
      %v3276 = vlaneseq
      %v3277 = vshrl.u32 %v3276, 7
      %v3278 = vsub.s32 %v3275, %v3277
      %v3279 = vrot.slane %v3271, %v3278
      %v3281 = vunpack.c.l.s4 1934713408
      %v3282 = vunpack.c.0.s8 %v3281
      %v3283 = vlaneseq
      %v3284 = vshrl.u32 %v3283, 7
      %v3285 = vsub.s32 %v3282, %v3284
      %v3286 = vrot.slane %v3272, %v3285
      %v3287 = vcombine.high %v3263, 0
      %v3288 = vcombine.high %v3270, 0
      %v3289 = vcombine.high %v3279, 0
      %v3290 = vcombine.high %v3286, 0
      %v3291 = vcombine.high %v2787, %v1097
      %v3293 = vunpack.c.l.s4 1983009808
      %v3294 = vunpack.c.0.s8 %v3293
      %v3295 = vlaneseq
      %v3296 = vshrl.u32 %v3295, 7
      %v3297 = vsub.s32 %v3294, %v3296
      %v3298 = vrot.slane %v2787, %v3297
      %v3300 = vunpack.c.l.s4 1983009808
      %v3301 = vunpack.c.0.s8 %v3300
      %v3302 = vlaneseq
      %v3303 = vshrl.u32 %v3302, 7
      %v3304 = vsub.s32 %v3301, %v3303
      %v3305 = vrot.slane %v3291, %v3304
      %v3306 = vcombine.high %v2795, %v1097
      %v3308 = vunpack.c.l.s4 1983009808
      %v3309 = vunpack.c.0.s8 %v3308
      %v3310 = vlaneseq
      %v3311 = vshrl.u32 %v3310, 7
      %v3312 = vsub.s32 %v3309, %v3311
      %v3313 = vrot.slane %v2795, %v3312
      %v3315 = vunpack.c.l.s4 1983009808
      %v3316 = vunpack.c.0.s8 %v3315
      %v3317 = vlaneseq
      %v3318 = vshrl.u32 %v3317, 7
      %v3319 = vsub.s32 %v3316, %v3318
      %v3320 = vrot.slane %v3306, %v3319
      %v3321 = vcombine.low %v3298, %v3313
      %v3322 = vcombine.high %v3298, %v3313
      %v3324 = vunpack.c.l.s4 1934713408
      %v3325 = vunpack.c.0.s8 %v3324
      %v3326 = vlaneseq
      %v3327 = vshrl.u32 %v3326, 7
      %v3328 = vsub.s32 %v3325, %v3327
      %v3329 = vrot.slane %v3321, %v3328
      %v3331 = vunpack.c.l.s4 1934713408
      %v3332 = vunpack.c.0.s8 %v3331
      %v3333 = vlaneseq
      %v3334 = vshrl.u32 %v3333, 7
      %v3335 = vsub.s32 %v3332, %v3334
      %v3336 = vrot.slane %v3322, %v3335
      %v3337 = vcombine.low %v3305, %v3320
      %v3338 = vcombine.high %v3305, %v3320
      %v3340 = vunpack.c.l.s4 1934713408
      %v3341 = vunpack.c.0.s8 %v3340
      %v3342 = vlaneseq
      %v3343 = vshrl.u32 %v3342, 7
      %v3344 = vsub.s32 %v3341, %v3343
      %v3345 = vrot.slane %v3337, %v3344
      %v3347 = vunpack.c.l.s4 1934713408
      %v3348 = vunpack.c.0.s8 %v3347
      %v3349 = vlaneseq
      %v3350 = vshrl.u32 %v3349, 7
      %v3351 = vsub.s32 %v3348, %v3350
      %v3352 = vrot.slane %v3338, %v3351
      %v3353 = vcombine.high %v3329, 0
      %v3354 = vcombine.high %v3336, 0
      %v3355 = vcombine.high %v3345, 0
      %v3356 = vcombine.high %v3352, 0
      %v3357 = vcombine.high %v2799, %v1094
      %v3359 = vunpack.c.l.s4 1983009808
      %v3360 = vunpack.c.0.s8 %v3359
      %v3361 = vlaneseq
      %v3362 = vshrl.u32 %v3361, 7
      %v3363 = vsub.s32 %v3360, %v3362
      %v3364 = vrot.slane %v2799, %v3363
      %v3366 = vunpack.c.l.s4 1983009808
      %v3367 = vunpack.c.0.s8 %v3366
      %v3368 = vlaneseq
      %v3369 = vshrl.u32 %v3368, 7
      %v3370 = vsub.s32 %v3367, %v3369
      %v3371 = vrot.slane %v3357, %v3370
      %v3372 = vcombine.high %v2807, %v1094
      %v3374 = vunpack.c.l.s4 1983009808
      %v3375 = vunpack.c.0.s8 %v3374
      %v3376 = vlaneseq
      %v3377 = vshrl.u32 %v3376, 7
      %v3378 = vsub.s32 %v3375, %v3377
      %v3379 = vrot.slane %v2807, %v3378
      %v3381 = vunpack.c.l.s4 1983009808
      %v3382 = vunpack.c.0.s8 %v3381
      %v3383 = vlaneseq
      %v3384 = vshrl.u32 %v3383, 7
      %v3385 = vsub.s32 %v3382, %v3384
      %v3386 = vrot.slane %v3372, %v3385
      %v3387 = vcombine.low %v3364, %v3379
      %v3388 = vcombine.high %v3364, %v3379
      %v3390 = vunpack.c.l.s4 1934713408
      %v3391 = vunpack.c.0.s8 %v3390
      %v3392 = vlaneseq
      %v3393 = vshrl.u32 %v3392, 7
      %v3394 = vsub.s32 %v3391, %v3393
      %v3395 = vrot.slane %v3387, %v3394
      %v3397 = vunpack.c.l.s4 1934713408
      %v3398 = vunpack.c.0.s8 %v3397
      %v3399 = vlaneseq
      %v3400 = vshrl.u32 %v3399, 7
      %v3401 = vsub.s32 %v3398, %v3400
      %v3402 = vrot.slane %v3388, %v3401
      %v3403 = vcombine.low %v3371, %v3386
      %v3404 = vcombine.high %v3371, %v3386
      %v3406 = vunpack.c.l.s4 1934713408
      %v3407 = vunpack.c.0.s8 %v3406
      %v3408 = vlaneseq
      %v3409 = vshrl.u32 %v3408, 7
      %v3410 = vsub.s32 %v3407, %v3409
      %v3411 = vrot.slane %v3403, %v3410
      %v3413 = vunpack.c.l.s4 1934713408
      %v3414 = vunpack.c.0.s8 %v3413
      %v3415 = vlaneseq
      %v3416 = vshrl.u32 %v3415, 7
      %v3417 = vsub.s32 %v3414, %v3416
      %v3418 = vrot.slane %v3404, %v3417
      %v3419 = vcombine.high %v3395, 0
      %v3420 = vcombine.high %v3402, 0
      %v3421 = vcombine.high %v3411, 0
      %v3422 = vcombine.high %v3418, 0
      %v3423 = vcombine.high %v2803, %v1097
      %v3425 = vunpack.c.l.s4 1983009808
      %v3426 = vunpack.c.0.s8 %v3425
      %v3427 = vlaneseq
      %v3428 = vshrl.u32 %v3427, 7
      %v3429 = vsub.s32 %v3426, %v3428
      %v3430 = vrot.slane %v2803, %v3429
      %v3432 = vunpack.c.l.s4 1983009808
      %v3433 = vunpack.c.0.s8 %v3432
      %v3434 = vlaneseq
      %v3435 = vshrl.u32 %v3434, 7
      %v3436 = vsub.s32 %v3433, %v3435
      %v3437 = vrot.slane %v3423, %v3436
      %v3438 = vcombine.high %v2811, %v1097
      %v3440 = vunpack.c.l.s4 1983009808
      %v3441 = vunpack.c.0.s8 %v3440
      %v3442 = vlaneseq
      %v3443 = vshrl.u32 %v3442, 7
      %v3444 = vsub.s32 %v3441, %v3443
      %v3445 = vrot.slane %v2811, %v3444
      %v3447 = vunpack.c.l.s4 1983009808
      %v3448 = vunpack.c.0.s8 %v3447
      %v3449 = vlaneseq
      %v3450 = vshrl.u32 %v3449, 7
      %v3451 = vsub.s32 %v3448, %v3450
      %v3452 = vrot.slane %v3438, %v3451
      %v3453 = vcombine.low %v3430, %v3445
      %v3454 = vcombine.high %v3430, %v3445
      %v3456 = vunpack.c.l.s4 1934713408
      %v3457 = vunpack.c.0.s8 %v3456
      %v3458 = vlaneseq
      %v3459 = vshrl.u32 %v3458, 7
      %v3460 = vsub.s32 %v3457, %v3459
      %v3461 = vrot.slane %v3453, %v3460
      %v3463 = vunpack.c.l.s4 1934713408
      %v3464 = vunpack.c.0.s8 %v3463
      %v3465 = vlaneseq
      %v3466 = vshrl.u32 %v3465, 7
      %v3467 = vsub.s32 %v3464, %v3466
      %v3468 = vrot.slane %v3454, %v3467
      %v3469 = vcombine.low %v3437, %v3452
      %v3470 = vcombine.high %v3437, %v3452
      %v3472 = vunpack.c.l.s4 1934713408
      %v3473 = vunpack.c.0.s8 %v3472
      %v3474 = vlaneseq
      %v3475 = vshrl.u32 %v3474, 7
      %v3476 = vsub.s32 %v3473, %v3475
      %v3477 = vrot.slane %v3469, %v3476
      %v3479 = vunpack.c.l.s4 1934713408
      %v3480 = vunpack.c.0.s8 %v3479
      %v3481 = vlaneseq
      %v3482 = vshrl.u32 %v3481, 7
      %v3483 = vsub.s32 %v3480, %v3482
      %v3484 = vrot.slane %v3470, %v3483
      %v3485 = vcombine.high %v3461, 0
      %v3486 = vcombine.high %v3468, 0
      %v3487 = vcombine.high %v3477, 0
      %v3488 = vcombine.high %v3484, 0
      %v3489 = vcombine.high %v2815, %v1094
      %v3491 = vunpack.c.l.s4 1983009808
      %v3492 = vunpack.c.0.s8 %v3491
      %v3493 = vlaneseq
      %v3494 = vshrl.u32 %v3493, 7
      %v3495 = vsub.s32 %v3492, %v3494
      %v3496 = vrot.slane %v2815, %v3495
      %v3498 = vunpack.c.l.s4 1983009808
      %v3499 = vunpack.c.0.s8 %v3498
      %v3500 = vlaneseq
      %v3501 = vshrl.u32 %v3500, 7
      %v3502 = vsub.s32 %v3499, %v3501
      %v3503 = vrot.slane %v3489, %v3502
      %v3504 = vcombine.high %v2823, %v1094
      %v3506 = vunpack.c.l.s4 1983009808
      %v3507 = vunpack.c.0.s8 %v3506
      %v3508 = vlaneseq
      %v3509 = vshrl.u32 %v3508, 7
      %v3510 = vsub.s32 %v3507, %v3509
      %v3511 = vrot.slane %v2823, %v3510
      %v3513 = vunpack.c.l.s4 1983009808
      %v3514 = vunpack.c.0.s8 %v3513
      %v3515 = vlaneseq
      %v3516 = vshrl.u32 %v3515, 7
      %v3517 = vsub.s32 %v3514, %v3516
      %v3518 = vrot.slane %v3504, %v3517
      %v3519 = vcombine.low %v3496, %v3511
      %v3520 = vcombine.high %v3496, %v3511
      %v3522 = vunpack.c.l.s4 1934713408
      %v3523 = vunpack.c.0.s8 %v3522
      %v3524 = vlaneseq
      %v3525 = vshrl.u32 %v3524, 7
      %v3526 = vsub.s32 %v3523, %v3525
      %v3527 = vrot.slane %v3519, %v3526
      %v3529 = vunpack.c.l.s4 1934713408
      %v3530 = vunpack.c.0.s8 %v3529
      %v3531 = vlaneseq
      %v3532 = vshrl.u32 %v3531, 7
      %v3533 = vsub.s32 %v3530, %v3532
      %v3534 = vrot.slane %v3520, %v3533
      %v3535 = vcombine.low %v3503, %v3518
      %v3536 = vcombine.high %v3503, %v3518
      %v3538 = vunpack.c.l.s4 1934713408
      %v3539 = vunpack.c.0.s8 %v3538
      %v3540 = vlaneseq
      %v3541 = vshrl.u32 %v3540, 7
      %v3542 = vsub.s32 %v3539, %v3541
      %v3543 = vrot.slane %v3535, %v3542
      %v3545 = vunpack.c.l.s4 1934713408
      %v3546 = vunpack.c.0.s8 %v3545
      %v3547 = vlaneseq
      %v3548 = vshrl.u32 %v3547, 7
      %v3549 = vsub.s32 %v3546, %v3548
      %v3550 = vrot.slane %v3536, %v3549
      %v3551 = vcombine.high %v3527, 0
      %v3552 = vcombine.high %v3534, 0
      %v3553 = vcombine.high %v3543, 0
      %v3554 = vcombine.high %v3550, 0
      %v3555 = vcombine.high %v2819, %v1097
      %v3557 = vunpack.c.l.s4 1983009808
      %v3558 = vunpack.c.0.s8 %v3557
      %v3559 = vlaneseq
      %v3560 = vshrl.u32 %v3559, 7
      %v3561 = vsub.s32 %v3558, %v3560
      %v3562 = vrot.slane %v2819, %v3561
      %v3564 = vunpack.c.l.s4 1983009808
      %v3565 = vunpack.c.0.s8 %v3564
      %v3566 = vlaneseq
      %v3567 = vshrl.u32 %v3566, 7
      %v3568 = vsub.s32 %v3565, %v3567
      %v3569 = vrot.slane %v3555, %v3568
      %v3570 = vcombine.high %v2827, %v1097
      %v3572 = vunpack.c.l.s4 1983009808
      %v3573 = vunpack.c.0.s8 %v3572
      %v3574 = vlaneseq
      %v3575 = vshrl.u32 %v3574, 7
      %v3576 = vsub.s32 %v3573, %v3575
      %v3577 = vrot.slane %v2827, %v3576
      %v3579 = vunpack.c.l.s4 1983009808
      %v3580 = vunpack.c.0.s8 %v3579
      %v3581 = vlaneseq
      %v3582 = vshrl.u32 %v3581, 7
      %v3583 = vsub.s32 %v3580, %v3582
      %v3584 = vrot.slane %v3570, %v3583
      %v3585 = vcombine.low %v3562, %v3577
      %v3586 = vcombine.high %v3562, %v3577
      %v3588 = vunpack.c.l.s4 1934713408
      %v3589 = vunpack.c.0.s8 %v3588
      %v3590 = vlaneseq
      %v3591 = vshrl.u32 %v3590, 7
      %v3592 = vsub.s32 %v3589, %v3591
      %v3593 = vrot.slane %v3585, %v3592
      %v3595 = vunpack.c.l.s4 1934713408
      %v3596 = vunpack.c.0.s8 %v3595
      %v3597 = vlaneseq
      %v3598 = vshrl.u32 %v3597, 7
      %v3599 = vsub.s32 %v3596, %v3598
      %v3600 = vrot.slane %v3586, %v3599
      %v3601 = vcombine.low %v3569, %v3584
      %v3602 = vcombine.high %v3569, %v3584
      %v3604 = vunpack.c.l.s4 1934713408
      %v3605 = vunpack.c.0.s8 %v3604
      %v3606 = vlaneseq
      %v3607 = vshrl.u32 %v3606, 7
      %v3608 = vsub.s32 %v3605, %v3607
      %v3609 = vrot.slane %v3601, %v3608
      %v3611 = vunpack.c.l.s4 1934713408
      %v3612 = vunpack.c.0.s8 %v3611
      %v3613 = vlaneseq
      %v3614 = vshrl.u32 %v3613, 7
      %v3615 = vsub.s32 %v3612, %v3614
      %v3616 = vrot.slane %v3602, %v3615
      %v3617 = vcombine.high %v3593, 0
      %v3618 = vcombine.high %v3600, 0
      %v3619 = vcombine.high %v3609, 0
      %v3620 = vcombine.high %v3616, 0
      %v3621 = vcombine.low %v2867, %v2874
      %v3623 = vunpack.c.l.s4 1983009808
      %v3624 = vunpack.c.0.s8 %v3623
      %v3625 = vlaneseq
      %v3626 = vshrl.u32 %v3625, 7
      %v3627 = vsub.s32 %v3624, %v3626
      %v3628 = vrot.slane %v3621, %v3627
      %v3629 = vcombine.low %v2891, %v2892
      %v3631 = vunpack.c.l.s4 1983009808
      %v3632 = vunpack.c.0.s8 %v3631
      %v3633 = vlaneseq
      %v3634 = vshrl.u32 %v3633, 7
      %v3635 = vsub.s32 %v3632, %v3634
      %v3636 = vrot.slane %v3629, %v3635
      %v3637 = vcombine.low %v2883, %v2890
      %v3639 = vunpack.c.l.s4 1983009808
      %v3640 = vunpack.c.0.s8 %v3639
      %v3641 = vlaneseq
      %v3642 = vshrl.u32 %v3641, 7
      %v3643 = vsub.s32 %v3640, %v3642
      %v3644 = vrot.slane %v3637, %v3643
      %v3645 = vcombine.low %v2893, %v2894
      %v3647 = vunpack.c.l.s4 1983009808
      %v3648 = vunpack.c.0.s8 %v3647
      %v3649 = vlaneseq
      %v3650 = vshrl.u32 %v3649, 7
      %v3651 = vsub.s32 %v3648, %v3650
      %v3652 = vrot.slane %v3645, %v3651
      %v3653 = vcombine.low %v3628, %v3636
      %v3655 = vunpack.c.l.s4 1934713408
      %v3656 = vunpack.c.0.s8 %v3655
      %v3657 = vlaneseq
      %v3658 = vshrl.u32 %v3657, 7
      %v3659 = vsub.s32 %v3656, %v3658
      %v3660 = vrot.slane %v3653, %v3659
      %v3661 = vcombine.low %v3644, %v3652
      %v3663 = vunpack.c.l.s4 1934713408
      %v3664 = vunpack.c.0.s8 %v3663
      %v3665 = vlaneseq
      %v3666 = vshrl.u32 %v3665, 7
      %v3667 = vsub.s32 %v3664, %v3666
      %v3668 = vrot.slane %v3661, %v3667
      %v3669 = vcombine.low %v3660, %v3668
      %v3670 = vcombine.high %v3660, %v3668
      %v3671 = vcombine.low %v2933, %v2940
      %v3673 = vunpack.c.l.s4 1983009808
      %v3674 = vunpack.c.0.s8 %v3673
      %v3675 = vlaneseq
      %v3676 = vshrl.u32 %v3675, 7
      %v3677 = vsub.s32 %v3674, %v3676
      %v3678 = vrot.slane %v3671, %v3677
      %v3679 = vcombine.low %v2957, %v2958
      %v3681 = vunpack.c.l.s4 1983009808
      %v3682 = vunpack.c.0.s8 %v3681
      %v3683 = vlaneseq
      %v3684 = vshrl.u32 %v3683, 7
      %v3685 = vsub.s32 %v3682, %v3684
      %v3686 = vrot.slane %v3679, %v3685
      %v3687 = vcombine.low %v2949, %v2956
      %v3689 = vunpack.c.l.s4 1983009808
      %v3690 = vunpack.c.0.s8 %v3689
      %v3691 = vlaneseq
      %v3692 = vshrl.u32 %v3691, 7
      %v3693 = vsub.s32 %v3690, %v3692
      %v3694 = vrot.slane %v3687, %v3693
      %v3695 = vcombine.low %v2959, %v2960
      %v3697 = vunpack.c.l.s4 1983009808
      %v3698 = vunpack.c.0.s8 %v3697
      %v3699 = vlaneseq
      %v3700 = vshrl.u32 %v3699, 7
      %v3701 = vsub.s32 %v3698, %v3700
      %v3702 = vrot.slane %v3695, %v3701
      %v3703 = vcombine.low %v3678, %v3686
      %v3705 = vunpack.c.l.s4 1934713408
      %v3706 = vunpack.c.0.s8 %v3705
      %v3707 = vlaneseq
      %v3708 = vshrl.u32 %v3707, 7
      %v3709 = vsub.s32 %v3706, %v3708
      %v3710 = vrot.slane %v3703, %v3709
      %v3711 = vcombine.low %v3694, %v3702
      %v3713 = vunpack.c.l.s4 1934713408
      %v3714 = vunpack.c.0.s8 %v3713
      %v3715 = vlaneseq
      %v3716 = vshrl.u32 %v3715, 7
      %v3717 = vsub.s32 %v3714, %v3716
      %v3718 = vrot.slane %v3711, %v3717
      %v3719 = vcombine.low %v3710, %v3718
      %v3720 = vcombine.high %v3710, %v3718
      %v3721 = vcombine.low %v2999, %v3006
      %v3723 = vunpack.c.l.s4 1983009808
      %v3724 = vunpack.c.0.s8 %v3723
      %v3725 = vlaneseq
      %v3726 = vshrl.u32 %v3725, 7
      %v3727 = vsub.s32 %v3724, %v3726
      %v3728 = vrot.slane %v3721, %v3727
      %v3729 = vcombine.low %v3023, %v3024
      %v3731 = vunpack.c.l.s4 1983009808
      %v3732 = vunpack.c.0.s8 %v3731
      %v3733 = vlaneseq
      %v3734 = vshrl.u32 %v3733, 7
      %v3735 = vsub.s32 %v3732, %v3734
      %v3736 = vrot.slane %v3729, %v3735
      %v3737 = vcombine.low %v3015, %v3022
      %v3739 = vunpack.c.l.s4 1983009808
      %v3740 = vunpack.c.0.s8 %v3739
      %v3741 = vlaneseq
      %v3742 = vshrl.u32 %v3741, 7
      %v3743 = vsub.s32 %v3740, %v3742
      %v3744 = vrot.slane %v3737, %v3743
      %v3745 = vcombine.low %v3025, %v3026
      %v3747 = vunpack.c.l.s4 1983009808
      %v3748 = vunpack.c.0.s8 %v3747
      %v3749 = vlaneseq
      %v3750 = vshrl.u32 %v3749, 7
      %v3751 = vsub.s32 %v3748, %v3750
      %v3752 = vrot.slane %v3745, %v3751
      %v3753 = vcombine.low %v3728, %v3736
      %v3755 = vunpack.c.l.s4 1934713408
      %v3756 = vunpack.c.0.s8 %v3755
      %v3757 = vlaneseq
      %v3758 = vshrl.u32 %v3757, 7
      %v3759 = vsub.s32 %v3756, %v3758
      %v3760 = vrot.slane %v3753, %v3759
      %v3761 = vcombine.low %v3744, %v3752
      %v3763 = vunpack.c.l.s4 1934713408
      %v3764 = vunpack.c.0.s8 %v3763
      %v3765 = vlaneseq
      %v3766 = vshrl.u32 %v3765, 7
      %v3767 = vsub.s32 %v3764, %v3766
      %v3768 = vrot.slane %v3761, %v3767
      %v3769 = vcombine.low %v3760, %v3768
      %v3770 = vcombine.high %v3760, %v3768
      %v3771 = vcombine.low %v3065, %v3072
      %v3773 = vunpack.c.l.s4 1983009808
      %v3774 = vunpack.c.0.s8 %v3773
      %v3775 = vlaneseq
      %v3776 = vshrl.u32 %v3775, 7
      %v3777 = vsub.s32 %v3774, %v3776
      %v3778 = vrot.slane %v3771, %v3777
      %v3779 = vcombine.low %v3089, %v3090
      %v3781 = vunpack.c.l.s4 1983009808
      %v3782 = vunpack.c.0.s8 %v3781
      %v3783 = vlaneseq
      %v3784 = vshrl.u32 %v3783, 7
      %v3785 = vsub.s32 %v3782, %v3784
      %v3786 = vrot.slane %v3779, %v3785
      %v3787 = vcombine.low %v3081, %v3088
      %v3789 = vunpack.c.l.s4 1983009808
      %v3790 = vunpack.c.0.s8 %v3789
      %v3791 = vlaneseq
      %v3792 = vshrl.u32 %v3791, 7
      %v3793 = vsub.s32 %v3790, %v3792
      %v3794 = vrot.slane %v3787, %v3793
      %v3795 = vcombine.low %v3091, %v3092
      %v3797 = vunpack.c.l.s4 1983009808
      %v3798 = vunpack.c.0.s8 %v3797
      %v3799 = vlaneseq
      %v3800 = vshrl.u32 %v3799, 7
      %v3801 = vsub.s32 %v3798, %v3800
      %v3802 = vrot.slane %v3795, %v3801
      %v3803 = vcombine.low %v3778, %v3786
      %v3805 = vunpack.c.l.s4 1934713408
      %v3806 = vunpack.c.0.s8 %v3805
      %v3807 = vlaneseq
      %v3808 = vshrl.u32 %v3807, 7
      %v3809 = vsub.s32 %v3806, %v3808
      %v3810 = vrot.slane %v3803, %v3809
      %v3811 = vcombine.low %v3794, %v3802
      %v3813 = vunpack.c.l.s4 1934713408
      %v3814 = vunpack.c.0.s8 %v3813
      %v3815 = vlaneseq
      %v3816 = vshrl.u32 %v3815, 7
      %v3817 = vsub.s32 %v3814, %v3816
      %v3818 = vrot.slane %v3811, %v3817
      %v3819 = vcombine.low %v3810, %v3818
      %v3820 = vcombine.high %v3810, %v3818
      %v3821 = vcombine.low %v3131, %v3138
      %v3823 = vunpack.c.l.s4 1983009808
      %v3824 = vunpack.c.0.s8 %v3823
      %v3825 = vlaneseq
      %v3826 = vshrl.u32 %v3825, 7
      %v3827 = vsub.s32 %v3824, %v3826
      %v3828 = vrot.slane %v3821, %v3827
      %v3829 = vcombine.low %v3155, %v3156
      %v3831 = vunpack.c.l.s4 1983009808
      %v3832 = vunpack.c.0.s8 %v3831
      %v3833 = vlaneseq
      %v3834 = vshrl.u32 %v3833, 7
      %v3835 = vsub.s32 %v3832, %v3834
      %v3836 = vrot.slane %v3829, %v3835
      %v3837 = vcombine.low %v3147, %v3154
      %v3839 = vunpack.c.l.s4 1983009808
      %v3840 = vunpack.c.0.s8 %v3839
      %v3841 = vlaneseq
      %v3842 = vshrl.u32 %v3841, 7
      %v3843 = vsub.s32 %v3840, %v3842
      %v3844 = vrot.slane %v3837, %v3843
      %v3845 = vcombine.low %v3157, %v3158
      %v3847 = vunpack.c.l.s4 1983009808
      %v3848 = vunpack.c.0.s8 %v3847
      %v3849 = vlaneseq
      %v3850 = vshrl.u32 %v3849, 7
      %v3851 = vsub.s32 %v3848, %v3850
      %v3852 = vrot.slane %v3845, %v3851
      %v3853 = vcombine.low %v3828, %v3836
      %v3855 = vunpack.c.l.s4 1934713408
      %v3856 = vunpack.c.0.s8 %v3855
      %v3857 = vlaneseq
      %v3858 = vshrl.u32 %v3857, 7
      %v3859 = vsub.s32 %v3856, %v3858
      %v3860 = vrot.slane %v3853, %v3859
      %v3861 = vcombine.low %v3844, %v3852
      %v3863 = vunpack.c.l.s4 1934713408
      %v3864 = vunpack.c.0.s8 %v3863
      %v3865 = vlaneseq
      %v3866 = vshrl.u32 %v3865, 7
      %v3867 = vsub.s32 %v3864, %v3866
      %v3868 = vrot.slane %v3861, %v3867
      %v3869 = vcombine.low %v3860, %v3868
      %v3870 = vcombine.high %v3860, %v3868
      %v3871 = vcombine.low %v3197, %v3204
      %v3873 = vunpack.c.l.s4 1983009808
      %v3874 = vunpack.c.0.s8 %v3873
      %v3875 = vlaneseq
      %v3876 = vshrl.u32 %v3875, 7
      %v3877 = vsub.s32 %v3874, %v3876
      %v3878 = vrot.slane %v3871, %v3877
      %v3879 = vcombine.low %v3221, %v3222
      %v3881 = vunpack.c.l.s4 1983009808
      %v3882 = vunpack.c.0.s8 %v3881
      %v3883 = vlaneseq
      %v3884 = vshrl.u32 %v3883, 7
      %v3885 = vsub.s32 %v3882, %v3884
      %v3886 = vrot.slane %v3879, %v3885
      %v3887 = vcombine.low %v3213, %v3220
      %v3889 = vunpack.c.l.s4 1983009808
      %v3890 = vunpack.c.0.s8 %v3889
      %v3891 = vlaneseq
      %v3892 = vshrl.u32 %v3891, 7
      %v3893 = vsub.s32 %v3890, %v3892
      %v3894 = vrot.slane %v3887, %v3893
      %v3895 = vcombine.low %v3223, %v3224
      %v3897 = vunpack.c.l.s4 1983009808
      %v3898 = vunpack.c.0.s8 %v3897
      %v3899 = vlaneseq
      %v3900 = vshrl.u32 %v3899, 7
      %v3901 = vsub.s32 %v3898, %v3900
      %v3902 = vrot.slane %v3895, %v3901
      %v3903 = vcombine.low %v3878, %v3886
      %v3905 = vunpack.c.l.s4 1934713408
      %v3906 = vunpack.c.0.s8 %v3905
      %v3907 = vlaneseq
      %v3908 = vshrl.u32 %v3907, 7
      %v3909 = vsub.s32 %v3906, %v3908
      %v3910 = vrot.slane %v3903, %v3909
      %v3911 = vcombine.low %v3894, %v3902
      %v3913 = vunpack.c.l.s4 1934713408
      %v3914 = vunpack.c.0.s8 %v3913
      %v3915 = vlaneseq
      %v3916 = vshrl.u32 %v3915, 7
      %v3917 = vsub.s32 %v3914, %v3916
      %v3918 = vrot.slane %v3911, %v3917
      %v3919 = vcombine.low %v3910, %v3918
      %v3920 = vcombine.high %v3910, %v3918
      %v3921 = vcombine.low %v3263, %v3270
      %v3923 = vunpack.c.l.s4 1983009808
      %v3924 = vunpack.c.0.s8 %v3923
      %v3925 = vlaneseq
      %v3926 = vshrl.u32 %v3925, 7
      %v3927 = vsub.s32 %v3924, %v3926
      %v3928 = vrot.slane %v3921, %v3927
      %v3929 = vcombine.low %v3287, %v3288
      %v3931 = vunpack.c.l.s4 1983009808
      %v3932 = vunpack.c.0.s8 %v3931
      %v3933 = vlaneseq
      %v3934 = vshrl.u32 %v3933, 7
      %v3935 = vsub.s32 %v3932, %v3934
      %v3936 = vrot.slane %v3929, %v3935
      %v3937 = vcombine.low %v3279, %v3286
      %v3939 = vunpack.c.l.s4 1983009808
      %v3940 = vunpack.c.0.s8 %v3939
      %v3941 = vlaneseq
      %v3942 = vshrl.u32 %v3941, 7
      %v3943 = vsub.s32 %v3940, %v3942
      %v3944 = vrot.slane %v3937, %v3943
      %v3945 = vcombine.low %v3289, %v3290
      %v3947 = vunpack.c.l.s4 1983009808
      %v3948 = vunpack.c.0.s8 %v3947
      %v3949 = vlaneseq
      %v3950 = vshrl.u32 %v3949, 7
      %v3951 = vsub.s32 %v3948, %v3950
      %v3952 = vrot.slane %v3945, %v3951
      %v3953 = vcombine.low %v3928, %v3936
      %v3955 = vunpack.c.l.s4 1934713408
      %v3956 = vunpack.c.0.s8 %v3955
      %v3957 = vlaneseq
      %v3958 = vshrl.u32 %v3957, 7
      %v3959 = vsub.s32 %v3956, %v3958
      %v3960 = vrot.slane %v3953, %v3959
      %v3961 = vcombine.low %v3944, %v3952
      %v3963 = vunpack.c.l.s4 1934713408
      %v3964 = vunpack.c.0.s8 %v3963
      %v3965 = vlaneseq
      %v3966 = vshrl.u32 %v3965, 7
      %v3967 = vsub.s32 %v3964, %v3966
      %v3968 = vrot.slane %v3961, %v3967
      %v3969 = vcombine.low %v3960, %v3968
      %v3970 = vcombine.high %v3960, %v3968
      %v3971 = vcombine.low %v3329, %v3336
      %v3973 = vunpack.c.l.s4 1983009808
      %v3974 = vunpack.c.0.s8 %v3973
      %v3975 = vlaneseq
      %v3976 = vshrl.u32 %v3975, 7
      %v3977 = vsub.s32 %v3974, %v3976
      %v3978 = vrot.slane %v3971, %v3977
      %v3979 = vcombine.low %v3353, %v3354
      %v3981 = vunpack.c.l.s4 1983009808
      %v3982 = vunpack.c.0.s8 %v3981
      %v3983 = vlaneseq
      %v3984 = vshrl.u32 %v3983, 7
      %v3985 = vsub.s32 %v3982, %v3984
      %v3986 = vrot.slane %v3979, %v3985
      %v3987 = vcombine.low %v3345, %v3352
      %v3989 = vunpack.c.l.s4 1983009808
      %v3990 = vunpack.c.0.s8 %v3989
      %v3991 = vlaneseq
      %v3992 = vshrl.u32 %v3991, 7
      %v3993 = vsub.s32 %v3990, %v3992
      %v3994 = vrot.slane %v3987, %v3993
      %v3995 = vcombine.low %v3355, %v3356
      %v3997 = vunpack.c.l.s4 1983009808
      %v3998 = vunpack.c.0.s8 %v3997
      %v3999 = vlaneseq
      %v4000 = vshrl.u32 %v3999, 7
      %v4001 = vsub.s32 %v3998, %v4000
      %v4002 = vrot.slane %v3995, %v4001
      %v4003 = vcombine.low %v3978, %v3986
      %v4005 = vunpack.c.l.s4 1934713408
      %v4006 = vunpack.c.0.s8 %v4005
      %v4007 = vlaneseq
      %v4008 = vshrl.u32 %v4007, 7
      %v4009 = vsub.s32 %v4006, %v4008
      %v4010 = vrot.slane %v4003, %v4009
      %v4011 = vcombine.low %v3994, %v4002
      %v4013 = vunpack.c.l.s4 1934713408
      %v4014 = vunpack.c.0.s8 %v4013
      %v4015 = vlaneseq
      %v4016 = vshrl.u32 %v4015, 7
      %v4017 = vsub.s32 %v4014, %v4016
      %v4018 = vrot.slane %v4011, %v4017
      %v4019 = vcombine.low %v4010, %v4018
      %v4020 = vcombine.high %v4010, %v4018
      %v4021 = vcombine.low %v3395, %v3402
      %v4023 = vunpack.c.l.s4 1983009808
      %v4024 = vunpack.c.0.s8 %v4023
      %v4025 = vlaneseq
      %v4026 = vshrl.u32 %v4025, 7
      %v4027 = vsub.s32 %v4024, %v4026
      %v4028 = vrot.slane %v4021, %v4027
      %v4029 = vcombine.low %v3419, %v3420
      %v4031 = vunpack.c.l.s4 1983009808
      %v4032 = vunpack.c.0.s8 %v4031
      %v4033 = vlaneseq
      %v4034 = vshrl.u32 %v4033, 7
      %v4035 = vsub.s32 %v4032, %v4034
      %v4036 = vrot.slane %v4029, %v4035
      %v4037 = vcombine.low %v3411, %v3418
      %v4039 = vunpack.c.l.s4 1983009808
      %v4040 = vunpack.c.0.s8 %v4039
      %v4041 = vlaneseq
      %v4042 = vshrl.u32 %v4041, 7
      %v4043 = vsub.s32 %v4040, %v4042
      %v4044 = vrot.slane %v4037, %v4043
      %v4045 = vcombine.low %v3421, %v3422
      %v4047 = vunpack.c.l.s4 1983009808
      %v4048 = vunpack.c.0.s8 %v4047
      %v4049 = vlaneseq
      %v4050 = vshrl.u32 %v4049, 7
      %v4051 = vsub.s32 %v4048, %v4050
      %v4052 = vrot.slane %v4045, %v4051
      %v4053 = vcombine.low %v4028, %v4036
      %v4055 = vunpack.c.l.s4 1934713408
      %v4056 = vunpack.c.0.s8 %v4055
      %v4057 = vlaneseq
      %v4058 = vshrl.u32 %v4057, 7
      %v4059 = vsub.s32 %v4056, %v4058
      %v4060 = vrot.slane %v4053, %v4059
      %v4061 = vcombine.low %v4044, %v4052
      %v4063 = vunpack.c.l.s4 1934713408
      %v4064 = vunpack.c.0.s8 %v4063
      %v4065 = vlaneseq
      %v4066 = vshrl.u32 %v4065, 7
      %v4067 = vsub.s32 %v4064, %v4066
      %v4068 = vrot.slane %v4061, %v4067
      %v4069 = vcombine.low %v4060, %v4068
      %v4070 = vcombine.high %v4060, %v4068
      %v4071 = vcombine.low %v3461, %v3468
      %v4073 = vunpack.c.l.s4 1983009808
      %v4074 = vunpack.c.0.s8 %v4073
      %v4075 = vlaneseq
      %v4076 = vshrl.u32 %v4075, 7
      %v4077 = vsub.s32 %v4074, %v4076
      %v4078 = vrot.slane %v4071, %v4077
      %v4079 = vcombine.low %v3485, %v3486
      %v4081 = vunpack.c.l.s4 1983009808
      %v4082 = vunpack.c.0.s8 %v4081
      %v4083 = vlaneseq
      %v4084 = vshrl.u32 %v4083, 7
      %v4085 = vsub.s32 %v4082, %v4084
      %v4086 = vrot.slane %v4079, %v4085
      %v4087 = vcombine.low %v3477, %v3484
      %v4089 = vunpack.c.l.s4 1983009808
      %v4090 = vunpack.c.0.s8 %v4089
      %v4091 = vlaneseq
      %v4092 = vshrl.u32 %v4091, 7
      %v4093 = vsub.s32 %v4090, %v4092
      %v4094 = vrot.slane %v4087, %v4093
      %v4095 = vcombine.low %v3487, %v3488
      %v4097 = vunpack.c.l.s4 1983009808
      %v4098 = vunpack.c.0.s8 %v4097
      %v4099 = vlaneseq
      %v4100 = vshrl.u32 %v4099, 7
      %v4101 = vsub.s32 %v4098, %v4100
      %v4102 = vrot.slane %v4095, %v4101
      %v4103 = vcombine.low %v4078, %v4086
      %v4105 = vunpack.c.l.s4 1934713408
      %v4106 = vunpack.c.0.s8 %v4105
      %v4107 = vlaneseq
      %v4108 = vshrl.u32 %v4107, 7
      %v4109 = vsub.s32 %v4106, %v4108
      %v4110 = vrot.slane %v4103, %v4109
      %v4111 = vcombine.low %v4094, %v4102
      %v4113 = vunpack.c.l.s4 1934713408
      %v4114 = vunpack.c.0.s8 %v4113
      %v4115 = vlaneseq
      %v4116 = vshrl.u32 %v4115, 7
      %v4117 = vsub.s32 %v4114, %v4116
      %v4118 = vrot.slane %v4111, %v4117
      %v4119 = vcombine.low %v4110, %v4118
      %v4120 = vcombine.high %v4110, %v4118
      %v4121 = vcombine.low %v3527, %v3534
      %v4123 = vunpack.c.l.s4 1983009808
      %v4124 = vunpack.c.0.s8 %v4123
      %v4125 = vlaneseq
      %v4126 = vshrl.u32 %v4125, 7
      %v4127 = vsub.s32 %v4124, %v4126
      %v4128 = vrot.slane %v4121, %v4127
      %v4129 = vcombine.low %v3551, %v3552
      %v4131 = vunpack.c.l.s4 1983009808
      %v4132 = vunpack.c.0.s8 %v4131
      %v4133 = vlaneseq
      %v4134 = vshrl.u32 %v4133, 7
      %v4135 = vsub.s32 %v4132, %v4134
      %v4136 = vrot.slane %v4129, %v4135
      %v4137 = vcombine.low %v3543, %v3550
      %v4139 = vunpack.c.l.s4 1983009808
      %v4140 = vunpack.c.0.s8 %v4139
      %v4141 = vlaneseq
      %v4142 = vshrl.u32 %v4141, 7
      %v4143 = vsub.s32 %v4140, %v4142
      %v4144 = vrot.slane %v4137, %v4143
      %v4145 = vcombine.low %v3553, %v3554
      %v4147 = vunpack.c.l.s4 1983009808
      %v4148 = vunpack.c.0.s8 %v4147
      %v4149 = vlaneseq
      %v4150 = vshrl.u32 %v4149, 7
      %v4151 = vsub.s32 %v4148, %v4150
      %v4152 = vrot.slane %v4145, %v4151
      %v4153 = vcombine.low %v4128, %v4136
      %v4155 = vunpack.c.l.s4 1934713408
      %v4156 = vunpack.c.0.s8 %v4155
      %v4157 = vlaneseq
      %v4158 = vshrl.u32 %v4157, 7
      %v4159 = vsub.s32 %v4156, %v4158
      %v4160 = vrot.slane %v4153, %v4159
      %v4161 = vcombine.low %v4144, %v4152
      %v4163 = vunpack.c.l.s4 1934713408
      %v4164 = vunpack.c.0.s8 %v4163
      %v4165 = vlaneseq
      %v4166 = vshrl.u32 %v4165, 7
      %v4167 = vsub.s32 %v4164, %v4166
      %v4168 = vrot.slane %v4161, %v4167
      %v4169 = vcombine.low %v4160, %v4168
      %v4170 = vcombine.high %v4160, %v4168
      %v4171 = vcombine.low %v3593, %v3600
      %v4173 = vunpack.c.l.s4 1983009808
      %v4174 = vunpack.c.0.s8 %v4173
      %v4175 = vlaneseq
      %v4176 = vshrl.u32 %v4175, 7
      %v4177 = vsub.s32 %v4174, %v4176
      %v4178 = vrot.slane %v4171, %v4177
      %v4179 = vcombine.low %v3617, %v3618
      %v4181 = vunpack.c.l.s4 1983009808
      %v4182 = vunpack.c.0.s8 %v4181
      %v4183 = vlaneseq
      %v4184 = vshrl.u32 %v4183, 7
      %v4185 = vsub.s32 %v4182, %v4184
      %v4186 = vrot.slane %v4179, %v4185
      %v4187 = vcombine.low %v3609, %v3616
      %v4189 = vunpack.c.l.s4 1983009808
      %v4190 = vunpack.c.0.s8 %v4189
      %v4191 = vlaneseq
      %v4192 = vshrl.u32 %v4191, 7
      %v4193 = vsub.s32 %v4190, %v4192
      %v4194 = vrot.slane %v4187, %v4193
      %v4195 = vcombine.low %v3619, %v3620
      %v4197 = vunpack.c.l.s4 1983009808
      %v4198 = vunpack.c.0.s8 %v4197
      %v4199 = vlaneseq
      %v4200 = vshrl.u32 %v4199, 7
      %v4201 = vsub.s32 %v4198, %v4200
      %v4202 = vrot.slane %v4195, %v4201
      %v4203 = vcombine.low %v4178, %v4186
      %v4205 = vunpack.c.l.s4 1934713408
      %v4206 = vunpack.c.0.s8 %v4205
      %v4207 = vlaneseq
      %v4208 = vshrl.u32 %v4207, 7
      %v4209 = vsub.s32 %v4206, %v4208
      %v4210 = vrot.slane %v4203, %v4209
      %v4211 = vcombine.low %v4194, %v4202
      %v4213 = vunpack.c.l.s4 1934713408
      %v4214 = vunpack.c.0.s8 %v4213
      %v4215 = vlaneseq
      %v4216 = vshrl.u32 %v4215, 7
      %v4217 = vsub.s32 %v4214, %v4216
      %v4218 = vrot.slane %v4211, %v4217
      %v4219 = vcombine.low %v4210, %v4218
      %v4220 = vcombine.high %v4210, %v4218
      %v4223 = vpack.i.b16 %v3719, %v3669
      %v4224 = vshrl.u32 %v3669, 16
      %v4225 = vshrl.u32 %v3719, 16
      %v4226 = vpack.i.b16 %v4225, %v4224
      %v4229 = vpack.i.b16 %v3720, %v3670
      %v4230 = vshrl.u32 %v3670, 16
      %v4231 = vshrl.u32 %v3720, 16
      %v4232 = vpack.i.b16 %v4231, %v4230
      %v4235 = vpack.i.b16 %v3819, %v3769
      %v4236 = vshrl.u32 %v3769, 16
      %v4237 = vshrl.u32 %v3819, 16
      %v4238 = vpack.i.b16 %v4237, %v4236
      %v4241 = vpack.i.b16 %v3820, %v3770
      %v4242 = vshrl.u32 %v3770, 16
      %v4243 = vshrl.u32 %v3820, 16
      %v4244 = vpack.i.b16 %v4243, %v4242
      %v4247 = vpack.i.b16 %v3919, %v3869
      %v4248 = vshrl.u32 %v3869, 16
      %v4249 = vshrl.u32 %v3919, 16
      %v4250 = vpack.i.b16 %v4249, %v4248
      %v4253 = vpack.i.b16 %v3920, %v3870
      %v4254 = vshrl.u32 %v3870, 16
      %v4255 = vshrl.u32 %v3920, 16
      %v4256 = vpack.i.b16 %v4255, %v4254
      %v4259 = vpack.i.b16 %v4019, %v3969
      %v4260 = vshrl.u32 %v3969, 16
      %v4261 = vshrl.u32 %v4019, 16
      %v4262 = vpack.i.b16 %v4261, %v4260
      %v4265 = vpack.i.b16 %v4020, %v3970
      %v4266 = vshrl.u32 %v3970, 16
      %v4267 = vshrl.u32 %v4020, 16
      %v4268 = vpack.i.b16 %v4267, %v4266
      %v4271 = vpack.i.b16 %v4119, %v4069
      %v4272 = vshrl.u32 %v4069, 16
      %v4273 = vshrl.u32 %v4119, 16
      %v4274 = vpack.i.b16 %v4273, %v4272
      %v4277 = vpack.i.b16 %v4120, %v4070
      %v4278 = vshrl.u32 %v4070, 16
      %v4279 = vshrl.u32 %v4120, 16
      %v4280 = vpack.i.b16 %v4279, %v4278
      %v4283 = vpack.i.b16 %v4219, %v4169
      %v4284 = vshrl.u32 %v4169, 16
      %v4285 = vshrl.u32 %v4219, 16
      %v4286 = vpack.i.b16 %v4285, %v4284
      %v4289 = vpack.i.b16 %v4220, %v4170
      %v4290 = vshrl.u32 %v4170, 16
      %v4291 = vshrl.u32 %v4220, 16
      %v4292 = vpack.i.b16 %v4291, %v4290
      %4293 = vrot.lane.b32.xlu0 %v1029, 64
      %v4294 = vpop.permute.xlu0 %4293
      %4295 = vrot.lane.b32.xlu0 %v1030, 64
      %v4296 = vpop.permute.xlu0 %4295
      %4297 = vrot.lane.b32.xlu0 %v1031, 64
      %v4298 = vpop.permute.xlu0 %4297
      %4299 = vrot.lane.b32.xlu0 %v1032, 64
      %v4300 = vpop.permute.xlu0 %4299
      %4301 = vrot.lane.b32.xlu0 %v1033, 64
      %v4302 = vpop.permute.xlu0 %4301
      %4303 = vrot.lane.b32.xlu0 %v1034, 64
      %v4304 = vpop.permute.xlu0 %4303
      %4305 = vrot.lane.b32.xlu0 %v2650, 64
      %v4306 = vpop.permute.xlu0 %4305
      %4307 = vrot.lane.b32.xlu0 %v2652, 64
      %v4308 = vpop.permute.xlu0 %4307
      %4309 = vrot.lane.b32.xlu0 %v2654, 64
      %v4310 = vpop.permute.xlu0 %4309
      %4311 = vrot.lane.b32.xlu0 %v2656, 64
      %v4312 = vpop.permute.xlu0 %4311
      %4313 = vrot.lane.b32.xlu0 %v2658, 64
      %v4314 = vpop.permute.xlu0 %4313
      %4315 = vrot.lane.b32.xlu0 %v2660, 64
      %v4316 = vpop.permute.xlu0 %4315
      %4317 = vrot.lane.b32.xlu0 %v2662, 64
      %v4318 = vpop.permute.xlu0 %4317
      %4319 = vrot.lane.b32.xlu0 %v2664, 64
      %v4320 = vpop.permute.xlu0 %4319
      %4321 = vrot.lane.b32.xlu0 %v2666, 64
      %v4322 = vpop.permute.xlu0 %4321
      %4323 = vrot.lane.b32.xlu0 %v2668, 64
      %v4324 = vpop.permute.xlu0 %4323
      %4325 = vrot.lane.b32.xlu0 %v2670, 64
      %v4326 = vpop.permute.xlu0 %4325
      %4327 = vrot.lane.b32.xlu0 %v2672, 64
      %v4328 = vpop.permute.xlu0 %4327
      %4329 = vrot.lane.b32.xlu0 %v2674, 64
      %v4330 = vpop.permute.xlu0 %4329
      %4331 = vrot.lane.b32.xlu0 %v2676, 64
      %v4332 = vpop.permute.xlu0 %4331
      %4333 = vrot.lane.b32.xlu0 %v2678, 64
      %v4334 = vpop.permute.xlu0 %4333
      %4335 = vrot.lane.b32.xlu0 %v2680, 64
      %v4336 = vpop.permute.xlu0 %4335
      %4337 = vrot.lane.b32.xlu0 %v2682, 64
      %v4338 = vpop.permute.xlu0 %4337
      %4339 = vrot.lane.b32.xlu0 %v2684, 64
      %v4340 = vpop.permute.xlu0 %4339
      %v4343 = vpack.i.b16 %v4306, %v4294
      %v4345 = vshrl.u32 %v4294, 16
      %v4346 = vshrl.u32 %v4306, 16
      %v4347 = vpack.i.b16 %v4346, %v4345
      %v4351 = vpack.i.b16 %v4330, %v4318
      %v4353 = vshrl.u32 %v4318, 16
      %v4354 = vshrl.u32 %v4330, 16
      %v4355 = vpack.i.b16 %v4354, %v4353
      %v4359 = vpack.i.b16 %v4308, %v4296
      %v4361 = vshrl.u32 %v4296, 16
      %v4362 = vshrl.u32 %v4308, 16
      %v4363 = vpack.i.b16 %v4362, %v4361
      %v4367 = vpack.i.b16 %v4332, %v4320
      %v4369 = vshrl.u32 %v4320, 16
      %v4370 = vshrl.u32 %v4332, 16
      %v4371 = vpack.i.b16 %v4370, %v4369
      %v4375 = vpack.i.b16 %v4310, %v4298
      %v4377 = vshrl.u32 %v4298, 16
      %v4378 = vshrl.u32 %v4310, 16
      %v4379 = vpack.i.b16 %v4378, %v4377
      %v4383 = vpack.i.b16 %v4334, %v4322
      %v4385 = vshrl.u32 %v4322, 16
      %v4386 = vshrl.u32 %v4334, 16
      %v4387 = vpack.i.b16 %v4386, %v4385
      %v4391 = vpack.i.b16 %v4312, %v4300
      %v4393 = vshrl.u32 %v4300, 16
      %v4394 = vshrl.u32 %v4312, 16
      %v4395 = vpack.i.b16 %v4394, %v4393
      %v4399 = vpack.i.b16 %v4336, %v4324
      %v4401 = vshrl.u32 %v4324, 16
      %v4402 = vshrl.u32 %v4336, 16
      %v4403 = vpack.i.b16 %v4402, %v4401
      %v4407 = vpack.i.b16 %v4314, %v4302
      %v4409 = vshrl.u32 %v4302, 16
      %v4410 = vshrl.u32 %v4314, 16
      %v4411 = vpack.i.b16 %v4410, %v4409
      %v4415 = vpack.i.b16 %v4338, %v4326
      %v4417 = vshrl.u32 %v4326, 16
      %v4418 = vshrl.u32 %v4338, 16
      %v4419 = vpack.i.b16 %v4418, %v4417
      %v4423 = vpack.i.b16 %v4316, %v4304
      %v4425 = vshrl.u32 %v4304, 16
      %v4426 = vshrl.u32 %v4316, 16
      %v4427 = vpack.i.b16 %v4426, %v4425
      %v4431 = vpack.i.b16 %v4340, %v4328
      %v4433 = vshrl.u32 %v4328, 16
      %v4434 = vshrl.u32 %v4340, 16
      %v4435 = vpack.i.b16 %v4434, %v4433
      %v4437 = vcombine.high %v4343, %v1094
      %v4439 = vunpack.c.l.s4 1983009808
      %v4440 = vunpack.c.0.s8 %v4439
      %v4441 = vlaneseq
      %v4442 = vshrl.u32 %v4441, 7
      %v4443 = vsub.s32 %v4440, %v4442
      %v4444 = vrot.slane %v4343, %v4443
      %v4446 = vunpack.c.l.s4 1983009808
      %v4447 = vunpack.c.0.s8 %v4446
      %v4448 = vlaneseq
      %v4449 = vshrl.u32 %v4448, 7
      %v4450 = vsub.s32 %v4447, %v4449
      %v4451 = vrot.slane %v4437, %v4450
      %v4452 = vcombine.high %v4351, %v1094
      %v4454 = vunpack.c.l.s4 1983009808
      %v4455 = vunpack.c.0.s8 %v4454
      %v4456 = vlaneseq
      %v4457 = vshrl.u32 %v4456, 7
      %v4458 = vsub.s32 %v4455, %v4457
      %v4459 = vrot.slane %v4351, %v4458
      %v4461 = vunpack.c.l.s4 1983009808
      %v4462 = vunpack.c.0.s8 %v4461
      %v4463 = vlaneseq
      %v4464 = vshrl.u32 %v4463, 7
      %v4465 = vsub.s32 %v4462, %v4464
      %v4466 = vrot.slane %v4452, %v4465
      %v4467 = vcombine.low %v4444, %v4459
      %v4468 = vcombine.high %v4444, %v4459
      %v4470 = vunpack.c.l.s4 1934713408
      %v4471 = vunpack.c.0.s8 %v4470
      %v4472 = vlaneseq
      %v4473 = vshrl.u32 %v4472, 7
      %v4474 = vsub.s32 %v4471, %v4473
      %v4475 = vrot.slane %v4467, %v4474
      %v4477 = vunpack.c.l.s4 1934713408
      %v4478 = vunpack.c.0.s8 %v4477
      %v4479 = vlaneseq
      %v4480 = vshrl.u32 %v4479, 7
      %v4481 = vsub.s32 %v4478, %v4480
      %v4482 = vrot.slane %v4468, %v4481
      %v4483 = vcombine.low %v4451, %v4466
      %v4484 = vcombine.high %v4451, %v4466
      %v4486 = vunpack.c.l.s4 1934713408
      %v4487 = vunpack.c.0.s8 %v4486
      %v4488 = vlaneseq
      %v4489 = vshrl.u32 %v4488, 7
      %v4490 = vsub.s32 %v4487, %v4489
      %v4491 = vrot.slane %v4483, %v4490
      %v4493 = vunpack.c.l.s4 1934713408
      %v4494 = vunpack.c.0.s8 %v4493
      %v4495 = vlaneseq
      %v4496 = vshrl.u32 %v4495, 7
      %v4497 = vsub.s32 %v4494, %v4496
      %v4498 = vrot.slane %v4484, %v4497
      %v4499 = vcombine.high %v4475, 0
      %v4500 = vcombine.high %v4482, 0
      %v4501 = vcombine.high %v4491, 0
      %v4502 = vcombine.high %v4498, 0
      %v4503 = vcombine.high %v4347, %v1097
      %v4505 = vunpack.c.l.s4 1983009808
      %v4506 = vunpack.c.0.s8 %v4505
      %v4507 = vlaneseq
      %v4508 = vshrl.u32 %v4507, 7
      %v4509 = vsub.s32 %v4506, %v4508
      %v4510 = vrot.slane %v4347, %v4509
      %v4512 = vunpack.c.l.s4 1983009808
      %v4513 = vunpack.c.0.s8 %v4512
      %v4514 = vlaneseq
      %v4515 = vshrl.u32 %v4514, 7
      %v4516 = vsub.s32 %v4513, %v4515
      %v4517 = vrot.slane %v4503, %v4516
      %v4518 = vcombine.high %v4355, %v1097
      %v4520 = vunpack.c.l.s4 1983009808
      %v4521 = vunpack.c.0.s8 %v4520
      %v4522 = vlaneseq
      %v4523 = vshrl.u32 %v4522, 7
      %v4524 = vsub.s32 %v4521, %v4523
      %v4525 = vrot.slane %v4355, %v4524
      %v4527 = vunpack.c.l.s4 1983009808
      %v4528 = vunpack.c.0.s8 %v4527
      %v4529 = vlaneseq
      %v4530 = vshrl.u32 %v4529, 7
      %v4531 = vsub.s32 %v4528, %v4530
      %v4532 = vrot.slane %v4518, %v4531
      %v4533 = vcombine.low %v4510, %v4525
      %v4534 = vcombine.high %v4510, %v4525
      %v4536 = vunpack.c.l.s4 1934713408
      %v4537 = vunpack.c.0.s8 %v4536
      %v4538 = vlaneseq
      %v4539 = vshrl.u32 %v4538, 7
      %v4540 = vsub.s32 %v4537, %v4539
      %v4541 = vrot.slane %v4533, %v4540
      %v4543 = vunpack.c.l.s4 1934713408
      %v4544 = vunpack.c.0.s8 %v4543
      %v4545 = vlaneseq
      %v4546 = vshrl.u32 %v4545, 7
      %v4547 = vsub.s32 %v4544, %v4546
      %v4548 = vrot.slane %v4534, %v4547
      %v4549 = vcombine.low %v4517, %v4532
      %v4550 = vcombine.high %v4517, %v4532
      %v4552 = vunpack.c.l.s4 1934713408
      %v4553 = vunpack.c.0.s8 %v4552
      %v4554 = vlaneseq
      %v4555 = vshrl.u32 %v4554, 7
      %v4556 = vsub.s32 %v4553, %v4555
      %v4557 = vrot.slane %v4549, %v4556
      %v4559 = vunpack.c.l.s4 1934713408
      %v4560 = vunpack.c.0.s8 %v4559
      %v4561 = vlaneseq
      %v4562 = vshrl.u32 %v4561, 7
      %v4563 = vsub.s32 %v4560, %v4562
      %v4564 = vrot.slane %v4550, %v4563
      %v4565 = vcombine.high %v4541, 0
      %v4566 = vcombine.high %v4548, 0
      %v4567 = vcombine.high %v4557, 0
      %v4568 = vcombine.high %v4564, 0
      %v4569 = vcombine.high %v4359, %v1094
      %v4571 = vunpack.c.l.s4 1983009808
      %v4572 = vunpack.c.0.s8 %v4571
      %v4573 = vlaneseq
      %v4574 = vshrl.u32 %v4573, 7
      %v4575 = vsub.s32 %v4572, %v4574
      %v4576 = vrot.slane %v4359, %v4575
      %v4578 = vunpack.c.l.s4 1983009808
      %v4579 = vunpack.c.0.s8 %v4578
      %v4580 = vlaneseq
      %v4581 = vshrl.u32 %v4580, 7
      %v4582 = vsub.s32 %v4579, %v4581
      %v4583 = vrot.slane %v4569, %v4582
      %v4584 = vcombine.high %v4367, %v1094
      %v4586 = vunpack.c.l.s4 1983009808
      %v4587 = vunpack.c.0.s8 %v4586
      %v4588 = vlaneseq
      %v4589 = vshrl.u32 %v4588, 7
      %v4590 = vsub.s32 %v4587, %v4589
      %v4591 = vrot.slane %v4367, %v4590
      %v4593 = vunpack.c.l.s4 1983009808
      %v4594 = vunpack.c.0.s8 %v4593
      %v4595 = vlaneseq
      %v4596 = vshrl.u32 %v4595, 7
      %v4597 = vsub.s32 %v4594, %v4596
      %v4598 = vrot.slane %v4584, %v4597
      %v4599 = vcombine.low %v4576, %v4591
      %v4600 = vcombine.high %v4576, %v4591
      %v4602 = vunpack.c.l.s4 1934713408
      %v4603 = vunpack.c.0.s8 %v4602
      %v4604 = vlaneseq
      %v4605 = vshrl.u32 %v4604, 7
      %v4606 = vsub.s32 %v4603, %v4605
      %v4607 = vrot.slane %v4599, %v4606
      %v4609 = vunpack.c.l.s4 1934713408
      %v4610 = vunpack.c.0.s8 %v4609
      %v4611 = vlaneseq
      %v4612 = vshrl.u32 %v4611, 7
      %v4613 = vsub.s32 %v4610, %v4612
      %v4614 = vrot.slane %v4600, %v4613
      %v4615 = vcombine.low %v4583, %v4598
      %v4616 = vcombine.high %v4583, %v4598
      %v4618 = vunpack.c.l.s4 1934713408
      %v4619 = vunpack.c.0.s8 %v4618
      %v4620 = vlaneseq
      %v4621 = vshrl.u32 %v4620, 7
      %v4622 = vsub.s32 %v4619, %v4621
      %v4623 = vrot.slane %v4615, %v4622
      %v4625 = vunpack.c.l.s4 1934713408
      %v4626 = vunpack.c.0.s8 %v4625
      %v4627 = vlaneseq
      %v4628 = vshrl.u32 %v4627, 7
      %v4629 = vsub.s32 %v4626, %v4628
      %v4630 = vrot.slane %v4616, %v4629
      %v4631 = vcombine.high %v4607, 0
      %v4632 = vcombine.high %v4614, 0
      %v4633 = vcombine.high %v4623, 0
      %v4634 = vcombine.high %v4630, 0
      %v4635 = vcombine.high %v4363, %v1097
      %v4637 = vunpack.c.l.s4 1983009808
      %v4638 = vunpack.c.0.s8 %v4637
      %v4639 = vlaneseq
      %v4640 = vshrl.u32 %v4639, 7
      %v4641 = vsub.s32 %v4638, %v4640
      %v4642 = vrot.slane %v4363, %v4641
      %v4644 = vunpack.c.l.s4 1983009808
      %v4645 = vunpack.c.0.s8 %v4644
      %v4646 = vlaneseq
      %v4647 = vshrl.u32 %v4646, 7
      %v4648 = vsub.s32 %v4645, %v4647
      %v4649 = vrot.slane %v4635, %v4648
      %v4650 = vcombine.high %v4371, %v1097
      %v4652 = vunpack.c.l.s4 1983009808
      %v4653 = vunpack.c.0.s8 %v4652
      %v4654 = vlaneseq
      %v4655 = vshrl.u32 %v4654, 7
      %v4656 = vsub.s32 %v4653, %v4655
      %v4657 = vrot.slane %v4371, %v4656
      %v4659 = vunpack.c.l.s4 1983009808
      %v4660 = vunpack.c.0.s8 %v4659
      %v4661 = vlaneseq
      %v4662 = vshrl.u32 %v4661, 7
      %v4663 = vsub.s32 %v4660, %v4662
      %v4664 = vrot.slane %v4650, %v4663
      %v4665 = vcombine.low %v4642, %v4657
      %v4666 = vcombine.high %v4642, %v4657
      %v4668 = vunpack.c.l.s4 1934713408
      %v4669 = vunpack.c.0.s8 %v4668
      %v4670 = vlaneseq
      %v4671 = vshrl.u32 %v4670, 7
      %v4672 = vsub.s32 %v4669, %v4671
      %v4673 = vrot.slane %v4665, %v4672
      %v4675 = vunpack.c.l.s4 1934713408
      %v4676 = vunpack.c.0.s8 %v4675
      %v4677 = vlaneseq
      %v4678 = vshrl.u32 %v4677, 7
      %v4679 = vsub.s32 %v4676, %v4678
      %v4680 = vrot.slane %v4666, %v4679
      %v4681 = vcombine.low %v4649, %v4664
      %v4682 = vcombine.high %v4649, %v4664
      %v4684 = vunpack.c.l.s4 1934713408
      %v4685 = vunpack.c.0.s8 %v4684
      %v4686 = vlaneseq
      %v4687 = vshrl.u32 %v4686, 7
      %v4688 = vsub.s32 %v4685, %v4687
      %v4689 = vrot.slane %v4681, %v4688
      %v4691 = vunpack.c.l.s4 1934713408
      %v4692 = vunpack.c.0.s8 %v4691
      %v4693 = vlaneseq
      %v4694 = vshrl.u32 %v4693, 7
      %v4695 = vsub.s32 %v4692, %v4694
      %v4696 = vrot.slane %v4682, %v4695
      %v4697 = vcombine.high %v4673, 0
      %v4698 = vcombine.high %v4680, 0
      %v4699 = vcombine.high %v4689, 0
      %v4700 = vcombine.high %v4696, 0
      %v4701 = vcombine.high %v4375, %v1094
      %v4703 = vunpack.c.l.s4 1983009808
      %v4704 = vunpack.c.0.s8 %v4703
      %v4705 = vlaneseq
      %v4706 = vshrl.u32 %v4705, 7
      %v4707 = vsub.s32 %v4704, %v4706
      %v4708 = vrot.slane %v4375, %v4707
      %v4710 = vunpack.c.l.s4 1983009808
      %v4711 = vunpack.c.0.s8 %v4710
      %v4712 = vlaneseq
      %v4713 = vshrl.u32 %v4712, 7
      %v4714 = vsub.s32 %v4711, %v4713
      %v4715 = vrot.slane %v4701, %v4714
      %v4716 = vcombine.high %v4383, %v1094
      %v4718 = vunpack.c.l.s4 1983009808
      %v4719 = vunpack.c.0.s8 %v4718
      %v4720 = vlaneseq
      %v4721 = vshrl.u32 %v4720, 7
      %v4722 = vsub.s32 %v4719, %v4721
      %v4723 = vrot.slane %v4383, %v4722
      %v4725 = vunpack.c.l.s4 1983009808
      %v4726 = vunpack.c.0.s8 %v4725
      %v4727 = vlaneseq
      %v4728 = vshrl.u32 %v4727, 7
      %v4729 = vsub.s32 %v4726, %v4728
      %v4730 = vrot.slane %v4716, %v4729
      %v4731 = vcombine.low %v4708, %v4723
      %v4732 = vcombine.high %v4708, %v4723
      %v4734 = vunpack.c.l.s4 1934713408
      %v4735 = vunpack.c.0.s8 %v4734
      %v4736 = vlaneseq
      %v4737 = vshrl.u32 %v4736, 7
      %v4738 = vsub.s32 %v4735, %v4737
      %v4739 = vrot.slane %v4731, %v4738
      %v4741 = vunpack.c.l.s4 1934713408
      %v4742 = vunpack.c.0.s8 %v4741
      %v4743 = vlaneseq
      %v4744 = vshrl.u32 %v4743, 7
      %v4745 = vsub.s32 %v4742, %v4744
      %v4746 = vrot.slane %v4732, %v4745
      %v4747 = vcombine.low %v4715, %v4730
      %v4748 = vcombine.high %v4715, %v4730
      %v4750 = vunpack.c.l.s4 1934713408
      %v4751 = vunpack.c.0.s8 %v4750
      %v4752 = vlaneseq
      %v4753 = vshrl.u32 %v4752, 7
      %v4754 = vsub.s32 %v4751, %v4753
      %v4755 = vrot.slane %v4747, %v4754
      %v4757 = vunpack.c.l.s4 1934713408
      %v4758 = vunpack.c.0.s8 %v4757
      %v4759 = vlaneseq
      %v4760 = vshrl.u32 %v4759, 7
      %v4761 = vsub.s32 %v4758, %v4760
      %v4762 = vrot.slane %v4748, %v4761
      %v4763 = vcombine.high %v4739, 0
      %v4764 = vcombine.high %v4746, 0
      %v4765 = vcombine.high %v4755, 0
      %v4766 = vcombine.high %v4762, 0
      %v4767 = vcombine.high %v4379, %v1097
      %v4769 = vunpack.c.l.s4 1983009808
      %v4770 = vunpack.c.0.s8 %v4769
      %v4771 = vlaneseq
      %v4772 = vshrl.u32 %v4771, 7
      %v4773 = vsub.s32 %v4770, %v4772
      %v4774 = vrot.slane %v4379, %v4773
      %v4776 = vunpack.c.l.s4 1983009808
      %v4777 = vunpack.c.0.s8 %v4776
      %v4778 = vlaneseq
      %v4779 = vshrl.u32 %v4778, 7
      %v4780 = vsub.s32 %v4777, %v4779
      %v4781 = vrot.slane %v4767, %v4780
      %v4782 = vcombine.high %v4387, %v1097
      %v4784 = vunpack.c.l.s4 1983009808
      %v4785 = vunpack.c.0.s8 %v4784
      %v4786 = vlaneseq
      %v4787 = vshrl.u32 %v4786, 7
      %v4788 = vsub.s32 %v4785, %v4787
      %v4789 = vrot.slane %v4387, %v4788
      %v4791 = vunpack.c.l.s4 1983009808
      %v4792 = vunpack.c.0.s8 %v4791
      %v4793 = vlaneseq
      %v4794 = vshrl.u32 %v4793, 7
      %v4795 = vsub.s32 %v4792, %v4794
      %v4796 = vrot.slane %v4782, %v4795
      %v4797 = vcombine.low %v4774, %v4789
      %v4798 = vcombine.high %v4774, %v4789
      %v4800 = vunpack.c.l.s4 1934713408
      %v4801 = vunpack.c.0.s8 %v4800
      %v4802 = vlaneseq
      %v4803 = vshrl.u32 %v4802, 7
      %v4804 = vsub.s32 %v4801, %v4803
      %v4805 = vrot.slane %v4797, %v4804
      %v4807 = vunpack.c.l.s4 1934713408
      %v4808 = vunpack.c.0.s8 %v4807
      %v4809 = vlaneseq
      %v4810 = vshrl.u32 %v4809, 7
      %v4811 = vsub.s32 %v4808, %v4810
      %v4812 = vrot.slane %v4798, %v4811
      %v4813 = vcombine.low %v4781, %v4796
      %v4814 = vcombine.high %v4781, %v4796
      %v4816 = vunpack.c.l.s4 1934713408
      %v4817 = vunpack.c.0.s8 %v4816
      %v4818 = vlaneseq
      %v4819 = vshrl.u32 %v4818, 7
      %v4820 = vsub.s32 %v4817, %v4819
      %v4821 = vrot.slane %v4813, %v4820
      %v4823 = vunpack.c.l.s4 1934713408
      %v4824 = vunpack.c.0.s8 %v4823
      %v4825 = vlaneseq
      %v4826 = vshrl.u32 %v4825, 7
      %v4827 = vsub.s32 %v4824, %v4826
      %v4828 = vrot.slane %v4814, %v4827
      %v4829 = vcombine.high %v4805, 0
      %v4830 = vcombine.high %v4812, 0
      %v4831 = vcombine.high %v4821, 0
      %v4832 = vcombine.high %v4828, 0
      %v4833 = vcombine.high %v4391, %v1094
      %v4835 = vunpack.c.l.s4 1983009808
      %v4836 = vunpack.c.0.s8 %v4835
      %v4837 = vlaneseq
      %v4838 = vshrl.u32 %v4837, 7
      %v4839 = vsub.s32 %v4836, %v4838
      %v4840 = vrot.slane %v4391, %v4839
      %v4842 = vunpack.c.l.s4 1983009808
      %v4843 = vunpack.c.0.s8 %v4842
      %v4844 = vlaneseq
      %v4845 = vshrl.u32 %v4844, 7
      %v4846 = vsub.s32 %v4843, %v4845
      %v4847 = vrot.slane %v4833, %v4846
      %v4848 = vcombine.high %v4399, %v1094
      %v4850 = vunpack.c.l.s4 1983009808
      %v4851 = vunpack.c.0.s8 %v4850
      %v4852 = vlaneseq
      %v4853 = vshrl.u32 %v4852, 7
      %v4854 = vsub.s32 %v4851, %v4853
      %v4855 = vrot.slane %v4399, %v4854
      %v4857 = vunpack.c.l.s4 1983009808
      %v4858 = vunpack.c.0.s8 %v4857
      %v4859 = vlaneseq
      %v4860 = vshrl.u32 %v4859, 7
      %v4861 = vsub.s32 %v4858, %v4860
      %v4862 = vrot.slane %v4848, %v4861
      %v4863 = vcombine.low %v4840, %v4855
      %v4864 = vcombine.high %v4840, %v4855
      %v4866 = vunpack.c.l.s4 1934713408
      %v4867 = vunpack.c.0.s8 %v4866
      %v4868 = vlaneseq
      %v4869 = vshrl.u32 %v4868, 7
      %v4870 = vsub.s32 %v4867, %v4869
      %v4871 = vrot.slane %v4863, %v4870
      %v4873 = vunpack.c.l.s4 1934713408
      %v4874 = vunpack.c.0.s8 %v4873
      %v4875 = vlaneseq
      %v4876 = vshrl.u32 %v4875, 7
      %v4877 = vsub.s32 %v4874, %v4876
      %v4878 = vrot.slane %v4864, %v4877
      %v4879 = vcombine.low %v4847, %v4862
      %v4880 = vcombine.high %v4847, %v4862
      %v4882 = vunpack.c.l.s4 1934713408
      %v4883 = vunpack.c.0.s8 %v4882
      %v4884 = vlaneseq
      %v4885 = vshrl.u32 %v4884, 7
      %v4886 = vsub.s32 %v4883, %v4885
      %v4887 = vrot.slane %v4879, %v4886
      %v4889 = vunpack.c.l.s4 1934713408
      %v4890 = vunpack.c.0.s8 %v4889
      %v4891 = vlaneseq
      %v4892 = vshrl.u32 %v4891, 7
      %v4893 = vsub.s32 %v4890, %v4892
      %v4894 = vrot.slane %v4880, %v4893
      %v4895 = vcombine.high %v4871, 0
      %v4896 = vcombine.high %v4878, 0
      %v4897 = vcombine.high %v4887, 0
      %v4898 = vcombine.high %v4894, 0
      %v4899 = vcombine.high %v4395, %v1097
      %v4901 = vunpack.c.l.s4 1983009808
      %v4902 = vunpack.c.0.s8 %v4901
      %v4903 = vlaneseq
      %v4904 = vshrl.u32 %v4903, 7
      %v4905 = vsub.s32 %v4902, %v4904
      %v4906 = vrot.slane %v4395, %v4905
      %v4908 = vunpack.c.l.s4 1983009808
      %v4909 = vunpack.c.0.s8 %v4908
      %v4910 = vlaneseq
      %v4911 = vshrl.u32 %v4910, 7
      %v4912 = vsub.s32 %v4909, %v4911
      %v4913 = vrot.slane %v4899, %v4912
      %v4914 = vcombine.high %v4403, %v1097
      %v4916 = vunpack.c.l.s4 1983009808
      %v4917 = vunpack.c.0.s8 %v4916
      %v4918 = vlaneseq
      %v4919 = vshrl.u32 %v4918, 7
      %v4920 = vsub.s32 %v4917, %v4919
      %v4921 = vrot.slane %v4403, %v4920
      %v4923 = vunpack.c.l.s4 1983009808
      %v4924 = vunpack.c.0.s8 %v4923
      %v4925 = vlaneseq
      %v4926 = vshrl.u32 %v4925, 7
      %v4927 = vsub.s32 %v4924, %v4926
      %v4928 = vrot.slane %v4914, %v4927
      %v4929 = vcombine.low %v4906, %v4921
      %v4930 = vcombine.high %v4906, %v4921
      %v4932 = vunpack.c.l.s4 1934713408
      %v4933 = vunpack.c.0.s8 %v4932
      %v4934 = vlaneseq
      %v4935 = vshrl.u32 %v4934, 7
      %v4936 = vsub.s32 %v4933, %v4935
      %v4937 = vrot.slane %v4929, %v4936
      %v4939 = vunpack.c.l.s4 1934713408
      %v4940 = vunpack.c.0.s8 %v4939
      %v4941 = vlaneseq
      %v4942 = vshrl.u32 %v4941, 7
      %v4943 = vsub.s32 %v4940, %v4942
      %v4944 = vrot.slane %v4930, %v4943
      %v4945 = vcombine.low %v4913, %v4928
      %v4946 = vcombine.high %v4913, %v4928
      %v4948 = vunpack.c.l.s4 1934713408
      %v4949 = vunpack.c.0.s8 %v4948
      %v4950 = vlaneseq
      %v4951 = vshrl.u32 %v4950, 7
      %v4952 = vsub.s32 %v4949, %v4951
      %v4953 = vrot.slane %v4945, %v4952
      %v4955 = vunpack.c.l.s4 1934713408
      %v4956 = vunpack.c.0.s8 %v4955
      %v4957 = vlaneseq
      %v4958 = vshrl.u32 %v4957, 7
      %v4959 = vsub.s32 %v4956, %v4958
      %v4960 = vrot.slane %v4946, %v4959
      %v4961 = vcombine.high %v4937, 0
      %v4962 = vcombine.high %v4944, 0
      %v4963 = vcombine.high %v4953, 0
      %v4964 = vcombine.high %v4960, 0
      %v4965 = vcombine.high %v4407, %v1094
      %v4967 = vunpack.c.l.s4 1983009808
      %v4968 = vunpack.c.0.s8 %v4967
      %v4969 = vlaneseq
      %v4970 = vshrl.u32 %v4969, 7
      %v4971 = vsub.s32 %v4968, %v4970
      %v4972 = vrot.slane %v4407, %v4971
      %v4974 = vunpack.c.l.s4 1983009808
      %v4975 = vunpack.c.0.s8 %v4974
      %v4976 = vlaneseq
      %v4977 = vshrl.u32 %v4976, 7
      %v4978 = vsub.s32 %v4975, %v4977
      %v4979 = vrot.slane %v4965, %v4978
      %v4980 = vcombine.high %v4415, %v1094
      %v4982 = vunpack.c.l.s4 1983009808
      %v4983 = vunpack.c.0.s8 %v4982
      %v4984 = vlaneseq
      %v4985 = vshrl.u32 %v4984, 7
      %v4986 = vsub.s32 %v4983, %v4985
      %v4987 = vrot.slane %v4415, %v4986
      %v4989 = vunpack.c.l.s4 1983009808
      %v4990 = vunpack.c.0.s8 %v4989
      %v4991 = vlaneseq
      %v4992 = vshrl.u32 %v4991, 7
      %v4993 = vsub.s32 %v4990, %v4992
      %v4994 = vrot.slane %v4980, %v4993
      %v4995 = vcombine.low %v4972, %v4987
      %v4996 = vcombine.high %v4972, %v4987
      %v4998 = vunpack.c.l.s4 1934713408
      %v4999 = vunpack.c.0.s8 %v4998
      %v5000 = vlaneseq
      %v5001 = vshrl.u32 %v5000, 7
      %v5002 = vsub.s32 %v4999, %v5001
      %v5003 = vrot.slane %v4995, %v5002
      %v5005 = vunpack.c.l.s4 1934713408
      %v5006 = vunpack.c.0.s8 %v5005
      %v5007 = vlaneseq
      %v5008 = vshrl.u32 %v5007, 7
      %v5009 = vsub.s32 %v5006, %v5008
      %v5010 = vrot.slane %v4996, %v5009
      %v5011 = vcombine.low %v4979, %v4994
      %v5012 = vcombine.high %v4979, %v4994
      %v5014 = vunpack.c.l.s4 1934713408
      %v5015 = vunpack.c.0.s8 %v5014
      %v5016 = vlaneseq
      %v5017 = vshrl.u32 %v5016, 7
      %v5018 = vsub.s32 %v5015, %v5017
      %v5019 = vrot.slane %v5011, %v5018
      %v5021 = vunpack.c.l.s4 1934713408
      %v5022 = vunpack.c.0.s8 %v5021
      %v5023 = vlaneseq
      %v5024 = vshrl.u32 %v5023, 7
      %v5025 = vsub.s32 %v5022, %v5024
      %v5026 = vrot.slane %v5012, %v5025
      %v5027 = vcombine.high %v5003, 0
      %v5028 = vcombine.high %v5010, 0
      %v5029 = vcombine.high %v5019, 0
      %v5030 = vcombine.high %v5026, 0
      %v5031 = vcombine.high %v4411, %v1097
      %v5033 = vunpack.c.l.s4 1983009808
      %v5034 = vunpack.c.0.s8 %v5033
      %v5035 = vlaneseq
      %v5036 = vshrl.u32 %v5035, 7
      %v5037 = vsub.s32 %v5034, %v5036
      %v5038 = vrot.slane %v4411, %v5037
      %v5040 = vunpack.c.l.s4 1983009808
      %v5041 = vunpack.c.0.s8 %v5040
      %v5042 = vlaneseq
      %v5043 = vshrl.u32 %v5042, 7
      %v5044 = vsub.s32 %v5041, %v5043
      %v5045 = vrot.slane %v5031, %v5044
      %v5046 = vcombine.high %v4419, %v1097
      %v5048 = vunpack.c.l.s4 1983009808
      %v5049 = vunpack.c.0.s8 %v5048
      %v5050 = vlaneseq
      %v5051 = vshrl.u32 %v5050, 7
      %v5052 = vsub.s32 %v5049, %v5051
      %v5053 = vrot.slane %v4419, %v5052
      %v5055 = vunpack.c.l.s4 1983009808
      %v5056 = vunpack.c.0.s8 %v5055
      %v5057 = vlaneseq
      %v5058 = vshrl.u32 %v5057, 7
      %v5059 = vsub.s32 %v5056, %v5058
      %v5060 = vrot.slane %v5046, %v5059
      %v5061 = vcombine.low %v5038, %v5053
      %v5062 = vcombine.high %v5038, %v5053
      %v5064 = vunpack.c.l.s4 1934713408
      %v5065 = vunpack.c.0.s8 %v5064
      %v5066 = vlaneseq
      %v5067 = vshrl.u32 %v5066, 7
      %v5068 = vsub.s32 %v5065, %v5067
      %v5069 = vrot.slane %v5061, %v5068
      %v5071 = vunpack.c.l.s4 1934713408
      %v5072 = vunpack.c.0.s8 %v5071
      %v5073 = vlaneseq
      %v5074 = vshrl.u32 %v5073, 7
      %v5075 = vsub.s32 %v5072, %v5074
      %v5076 = vrot.slane %v5062, %v5075
      %v5077 = vcombine.low %v5045, %v5060
      %v5078 = vcombine.high %v5045, %v5060
      %v5080 = vunpack.c.l.s4 1934713408
      %v5081 = vunpack.c.0.s8 %v5080
      %v5082 = vlaneseq
      %v5083 = vshrl.u32 %v5082, 7
      %v5084 = vsub.s32 %v5081, %v5083
      %v5085 = vrot.slane %v5077, %v5084
      %v5087 = vunpack.c.l.s4 1934713408
      %v5088 = vunpack.c.0.s8 %v5087
      %v5089 = vlaneseq
      %v5090 = vshrl.u32 %v5089, 7
      %v5091 = vsub.s32 %v5088, %v5090
      %v5092 = vrot.slane %v5078, %v5091
      %v5093 = vcombine.high %v5069, 0
      %v5094 = vcombine.high %v5076, 0
      %v5095 = vcombine.high %v5085, 0
      %v5096 = vcombine.high %v5092, 0
      %v5097 = vcombine.high %v4423, %v1094
      %v5099 = vunpack.c.l.s4 1983009808
      %v5100 = vunpack.c.0.s8 %v5099
      %v5101 = vlaneseq
      %v5102 = vshrl.u32 %v5101, 7
      %v5103 = vsub.s32 %v5100, %v5102
      %v5104 = vrot.slane %v4423, %v5103
      %v5106 = vunpack.c.l.s4 1983009808
      %v5107 = vunpack.c.0.s8 %v5106
      %v5108 = vlaneseq
      %v5109 = vshrl.u32 %v5108, 7
      %v5110 = vsub.s32 %v5107, %v5109
      %v5111 = vrot.slane %v5097, %v5110
      %v5112 = vcombine.high %v4431, %v1094
      %v5114 = vunpack.c.l.s4 1983009808
      %v5115 = vunpack.c.0.s8 %v5114
      %v5116 = vlaneseq
      %v5117 = vshrl.u32 %v5116, 7
      %v5118 = vsub.s32 %v5115, %v5117
      %v5119 = vrot.slane %v4431, %v5118
      %v5121 = vunpack.c.l.s4 1983009808
      %v5122 = vunpack.c.0.s8 %v5121
      %v5123 = vlaneseq
      %v5124 = vshrl.u32 %v5123, 7
      %v5125 = vsub.s32 %v5122, %v5124
      %v5126 = vrot.slane %v5112, %v5125
      %v5127 = vcombine.low %v5104, %v5119
      %v5128 = vcombine.high %v5104, %v5119
      %v5130 = vunpack.c.l.s4 1934713408
      %v5131 = vunpack.c.0.s8 %v5130
      %v5132 = vlaneseq
      %v5133 = vshrl.u32 %v5132, 7
      %v5134 = vsub.s32 %v5131, %v5133
      %v5135 = vrot.slane %v5127, %v5134
      %v5137 = vunpack.c.l.s4 1934713408
      %v5138 = vunpack.c.0.s8 %v5137
      %v5139 = vlaneseq
      %v5140 = vshrl.u32 %v5139, 7
      %v5141 = vsub.s32 %v5138, %v5140
      %v5142 = vrot.slane %v5128, %v5141
      %v5143 = vcombine.low %v5111, %v5126
      %v5144 = vcombine.high %v5111, %v5126
      %v5146 = vunpack.c.l.s4 1934713408
      %v5147 = vunpack.c.0.s8 %v5146
      %v5148 = vlaneseq
      %v5149 = vshrl.u32 %v5148, 7
      %v5150 = vsub.s32 %v5147, %v5149
      %v5151 = vrot.slane %v5143, %v5150
      %v5153 = vunpack.c.l.s4 1934713408
      %v5154 = vunpack.c.0.s8 %v5153
      %v5155 = vlaneseq
      %v5156 = vshrl.u32 %v5155, 7
      %v5157 = vsub.s32 %v5154, %v5156
      %v5158 = vrot.slane %v5144, %v5157
      %v5159 = vcombine.high %v5135, 0
      %v5160 = vcombine.high %v5142, 0
      %v5161 = vcombine.high %v5151, 0
      %v5162 = vcombine.high %v5158, 0
      %v5163 = vcombine.high %v4427, %v1097
      %v5165 = vunpack.c.l.s4 1983009808
      %v5166 = vunpack.c.0.s8 %v5165
      %v5167 = vlaneseq
      %v5168 = vshrl.u32 %v5167, 7
      %v5169 = vsub.s32 %v5166, %v5168
      %v5170 = vrot.slane %v4427, %v5169
      %v5172 = vunpack.c.l.s4 1983009808
      %v5173 = vunpack.c.0.s8 %v5172
      %v5174 = vlaneseq
      %v5175 = vshrl.u32 %v5174, 7
      %v5176 = vsub.s32 %v5173, %v5175
      %v5177 = vrot.slane %v5163, %v5176
      %v5178 = vcombine.high %v4435, %v1097
      %v5180 = vunpack.c.l.s4 1983009808
      %v5181 = vunpack.c.0.s8 %v5180
      %v5182 = vlaneseq
      %v5183 = vshrl.u32 %v5182, 7
      %v5184 = vsub.s32 %v5181, %v5183
      %v5185 = vrot.slane %v4435, %v5184
      %v5187 = vunpack.c.l.s4 1983009808
      %v5188 = vunpack.c.0.s8 %v5187
      %v5189 = vlaneseq
      %v5190 = vshrl.u32 %v5189, 7
      %v5191 = vsub.s32 %v5188, %v5190
      %v5192 = vrot.slane %v5178, %v5191
      %v5193 = vcombine.low %v5170, %v5185
      %v5194 = vcombine.high %v5170, %v5185
      %v5196 = vunpack.c.l.s4 1934713408
      %v5197 = vunpack.c.0.s8 %v5196
      %v5198 = vlaneseq
      %v5199 = vshrl.u32 %v5198, 7
      %v5200 = vsub.s32 %v5197, %v5199
      %v5201 = vrot.slane %v5193, %v5200
      %v5203 = vunpack.c.l.s4 1934713408
      %v5204 = vunpack.c.0.s8 %v5203
      %v5205 = vlaneseq
      %v5206 = vshrl.u32 %v5205, 7
      %v5207 = vsub.s32 %v5204, %v5206
      %v5208 = vrot.slane %v5194, %v5207
      %v5209 = vcombine.low %v5177, %v5192
      %v5210 = vcombine.high %v5177, %v5192
      %v5212 = vunpack.c.l.s4 1934713408
      %v5213 = vunpack.c.0.s8 %v5212
      %v5214 = vlaneseq
      %v5215 = vshrl.u32 %v5214, 7
      %v5216 = vsub.s32 %v5213, %v5215
      %v5217 = vrot.slane %v5209, %v5216
      %v5219 = vunpack.c.l.s4 1934713408
      %v5220 = vunpack.c.0.s8 %v5219
      %v5221 = vlaneseq
      %v5222 = vshrl.u32 %v5221, 7
      %v5223 = vsub.s32 %v5220, %v5222
      %v5224 = vrot.slane %v5210, %v5223
      %v5225 = vcombine.high %v5201, 0
      %v5226 = vcombine.high %v5208, 0
      %v5227 = vcombine.high %v5217, 0
      %v5228 = vcombine.high %v5224, 0
      %v5229 = vcombine.low %v4475, %v4482
      %v5231 = vunpack.c.l.s4 1983009808
      %v5232 = vunpack.c.0.s8 %v5231
      %v5233 = vlaneseq
      %v5234 = vshrl.u32 %v5233, 7
      %v5235 = vsub.s32 %v5232, %v5234
      %v5236 = vrot.slane %v5229, %v5235
      %v5237 = vcombine.low %v4499, %v4500
      %v5239 = vunpack.c.l.s4 1983009808
      %v5240 = vunpack.c.0.s8 %v5239
      %v5241 = vlaneseq
      %v5242 = vshrl.u32 %v5241, 7
      %v5243 = vsub.s32 %v5240, %v5242
      %v5244 = vrot.slane %v5237, %v5243
      %v5245 = vcombine.low %v4491, %v4498
      %v5247 = vunpack.c.l.s4 1983009808
      %v5248 = vunpack.c.0.s8 %v5247
      %v5249 = vlaneseq
      %v5250 = vshrl.u32 %v5249, 7
      %v5251 = vsub.s32 %v5248, %v5250
      %v5252 = vrot.slane %v5245, %v5251
      %v5253 = vcombine.low %v4501, %v4502
      %v5255 = vunpack.c.l.s4 1983009808
      %v5256 = vunpack.c.0.s8 %v5255
      %v5257 = vlaneseq
      %v5258 = vshrl.u32 %v5257, 7
      %v5259 = vsub.s32 %v5256, %v5258
      %v5260 = vrot.slane %v5253, %v5259
      %v5261 = vcombine.low %v5236, %v5244
      %v5263 = vunpack.c.l.s4 1934713408
      %v5264 = vunpack.c.0.s8 %v5263
      %v5265 = vlaneseq
      %v5266 = vshrl.u32 %v5265, 7
      %v5267 = vsub.s32 %v5264, %v5266
      %v5268 = vrot.slane %v5261, %v5267
      %v5269 = vcombine.low %v5252, %v5260
      %v5271 = vunpack.c.l.s4 1934713408
      %v5272 = vunpack.c.0.s8 %v5271
      %v5273 = vlaneseq
      %v5274 = vshrl.u32 %v5273, 7
      %v5275 = vsub.s32 %v5272, %v5274
      %v5276 = vrot.slane %v5269, %v5275
      %v5277 = vcombine.low %v5268, %v5276
      %v5278 = vcombine.high %v5268, %v5276
      %v5279 = vcombine.low %v4541, %v4548
      %v5281 = vunpack.c.l.s4 1983009808
      %v5282 = vunpack.c.0.s8 %v5281
      %v5283 = vlaneseq
      %v5284 = vshrl.u32 %v5283, 7
      %v5285 = vsub.s32 %v5282, %v5284
      %v5286 = vrot.slane %v5279, %v5285
      %v5287 = vcombine.low %v4565, %v4566
      %v5289 = vunpack.c.l.s4 1983009808
      %v5290 = vunpack.c.0.s8 %v5289
      %v5291 = vlaneseq
      %v5292 = vshrl.u32 %v5291, 7
      %v5293 = vsub.s32 %v5290, %v5292
      %v5294 = vrot.slane %v5287, %v5293
      %v5295 = vcombine.low %v4557, %v4564
      %v5297 = vunpack.c.l.s4 1983009808
      %v5298 = vunpack.c.0.s8 %v5297
      %v5299 = vlaneseq
      %v5300 = vshrl.u32 %v5299, 7
      %v5301 = vsub.s32 %v5298, %v5300
      %v5302 = vrot.slane %v5295, %v5301
      %v5303 = vcombine.low %v4567, %v4568
      %v5305 = vunpack.c.l.s4 1983009808
      %v5306 = vunpack.c.0.s8 %v5305
      %v5307 = vlaneseq
      %v5308 = vshrl.u32 %v5307, 7
      %v5309 = vsub.s32 %v5306, %v5308
      %v5310 = vrot.slane %v5303, %v5309
      %v5311 = vcombine.low %v5286, %v5294
      %v5313 = vunpack.c.l.s4 1934713408
      %v5314 = vunpack.c.0.s8 %v5313
      %v5315 = vlaneseq
      %v5316 = vshrl.u32 %v5315, 7
      %v5317 = vsub.s32 %v5314, %v5316
      %v5318 = vrot.slane %v5311, %v5317
      %v5319 = vcombine.low %v5302, %v5310
      %v5321 = vunpack.c.l.s4 1934713408
      %v5322 = vunpack.c.0.s8 %v5321
      %v5323 = vlaneseq
      %v5324 = vshrl.u32 %v5323, 7
      %v5325 = vsub.s32 %v5322, %v5324
      %v5326 = vrot.slane %v5319, %v5325
      %v5327 = vcombine.low %v5318, %v5326
      %v5328 = vcombine.high %v5318, %v5326
      %v5329 = vcombine.low %v4607, %v4614
      %v5331 = vunpack.c.l.s4 1983009808
      %v5332 = vunpack.c.0.s8 %v5331
      %v5333 = vlaneseq
      %v5334 = vshrl.u32 %v5333, 7
      %v5335 = vsub.s32 %v5332, %v5334
      %v5336 = vrot.slane %v5329, %v5335
      %v5337 = vcombine.low %v4631, %v4632
      %v5339 = vunpack.c.l.s4 1983009808
      %v5340 = vunpack.c.0.s8 %v5339
      %v5341 = vlaneseq
      %v5342 = vshrl.u32 %v5341, 7
      %v5343 = vsub.s32 %v5340, %v5342
      %v5344 = vrot.slane %v5337, %v5343
      %v5345 = vcombine.low %v4623, %v4630
      %v5347 = vunpack.c.l.s4 1983009808
      %v5348 = vunpack.c.0.s8 %v5347
      %v5349 = vlaneseq
      %v5350 = vshrl.u32 %v5349, 7
      %v5351 = vsub.s32 %v5348, %v5350
      %v5352 = vrot.slane %v5345, %v5351
      %v5353 = vcombine.low %v4633, %v4634
      %v5355 = vunpack.c.l.s4 1983009808
      %v5356 = vunpack.c.0.s8 %v5355
      %v5357 = vlaneseq
      %v5358 = vshrl.u32 %v5357, 7
      %v5359 = vsub.s32 %v5356, %v5358
      %v5360 = vrot.slane %v5353, %v5359
      %v5361 = vcombine.low %v5336, %v5344
      %v5363 = vunpack.c.l.s4 1934713408
      %v5364 = vunpack.c.0.s8 %v5363
      %v5365 = vlaneseq
      %v5366 = vshrl.u32 %v5365, 7
      %v5367 = vsub.s32 %v5364, %v5366
      %v5368 = vrot.slane %v5361, %v5367
      %v5369 = vcombine.low %v5352, %v5360
      %v5371 = vunpack.c.l.s4 1934713408
      %v5372 = vunpack.c.0.s8 %v5371
      %v5373 = vlaneseq
      %v5374 = vshrl.u32 %v5373, 7
      %v5375 = vsub.s32 %v5372, %v5374
      %v5376 = vrot.slane %v5369, %v5375
      %v5377 = vcombine.low %v5368, %v5376
      %v5378 = vcombine.high %v5368, %v5376
      %v5379 = vcombine.low %v4673, %v4680
      %v5381 = vunpack.c.l.s4 1983009808
      %v5382 = vunpack.c.0.s8 %v5381
      %v5383 = vlaneseq
      %v5384 = vshrl.u32 %v5383, 7
      %v5385 = vsub.s32 %v5382, %v5384
      %v5386 = vrot.slane %v5379, %v5385
      %v5387 = vcombine.low %v4697, %v4698
      %v5389 = vunpack.c.l.s4 1983009808
      %v5390 = vunpack.c.0.s8 %v5389
      %v5391 = vlaneseq
      %v5392 = vshrl.u32 %v5391, 7
      %v5393 = vsub.s32 %v5390, %v5392
      %v5394 = vrot.slane %v5387, %v5393
      %v5395 = vcombine.low %v4689, %v4696
      %v5397 = vunpack.c.l.s4 1983009808
      %v5398 = vunpack.c.0.s8 %v5397
      %v5399 = vlaneseq
      %v5400 = vshrl.u32 %v5399, 7
      %v5401 = vsub.s32 %v5398, %v5400
      %v5402 = vrot.slane %v5395, %v5401
      %v5403 = vcombine.low %v4699, %v4700
      %v5405 = vunpack.c.l.s4 1983009808
      %v5406 = vunpack.c.0.s8 %v5405
      %v5407 = vlaneseq
      %v5408 = vshrl.u32 %v5407, 7
      %v5409 = vsub.s32 %v5406, %v5408
      %v5410 = vrot.slane %v5403, %v5409
      %v5411 = vcombine.low %v5386, %v5394
      %v5413 = vunpack.c.l.s4 1934713408
      %v5414 = vunpack.c.0.s8 %v5413
      %v5415 = vlaneseq
      %v5416 = vshrl.u32 %v5415, 7
      %v5417 = vsub.s32 %v5414, %v5416
      %v5418 = vrot.slane %v5411, %v5417
      %v5419 = vcombine.low %v5402, %v5410
      %v5421 = vunpack.c.l.s4 1934713408
      %v5422 = vunpack.c.0.s8 %v5421
      %v5423 = vlaneseq
      %v5424 = vshrl.u32 %v5423, 7
      %v5425 = vsub.s32 %v5422, %v5424
      %v5426 = vrot.slane %v5419, %v5425
      %v5427 = vcombine.low %v5418, %v5426
      %v5428 = vcombine.high %v5418, %v5426
      %v5429 = vcombine.low %v4739, %v4746
      %v5431 = vunpack.c.l.s4 1983009808
      %v5432 = vunpack.c.0.s8 %v5431
      %v5433 = vlaneseq
      %v5434 = vshrl.u32 %v5433, 7
      %v5435 = vsub.s32 %v5432, %v5434
      %v5436 = vrot.slane %v5429, %v5435
      %v5437 = vcombine.low %v4763, %v4764
      %v5439 = vunpack.c.l.s4 1983009808
      %v5440 = vunpack.c.0.s8 %v5439
      %v5441 = vlaneseq
      %v5442 = vshrl.u32 %v5441, 7
      %v5443 = vsub.s32 %v5440, %v5442
      %v5444 = vrot.slane %v5437, %v5443
      %v5445 = vcombine.low %v4755, %v4762
      %v5447 = vunpack.c.l.s4 1983009808
      %v5448 = vunpack.c.0.s8 %v5447
      %v5449 = vlaneseq
      %v5450 = vshrl.u32 %v5449, 7
      %v5451 = vsub.s32 %v5448, %v5450
      %v5452 = vrot.slane %v5445, %v5451
      %v5453 = vcombine.low %v4765, %v4766
      %v5455 = vunpack.c.l.s4 1983009808
      %v5456 = vunpack.c.0.s8 %v5455
      %v5457 = vlaneseq
      %v5458 = vshrl.u32 %v5457, 7
      %v5459 = vsub.s32 %v5456, %v5458
      %v5460 = vrot.slane %v5453, %v5459
      %v5461 = vcombine.low %v5436, %v5444
      %v5463 = vunpack.c.l.s4 1934713408
      %v5464 = vunpack.c.0.s8 %v5463
      %v5465 = vlaneseq
      %v5466 = vshrl.u32 %v5465, 7
      %v5467 = vsub.s32 %v5464, %v5466
      %v5468 = vrot.slane %v5461, %v5467
      %v5469 = vcombine.low %v5452, %v5460
      %v5471 = vunpack.c.l.s4 1934713408
      %v5472 = vunpack.c.0.s8 %v5471
      %v5473 = vlaneseq
      %v5474 = vshrl.u32 %v5473, 7
      %v5475 = vsub.s32 %v5472, %v5474
      %v5476 = vrot.slane %v5469, %v5475
      %v5477 = vcombine.low %v5468, %v5476
      %v5478 = vcombine.high %v5468, %v5476
      %v5479 = vcombine.low %v4805, %v4812
      %v5481 = vunpack.c.l.s4 1983009808
      %v5482 = vunpack.c.0.s8 %v5481
      %v5483 = vlaneseq
      %v5484 = vshrl.u32 %v5483, 7
      %v5485 = vsub.s32 %v5482, %v5484
      %v5486 = vrot.slane %v5479, %v5485
      %v5487 = vcombine.low %v4829, %v4830
      %v5489 = vunpack.c.l.s4 1983009808
      %v5490 = vunpack.c.0.s8 %v5489
      %v5491 = vlaneseq
      %v5492 = vshrl.u32 %v5491, 7
      %v5493 = vsub.s32 %v5490, %v5492
      %v5494 = vrot.slane %v5487, %v5493
      %v5495 = vcombine.low %v4821, %v4828
      %v5497 = vunpack.c.l.s4 1983009808
      %v5498 = vunpack.c.0.s8 %v5497
      %v5499 = vlaneseq
      %v5500 = vshrl.u32 %v5499, 7
      %v5501 = vsub.s32 %v5498, %v5500
      %v5502 = vrot.slane %v5495, %v5501
      %v5503 = vcombine.low %v4831, %v4832
      %v5505 = vunpack.c.l.s4 1983009808
      %v5506 = vunpack.c.0.s8 %v5505
      %v5507 = vlaneseq
      %v5508 = vshrl.u32 %v5507, 7
      %v5509 = vsub.s32 %v5506, %v5508
      %v5510 = vrot.slane %v5503, %v5509
      %v5511 = vcombine.low %v5486, %v5494
      %v5513 = vunpack.c.l.s4 1934713408
      %v5514 = vunpack.c.0.s8 %v5513
      %v5515 = vlaneseq
      %v5516 = vshrl.u32 %v5515, 7
      %v5517 = vsub.s32 %v5514, %v5516
      %v5518 = vrot.slane %v5511, %v5517
      %v5519 = vcombine.low %v5502, %v5510
      %v5521 = vunpack.c.l.s4 1934713408
      %v5522 = vunpack.c.0.s8 %v5521
      %v5523 = vlaneseq
      %v5524 = vshrl.u32 %v5523, 7
      %v5525 = vsub.s32 %v5522, %v5524
      %v5526 = vrot.slane %v5519, %v5525
      %v5527 = vcombine.low %v5518, %v5526
      %v5528 = vcombine.high %v5518, %v5526
      %v5529 = vcombine.low %v4871, %v4878
      %v5531 = vunpack.c.l.s4 1983009808
      %v5532 = vunpack.c.0.s8 %v5531
      %v5533 = vlaneseq
      %v5534 = vshrl.u32 %v5533, 7
      %v5535 = vsub.s32 %v5532, %v5534
      %v5536 = vrot.slane %v5529, %v5535
      %v5537 = vcombine.low %v4895, %v4896
      %v5539 = vunpack.c.l.s4 1983009808
      %v5540 = vunpack.c.0.s8 %v5539
      %v5541 = vlaneseq
      %v5542 = vshrl.u32 %v5541, 7
      %v5543 = vsub.s32 %v5540, %v5542
      %v5544 = vrot.slane %v5537, %v5543
      %v5545 = vcombine.low %v4887, %v4894
      %v5547 = vunpack.c.l.s4 1983009808
      %v5548 = vunpack.c.0.s8 %v5547
      %v5549 = vlaneseq
      %v5550 = vshrl.u32 %v5549, 7
      %v5551 = vsub.s32 %v5548, %v5550
      %v5552 = vrot.slane %v5545, %v5551
      %v5553 = vcombine.low %v4897, %v4898
      %v5555 = vunpack.c.l.s4 1983009808
      %v5556 = vunpack.c.0.s8 %v5555
      %v5557 = vlaneseq
      %v5558 = vshrl.u32 %v5557, 7
      %v5559 = vsub.s32 %v5556, %v5558
      %v5560 = vrot.slane %v5553, %v5559
      %v5561 = vcombine.low %v5536, %v5544
      %v5563 = vunpack.c.l.s4 1934713408
      %v5564 = vunpack.c.0.s8 %v5563
      %v5565 = vlaneseq
      %v5566 = vshrl.u32 %v5565, 7
      %v5567 = vsub.s32 %v5564, %v5566
      %v5568 = vrot.slane %v5561, %v5567
      %v5569 = vcombine.low %v5552, %v5560
      %v5571 = vunpack.c.l.s4 1934713408
      %v5572 = vunpack.c.0.s8 %v5571
      %v5573 = vlaneseq
      %v5574 = vshrl.u32 %v5573, 7
      %v5575 = vsub.s32 %v5572, %v5574
      %v5576 = vrot.slane %v5569, %v5575
      %v5577 = vcombine.low %v5568, %v5576
      %v5578 = vcombine.high %v5568, %v5576
      %v5579 = vcombine.low %v4937, %v4944
      %v5581 = vunpack.c.l.s4 1983009808
      %v5582 = vunpack.c.0.s8 %v5581
      %v5583 = vlaneseq
      %v5584 = vshrl.u32 %v5583, 7
      %v5585 = vsub.s32 %v5582, %v5584
      %v5586 = vrot.slane %v5579, %v5585
      %v5587 = vcombine.low %v4961, %v4962
      %v5589 = vunpack.c.l.s4 1983009808
      %v5590 = vunpack.c.0.s8 %v5589
      %v5591 = vlaneseq
      %v5592 = vshrl.u32 %v5591, 7
      %v5593 = vsub.s32 %v5590, %v5592
      %v5594 = vrot.slane %v5587, %v5593
      %v5595 = vcombine.low %v4953, %v4960
      %v5597 = vunpack.c.l.s4 1983009808
      %v5598 = vunpack.c.0.s8 %v5597
      %v5599 = vlaneseq
      %v5600 = vshrl.u32 %v5599, 7
      %v5601 = vsub.s32 %v5598, %v5600
      %v5602 = vrot.slane %v5595, %v5601
      %v5603 = vcombine.low %v4963, %v4964
      %v5605 = vunpack.c.l.s4 1983009808
      %v5606 = vunpack.c.0.s8 %v5605
      %v5607 = vlaneseq
      %v5608 = vshrl.u32 %v5607, 7
      %v5609 = vsub.s32 %v5606, %v5608
      %v5610 = vrot.slane %v5603, %v5609
      %v5611 = vcombine.low %v5586, %v5594
      %v5613 = vunpack.c.l.s4 1934713408
      %v5614 = vunpack.c.0.s8 %v5613
      %v5615 = vlaneseq
      %v5616 = vshrl.u32 %v5615, 7
      %v5617 = vsub.s32 %v5614, %v5616
      %v5618 = vrot.slane %v5611, %v5617
      %v5619 = vcombine.low %v5602, %v5610
      %v5621 = vunpack.c.l.s4 1934713408
      %v5622 = vunpack.c.0.s8 %v5621
      %v5623 = vlaneseq
      %v5624 = vshrl.u32 %v5623, 7
      %v5625 = vsub.s32 %v5622, %v5624
      %v5626 = vrot.slane %v5619, %v5625
      %v5627 = vcombine.low %v5618, %v5626
      %v5628 = vcombine.high %v5618, %v5626
      %v5629 = vcombine.low %v5003, %v5010
      %v5631 = vunpack.c.l.s4 1983009808
      %v5632 = vunpack.c.0.s8 %v5631
      %v5633 = vlaneseq
      %v5634 = vshrl.u32 %v5633, 7
      %v5635 = vsub.s32 %v5632, %v5634
      %v5636 = vrot.slane %v5629, %v5635
      %v5637 = vcombine.low %v5027, %v5028
      %v5639 = vunpack.c.l.s4 1983009808
      %v5640 = vunpack.c.0.s8 %v5639
      %v5641 = vlaneseq
      %v5642 = vshrl.u32 %v5641, 7
      %v5643 = vsub.s32 %v5640, %v5642
      %v5644 = vrot.slane %v5637, %v5643
      %v5645 = vcombine.low %v5019, %v5026
      %v5647 = vunpack.c.l.s4 1983009808
      %v5648 = vunpack.c.0.s8 %v5647
      %v5649 = vlaneseq
      %v5650 = vshrl.u32 %v5649, 7
      %v5651 = vsub.s32 %v5648, %v5650
      %v5652 = vrot.slane %v5645, %v5651
      %v5653 = vcombine.low %v5029, %v5030
      %v5655 = vunpack.c.l.s4 1983009808
      %v5656 = vunpack.c.0.s8 %v5655
      %v5657 = vlaneseq
      %v5658 = vshrl.u32 %v5657, 7
      %v5659 = vsub.s32 %v5656, %v5658
      %v5660 = vrot.slane %v5653, %v5659
      %v5661 = vcombine.low %v5636, %v5644
      %v5663 = vunpack.c.l.s4 1934713408
      %v5664 = vunpack.c.0.s8 %v5663
      %v5665 = vlaneseq
      %v5666 = vshrl.u32 %v5665, 7
      %v5667 = vsub.s32 %v5664, %v5666
      %v5668 = vrot.slane %v5661, %v5667
      %v5669 = vcombine.low %v5652, %v5660
      %v5671 = vunpack.c.l.s4 1934713408
      %v5672 = vunpack.c.0.s8 %v5671
      %v5673 = vlaneseq
      %v5674 = vshrl.u32 %v5673, 7
      %v5675 = vsub.s32 %v5672, %v5674
      %v5676 = vrot.slane %v5669, %v5675
      %v5677 = vcombine.low %v5668, %v5676
      %v5678 = vcombine.high %v5668, %v5676
      %v5679 = vcombine.low %v5069, %v5076
      %v5681 = vunpack.c.l.s4 1983009808
      %v5682 = vunpack.c.0.s8 %v5681
      %v5683 = vlaneseq
      %v5684 = vshrl.u32 %v5683, 7
      %v5685 = vsub.s32 %v5682, %v5684
      %v5686 = vrot.slane %v5679, %v5685
      %v5687 = vcombine.low %v5093, %v5094
      %v5689 = vunpack.c.l.s4 1983009808
      %v5690 = vunpack.c.0.s8 %v5689
      %v5691 = vlaneseq
      %v5692 = vshrl.u32 %v5691, 7
      %v5693 = vsub.s32 %v5690, %v5692
      %v5694 = vrot.slane %v5687, %v5693
      %v5695 = vcombine.low %v5085, %v5092
      %v5697 = vunpack.c.l.s4 1983009808
      %v5698 = vunpack.c.0.s8 %v5697
      %v5699 = vlaneseq
      %v5700 = vshrl.u32 %v5699, 7
      %v5701 = vsub.s32 %v5698, %v5700
      %v5702 = vrot.slane %v5695, %v5701
      %v5703 = vcombine.low %v5095, %v5096
      %v5705 = vunpack.c.l.s4 1983009808
      %v5706 = vunpack.c.0.s8 %v5705
      %v5707 = vlaneseq
      %v5708 = vshrl.u32 %v5707, 7
      %v5709 = vsub.s32 %v5706, %v5708
      %v5710 = vrot.slane %v5703, %v5709
      %v5711 = vcombine.low %v5686, %v5694
      %v5713 = vunpack.c.l.s4 1934713408
      %v5714 = vunpack.c.0.s8 %v5713
      %v5715 = vlaneseq
      %v5716 = vshrl.u32 %v5715, 7
      %v5717 = vsub.s32 %v5714, %v5716
      %v5718 = vrot.slane %v5711, %v5717
      %v5719 = vcombine.low %v5702, %v5710
      %v5721 = vunpack.c.l.s4 1934713408
      %v5722 = vunpack.c.0.s8 %v5721
      %v5723 = vlaneseq
      %v5724 = vshrl.u32 %v5723, 7
      %v5725 = vsub.s32 %v5722, %v5724
      %v5726 = vrot.slane %v5719, %v5725
      %v5727 = vcombine.low %v5718, %v5726
      %v5728 = vcombine.high %v5718, %v5726
      %v5729 = vcombine.low %v5135, %v5142
      %v5731 = vunpack.c.l.s4 1983009808
      %v5732 = vunpack.c.0.s8 %v5731
      %v5733 = vlaneseq
      %v5734 = vshrl.u32 %v5733, 7
      %v5735 = vsub.s32 %v5732, %v5734
      %v5736 = vrot.slane %v5729, %v5735
      %v5737 = vcombine.low %v5159, %v5160
      %v5739 = vunpack.c.l.s4 1983009808
      %v5740 = vunpack.c.0.s8 %v5739
      %v5741 = vlaneseq
      %v5742 = vshrl.u32 %v5741, 7
      %v5743 = vsub.s32 %v5740, %v5742
      %v5744 = vrot.slane %v5737, %v5743
      %v5745 = vcombine.low %v5151, %v5158
      %v5747 = vunpack.c.l.s4 1983009808
      %v5748 = vunpack.c.0.s8 %v5747
      %v5749 = vlaneseq
      %v5750 = vshrl.u32 %v5749, 7
      %v5751 = vsub.s32 %v5748, %v5750
      %v5752 = vrot.slane %v5745, %v5751
      %v5753 = vcombine.low %v5161, %v5162
      %v5755 = vunpack.c.l.s4 1983009808
      %v5756 = vunpack.c.0.s8 %v5755
      %v5757 = vlaneseq
      %v5758 = vshrl.u32 %v5757, 7
      %v5759 = vsub.s32 %v5756, %v5758
      %v5760 = vrot.slane %v5753, %v5759
      %v5761 = vcombine.low %v5736, %v5744
      %v5763 = vunpack.c.l.s4 1934713408
      %v5764 = vunpack.c.0.s8 %v5763
      %v5765 = vlaneseq
      %v5766 = vshrl.u32 %v5765, 7
      %v5767 = vsub.s32 %v5764, %v5766
      %v5768 = vrot.slane %v5761, %v5767
      %v5769 = vcombine.low %v5752, %v5760
      %v5771 = vunpack.c.l.s4 1934713408
      %v5772 = vunpack.c.0.s8 %v5771
      %v5773 = vlaneseq
      %v5774 = vshrl.u32 %v5773, 7
      %v5775 = vsub.s32 %v5772, %v5774
      %v5776 = vrot.slane %v5769, %v5775
      %v5777 = vcombine.low %v5768, %v5776
      %v5778 = vcombine.high %v5768, %v5776
      %v5779 = vcombine.low %v5201, %v5208
      %v5781 = vunpack.c.l.s4 1983009808
      %v5782 = vunpack.c.0.s8 %v5781
      %v5783 = vlaneseq
      %v5784 = vshrl.u32 %v5783, 7
      %v5785 = vsub.s32 %v5782, %v5784
      %v5786 = vrot.slane %v5779, %v5785
      %v5787 = vcombine.low %v5225, %v5226
      %v5789 = vunpack.c.l.s4 1983009808
      %v5790 = vunpack.c.0.s8 %v5789
      %v5791 = vlaneseq
      %v5792 = vshrl.u32 %v5791, 7
      %v5793 = vsub.s32 %v5790, %v5792
      %v5794 = vrot.slane %v5787, %v5793
      %v5795 = vcombine.low %v5217, %v5224
      %v5797 = vunpack.c.l.s4 1983009808
      %v5798 = vunpack.c.0.s8 %v5797
      %v5799 = vlaneseq
      %v5800 = vshrl.u32 %v5799, 7
      %v5801 = vsub.s32 %v5798, %v5800
      %v5802 = vrot.slane %v5795, %v5801
      %v5803 = vcombine.low %v5227, %v5228
      %v5805 = vunpack.c.l.s4 1983009808
      %v5806 = vunpack.c.0.s8 %v5805
      %v5807 = vlaneseq
      %v5808 = vshrl.u32 %v5807, 7
      %v5809 = vsub.s32 %v5806, %v5808
      %v5810 = vrot.slane %v5803, %v5809
      %v5811 = vcombine.low %v5786, %v5794
      %v5813 = vunpack.c.l.s4 1934713408
      %v5814 = vunpack.c.0.s8 %v5813
      %v5815 = vlaneseq
      %v5816 = vshrl.u32 %v5815, 7
      %v5817 = vsub.s32 %v5814, %v5816
      %v5818 = vrot.slane %v5811, %v5817
      %v5819 = vcombine.low %v5802, %v5810
      %v5821 = vunpack.c.l.s4 1934713408
      %v5822 = vunpack.c.0.s8 %v5821
      %v5823 = vlaneseq
      %v5824 = vshrl.u32 %v5823, 7
      %v5825 = vsub.s32 %v5822, %v5824
      %v5826 = vrot.slane %v5819, %v5825
      %v5827 = vcombine.low %v5818, %v5826
      %v5828 = vcombine.high %v5818, %v5826
      %v5831 = vpack.i.b16 %v5327, %v5277
      %v5833 = vshrl.u32 %v5277, 16
      %v5834 = vshrl.u32 %v5327, 16
      %v5835 = vpack.i.b16 %v5834, %v5833
      %v5839 = vpack.i.b16 %v5328, %v5278
      %v5841 = vshrl.u32 %v5278, 16
      %v5842 = vshrl.u32 %v5328, 16
      %v5843 = vpack.i.b16 %v5842, %v5841
      %v5847 = vpack.i.b16 %v5427, %v5377
      %v5849 = vshrl.u32 %v5377, 16
      %v5850 = vshrl.u32 %v5427, 16
      %v5851 = vpack.i.b16 %v5850, %v5849
      %v5855 = vpack.i.b16 %v5428, %v5378
      %v5857 = vshrl.u32 %v5378, 16
      %v5858 = vshrl.u32 %v5428, 16
      %v5859 = vpack.i.b16 %v5858, %v5857
      %v5863 = vpack.i.b16 %v5527, %v5477
      %v5865 = vshrl.u32 %v5477, 16
      %v5866 = vshrl.u32 %v5527, 16
      %v5867 = vpack.i.b16 %v5866, %v5865
      %v5871 = vpack.i.b16 %v5528, %v5478
      %v5873 = vshrl.u32 %v5478, 16
      %v5874 = vshrl.u32 %v5528, 16
      %v5875 = vpack.i.b16 %v5874, %v5873
      %v5879 = vpack.i.b16 %v5627, %v5577
      %v5881 = vshrl.u32 %v5577, 16
      %v5882 = vshrl.u32 %v5627, 16
      %v5883 = vpack.i.b16 %v5882, %v5881
      %v5887 = vpack.i.b16 %v5628, %v5578
      %v5889 = vshrl.u32 %v5578, 16
      %v5890 = vshrl.u32 %v5628, 16
      %v5891 = vpack.i.b16 %v5890, %v5889
      %v5895 = vpack.i.b16 %v5727, %v5677
      %v5897 = vshrl.u32 %v5677, 16
      %v5898 = vshrl.u32 %v5727, 16
      %v5899 = vpack.i.b16 %v5898, %v5897
      %v5903 = vpack.i.b16 %v5728, %v5678
      %v5905 = vshrl.u32 %v5678, 16
      %v5906 = vshrl.u32 %v5728, 16
      %v5907 = vpack.i.b16 %v5906, %v5905
      %v5911 = vpack.i.b16 %v5827, %v5777
      %v5913 = vshrl.u32 %v5777, 16
      %v5914 = vshrl.u32 %v5827, 16
      %v5915 = vpack.i.b16 %v5914, %v5913
      %v5919 = vpack.i.b16 %v5828, %v5778
      %v5921 = vshrl.u32 %v5778, 16
      %v5922 = vshrl.u32 %v5828, 16
      %v5923 = vpack.i.b16 %v5922, %v5921
      %vm5925 = vcmask 64512
      %v5927 = vsel %vm5925, %v2573, 0
      %v5930 = vsel %vm5925, %v2585, 0
      %v5933 = vsel %vm5925, %v2597, 0
      %v5936 = vsel %vm5925, %v2609, 0
      %v5939 = vsel %vm5925, %v2621, 0
      %v5942 = vsel %vm5925, %v2633, 0
      %v5945 = vsel %vm5925, %v4223, 0
      %v5948 = vsel %vm5925, %v4235, 0
      %v5951 = vsel %vm5925, %v4247, 0
      %v5954 = vsel %vm5925, %v4259, 0
      %v5957 = vsel %vm5925, %v4271, 0
      %v5960 = vsel %vm5925, %v4283, 0
      %5962 = vmatprep.subr.bf16.mxu0 0
      %5963 = vmatpush1.bf16.xpose.msra.mxu0 0
      %5964 = vmatprep.subr.bf16.mxu0 0
      %5965 = vmatpush1.bf16.xpose.msra.mxu0 0
      %5966 = vmatprep.subr.bf16.mxu0 0
      %5967 = vmatpush1.bf16.xpose.msra.mxu0 %v5960
      %5968 = vmatprep.subr.bf16.mxu0 0
      %5969 = vmatpush1.bf16.xpose.msra.mxu0 %v5957
      %5970 = vmatprep.subr.bf16.mxu0 0
      %5971 = vmatpush1.bf16.xpose.msra.mxu0 %v5954
      %5972 = vmatprep.subr.bf16.mxu0 0
      %5973 = vmatpush1.bf16.xpose.msra.mxu0 %v5951
      %5974 = vmatprep.subr.bf16.mxu0 0
      %5975 = vmatpush1.bf16.xpose.msra.mxu0 %v5948
      %5976 = vmatprep.subr.bf16.mxu0 0
      %5977 = vmatpush1.bf16.xpose.msra.mxu0 %v5945
      %5978 = vmatprep.subr.bf16.mxu0 0
      %5979 = vmatpush2.bf16.xpose.msra.mxu0 0
      %5980 = vmatprep.subr.bf16.mxu0 0
      %5981 = vmatpush2.bf16.xpose.msra.mxu0 0
      %5982 = vmatprep.subr.bf16.mxu0 0
      %5983 = vmatpush2.bf16.xpose.msra.mxu0 0
      %5984 = vmatprep.subr.bf16.mxu0 0
      %5985 = vmatpush2.bf16.xpose.msra.mxu0 0
      %5986 = vmatprep.subr.bf16.mxu0 0
      %5987 = vmatpush2.bf16.xpose.msra.mxu0 0
      %5988 = vmatprep.subr.bf16.mxu0 0
      %5989 = vmatpush2.bf16.xpose.msra.mxu0 0
      %5990 = vmatprep.subr.bf16.mxu0 0
      %5991 = vmatpush2.bf16.xpose.msra.mxu0 0
      %5992 = vmatprep.subr.bf16.mxu0 0
      %5993 = vmatpush2.bf16.xpose.msra.mxu0 0
      %5994 = vmatprep.mubr.bf16.mxu0 0
      %5995 = vmatmul.mubr.bf16.gmra.mxu0 %v5927
      %v5996 = vpop.f32.mrf.mxu0
      %v5997 = vadd.f32 0.0, %v5996
      %v5998 = vpop.f32.mrf.mxu0
      %v5999 = vpop.f32.mrf.mxu0
      %v6000 = vadd.f32 0.0, %v5999
      %v6001 = vpop.f32.mrf.mxu0
      %6002 = vmatprep.mubr.bf16.mxu0 0
      %6003 = vmatmul.mubr.bf16.gmra.mxu0 %v5930
      %v6004 = vpop.f32.mrf.mxu0
      %v6005 = vadd.f32 0.0, %v6004
      %v6006 = vpop.f32.mrf.mxu0
      %v6007 = vpop.f32.mrf.mxu0
      %v6008 = vadd.f32 0.0, %v6007
      %v6009 = vpop.f32.mrf.mxu0
      %6010 = vmatprep.mubr.bf16.mxu0 0
      %6011 = vmatmul.mubr.bf16.gmra.mxu0 %v5933
      %v6012 = vpop.f32.mrf.mxu0
      %v6013 = vadd.f32 0.0, %v6012
      %v6014 = vpop.f32.mrf.mxu0
      %v6015 = vpop.f32.mrf.mxu0
      %v6016 = vadd.f32 0.0, %v6015
      %v6017 = vpop.f32.mrf.mxu0
      %6018 = vmatprep.mubr.bf16.mxu0 0
      %6019 = vmatmul.mubr.bf16.gmra.mxu0 %v5936
      %v6020 = vpop.f32.mrf.mxu0
      %v6021 = vadd.f32 0.0, %v6020
      %v6022 = vpop.f32.mrf.mxu0
      %v6023 = vpop.f32.mrf.mxu0
      %v6024 = vadd.f32 0.0, %v6023
      %v6025 = vpop.f32.mrf.mxu0
      %6026 = vmatprep.mubr.bf16.mxu0 0
      %6027 = vmatmul.mubr.bf16.gmra.mxu0 %v5939
      %v6028 = vpop.f32.mrf.mxu0
      %v6029 = vadd.f32 0.0, %v6028
      %v6030 = vpop.f32.mrf.mxu0
      %v6031 = vpop.f32.mrf.mxu0
      %v6032 = vadd.f32 0.0, %v6031
      %v6033 = vpop.f32.mrf.mxu0
      %6034 = vmatprep.mubr.bf16.mxu0 0
      %6035 = vmatmul.mubr.bf16.gmra.mxu0 %v5942
      %v6036 = vpop.f32.mrf.mxu0
      %v6037 = vadd.f32 0.0, %v6036
      %v6038 = vpop.f32.mrf.mxu0
      %v6039 = vpop.f32.mrf.mxu0
      %v6040 = vadd.f32 0.0, %v6039
      %v6041 = vpop.f32.mrf.mxu0
      %6042 = vdwg.mxu0
      %v6044 = vsel %vm5925, %v2576, 0
      %v6047 = vsel %vm5925, %v2588, 0
      %v6050 = vsel %vm5925, %v2600, 0
      %v6053 = vsel %vm5925, %v2612, 0
      %v6056 = vsel %vm5925, %v2624, 0
      %v6059 = vsel %vm5925, %v2636, 0
      %v6062 = vsel %vm5925, %v4226, 0
      %v6065 = vsel %vm5925, %v4238, 0
      %v6068 = vsel %vm5925, %v4250, 0
      %v6071 = vsel %vm5925, %v4262, 0
      %v6074 = vsel %vm5925, %v4274, 0
      %v6077 = vsel %vm5925, %v4286, 0
      %6079 = vmatprep.subr.bf16.mxu0 0
      %6080 = vmatpush1.bf16.xpose.msra.mxu0 0
      %6081 = vmatprep.subr.bf16.mxu0 0
      %6082 = vmatpush1.bf16.xpose.msra.mxu0 0
      %6083 = vmatprep.subr.bf16.mxu0 0
      %6084 = vmatpush1.bf16.xpose.msra.mxu0 %v6077
      %6085 = vmatprep.subr.bf16.mxu0 0
      %6086 = vmatpush1.bf16.xpose.msra.mxu0 %v6074
      %6087 = vmatprep.subr.bf16.mxu0 0
      %6088 = vmatpush1.bf16.xpose.msra.mxu0 %v6071
      %6089 = vmatprep.subr.bf16.mxu0 0
      %6090 = vmatpush1.bf16.xpose.msra.mxu0 %v6068
      %6091 = vmatprep.subr.bf16.mxu0 0
      %6092 = vmatpush1.bf16.xpose.msra.mxu0 %v6065
      %6093 = vmatprep.subr.bf16.mxu0 0
      %6094 = vmatpush1.bf16.xpose.msra.mxu0 %v6062
      %6095 = vmatprep.subr.bf16.mxu0 0
      %6096 = vmatpush2.bf16.xpose.msra.mxu0 0
      %6097 = vmatprep.subr.bf16.mxu0 0
      %6098 = vmatpush2.bf16.xpose.msra.mxu0 0
      %6099 = vmatprep.subr.bf16.mxu0 0
      %6100 = vmatpush2.bf16.xpose.msra.mxu0 0
      %6101 = vmatprep.subr.bf16.mxu0 0
      %6102 = vmatpush2.bf16.xpose.msra.mxu0 0
      %6103 = vmatprep.subr.bf16.mxu0 0
      %6104 = vmatpush2.bf16.xpose.msra.mxu0 0
      %6105 = vmatprep.subr.bf16.mxu0 0
      %6106 = vmatpush2.bf16.xpose.msra.mxu0 0
      %6107 = vmatprep.subr.bf16.mxu0 0
      %6108 = vmatpush2.bf16.xpose.msra.mxu0 0
      %6109 = vmatprep.subr.bf16.mxu0 0
      %6110 = vmatpush2.bf16.xpose.msra.mxu0 0
      %6111 = vmatprep.mubr.bf16.mxu0 0
      %6112 = vmatmul.mubr.bf16.gmra.mxu0 %v6044
      %v6113 = vpop.f32.mrf.mxu0
      %v6114 = vadd.f32 0.0, %v6113
      %v6115 = vpop.f32.mrf.mxu0
      %v6116 = vpop.f32.mrf.mxu0
      %v6117 = vadd.f32 0.0, %v6116
      %v6118 = vpop.f32.mrf.mxu0
      %6119 = vmatprep.mubr.bf16.mxu0 0
      %6120 = vmatmul.mubr.bf16.gmra.mxu0 %v6047
      %v6121 = vpop.f32.mrf.mxu0
      %v6122 = vadd.f32 0.0, %v6121
      %v6123 = vpop.f32.mrf.mxu0
      %v6124 = vpop.f32.mrf.mxu0
      %v6125 = vadd.f32 0.0, %v6124
      %v6126 = vpop.f32.mrf.mxu0
      %6127 = vmatprep.mubr.bf16.mxu0 0
      %6128 = vmatmul.mubr.bf16.gmra.mxu0 %v6050
      %v6129 = vpop.f32.mrf.mxu0
      %v6130 = vadd.f32 0.0, %v6129
      %v6131 = vpop.f32.mrf.mxu0
      %v6132 = vpop.f32.mrf.mxu0
      %v6133 = vadd.f32 0.0, %v6132
      %v6134 = vpop.f32.mrf.mxu0
      %6135 = vmatprep.mubr.bf16.mxu0 0
      %6136 = vmatmul.mubr.bf16.gmra.mxu0 %v6053
      %v6137 = vpop.f32.mrf.mxu0
      %v6138 = vadd.f32 0.0, %v6137
      %v6139 = vpop.f32.mrf.mxu0
      %v6140 = vpop.f32.mrf.mxu0
      %v6141 = vadd.f32 0.0, %v6140
      %v6142 = vpop.f32.mrf.mxu0
      %6143 = vmatprep.mubr.bf16.mxu0 0
      %6144 = vmatmul.mubr.bf16.gmra.mxu0 %v6056
      %v6145 = vpop.f32.mrf.mxu0
      %v6146 = vadd.f32 0.0, %v6145
      %v6147 = vpop.f32.mrf.mxu0
      %v6148 = vpop.f32.mrf.mxu0
      %v6149 = vadd.f32 0.0, %v6148
      %v6150 = vpop.f32.mrf.mxu0
      %6151 = vmatprep.mubr.bf16.mxu0 0
      %6152 = vmatmul.mubr.bf16.gmra.mxu0 %v6059
      %v6153 = vpop.f32.mrf.mxu0
      %v6154 = vadd.f32 0.0, %v6153
      %v6155 = vpop.f32.mrf.mxu0
      %v6156 = vpop.f32.mrf.mxu0
      %v6157 = vadd.f32 0.0, %v6156
      %v6158 = vpop.f32.mrf.mxu0
      %6159 = vdwg.mxu0
      %v6161 = vsel %vm5925, %v2579, 0
      %v6164 = vsel %vm5925, %v2591, 0
      %v6167 = vsel %vm5925, %v2603, 0
      %v6170 = vsel %vm5925, %v2615, 0
      %v6173 = vsel %vm5925, %v2627, 0
      %v6176 = vsel %vm5925, %v2639, 0
      %v6179 = vsel %vm5925, %v4229, 0
      %v6182 = vsel %vm5925, %v4241, 0
      %v6185 = vsel %vm5925, %v4253, 0
      %v6188 = vsel %vm5925, %v4265, 0
      %v6191 = vsel %vm5925, %v4277, 0
      %v6194 = vsel %vm5925, %v4289, 0
      %6196 = vmatprep.subr.bf16.mxu0 0
      %6197 = vmatpush1.bf16.xpose.msra.mxu0 0
      %6198 = vmatprep.subr.bf16.mxu0 0
      %6199 = vmatpush1.bf16.xpose.msra.mxu0 0
      %6200 = vmatprep.subr.bf16.mxu0 0
      %6201 = vmatpush1.bf16.xpose.msra.mxu0 %v6194
      %6202 = vmatprep.subr.bf16.mxu0 0
      %6203 = vmatpush1.bf16.xpose.msra.mxu0 %v6191
      %6204 = vmatprep.subr.bf16.mxu0 0
      %6205 = vmatpush1.bf16.xpose.msra.mxu0 %v6188
      %6206 = vmatprep.subr.bf16.mxu0 0
      %6207 = vmatpush1.bf16.xpose.msra.mxu0 %v6185
      %6208 = vmatprep.subr.bf16.mxu0 0
      %6209 = vmatpush1.bf16.xpose.msra.mxu0 %v6182
      %6210 = vmatprep.subr.bf16.mxu0 0
      %6211 = vmatpush1.bf16.xpose.msra.mxu0 %v6179
      %6212 = vmatprep.subr.bf16.mxu0 0
      %6213 = vmatpush2.bf16.xpose.msra.mxu0 0
      %6214 = vmatprep.subr.bf16.mxu0 0
      %6215 = vmatpush2.bf16.xpose.msra.mxu0 0
      %6216 = vmatprep.subr.bf16.mxu0 0
      %6217 = vmatpush2.bf16.xpose.msra.mxu0 0
      %6218 = vmatprep.subr.bf16.mxu0 0
      %6219 = vmatpush2.bf16.xpose.msra.mxu0 0
      %6220 = vmatprep.subr.bf16.mxu0 0
      %6221 = vmatpush2.bf16.xpose.msra.mxu0 0
      %6222 = vmatprep.subr.bf16.mxu0 0
      %6223 = vmatpush2.bf16.xpose.msra.mxu0 0
      %6224 = vmatprep.subr.bf16.mxu0 0
      %6225 = vmatpush2.bf16.xpose.msra.mxu0 0
      %6226 = vmatprep.subr.bf16.mxu0 0
      %6227 = vmatpush2.bf16.xpose.msra.mxu0 0
      %6228 = vmatprep.mubr.bf16.mxu0 0
      %6229 = vmatmul.mubr.bf16.gmra.mxu0 %v6161
      %v6230 = vpop.f32.mrf.mxu0
      %v6231 = vadd.f32 0.0, %v6230
      %v6232 = vpop.f32.mrf.mxu0
      %v6233 = vpop.f32.mrf.mxu0
      %v6234 = vadd.f32 0.0, %v6233
      %v6235 = vpop.f32.mrf.mxu0
      %6236 = vmatprep.mubr.bf16.mxu0 0
      %6237 = vmatmul.mubr.bf16.gmra.mxu0 %v6164
      %v6238 = vpop.f32.mrf.mxu0
      %v6239 = vadd.f32 0.0, %v6238
      %v6240 = vpop.f32.mrf.mxu0
      %v6241 = vpop.f32.mrf.mxu0
      %v6242 = vadd.f32 0.0, %v6241
      %v6243 = vpop.f32.mrf.mxu0
      %6244 = vmatprep.mubr.bf16.mxu0 0
      %6245 = vmatmul.mubr.bf16.gmra.mxu0 %v6167
      %v6246 = vpop.f32.mrf.mxu0
      %v6247 = vadd.f32 0.0, %v6246
      %v6248 = vpop.f32.mrf.mxu0
      %v6249 = vpop.f32.mrf.mxu0
      %v6250 = vadd.f32 0.0, %v6249
      %v6251 = vpop.f32.mrf.mxu0
      %6252 = vmatprep.mubr.bf16.mxu0 0
      %6253 = vmatmul.mubr.bf16.gmra.mxu0 %v6170
      %v6254 = vpop.f32.mrf.mxu0
      %v6255 = vadd.f32 0.0, %v6254
      %v6256 = vpop.f32.mrf.mxu0
      %v6257 = vpop.f32.mrf.mxu0
      %v6258 = vadd.f32 0.0, %v6257
      %v6259 = vpop.f32.mrf.mxu0
      %6260 = vmatprep.mubr.bf16.mxu0 0
      %6261 = vmatmul.mubr.bf16.gmra.mxu0 %v6173
      %v6262 = vpop.f32.mrf.mxu0
      %v6263 = vadd.f32 0.0, %v6262
      %v6264 = vpop.f32.mrf.mxu0
      %v6265 = vpop.f32.mrf.mxu0
      %v6266 = vadd.f32 0.0, %v6265
      %v6267 = vpop.f32.mrf.mxu0
      %6268 = vmatprep.mubr.bf16.mxu0 0
      %6269 = vmatmul.mubr.bf16.gmra.mxu0 %v6176
      %v6270 = vpop.f32.mrf.mxu0
      %v6271 = vadd.f32 0.0, %v6270
      %v6272 = vpop.f32.mrf.mxu0
      %v6273 = vpop.f32.mrf.mxu0
      %v6274 = vadd.f32 0.0, %v6273
      %v6275 = vpop.f32.mrf.mxu0
      %6276 = vdwg.mxu0
      %v6278 = vsel %vm5925, %v2582, 0
      %v6281 = vsel %vm5925, %v2594, 0
      %v6284 = vsel %vm5925, %v2606, 0
      %v6287 = vsel %vm5925, %v2618, 0
      %v6290 = vsel %vm5925, %v2630, 0
      %v6293 = vsel %vm5925, %v2642, 0
      %v6296 = vsel %vm5925, %v4232, 0
      %v6299 = vsel %vm5925, %v4244, 0
      %v6302 = vsel %vm5925, %v4256, 0
      %v6305 = vsel %vm5925, %v4268, 0
      %v6308 = vsel %vm5925, %v4280, 0
      %v6311 = vsel %vm5925, %v4292, 0
      %6313 = vmatprep.subr.bf16.mxu0 0
      %6314 = vmatpush1.bf16.xpose.msra.mxu0 0
      %6315 = vmatprep.subr.bf16.mxu0 0
      %6316 = vmatpush1.bf16.xpose.msra.mxu0 0
      %6317 = vmatprep.subr.bf16.mxu0 0
      %6318 = vmatpush1.bf16.xpose.msra.mxu0 %v6311
      %6319 = vmatprep.subr.bf16.mxu0 0
      %6320 = vmatpush1.bf16.xpose.msra.mxu0 %v6308
      %6321 = vmatprep.subr.bf16.mxu0 0
      %6322 = vmatpush1.bf16.xpose.msra.mxu0 %v6305
      %6323 = vmatprep.subr.bf16.mxu0 0
      %6324 = vmatpush1.bf16.xpose.msra.mxu0 %v6302
      %6325 = vmatprep.subr.bf16.mxu0 0
      %6326 = vmatpush1.bf16.xpose.msra.mxu0 %v6299
      %6327 = vmatprep.subr.bf16.mxu0 0
      %6328 = vmatpush1.bf16.xpose.msra.mxu0 %v6296
      %6329 = vmatprep.subr.bf16.mxu0 0
      %6330 = vmatpush2.bf16.xpose.msra.mxu0 0
      %6331 = vmatprep.subr.bf16.mxu0 0
      %6332 = vmatpush2.bf16.xpose.msra.mxu0 0
      %6333 = vmatprep.subr.bf16.mxu0 0
      %6334 = vmatpush2.bf16.xpose.msra.mxu0 0
      %6335 = vmatprep.subr.bf16.mxu0 0
      %6336 = vmatpush2.bf16.xpose.msra.mxu0 0
      %6337 = vmatprep.subr.bf16.mxu0 0
      %6338 = vmatpush2.bf16.xpose.msra.mxu0 0
      %6339 = vmatprep.subr.bf16.mxu0 0
      %6340 = vmatpush2.bf16.xpose.msra.mxu0 0
      %6341 = vmatprep.subr.bf16.mxu0 0
      %6342 = vmatpush2.bf16.xpose.msra.mxu0 0
      %6343 = vmatprep.subr.bf16.mxu0 0
      %6344 = vmatpush2.bf16.xpose.msra.mxu0 0
      %6345 = vmatprep.mubr.bf16.mxu0 0
      %6346 = vmatmul.mubr.bf16.gmra.mxu0 %v6278
      %v6347 = vpop.f32.mrf.mxu0
      %v6348 = vadd.f32 0.0, %v6347
      %v6349 = vpop.f32.mrf.mxu0
      %v6350 = vpop.f32.mrf.mxu0
      %v6351 = vadd.f32 0.0, %v6350
      %v6352 = vpop.f32.mrf.mxu0
      %6353 = vmatprep.mubr.bf16.mxu0 0
      %6354 = vmatmul.mubr.bf16.gmra.mxu0 %v6281
      %v6355 = vpop.f32.mrf.mxu0
      %v6356 = vadd.f32 0.0, %v6355
      %v6357 = vpop.f32.mrf.mxu0
      %v6358 = vpop.f32.mrf.mxu0
      %v6359 = vadd.f32 0.0, %v6358
      %v6360 = vpop.f32.mrf.mxu0
      %6361 = vmatprep.mubr.bf16.mxu0 0
      %6362 = vmatmul.mubr.bf16.gmra.mxu0 %v6284
      %v6363 = vpop.f32.mrf.mxu0
      %v6364 = vadd.f32 0.0, %v6363
      %v6365 = vpop.f32.mrf.mxu0
      %v6366 = vpop.f32.mrf.mxu0
      %v6367 = vadd.f32 0.0, %v6366
      %v6368 = vpop.f32.mrf.mxu0
      %6369 = vmatprep.mubr.bf16.mxu0 0
      %6370 = vmatmul.mubr.bf16.gmra.mxu0 %v6287
      %v6371 = vpop.f32.mrf.mxu0
      %v6372 = vadd.f32 0.0, %v6371
      %v6373 = vpop.f32.mrf.mxu0
      %v6374 = vpop.f32.mrf.mxu0
      %v6375 = vadd.f32 0.0, %v6374
      %v6376 = vpop.f32.mrf.mxu0
      %6377 = vmatprep.mubr.bf16.mxu0 0
      %6378 = vmatmul.mubr.bf16.gmra.mxu0 %v6290
      %v6379 = vpop.f32.mrf.mxu0
      %v6380 = vadd.f32 0.0, %v6379
      %v6381 = vpop.f32.mrf.mxu0
      %v6382 = vpop.f32.mrf.mxu0
      %v6383 = vadd.f32 0.0, %v6382
      %v6384 = vpop.f32.mrf.mxu0
      %6385 = vmatprep.mubr.bf16.mxu0 0
      %6386 = vmatmul.mubr.bf16.gmra.mxu0 %v6293
      %v6387 = vpop.f32.mrf.mxu0
      %v6388 = vadd.f32 0.0, %v6387
      %v6389 = vpop.f32.mrf.mxu0
      %v6390 = vpop.f32.mrf.mxu0
      %v6391 = vadd.f32 0.0, %v6390
      %v6392 = vpop.f32.mrf.mxu0
      %6393 = vdwg.mxu0
      %vm6394 = vcmask 785408
      %v6395 = vsel %vm6394, %v5997, -inf
      %6396 = vmax.xlane.f32.xlu0 %v6395
      %v6397 = vpop.xlane.xlu0 %6396
      %v6398 = vsel %vm6394, %v6000, -inf
      %6399 = vmax.xlane.f32.xlu0 %v6398
      %v6400 = vpop.xlane.xlu0 %6399
      %v6401 = vsel %vm6394, %v6005, -inf
      %6402 = vmax.xlane.f32.xlu0 %v6401
      %v6403 = vpop.xlane.xlu0 %6402
      %v6404 = vsel %vm6394, %v6008, -inf
      %6405 = vmax.xlane.f32.xlu0 %v6404
      %v6406 = vpop.xlane.xlu0 %6405
      %v6407 = vsel %vm6394, %v6013, -inf
      %6408 = vmax.xlane.f32.xlu0 %v6407
      %v6409 = vpop.xlane.xlu0 %6408
      %v6410 = vsel %vm6394, %v6016, -inf
      %6411 = vmax.xlane.f32.xlu0 %v6410
      %v6412 = vpop.xlane.xlu0 %6411
      %v6413 = vsel %vm6394, %v6021, -inf
      %6414 = vmax.xlane.f32.xlu0 %v6413
      %v6415 = vpop.xlane.xlu0 %6414
      %v6416 = vsel %vm6394, %v6024, -inf
      %6417 = vmax.xlane.f32.xlu0 %v6416
      %v6418 = vpop.xlane.xlu0 %6417
      %v6419 = vsel %vm6394, %v6029, -inf
      %6420 = vmax.xlane.f32.xlu0 %v6419
      %v6421 = vpop.xlane.xlu0 %6420
      %v6422 = vsel %vm6394, %v6032, -inf
      %6423 = vmax.xlane.f32.xlu0 %v6422
      %v6424 = vpop.xlane.xlu0 %6423
      %v6425 = vsel %vm6394, %v6037, -inf
      %6426 = vmax.xlane.f32.xlu0 %v6425
      %v6427 = vpop.xlane.xlu0 %6426
      %v6428 = vsel %vm6394, %v6040, -inf
      %6429 = vmax.xlane.f32.xlu0 %v6428
      %v6430 = vpop.xlane.xlu0 %6429
      %v6431 = vsel %vm6394, %v6114, -inf
      %6432 = vmax.xlane.f32.xlu0 %v6431
      %v6433 = vpop.xlane.xlu0 %6432
      %v6434 = vsel %vm6394, %v6117, -inf
      %6435 = vmax.xlane.f32.xlu0 %v6434
      %v6436 = vpop.xlane.xlu0 %6435
      %v6437 = vsel %vm6394, %v6122, -inf
      %6438 = vmax.xlane.f32.xlu0 %v6437
      %v6439 = vpop.xlane.xlu0 %6438
      %v6440 = vsel %vm6394, %v6125, -inf
      %6441 = vmax.xlane.f32.xlu0 %v6440
      %v6442 = vpop.xlane.xlu0 %6441
      %v6443 = vsel %vm6394, %v6130, -inf
      %6444 = vmax.xlane.f32.xlu0 %v6443
      %v6445 = vpop.xlane.xlu0 %6444
      %v6446 = vsel %vm6394, %v6133, -inf
      %6447 = vmax.xlane.f32.xlu0 %v6446
      %v6448 = vpop.xlane.xlu0 %6447
      %v6449 = vsel %vm6394, %v6138, -inf
      %6450 = vmax.xlane.f32.xlu0 %v6449
      %v6451 = vpop.xlane.xlu0 %6450
      %v6452 = vsel %vm6394, %v6141, -inf
      %6453 = vmax.xlane.f32.xlu0 %v6452
      %v6454 = vpop.xlane.xlu0 %6453
      %v6455 = vsel %vm6394, %v6146, -inf
      %6456 = vmax.xlane.f32.xlu0 %v6455
      %v6457 = vpop.xlane.xlu0 %6456
      %v6458 = vsel %vm6394, %v6149, -inf
      %6459 = vmax.xlane.f32.xlu0 %v6458
      %v6460 = vpop.xlane.xlu0 %6459
      %v6461 = vsel %vm6394, %v6154, -inf
      %6462 = vmax.xlane.f32.xlu0 %v6461
      %v6463 = vpop.xlane.xlu0 %6462
      %v6464 = vsel %vm6394, %v6157, -inf
      %6465 = vmax.xlane.f32.xlu0 %v6464
      %v6466 = vpop.xlane.xlu0 %6465
      %v6467 = vsel %vm6394, %v6231, -inf
      %6468 = vmax.xlane.f32.xlu0 %v6467
      %v6469 = vpop.xlane.xlu0 %6468
      %v6470 = vsel %vm6394, %v6234, -inf
      %6471 = vmax.xlane.f32.xlu0 %v6470
      %v6472 = vpop.xlane.xlu0 %6471
      %v6473 = vsel %vm6394, %v6239, -inf
      %6474 = vmax.xlane.f32.xlu0 %v6473
      %v6475 = vpop.xlane.xlu0 %6474
      %v6476 = vsel %vm6394, %v6242, -inf
      %6477 = vmax.xlane.f32.xlu0 %v6476
      %v6478 = vpop.xlane.xlu0 %6477
      %v6479 = vsel %vm6394, %v6247, -inf
      %6480 = vmax.xlane.f32.xlu0 %v6479
      %v6481 = vpop.xlane.xlu0 %6480
      %v6482 = vsel %vm6394, %v6250, -inf
      %6483 = vmax.xlane.f32.xlu0 %v6482
      %v6484 = vpop.xlane.xlu0 %6483
      %v6485 = vsel %vm6394, %v6255, -inf
      %6486 = vmax.xlane.f32.xlu0 %v6485
      %v6487 = vpop.xlane.xlu0 %6486
      %v6488 = vsel %vm6394, %v6258, -inf
      %6489 = vmax.xlane.f32.xlu0 %v6488
      %v6490 = vpop.xlane.xlu0 %6489
      %v6491 = vsel %vm6394, %v6263, -inf
      %6492 = vmax.xlane.f32.xlu0 %v6491
      %v6493 = vpop.xlane.xlu0 %6492
      %v6494 = vsel %vm6394, %v6266, -inf
      %6495 = vmax.xlane.f32.xlu0 %v6494
      %v6496 = vpop.xlane.xlu0 %6495
      %v6497 = vsel %vm6394, %v6271, -inf
      %6498 = vmax.xlane.f32.xlu0 %v6497
      %v6499 = vpop.xlane.xlu0 %6498
      %v6500 = vsel %vm6394, %v6274, -inf
      %6501 = vmax.xlane.f32.xlu0 %v6500
      %v6502 = vpop.xlane.xlu0 %6501
      %v6503 = vsel %vm6394, %v6348, -inf
      %6504 = vmax.xlane.f32.xlu0 %v6503
      %v6505 = vpop.xlane.xlu0 %6504
      %v6506 = vsel %vm6394, %v6351, -inf
      %6507 = vmax.xlane.f32.xlu0 %v6506
      %v6508 = vpop.xlane.xlu0 %6507
      %v6509 = vsel %vm6394, %v6356, -inf
      %6510 = vmax.xlane.f32.xlu0 %v6509
      %v6511 = vpop.xlane.xlu0 %6510
      %v6512 = vsel %vm6394, %v6359, -inf
      %6513 = vmax.xlane.f32.xlu0 %v6512
      %v6514 = vpop.xlane.xlu0 %6513
      %v6515 = vsel %vm6394, %v6364, -inf
      %6516 = vmax.xlane.f32.xlu0 %v6515
      %v6517 = vpop.xlane.xlu0 %6516
      %v6518 = vsel %vm6394, %v6367, -inf
      %6519 = vmax.xlane.f32.xlu0 %v6518
      %v6520 = vpop.xlane.xlu0 %6519
      %v6521 = vsel %vm6394, %v6372, -inf
      %6522 = vmax.xlane.f32.xlu0 %v6521
      %v6523 = vpop.xlane.xlu0 %6522
      %v6524 = vsel %vm6394, %v6375, -inf
      %6525 = vmax.xlane.f32.xlu0 %v6524
      %v6526 = vpop.xlane.xlu0 %6525
      %v6527 = vsel %vm6394, %v6380, -inf
      %6528 = vmax.xlane.f32.xlu0 %v6527
      %v6529 = vpop.xlane.xlu0 %6528
      %v6530 = vsel %vm6394, %v6383, -inf
      %6531 = vmax.xlane.f32.xlu0 %v6530
      %v6532 = vpop.xlane.xlu0 %6531
      %v6533 = vsel %vm6394, %v6388, -inf
      %6534 = vmax.xlane.f32.xlu0 %v6533
      %v6535 = vpop.xlane.xlu0 %6534
      %v6536 = vsel %vm6394, %v6391, -inf
      %6537 = vmax.xlane.f32.xlu0 %v6536
      %v6538 = vpop.xlane.xlu0 %6537
      %v6539 = vsub.f32 %v5997, %v6397
      %v6540 = vsub.f32 %v6000, %v6400
      %v6541 = vsub.f32 %v6005, %v6403
      %v6542 = vsub.f32 %v6008, %v6406
      %v6543 = vsub.f32 %v6013, %v6409
      %v6544 = vsub.f32 %v6016, %v6412
      %v6545 = vsub.f32 %v6021, %v6415
      %v6546 = vsub.f32 %v6024, %v6418
      %v6547 = vsub.f32 %v6029, %v6421
      %v6548 = vsub.f32 %v6032, %v6424
      %v6549 = vsub.f32 %v6037, %v6427
      %v6550 = vsub.f32 %v6040, %v6430
      %v6551 = vsub.f32 %v6114, %v6433
      %v6552 = vsub.f32 %v6117, %v6436
      %v6553 = vsub.f32 %v6122, %v6439
      %v6554 = vsub.f32 %v6125, %v6442
      %v6555 = vsub.f32 %v6130, %v6445
      %v6556 = vsub.f32 %v6133, %v6448
      %v6557 = vsub.f32 %v6138, %v6451
      %v6558 = vsub.f32 %v6141, %v6454
      %v6559 = vsub.f32 %v6146, %v6457
      %v6560 = vsub.f32 %v6149, %v6460
      %v6561 = vsub.f32 %v6154, %v6463
      %v6562 = vsub.f32 %v6157, %v6466
      %v6563 = vsub.f32 %v6231, %v6469
      %v6564 = vsub.f32 %v6234, %v6472
      %v6565 = vsub.f32 %v6239, %v6475
      %v6566 = vsub.f32 %v6242, %v6478
      %v6567 = vsub.f32 %v6247, %v6481
      %v6568 = vsub.f32 %v6250, %v6484
      %v6569 = vsub.f32 %v6255, %v6487
      %v6570 = vsub.f32 %v6258, %v6490
      %v6571 = vsub.f32 %v6263, %v6493
      %v6572 = vsub.f32 %v6266, %v6496
      %v6573 = vsub.f32 %v6271, %v6499
      %v6574 = vsub.f32 %v6274, %v6502
      %v6575 = vsub.f32 %v6348, %v6505
      %v6576 = vsub.f32 %v6351, %v6508
      %v6577 = vsub.f32 %v6356, %v6511
      %v6578 = vsub.f32 %v6359, %v6514
      %v6579 = vsub.f32 %v6364, %v6517
      %v6580 = vsub.f32 %v6367, %v6520
      %v6581 = vsub.f32 %v6372, %v6523
      %v6582 = vsub.f32 %v6375, %v6526
      %v6583 = vsub.f32 %v6380, %v6529
      %v6584 = vsub.f32 %v6383, %v6532
      %v6585 = vsub.f32 %v6388, %v6535
      %v6586 = vsub.f32 %v6391, %v6538
      %v6587 = vmul.f32 %v6539, 1.442695
      %v6588 = vpow.pop %v6587
      %v6589 = vmul.f32 %v6540, 1.442695
      %v6590 = vpow.pop %v6589
      %v6591 = vmul.f32 %v6541, 1.442695
      %v6592 = vpow.pop %v6591
      %v6593 = vmul.f32 %v6542, 1.442695
      %v6594 = vpow.pop %v6593
      %v6595 = vmul.f32 %v6543, 1.442695
      %v6596 = vpow.pop %v6595
      %v6597 = vmul.f32 %v6544, 1.442695
      %v6598 = vpow.pop %v6597
      %v6599 = vmul.f32 %v6545, 1.442695
      %v6600 = vpow.pop %v6599
      %v6601 = vmul.f32 %v6546, 1.442695
      %v6602 = vpow.pop %v6601
      %v6603 = vmul.f32 %v6547, 1.442695
      %v6604 = vpow.pop %v6603
      %v6605 = vmul.f32 %v6548, 1.442695
      %v6606 = vpow.pop %v6605
      %v6607 = vmul.f32 %v6549, 1.442695
      %v6608 = vpow.pop %v6607
      %v6609 = vmul.f32 %v6550, 1.442695
      %v6610 = vpow.pop %v6609
      %v6611 = vmul.f32 %v6551, 1.442695
      %v6612 = vpow.pop %v6611
      %v6613 = vmul.f32 %v6552, 1.442695
      %v6614 = vpow.pop %v6613
      %v6615 = vmul.f32 %v6553, 1.442695
      %v6616 = vpow.pop %v6615
      %v6617 = vmul.f32 %v6554, 1.442695
      %v6618 = vpow.pop %v6617
      %v6619 = vmul.f32 %v6555, 1.442695
      %v6620 = vpow.pop %v6619
      %v6621 = vmul.f32 %v6556, 1.442695
      %v6622 = vpow.pop %v6621
      %v6623 = vmul.f32 %v6557, 1.442695
      %v6624 = vpow.pop %v6623
      %v6625 = vmul.f32 %v6558, 1.442695
      %v6626 = vpow.pop %v6625
      %v6627 = vmul.f32 %v6559, 1.442695
      %v6628 = vpow.pop %v6627
      %v6629 = vmul.f32 %v6560, 1.442695
      %v6630 = vpow.pop %v6629
      %v6631 = vmul.f32 %v6561, 1.442695
      %v6632 = vpow.pop %v6631
      %v6633 = vmul.f32 %v6562, 1.442695
      %v6634 = vpow.pop %v6633
      %v6635 = vmul.f32 %v6563, 1.442695
      %v6636 = vpow.pop %v6635
      %v6637 = vmul.f32 %v6564, 1.442695
      %v6638 = vpow.pop %v6637
      %v6639 = vmul.f32 %v6565, 1.442695
      %v6640 = vpow.pop %v6639
      %v6641 = vmul.f32 %v6566, 1.442695
      %v6642 = vpow.pop %v6641
      %v6643 = vmul.f32 %v6567, 1.442695
      %v6644 = vpow.pop %v6643
      %v6645 = vmul.f32 %v6568, 1.442695
      %v6646 = vpow.pop %v6645
      %v6647 = vmul.f32 %v6569, 1.442695
      %v6648 = vpow.pop %v6647
      %v6649 = vmul.f32 %v6570, 1.442695
      %v6650 = vpow.pop %v6649
      %v6651 = vmul.f32 %v6571, 1.442695
      %v6652 = vpow.pop %v6651
      %v6653 = vmul.f32 %v6572, 1.442695
      %v6654 = vpow.pop %v6653
      %v6655 = vmul.f32 %v6573, 1.442695
      %v6656 = vpow.pop %v6655
      %v6657 = vmul.f32 %v6574, 1.442695
      %v6658 = vpow.pop %v6657
      %v6659 = vmul.f32 %v6575, 1.442695
      %v6660 = vpow.pop %v6659
      %v6661 = vmul.f32 %v6576, 1.442695
      %v6662 = vpow.pop %v6661
      %v6663 = vmul.f32 %v6577, 1.442695
      %v6664 = vpow.pop %v6663
      %v6665 = vmul.f32 %v6578, 1.442695
      %v6666 = vpow.pop %v6665
      %v6667 = vmul.f32 %v6579, 1.442695
      %v6668 = vpow.pop %v6667
      %v6669 = vmul.f32 %v6580, 1.442695
      %v6670 = vpow.pop %v6669
      %v6671 = vmul.f32 %v6581, 1.442695
      %v6672 = vpow.pop %v6671
      %v6673 = vmul.f32 %v6582, 1.442695
      %v6674 = vpow.pop %v6673
      %v6675 = vmul.f32 %v6583, 1.442695
      %v6676 = vpow.pop %v6675
      %v6677 = vmul.f32 %v6584, 1.442695
      %v6678 = vpow.pop %v6677
      %v6679 = vmul.f32 %v6585, 1.442695
      %v6680 = vpow.pop %v6679
      %v6681 = vmul.f32 %v6586, 1.442695
      %v6682 = vpow.pop %v6681
      %v6683 = vsel %vm6394, %v6588, 0.0
      %6684 = vadd.xlane.f32.xlu0 %v6683
      %v6685 = vpop.xlane.xlu0 %6684
      %v6686 = vsel %vm6394, %v6590, 0.0
      %6687 = vadd.xlane.f32.xlu0 %v6686
      %v6688 = vpop.xlane.xlu0 %6687
      %v6689 = vsel %vm6394, %v6592, 0.0
      %6690 = vadd.xlane.f32.xlu0 %v6689
      %v6691 = vpop.xlane.xlu0 %6690
      %v6692 = vsel %vm6394, %v6594, 0.0
      %6693 = vadd.xlane.f32.xlu0 %v6692
      %v6694 = vpop.xlane.xlu0 %6693
      %v6695 = vsel %vm6394, %v6596, 0.0
      %6696 = vadd.xlane.f32.xlu0 %v6695
      %v6697 = vpop.xlane.xlu0 %6696
      %v6698 = vsel %vm6394, %v6598, 0.0
      %6699 = vadd.xlane.f32.xlu0 %v6698
      %v6700 = vpop.xlane.xlu0 %6699
      %v6701 = vsel %vm6394, %v6600, 0.0
      %6702 = vadd.xlane.f32.xlu0 %v6701
      %v6703 = vpop.xlane.xlu0 %6702
      %v6704 = vsel %vm6394, %v6602, 0.0
      %6705 = vadd.xlane.f32.xlu0 %v6704
      %v6706 = vpop.xlane.xlu0 %6705
      %v6707 = vsel %vm6394, %v6604, 0.0
      %6708 = vadd.xlane.f32.xlu0 %v6707
      %v6709 = vpop.xlane.xlu0 %6708
      %v6710 = vsel %vm6394, %v6606, 0.0
      %6711 = vadd.xlane.f32.xlu0 %v6710
      %v6712 = vpop.xlane.xlu0 %6711
      %v6713 = vsel %vm6394, %v6608, 0.0
      %6714 = vadd.xlane.f32.xlu0 %v6713
      %v6715 = vpop.xlane.xlu0 %6714
      %v6716 = vsel %vm6394, %v6610, 0.0
      %6717 = vadd.xlane.f32.xlu0 %v6716
      %v6718 = vpop.xlane.xlu0 %6717
      %v6719 = vsel %vm6394, %v6612, 0.0
      %6720 = vadd.xlane.f32.xlu0 %v6719
      %v6721 = vpop.xlane.xlu0 %6720
      %v6722 = vsel %vm6394, %v6614, 0.0
      %6723 = vadd.xlane.f32.xlu0 %v6722
      %v6724 = vpop.xlane.xlu0 %6723
      %v6725 = vsel %vm6394, %v6616, 0.0
      %6726 = vadd.xlane.f32.xlu0 %v6725
      %v6727 = vpop.xlane.xlu0 %6726
      %v6728 = vsel %vm6394, %v6618, 0.0
      %6729 = vadd.xlane.f32.xlu0 %v6728
      %v6730 = vpop.xlane.xlu0 %6729
      %v6731 = vsel %vm6394, %v6620, 0.0
      %6732 = vadd.xlane.f32.xlu0 %v6731
      %v6733 = vpop.xlane.xlu0 %6732
      %v6734 = vsel %vm6394, %v6622, 0.0
      %6735 = vadd.xlane.f32.xlu0 %v6734
      %v6736 = vpop.xlane.xlu0 %6735
      %v6737 = vsel %vm6394, %v6624, 0.0
      %6738 = vadd.xlane.f32.xlu0 %v6737
      %v6739 = vpop.xlane.xlu0 %6738
      %v6740 = vsel %vm6394, %v6626, 0.0
      %6741 = vadd.xlane.f32.xlu0 %v6740
      %v6742 = vpop.xlane.xlu0 %6741
      %v6743 = vsel %vm6394, %v6628, 0.0
      %6744 = vadd.xlane.f32.xlu0 %v6743
      %v6745 = vpop.xlane.xlu0 %6744
      %v6746 = vsel %vm6394, %v6630, 0.0
      %6747 = vadd.xlane.f32.xlu0 %v6746
      %v6748 = vpop.xlane.xlu0 %6747
      %v6749 = vsel %vm6394, %v6632, 0.0
      %6750 = vadd.xlane.f32.xlu0 %v6749
      %v6751 = vpop.xlane.xlu0 %6750
      %v6752 = vsel %vm6394, %v6634, 0.0
      %6753 = vadd.xlane.f32.xlu0 %v6752
      %v6754 = vpop.xlane.xlu0 %6753
      %v6755 = vsel %vm6394, %v6636, 0.0
      %6756 = vadd.xlane.f32.xlu0 %v6755
      %v6757 = vpop.xlane.xlu0 %6756
      %v6758 = vsel %vm6394, %v6638, 0.0
      %6759 = vadd.xlane.f32.xlu0 %v6758
      %v6760 = vpop.xlane.xlu0 %6759
      %v6761 = vsel %vm6394, %v6640, 0.0
      %6762 = vadd.xlane.f32.xlu0 %v6761
      %v6763 = vpop.xlane.xlu0 %6762
      %v6764 = vsel %vm6394, %v6642, 0.0
      %6765 = vadd.xlane.f32.xlu0 %v6764
      %v6766 = vpop.xlane.xlu0 %6765
      %v6767 = vsel %vm6394, %v6644, 0.0
      %6768 = vadd.xlane.f32.xlu0 %v6767
      %v6769 = vpop.xlane.xlu0 %6768
      %v6770 = vsel %vm6394, %v6646, 0.0
      %6771 = vadd.xlane.f32.xlu0 %v6770
      %v6772 = vpop.xlane.xlu0 %6771
      %v6773 = vsel %vm6394, %v6648, 0.0
      %6774 = vadd.xlane.f32.xlu0 %v6773
      %v6775 = vpop.xlane.xlu0 %6774
      %v6776 = vsel %vm6394, %v6650, 0.0
      %6777 = vadd.xlane.f32.xlu0 %v6776
      %v6778 = vpop.xlane.xlu0 %6777
      %v6779 = vsel %vm6394, %v6652, 0.0
      %6780 = vadd.xlane.f32.xlu0 %v6779
      %v6781 = vpop.xlane.xlu0 %6780
      %v6782 = vsel %vm6394, %v6654, 0.0
      %6783 = vadd.xlane.f32.xlu0 %v6782
      %v6784 = vpop.xlane.xlu0 %6783
      %v6785 = vsel %vm6394, %v6656, 0.0
      %6786 = vadd.xlane.f32.xlu0 %v6785
      %v6787 = vpop.xlane.xlu0 %6786
      %v6788 = vsel %vm6394, %v6658, 0.0
      %6789 = vadd.xlane.f32.xlu0 %v6788
      %v6790 = vpop.xlane.xlu0 %6789
      %v6791 = vsel %vm6394, %v6660, 0.0
      %6792 = vadd.xlane.f32.xlu0 %v6791
      %v6793 = vpop.xlane.xlu0 %6792
      %v6794 = vsel %vm6394, %v6662, 0.0
      %6795 = vadd.xlane.f32.xlu0 %v6794
      %v6796 = vpop.xlane.xlu0 %6795
      %v6797 = vsel %vm6394, %v6664, 0.0
      %6798 = vadd.xlane.f32.xlu0 %v6797
      %v6799 = vpop.xlane.xlu0 %6798
      %v6800 = vsel %vm6394, %v6666, 0.0
      %6801 = vadd.xlane.f32.xlu0 %v6800
      %v6802 = vpop.xlane.xlu0 %6801
      %v6803 = vsel %vm6394, %v6668, 0.0
      %6804 = vadd.xlane.f32.xlu0 %v6803
      %v6805 = vpop.xlane.xlu0 %6804
      %v6806 = vsel %vm6394, %v6670, 0.0
      %6807 = vadd.xlane.f32.xlu0 %v6806
      %v6808 = vpop.xlane.xlu0 %6807
      %v6809 = vsel %vm6394, %v6672, 0.0
      %6810 = vadd.xlane.f32.xlu0 %v6809
      %v6811 = vpop.xlane.xlu0 %6810
      %v6812 = vsel %vm6394, %v6674, 0.0
      %6813 = vadd.xlane.f32.xlu0 %v6812
      %v6814 = vpop.xlane.xlu0 %6813
      %v6815 = vsel %vm6394, %v6676, 0.0
      %6816 = vadd.xlane.f32.xlu0 %v6815
      %v6817 = vpop.xlane.xlu0 %6816
      %v6818 = vsel %vm6394, %v6678, 0.0
      %6819 = vadd.xlane.f32.xlu0 %v6818
      %v6820 = vpop.xlane.xlu0 %6819
      %v6821 = vsel %vm6394, %v6680, 0.0
      %6822 = vadd.xlane.f32.xlu0 %v6821
      %v6823 = vpop.xlane.xlu0 %6822
      %v6824 = vsel %vm6394, %v6682, 0.0
      %6825 = vadd.xlane.f32.xlu0 %v6824
      %v6826 = vpop.xlane.xlu0 %6825
      %v6827 = vrcp.pop %v6685
      %v6828 = vrcp.pop %v6688
      %v6829 = vrcp.pop %v6691
      %v6830 = vrcp.pop %v6694
      %v6831 = vrcp.pop %v6697
      %v6832 = vrcp.pop %v6700
      %v6833 = vrcp.pop %v6703
      %v6834 = vrcp.pop %v6706
      %v6835 = vrcp.pop %v6709
      %v6836 = vrcp.pop %v6712
      %v6837 = vrcp.pop %v6715
      %v6838 = vrcp.pop %v6718
      %v6839 = vrcp.pop %v6721
      %v6840 = vrcp.pop %v6724
      %v6841 = vrcp.pop %v6727
      %v6842 = vrcp.pop %v6730
      %v6843 = vrcp.pop %v6733
      %v6844 = vrcp.pop %v6736
      %v6845 = vrcp.pop %v6739
      %v6846 = vrcp.pop %v6742
      %v6847 = vrcp.pop %v6745
      %v6848 = vrcp.pop %v6748
      %v6849 = vrcp.pop %v6751
      %v6850 = vrcp.pop %v6754
      %v6851 = vrcp.pop %v6757
      %v6852 = vrcp.pop %v6760
      %v6853 = vrcp.pop %v6763
      %v6854 = vrcp.pop %v6766
      %v6855 = vrcp.pop %v6769
      %v6856 = vrcp.pop %v6772
      %v6857 = vrcp.pop %v6775
      %v6858 = vrcp.pop %v6778
      %v6859 = vrcp.pop %v6781
      %v6860 = vrcp.pop %v6784
      %v6861 = vrcp.pop %v6787
      %v6862 = vrcp.pop %v6790
      %v6863 = vrcp.pop %v6793
      %v6864 = vrcp.pop %v6796
      %v6865 = vrcp.pop %v6799
      %v6866 = vrcp.pop %v6802
      %v6867 = vrcp.pop %v6805
      %v6868 = vrcp.pop %v6808
      %v6869 = vrcp.pop %v6811
      %v6870 = vrcp.pop %v6814
      %v6871 = vrcp.pop %v6817
      %v6872 = vrcp.pop %v6820
      %v6873 = vrcp.pop %v6823
      %v6874 = vrcp.pop %v6826
      %v6875 = vmul.f32 %v6588, %v6827
      %v6876 = vmul.f32 %v6590, %v6828
      %v6877 = vmul.f32 %v6592, %v6829
      %v6878 = vmul.f32 %v6594, %v6830
      %v6879 = vmul.f32 %v6596, %v6831
      %v6880 = vmul.f32 %v6598, %v6832
      %v6881 = vmul.f32 %v6600, %v6833
      %v6882 = vmul.f32 %v6602, %v6834
      %v6883 = vmul.f32 %v6604, %v6835
      %v6884 = vmul.f32 %v6606, %v6836
      %v6885 = vmul.f32 %v6608, %v6837
      %v6886 = vmul.f32 %v6610, %v6838
      %v6887 = vmul.f32 %v6612, %v6839
      %v6888 = vmul.f32 %v6614, %v6840
      %v6889 = vmul.f32 %v6616, %v6841
      %v6890 = vmul.f32 %v6618, %v6842
      %v6891 = vmul.f32 %v6620, %v6843
      %v6892 = vmul.f32 %v6622, %v6844
      %v6893 = vmul.f32 %v6624, %v6845
      %v6894 = vmul.f32 %v6626, %v6846
      %v6895 = vmul.f32 %v6628, %v6847
      %v6896 = vmul.f32 %v6630, %v6848
      %v6897 = vmul.f32 %v6632, %v6849
      %v6898 = vmul.f32 %v6634, %v6850
      %v6899 = vmul.f32 %v6636, %v6851
      %v6900 = vmul.f32 %v6638, %v6852
      %v6901 = vmul.f32 %v6640, %v6853
      %v6902 = vmul.f32 %v6642, %v6854
      %v6903 = vmul.f32 %v6644, %v6855
      %v6904 = vmul.f32 %v6646, %v6856
      %v6905 = vmul.f32 %v6648, %v6857
      %v6906 = vmul.f32 %v6650, %v6858
      %v6907 = vmul.f32 %v6652, %v6859
      %v6908 = vmul.f32 %v6654, %v6860
      %v6909 = vmul.f32 %v6656, %v6861
      %v6910 = vmul.f32 %v6658, %v6862
      %v6911 = vmul.f32 %v6660, %v6863
      %v6912 = vmul.f32 %v6662, %v6864
      %v6913 = vmul.f32 %v6664, %v6865
      %v6914 = vmul.f32 %v6666, %v6866
      %v6915 = vmul.f32 %v6668, %v6867
      %v6916 = vmul.f32 %v6670, %v6868
      %v6917 = vmul.f32 %v6672, %v6869
      %v6918 = vmul.f32 %v6674, %v6870
      %v6919 = vmul.f32 %v6676, %v6871
      %v6920 = vmul.f32 %v6678, %v6872
      %v6921 = vmul.f32 %v6680, %v6873
      %v6922 = vmul.f32 %v6682, %v6874
      %v6923 = vpack.c.bf16 %v6876, %v6875
      %v6924 = vpack.c.bf16 %v6878, %v6877
      %v6925 = vpack.c.bf16 %v6880, %v6879
      %v6926 = vpack.c.bf16 %v6882, %v6881
      %v6927 = vpack.c.bf16 %v6884, %v6883
      %v6928 = vpack.c.bf16 %v6886, %v6885
      %v6929 = vpack.c.bf16 %v6888, %v6887
      %v6930 = vpack.c.bf16 %v6890, %v6889
      %v6931 = vpack.c.bf16 %v6892, %v6891
      %v6932 = vpack.c.bf16 %v6894, %v6893
      %v6933 = vpack.c.bf16 %v6896, %v6895
      %v6934 = vpack.c.bf16 %v6898, %v6897
      %v6935 = vpack.c.bf16 %v6900, %v6899
      %v6936 = vpack.c.bf16 %v6902, %v6901
      %v6937 = vpack.c.bf16 %v6904, %v6903
      %v6938 = vpack.c.bf16 %v6906, %v6905
      %v6939 = vpack.c.bf16 %v6908, %v6907
      %v6940 = vpack.c.bf16 %v6910, %v6909
      %v6941 = vpack.c.bf16 %v6912, %v6911
      %v6942 = vpack.c.bf16 %v6914, %v6913
      %v6943 = vpack.c.bf16 %v6916, %v6915
      %v6944 = vpack.c.bf16 %v6918, %v6917
      %v6945 = vpack.c.bf16 %v6920, %v6919
      %v6946 = vpack.c.bf16 %v6922, %v6921
      %v6948 = vsel %vm6394, %v6923, 0
      %v6951 = vsel %vm6394, %v6924, 0
      %v6954 = vsel %vm6394, %v6925, 0
      %v6957 = vsel %vm6394, %v6926, 0
      %v6960 = vsel %vm6394, %v6927, 0
      %v6963 = vsel %vm6394, %v6928, 0
      %6965 = vmatprep.subr.bf16.mxu0 0
      %6966 = vmatpush1.bf16.msra.mxu0 0
      %6967 = vmatprep.subr.bf16.mxu0 0
      %6968 = vmatpush1.bf16.msra.mxu0 0
      %6969 = vmatprep.subr.bf16.mxu0 0
      %6970 = vmatpush1.bf16.msra.mxu0 %v5911
      %6971 = vmatprep.subr.bf16.mxu0 0
      %6972 = vmatpush1.bf16.msra.mxu0 %v5895
      %6973 = vmatprep.subr.bf16.mxu0 0
      %6974 = vmatpush1.bf16.msra.mxu0 %v5879
      %6975 = vmatprep.subr.bf16.mxu0 0
      %6976 = vmatpush1.bf16.msra.mxu0 %v5863
      %6977 = vmatprep.subr.bf16.mxu0 0
      %6978 = vmatpush1.bf16.msra.mxu0 %v5847
      %6979 = vmatprep.subr.bf16.mxu0 0
      %6980 = vmatpush1.bf16.msra.mxu0 %v5831
      %6981 = vmatprep.subr.bf16.mxu0 0
      %6982 = vmatpush2.bf16.msra.mxu0 0
      %6983 = vmatprep.subr.bf16.mxu0 0
      %6984 = vmatpush2.bf16.msra.mxu0 0
      %6985 = vmatprep.subr.bf16.mxu0 0
      %6986 = vmatpush2.bf16.msra.mxu0 0
      %6987 = vmatprep.subr.bf16.mxu0 0
      %6988 = vmatpush2.bf16.msra.mxu0 0
      %6989 = vmatprep.subr.bf16.mxu0 0
      %6990 = vmatpush2.bf16.msra.mxu0 0
      %6991 = vmatprep.subr.bf16.mxu0 0
      %6992 = vmatpush2.bf16.msra.mxu0 0
      %6993 = vmatprep.subr.bf16.mxu0 0
      %6994 = vmatpush2.bf16.msra.mxu0 0
      %6995 = vmatprep.subr.bf16.mxu0 0
      %6996 = vmatpush2.bf16.msra.mxu0 0
      %6997 = vmatprep.mubr.bf16.mxu0 0
      %6998 = vmatmul.mubr.bf16.gmra.mxu0 %v6948
      %v6999 = vpop.f32.mrf.mxu0
      %v7000 = vadd.f32 0.0, %v6999
      %v7001 = vpop.f32.mrf.mxu0
      %v7002 = vpop.f32.mrf.mxu0
      %v7003 = vadd.f32 0.0, %v7002
      %v7004 = vpop.f32.mrf.mxu0
      %7005 = vmatprep.mubr.bf16.mxu0 0
      %7006 = vmatmul.mubr.bf16.gmra.mxu0 %v6951
      %v7007 = vpop.f32.mrf.mxu0
      %v7008 = vadd.f32 0.0, %v7007
      %v7009 = vpop.f32.mrf.mxu0
      %v7010 = vpop.f32.mrf.mxu0
      %v7011 = vadd.f32 0.0, %v7010
      %v7012 = vpop.f32.mrf.mxu0
      %7013 = vmatprep.mubr.bf16.mxu0 0
      %7014 = vmatmul.mubr.bf16.gmra.mxu0 %v6954
      %v7015 = vpop.f32.mrf.mxu0
      %v7016 = vadd.f32 0.0, %v7015
      %v7017 = vpop.f32.mrf.mxu0
      %v7018 = vpop.f32.mrf.mxu0
      %v7019 = vadd.f32 0.0, %v7018
      %v7020 = vpop.f32.mrf.mxu0
      %7021 = vmatprep.mubr.bf16.mxu0 0
      %7022 = vmatmul.mubr.bf16.gmra.mxu0 %v6957
      %v7023 = vpop.f32.mrf.mxu0
      %v7024 = vadd.f32 0.0, %v7023
      %v7025 = vpop.f32.mrf.mxu0
      %v7026 = vpop.f32.mrf.mxu0
      %v7027 = vadd.f32 0.0, %v7026
      %v7028 = vpop.f32.mrf.mxu0
      %7029 = vmatprep.mubr.bf16.mxu0 0
      %7030 = vmatmul.mubr.bf16.gmra.mxu0 %v6960
      %v7031 = vpop.f32.mrf.mxu0
      %v7032 = vadd.f32 0.0, %v7031
      %v7033 = vpop.f32.mrf.mxu0
      %v7034 = vpop.f32.mrf.mxu0
      %v7035 = vadd.f32 0.0, %v7034
      %v7036 = vpop.f32.mrf.mxu0
      %7037 = vmatprep.mubr.bf16.mxu0 0
      %7038 = vmatmul.mubr.bf16.gmra.mxu0 %v6963
      %v7039 = vpop.f32.mrf.mxu0
      %v7040 = vadd.f32 0.0, %v7039
      %v7041 = vpop.f32.mrf.mxu0
      %v7042 = vpop.f32.mrf.mxu0
      %v7043 = vadd.f32 0.0, %v7042
      %v7044 = vpop.f32.mrf.mxu0
      %7045 = vdwg.mxu0
      %v7047 = vsel %vm6394, %v6929, 0
      %v7050 = vsel %vm6394, %v6930, 0
      %v7053 = vsel %vm6394, %v6931, 0
      %v7056 = vsel %vm6394, %v6932, 0
      %v7059 = vsel %vm6394, %v6933, 0
      %v7062 = vsel %vm6394, %v6934, 0
      %7064 = vmatprep.subr.bf16.mxu0 0
      %7065 = vmatpush1.bf16.msra.mxu0 0
      %7066 = vmatprep.subr.bf16.mxu0 0
      %7067 = vmatpush1.bf16.msra.mxu0 0
      %7068 = vmatprep.subr.bf16.mxu0 0
      %7069 = vmatpush1.bf16.msra.mxu0 %v5915
      %7070 = vmatprep.subr.bf16.mxu0 0
      %7071 = vmatpush1.bf16.msra.mxu0 %v5899
      %7072 = vmatprep.subr.bf16.mxu0 0
      %7073 = vmatpush1.bf16.msra.mxu0 %v5883
      %7074 = vmatprep.subr.bf16.mxu0 0
      %7075 = vmatpush1.bf16.msra.mxu0 %v5867
      %7076 = vmatprep.subr.bf16.mxu0 0
      %7077 = vmatpush1.bf16.msra.mxu0 %v5851
      %7078 = vmatprep.subr.bf16.mxu0 0
      %7079 = vmatpush1.bf16.msra.mxu0 %v5835
      %7080 = vmatprep.subr.bf16.mxu0 0
      %7081 = vmatpush2.bf16.msra.mxu0 0
      %7082 = vmatprep.subr.bf16.mxu0 0
      %7083 = vmatpush2.bf16.msra.mxu0 0
      %7084 = vmatprep.subr.bf16.mxu0 0
      %7085 = vmatpush2.bf16.msra.mxu0 0
      %7086 = vmatprep.subr.bf16.mxu0 0
      %7087 = vmatpush2.bf16.msra.mxu0 0
      %7088 = vmatprep.subr.bf16.mxu0 0
      %7089 = vmatpush2.bf16.msra.mxu0 0
      %7090 = vmatprep.subr.bf16.mxu0 0
      %7091 = vmatpush2.bf16.msra.mxu0 0
      %7092 = vmatprep.subr.bf16.mxu0 0
      %7093 = vmatpush2.bf16.msra.mxu0 0
      %7094 = vmatprep.subr.bf16.mxu0 0
      %7095 = vmatpush2.bf16.msra.mxu0 0
      %7096 = vmatprep.mubr.bf16.mxu0 0
      %7097 = vmatmul.mubr.bf16.gmra.mxu0 %v7047
      %v7098 = vpop.f32.mrf.mxu0
      %v7099 = vadd.f32 0.0, %v7098
      %v7100 = vpop.f32.mrf.mxu0
      %v7101 = vpop.f32.mrf.mxu0
      %v7102 = vadd.f32 0.0, %v7101
      %v7103 = vpop.f32.mrf.mxu0
      %7104 = vmatprep.mubr.bf16.mxu0 0
      %7105 = vmatmul.mubr.bf16.gmra.mxu0 %v7050
      %v7106 = vpop.f32.mrf.mxu0
      %v7107 = vadd.f32 0.0, %v7106
      %v7108 = vpop.f32.mrf.mxu0
      %v7109 = vpop.f32.mrf.mxu0
      %v7110 = vadd.f32 0.0, %v7109
      %v7111 = vpop.f32.mrf.mxu0
      %7112 = vmatprep.mubr.bf16.mxu0 0
      %7113 = vmatmul.mubr.bf16.gmra.mxu0 %v7053
      %v7114 = vpop.f32.mrf.mxu0
      %v7115 = vadd.f32 0.0, %v7114
      %v7116 = vpop.f32.mrf.mxu0
      %v7117 = vpop.f32.mrf.mxu0
      %v7118 = vadd.f32 0.0, %v7117
      %v7119 = vpop.f32.mrf.mxu0
      %7120 = vmatprep.mubr.bf16.mxu0 0
      %7121 = vmatmul.mubr.bf16.gmra.mxu0 %v7056
      %v7122 = vpop.f32.mrf.mxu0
      %v7123 = vadd.f32 0.0, %v7122
      %v7124 = vpop.f32.mrf.mxu0
      %v7125 = vpop.f32.mrf.mxu0
      %v7126 = vadd.f32 0.0, %v7125
      %v7127 = vpop.f32.mrf.mxu0
      %7128 = vmatprep.mubr.bf16.mxu0 0
      %7129 = vmatmul.mubr.bf16.gmra.mxu0 %v7059
      %v7130 = vpop.f32.mrf.mxu0
      %v7131 = vadd.f32 0.0, %v7130
      %v7132 = vpop.f32.mrf.mxu0
      %v7133 = vpop.f32.mrf.mxu0
      %v7134 = vadd.f32 0.0, %v7133
      %v7135 = vpop.f32.mrf.mxu0
      %7136 = vmatprep.mubr.bf16.mxu0 0
      %7137 = vmatmul.mubr.bf16.gmra.mxu0 %v7062
      %v7138 = vpop.f32.mrf.mxu0
      %v7139 = vadd.f32 0.0, %v7138
      %v7140 = vpop.f32.mrf.mxu0
      %v7141 = vpop.f32.mrf.mxu0
      %v7142 = vadd.f32 0.0, %v7141
      %v7143 = vpop.f32.mrf.mxu0
      %7144 = vdwg.mxu0
      %v7146 = vsel %vm6394, %v6935, 0
      %v7149 = vsel %vm6394, %v6936, 0
      %v7152 = vsel %vm6394, %v6937, 0
      %v7155 = vsel %vm6394, %v6938, 0
      %v7158 = vsel %vm6394, %v6939, 0
      %v7161 = vsel %vm6394, %v6940, 0
      %7163 = vmatprep.subr.bf16.mxu0 0
      %7164 = vmatpush1.bf16.msra.mxu0 0
      %7165 = vmatprep.subr.bf16.mxu0 0
      %7166 = vmatpush1.bf16.msra.mxu0 0
      %7167 = vmatprep.subr.bf16.mxu0 0
      %7168 = vmatpush1.bf16.msra.mxu0 %v5919
      %7169 = vmatprep.subr.bf16.mxu0 0
      %7170 = vmatpush1.bf16.msra.mxu0 %v5903
      %7171 = vmatprep.subr.bf16.mxu0 0
      %7172 = vmatpush1.bf16.msra.mxu0 %v5887
      %7173 = vmatprep.subr.bf16.mxu0 0
      %7174 = vmatpush1.bf16.msra.mxu0 %v5871
      %7175 = vmatprep.subr.bf16.mxu0 0
      %7176 = vmatpush1.bf16.msra.mxu0 %v5855
      %7177 = vmatprep.subr.bf16.mxu0 0
      %7178 = vmatpush1.bf16.msra.mxu0 %v5839
      %7179 = vmatprep.subr.bf16.mxu0 0
      %7180 = vmatpush2.bf16.msra.mxu0 0
      %7181 = vmatprep.subr.bf16.mxu0 0
      %7182 = vmatpush2.bf16.msra.mxu0 0
      %7183 = vmatprep.subr.bf16.mxu0 0
      %7184 = vmatpush2.bf16.msra.mxu0 0
      %7185 = vmatprep.subr.bf16.mxu0 0
      %7186 = vmatpush2.bf16.msra.mxu0 0
      %7187 = vmatprep.subr.bf16.mxu0 0
      %7188 = vmatpush2.bf16.msra.mxu0 0
      %7189 = vmatprep.subr.bf16.mxu0 0
      %7190 = vmatpush2.bf16.msra.mxu0 0
      %7191 = vmatprep.subr.bf16.mxu0 0
      %7192 = vmatpush2.bf16.msra.mxu0 0
      %7193 = vmatprep.subr.bf16.mxu0 0
      %7194 = vmatpush2.bf16.msra.mxu0 0
      %7195 = vmatprep.mubr.bf16.mxu0 0
      %7196 = vmatmul.mubr.bf16.gmra.mxu0 %v7146
      %v7197 = vpop.f32.mrf.mxu0
      %v7198 = vadd.f32 0.0, %v7197
      %v7199 = vpop.f32.mrf.mxu0
      %v7200 = vpop.f32.mrf.mxu0
      %v7201 = vadd.f32 0.0, %v7200
      %v7202 = vpop.f32.mrf.mxu0
      %7203 = vmatprep.mubr.bf16.mxu0 0
      %7204 = vmatmul.mubr.bf16.gmra.mxu0 %v7149
      %v7205 = vpop.f32.mrf.mxu0
      %v7206 = vadd.f32 0.0, %v7205
      %v7207 = vpop.f32.mrf.mxu0
      %v7208 = vpop.f32.mrf.mxu0
      %v7209 = vadd.f32 0.0, %v7208
      %v7210 = vpop.f32.mrf.mxu0
      %7211 = vmatprep.mubr.bf16.mxu0 0
      %7212 = vmatmul.mubr.bf16.gmra.mxu0 %v7152
      %v7213 = vpop.f32.mrf.mxu0
      %v7214 = vadd.f32 0.0, %v7213
      %v7215 = vpop.f32.mrf.mxu0
      %v7216 = vpop.f32.mrf.mxu0
      %v7217 = vadd.f32 0.0, %v7216
      %v7218 = vpop.f32.mrf.mxu0
      %7219 = vmatprep.mubr.bf16.mxu0 0
      %7220 = vmatmul.mubr.bf16.gmra.mxu0 %v7155
      %v7221 = vpop.f32.mrf.mxu0
      %v7222 = vadd.f32 0.0, %v7221
      %v7223 = vpop.f32.mrf.mxu0
      %v7224 = vpop.f32.mrf.mxu0
      %v7225 = vadd.f32 0.0, %v7224
      %v7226 = vpop.f32.mrf.mxu0
      %7227 = vmatprep.mubr.bf16.mxu0 0
      %7228 = vmatmul.mubr.bf16.gmra.mxu0 %v7158
      %v7229 = vpop.f32.mrf.mxu0
      %v7230 = vadd.f32 0.0, %v7229
      %v7231 = vpop.f32.mrf.mxu0
      %v7232 = vpop.f32.mrf.mxu0
      %v7233 = vadd.f32 0.0, %v7232
      %v7234 = vpop.f32.mrf.mxu0
      %7235 = vmatprep.mubr.bf16.mxu0 0
      %7236 = vmatmul.mubr.bf16.gmra.mxu0 %v7161
      %v7237 = vpop.f32.mrf.mxu0
      %v7238 = vadd.f32 0.0, %v7237
      %v7239 = vpop.f32.mrf.mxu0
      %v7240 = vpop.f32.mrf.mxu0
      %v7241 = vadd.f32 0.0, %v7240
      %v7242 = vpop.f32.mrf.mxu0
      %7243 = vdwg.mxu0
      %v7245 = vsel %vm6394, %v6941, 0
      %v7248 = vsel %vm6394, %v6942, 0
      %v7251 = vsel %vm6394, %v6943, 0
      %v7254 = vsel %vm6394, %v6944, 0
      %v7257 = vsel %vm6394, %v6945, 0
      %v7260 = vsel %vm6394, %v6946, 0
      %7262 = vmatprep.subr.bf16.mxu0 0
      %7263 = vmatpush1.bf16.msra.mxu0 0
      %7264 = vmatprep.subr.bf16.mxu0 0
      %7265 = vmatpush1.bf16.msra.mxu0 0
      %7266 = vmatprep.subr.bf16.mxu0 0
      %7267 = vmatpush1.bf16.msra.mxu0 %v5923
      %7268 = vmatprep.subr.bf16.mxu0 0
      %7269 = vmatpush1.bf16.msra.mxu0 %v5907
      %7270 = vmatprep.subr.bf16.mxu0 0
      %7271 = vmatpush1.bf16.msra.mxu0 %v5891
      %7272 = vmatprep.subr.bf16.mxu0 0
      %7273 = vmatpush1.bf16.msra.mxu0 %v5875
      %7274 = vmatprep.subr.bf16.mxu0 0
      %7275 = vmatpush1.bf16.msra.mxu0 %v5859
      %7276 = vmatprep.subr.bf16.mxu0 0
      %7277 = vmatpush1.bf16.msra.mxu0 %v5843
      %7278 = vmatprep.subr.bf16.mxu0 0
      %7279 = vmatpush2.bf16.msra.mxu0 0
      %7280 = vmatprep.subr.bf16.mxu0 0
      %7281 = vmatpush2.bf16.msra.mxu0 0
      %7282 = vmatprep.subr.bf16.mxu0 0
      %7283 = vmatpush2.bf16.msra.mxu0 0
      %7284 = vmatprep.subr.bf16.mxu0 0
      %7285 = vmatpush2.bf16.msra.mxu0 0
      %7286 = vmatprep.subr.bf16.mxu0 0
      %7287 = vmatpush2.bf16.msra.mxu0 0
      %7288 = vmatprep.subr.bf16.mxu0 0
      %7289 = vmatpush2.bf16.msra.mxu0 0
      %7290 = vmatprep.subr.bf16.mxu0 0
      %7291 = vmatpush2.bf16.msra.mxu0 0
      %7292 = vmatprep.subr.bf16.mxu0 0
      %7293 = vmatpush2.bf16.msra.mxu0 0
      %7294 = vmatprep.mubr.bf16.mxu0 0
      %7295 = vmatmul.mubr.bf16.gmra.mxu0 %v7245
      %v7296 = vpop.f32.mrf.mxu0
      %v7297 = vadd.f32 0.0, %v7296
      %v7298 = vpop.f32.mrf.mxu0
      %v7299 = vpop.f32.mrf.mxu0
      %v7300 = vadd.f32 0.0, %v7299
      %v7301 = vpop.f32.mrf.mxu0
      %7302 = vmatprep.mubr.bf16.mxu0 0
      %7303 = vmatmul.mubr.bf16.gmra.mxu0 %v7248
      %v7304 = vpop.f32.mrf.mxu0
      %v7305 = vadd.f32 0.0, %v7304
      %v7306 = vpop.f32.mrf.mxu0
      %v7307 = vpop.f32.mrf.mxu0
      %v7308 = vadd.f32 0.0, %v7307
      %v7309 = vpop.f32.mrf.mxu0
      %7310 = vmatprep.mubr.bf16.mxu0 0
      %7311 = vmatmul.mubr.bf16.gmra.mxu0 %v7251
      %v7312 = vpop.f32.mrf.mxu0
      %v7313 = vadd.f32 0.0, %v7312
      %v7314 = vpop.f32.mrf.mxu0
      %v7315 = vpop.f32.mrf.mxu0
      %v7316 = vadd.f32 0.0, %v7315
      %v7317 = vpop.f32.mrf.mxu0
      %7318 = vmatprep.mubr.bf16.mxu0 0
      %7319 = vmatmul.mubr.bf16.gmra.mxu0 %v7254
      %v7320 = vpop.f32.mrf.mxu0
      %v7321 = vadd.f32 0.0, %v7320
      %v7322 = vpop.f32.mrf.mxu0
      %v7323 = vpop.f32.mrf.mxu0
      %v7324 = vadd.f32 0.0, %v7323
      %v7325 = vpop.f32.mrf.mxu0
      %7326 = vmatprep.mubr.bf16.mxu0 0
      %7327 = vmatmul.mubr.bf16.gmra.mxu0 %v7257
      %v7328 = vpop.f32.mrf.mxu0
      %v7329 = vadd.f32 0.0, %v7328
      %v7330 = vpop.f32.mrf.mxu0
      %v7331 = vpop.f32.mrf.mxu0
      %v7332 = vadd.f32 0.0, %v7331
      %v7333 = vpop.f32.mrf.mxu0
      %7334 = vmatprep.mubr.bf16.mxu0 0
      %7335 = vmatmul.mubr.bf16.gmra.mxu0 %v7260
      %v7336 = vpop.f32.mrf.mxu0
      %v7337 = vadd.f32 0.0, %v7336
      %v7338 = vpop.f32.mrf.mxu0
      %v7339 = vpop.f32.mrf.mxu0
      %v7340 = vadd.f32 0.0, %v7339
      %v7341 = vpop.f32.mrf.mxu0
      %7342 = vdwg.mxu0
      %v7343 = vpack.c.bf16 %v7003, %v7000
      %v7344 = vpack.c.bf16 %v7011, %v7008
      %v7345 = vpack.c.bf16 %v7019, %v7016
      %v7346 = vpack.c.bf16 %v7027, %v7024
      %v7347 = vpack.c.bf16 %v7035, %v7032
      %v7348 = vpack.c.bf16 %v7043, %v7040
      %v7349 = vpack.c.bf16 %v7102, %v7099
      %v7350 = vpack.c.bf16 %v7110, %v7107
      %v7351 = vpack.c.bf16 %v7118, %v7115
      %v7352 = vpack.c.bf16 %v7126, %v7123
      %v7353 = vpack.c.bf16 %v7134, %v7131
      %v7354 = vpack.c.bf16 %v7142, %v7139
      %v7355 = vpack.c.bf16 %v7201, %v7198
      %v7356 = vpack.c.bf16 %v7209, %v7206
      %v7357 = vpack.c.bf16 %v7217, %v7214
      %v7358 = vpack.c.bf16 %v7225, %v7222
      %v7359 = vpack.c.bf16 %v7233, %v7230
      %v7360 = vpack.c.bf16 %v7241, %v7238
      %v7361 = vpack.c.bf16 %v7300, %v7297
      %v7362 = vpack.c.bf16 %v7308, %v7305
      %v7363 = vpack.c.bf16 %v7316, %v7313
      %v7364 = vpack.c.bf16 %v7324, %v7321
      %v7365 = vpack.c.bf16 %v7332, %v7329
      %v7366 = vpack.c.bf16 %v7340, %v7337
      %v7369 = vpack.i.b16 %v7349, %v7343
      %v7371 = vshrl.u32 %v7343, 16
      %v7372 = vshrl.u32 %v7349, 16
      %v7373 = vpack.i.b16 %v7372, %v7371
      %v7377 = vpack.i.b16 %v7361, %v7355
      %v7379 = vshrl.u32 %v7355, 16
      %v7380 = vshrl.u32 %v7361, 16
      %v7381 = vpack.i.b16 %v7380, %v7379
      %v7385 = vpack.i.b16 %v7350, %v7344
      %v7387 = vshrl.u32 %v7344, 16
      %v7388 = vshrl.u32 %v7350, 16
      %v7389 = vpack.i.b16 %v7388, %v7387
      %v7393 = vpack.i.b16 %v7362, %v7356
      %v7395 = vshrl.u32 %v7356, 16
      %v7396 = vshrl.u32 %v7362, 16
      %v7397 = vpack.i.b16 %v7396, %v7395
      %v7401 = vpack.i.b16 %v7351, %v7345
      %v7403 = vshrl.u32 %v7345, 16
      %v7404 = vshrl.u32 %v7351, 16
      %v7405 = vpack.i.b16 %v7404, %v7403
      %v7409 = vpack.i.b16 %v7363, %v7357
      %v7411 = vshrl.u32 %v7357, 16
      %v7412 = vshrl.u32 %v7363, 16
      %v7413 = vpack.i.b16 %v7412, %v7411
      %v7417 = vpack.i.b16 %v7352, %v7346
      %v7419 = vshrl.u32 %v7346, 16
      %v7420 = vshrl.u32 %v7352, 16
      %v7421 = vpack.i.b16 %v7420, %v7419
      %v7425 = vpack.i.b16 %v7364, %v7358
      %v7427 = vshrl.u32 %v7358, 16
      %v7428 = vshrl.u32 %v7364, 16
      %v7429 = vpack.i.b16 %v7428, %v7427
      %v7433 = vpack.i.b16 %v7353, %v7347
      %v7435 = vshrl.u32 %v7347, 16
      %v7436 = vshrl.u32 %v7353, 16
      %v7437 = vpack.i.b16 %v7436, %v7435
      %v7441 = vpack.i.b16 %v7365, %v7359
      %v7443 = vshrl.u32 %v7359, 16
      %v7444 = vshrl.u32 %v7365, 16
      %v7445 = vpack.i.b16 %v7444, %v7443
      %v7449 = vpack.i.b16 %v7354, %v7348
      %v7451 = vshrl.u32 %v7348, 16
      %v7452 = vshrl.u32 %v7354, 16
      %v7453 = vpack.i.b16 %v7452, %v7451
      %v7457 = vpack.i.b16 %v7366, %v7360
      %v7459 = vshrl.u32 %v7360, 16
      %v7460 = vshrl.u32 %v7366, 16
      %v7461 = vpack.i.b16 %v7460, %v7459
      %v7463 = vcombine.high %v7369, %v1094
      %v7465 = vunpack.c.l.s4 1983009808
      %v7466 = vunpack.c.0.s8 %v7465
      %v7467 = vlaneseq
      %v7468 = vshrl.u32 %v7467, 7
      %v7469 = vsub.s32 %v7466, %v7468
      %v7470 = vrot.slane %v7369, %v7469
      %v7472 = vunpack.c.l.s4 1983009808
      %v7473 = vunpack.c.0.s8 %v7472
      %v7474 = vlaneseq
      %v7475 = vshrl.u32 %v7474, 7
      %v7476 = vsub.s32 %v7473, %v7475
      %v7477 = vrot.slane %v7463, %v7476
      %v7478 = vcombine.high %v7377, %v1094
      %v7480 = vunpack.c.l.s4 1983009808
      %v7481 = vunpack.c.0.s8 %v7480
      %v7482 = vlaneseq
      %v7483 = vshrl.u32 %v7482, 7
      %v7484 = vsub.s32 %v7481, %v7483
      %v7485 = vrot.slane %v7377, %v7484
      %v7487 = vunpack.c.l.s4 1983009808
      %v7488 = vunpack.c.0.s8 %v7487
      %v7489 = vlaneseq
      %v7490 = vshrl.u32 %v7489, 7
      %v7491 = vsub.s32 %v7488, %v7490
      %v7492 = vrot.slane %v7478, %v7491
      %v7493 = vcombine.low %v7470, %v7485
      %v7494 = vcombine.high %v7470, %v7485
      %v7496 = vunpack.c.l.s4 1934713408
      %v7497 = vunpack.c.0.s8 %v7496
      %v7498 = vlaneseq
      %v7499 = vshrl.u32 %v7498, 7
      %v7500 = vsub.s32 %v7497, %v7499
      %v7501 = vrot.slane %v7493, %v7500
      %v7503 = vunpack.c.l.s4 1934713408
      %v7504 = vunpack.c.0.s8 %v7503
      %v7505 = vlaneseq
      %v7506 = vshrl.u32 %v7505, 7
      %v7507 = vsub.s32 %v7504, %v7506
      %v7508 = vrot.slane %v7494, %v7507
      %v7509 = vcombine.low %v7477, %v7492
      %v7510 = vcombine.high %v7477, %v7492
      %v7512 = vunpack.c.l.s4 1934713408
      %v7513 = vunpack.c.0.s8 %v7512
      %v7514 = vlaneseq
      %v7515 = vshrl.u32 %v7514, 7
      %v7516 = vsub.s32 %v7513, %v7515
      %v7517 = vrot.slane %v7509, %v7516
      %v7519 = vunpack.c.l.s4 1934713408
      %v7520 = vunpack.c.0.s8 %v7519
      %v7521 = vlaneseq
      %v7522 = vshrl.u32 %v7521, 7
      %v7523 = vsub.s32 %v7520, %v7522
      %v7524 = vrot.slane %v7510, %v7523
      %v7525 = vcombine.high %v7501, 0
      %v7526 = vcombine.high %v7508, 0
      %v7527 = vcombine.high %v7517, 0
      %v7528 = vcombine.high %v7524, 0
      %v7529 = vcombine.high %v7373, %v1097
      %v7531 = vunpack.c.l.s4 1983009808
      %v7532 = vunpack.c.0.s8 %v7531
      %v7533 = vlaneseq
      %v7534 = vshrl.u32 %v7533, 7
      %v7535 = vsub.s32 %v7532, %v7534
      %v7536 = vrot.slane %v7373, %v7535
      %v7538 = vunpack.c.l.s4 1983009808
      %v7539 = vunpack.c.0.s8 %v7538
      %v7540 = vlaneseq
      %v7541 = vshrl.u32 %v7540, 7
      %v7542 = vsub.s32 %v7539, %v7541
      %v7543 = vrot.slane %v7529, %v7542
      %v7544 = vcombine.high %v7381, %v1097
      %v7546 = vunpack.c.l.s4 1983009808
      %v7547 = vunpack.c.0.s8 %v7546
      %v7548 = vlaneseq
      %v7549 = vshrl.u32 %v7548, 7
      %v7550 = vsub.s32 %v7547, %v7549
      %v7551 = vrot.slane %v7381, %v7550
      %v7553 = vunpack.c.l.s4 1983009808
      %v7554 = vunpack.c.0.s8 %v7553
      %v7555 = vlaneseq
      %v7556 = vshrl.u32 %v7555, 7
      %v7557 = vsub.s32 %v7554, %v7556
      %v7558 = vrot.slane %v7544, %v7557
      %v7559 = vcombine.low %v7536, %v7551
      %v7560 = vcombine.high %v7536, %v7551
      %v7562 = vunpack.c.l.s4 1934713408
      %v7563 = vunpack.c.0.s8 %v7562
      %v7564 = vlaneseq
      %v7565 = vshrl.u32 %v7564, 7
      %v7566 = vsub.s32 %v7563, %v7565
      %v7567 = vrot.slane %v7559, %v7566
      %v7569 = vunpack.c.l.s4 1934713408
      %v7570 = vunpack.c.0.s8 %v7569
      %v7571 = vlaneseq
      %v7572 = vshrl.u32 %v7571, 7
      %v7573 = vsub.s32 %v7570, %v7572
      %v7574 = vrot.slane %v7560, %v7573
      %v7575 = vcombine.low %v7543, %v7558
      %v7576 = vcombine.high %v7543, %v7558
      %v7578 = vunpack.c.l.s4 1934713408
      %v7579 = vunpack.c.0.s8 %v7578
      %v7580 = vlaneseq
      %v7581 = vshrl.u32 %v7580, 7
      %v7582 = vsub.s32 %v7579, %v7581
      %v7583 = vrot.slane %v7575, %v7582
      %v7585 = vunpack.c.l.s4 1934713408
      %v7586 = vunpack.c.0.s8 %v7585
      %v7587 = vlaneseq
      %v7588 = vshrl.u32 %v7587, 7
      %v7589 = vsub.s32 %v7586, %v7588
      %v7590 = vrot.slane %v7576, %v7589
      %v7591 = vcombine.high %v7567, 0
      %v7592 = vcombine.high %v7574, 0
      %v7593 = vcombine.high %v7583, 0
      %v7594 = vcombine.high %v7590, 0
      %v7595 = vcombine.high %v7385, %v1094
      %v7597 = vunpack.c.l.s4 1983009808
      %v7598 = vunpack.c.0.s8 %v7597
      %v7599 = vlaneseq
      %v7600 = vshrl.u32 %v7599, 7
      %v7601 = vsub.s32 %v7598, %v7600
      %v7602 = vrot.slane %v7385, %v7601
      %v7604 = vunpack.c.l.s4 1983009808
      %v7605 = vunpack.c.0.s8 %v7604
      %v7606 = vlaneseq
      %v7607 = vshrl.u32 %v7606, 7
      %v7608 = vsub.s32 %v7605, %v7607
      %v7609 = vrot.slane %v7595, %v7608
      %v7610 = vcombine.high %v7393, %v1094
      %v7612 = vunpack.c.l.s4 1983009808
      %v7613 = vunpack.c.0.s8 %v7612
      %v7614 = vlaneseq
      %v7615 = vshrl.u32 %v7614, 7
      %v7616 = vsub.s32 %v7613, %v7615
      %v7617 = vrot.slane %v7393, %v7616
      %v7619 = vunpack.c.l.s4 1983009808
      %v7620 = vunpack.c.0.s8 %v7619
      %v7621 = vlaneseq
      %v7622 = vshrl.u32 %v7621, 7
      %v7623 = vsub.s32 %v7620, %v7622
      %v7624 = vrot.slane %v7610, %v7623
      %v7625 = vcombine.low %v7602, %v7617
      %v7626 = vcombine.high %v7602, %v7617
      %v7628 = vunpack.c.l.s4 1934713408
      %v7629 = vunpack.c.0.s8 %v7628
      %v7630 = vlaneseq
      %v7631 = vshrl.u32 %v7630, 7
      %v7632 = vsub.s32 %v7629, %v7631
      %v7633 = vrot.slane %v7625, %v7632
      %v7635 = vunpack.c.l.s4 1934713408
      %v7636 = vunpack.c.0.s8 %v7635
      %v7637 = vlaneseq
      %v7638 = vshrl.u32 %v7637, 7
      %v7639 = vsub.s32 %v7636, %v7638
      %v7640 = vrot.slane %v7626, %v7639
      %v7641 = vcombine.low %v7609, %v7624
      %v7642 = vcombine.high %v7609, %v7624
      %v7644 = vunpack.c.l.s4 1934713408
      %v7645 = vunpack.c.0.s8 %v7644
      %v7646 = vlaneseq
      %v7647 = vshrl.u32 %v7646, 7
      %v7648 = vsub.s32 %v7645, %v7647
      %v7649 = vrot.slane %v7641, %v7648
      %v7651 = vunpack.c.l.s4 1934713408
      %v7652 = vunpack.c.0.s8 %v7651
      %v7653 = vlaneseq
      %v7654 = vshrl.u32 %v7653, 7
      %v7655 = vsub.s32 %v7652, %v7654
      %v7656 = vrot.slane %v7642, %v7655
      %v7657 = vcombine.high %v7633, 0
      %v7658 = vcombine.high %v7640, 0
      %v7659 = vcombine.high %v7649, 0
      %v7660 = vcombine.high %v7656, 0
      %v7661 = vcombine.high %v7389, %v1097
      %v7663 = vunpack.c.l.s4 1983009808
      %v7664 = vunpack.c.0.s8 %v7663
      %v7665 = vlaneseq
      %v7666 = vshrl.u32 %v7665, 7
      %v7667 = vsub.s32 %v7664, %v7666
      %v7668 = vrot.slane %v7389, %v7667
      %v7670 = vunpack.c.l.s4 1983009808
      %v7671 = vunpack.c.0.s8 %v7670
      %v7672 = vlaneseq
      %v7673 = vshrl.u32 %v7672, 7
      %v7674 = vsub.s32 %v7671, %v7673
      %v7675 = vrot.slane %v7661, %v7674
      %v7676 = vcombine.high %v7397, %v1097
      %v7678 = vunpack.c.l.s4 1983009808
      %v7679 = vunpack.c.0.s8 %v7678
      %v7680 = vlaneseq
      %v7681 = vshrl.u32 %v7680, 7
      %v7682 = vsub.s32 %v7679, %v7681
      %v7683 = vrot.slane %v7397, %v7682
      %v7685 = vunpack.c.l.s4 1983009808
      %v7686 = vunpack.c.0.s8 %v7685
      %v7687 = vlaneseq
      %v7688 = vshrl.u32 %v7687, 7
      %v7689 = vsub.s32 %v7686, %v7688
      %v7690 = vrot.slane %v7676, %v7689
      %v7691 = vcombine.low %v7668, %v7683
      %v7692 = vcombine.high %v7668, %v7683
      %v7694 = vunpack.c.l.s4 1934713408
      %v7695 = vunpack.c.0.s8 %v7694
      %v7696 = vlaneseq
      %v7697 = vshrl.u32 %v7696, 7
      %v7698 = vsub.s32 %v7695, %v7697
      %v7699 = vrot.slane %v7691, %v7698
      %v7701 = vunpack.c.l.s4 1934713408
      %v7702 = vunpack.c.0.s8 %v7701
      %v7703 = vlaneseq
      %v7704 = vshrl.u32 %v7703, 7
      %v7705 = vsub.s32 %v7702, %v7704
      %v7706 = vrot.slane %v7692, %v7705
      %v7707 = vcombine.low %v7675, %v7690
      %v7708 = vcombine.high %v7675, %v7690
      %v7710 = vunpack.c.l.s4 1934713408
      %v7711 = vunpack.c.0.s8 %v7710
      %v7712 = vlaneseq
      %v7713 = vshrl.u32 %v7712, 7
      %v7714 = vsub.s32 %v7711, %v7713
      %v7715 = vrot.slane %v7707, %v7714
      %v7717 = vunpack.c.l.s4 1934713408
      %v7718 = vunpack.c.0.s8 %v7717
      %v7719 = vlaneseq
      %v7720 = vshrl.u32 %v7719, 7
      %v7721 = vsub.s32 %v7718, %v7720
      %v7722 = vrot.slane %v7708, %v7721
      %v7723 = vcombine.high %v7699, 0
      %v7724 = vcombine.high %v7706, 0
      %v7725 = vcombine.high %v7715, 0
      %v7726 = vcombine.high %v7722, 0
      %v7727 = vcombine.high %v7401, %v1094
      %v7729 = vunpack.c.l.s4 1983009808
      %v7730 = vunpack.c.0.s8 %v7729
      %v7731 = vlaneseq
      %v7732 = vshrl.u32 %v7731, 7
      %v7733 = vsub.s32 %v7730, %v7732
      %v7734 = vrot.slane %v7401, %v7733
      %v7736 = vunpack.c.l.s4 1983009808
      %v7737 = vunpack.c.0.s8 %v7736
      %v7738 = vlaneseq
      %v7739 = vshrl.u32 %v7738, 7
      %v7740 = vsub.s32 %v7737, %v7739
      %v7741 = vrot.slane %v7727, %v7740
      %v7742 = vcombine.high %v7409, %v1094
      %v7744 = vunpack.c.l.s4 1983009808
      %v7745 = vunpack.c.0.s8 %v7744
      %v7746 = vlaneseq
      %v7747 = vshrl.u32 %v7746, 7
      %v7748 = vsub.s32 %v7745, %v7747
      %v7749 = vrot.slane %v7409, %v7748
      %v7751 = vunpack.c.l.s4 1983009808
      %v7752 = vunpack.c.0.s8 %v7751
      %v7753 = vlaneseq
      %v7754 = vshrl.u32 %v7753, 7
      %v7755 = vsub.s32 %v7752, %v7754
      %v7756 = vrot.slane %v7742, %v7755
      %v7757 = vcombine.low %v7734, %v7749
      %v7758 = vcombine.high %v7734, %v7749
      %v7760 = vunpack.c.l.s4 1934713408
      %v7761 = vunpack.c.0.s8 %v7760
      %v7762 = vlaneseq
      %v7763 = vshrl.u32 %v7762, 7
      %v7764 = vsub.s32 %v7761, %v7763
      %v7765 = vrot.slane %v7757, %v7764
      %v7767 = vunpack.c.l.s4 1934713408
      %v7768 = vunpack.c.0.s8 %v7767
      %v7769 = vlaneseq
      %v7770 = vshrl.u32 %v7769, 7
      %v7771 = vsub.s32 %v7768, %v7770
      %v7772 = vrot.slane %v7758, %v7771
      %v7773 = vcombine.low %v7741, %v7756
      %v7774 = vcombine.high %v7741, %v7756
      %v7776 = vunpack.c.l.s4 1934713408
      %v7777 = vunpack.c.0.s8 %v7776
      %v7778 = vlaneseq
      %v7779 = vshrl.u32 %v7778, 7
      %v7780 = vsub.s32 %v7777, %v7779
      %v7781 = vrot.slane %v7773, %v7780
      %v7783 = vunpack.c.l.s4 1934713408
      %v7784 = vunpack.c.0.s8 %v7783
      %v7785 = vlaneseq
      %v7786 = vshrl.u32 %v7785, 7
      %v7787 = vsub.s32 %v7784, %v7786
      %v7788 = vrot.slane %v7774, %v7787
      %v7789 = vcombine.high %v7765, 0
      %v7790 = vcombine.high %v7772, 0
      %v7791 = vcombine.high %v7781, 0
      %v7792 = vcombine.high %v7788, 0
      %v7793 = vcombine.high %v7405, %v1097
      %v7795 = vunpack.c.l.s4 1983009808
      %v7796 = vunpack.c.0.s8 %v7795
      %v7797 = vlaneseq
      %v7798 = vshrl.u32 %v7797, 7
      %v7799 = vsub.s32 %v7796, %v7798
      %v7800 = vrot.slane %v7405, %v7799
      %v7802 = vunpack.c.l.s4 1983009808
      %v7803 = vunpack.c.0.s8 %v7802
      %v7804 = vlaneseq
      %v7805 = vshrl.u32 %v7804, 7
      %v7806 = vsub.s32 %v7803, %v7805
      %v7807 = vrot.slane %v7793, %v7806
      %v7808 = vcombine.high %v7413, %v1097
      %v7810 = vunpack.c.l.s4 1983009808
      %v7811 = vunpack.c.0.s8 %v7810
      %v7812 = vlaneseq
      %v7813 = vshrl.u32 %v7812, 7
      %v7814 = vsub.s32 %v7811, %v7813
      %v7815 = vrot.slane %v7413, %v7814
      %v7817 = vunpack.c.l.s4 1983009808
      %v7818 = vunpack.c.0.s8 %v7817
      %v7819 = vlaneseq
      %v7820 = vshrl.u32 %v7819, 7
      %v7821 = vsub.s32 %v7818, %v7820
      %v7822 = vrot.slane %v7808, %v7821
      %v7823 = vcombine.low %v7800, %v7815
      %v7824 = vcombine.high %v7800, %v7815
      %v7826 = vunpack.c.l.s4 1934713408
      %v7827 = vunpack.c.0.s8 %v7826
      %v7828 = vlaneseq
      %v7829 = vshrl.u32 %v7828, 7
      %v7830 = vsub.s32 %v7827, %v7829
      %v7831 = vrot.slane %v7823, %v7830
      %v7833 = vunpack.c.l.s4 1934713408
      %v7834 = vunpack.c.0.s8 %v7833
      %v7835 = vlaneseq
      %v7836 = vshrl.u32 %v7835, 7
      %v7837 = vsub.s32 %v7834, %v7836
      %v7838 = vrot.slane %v7824, %v7837
      %v7839 = vcombine.low %v7807, %v7822
      %v7840 = vcombine.high %v7807, %v7822
      %v7842 = vunpack.c.l.s4 1934713408
      %v7843 = vunpack.c.0.s8 %v7842
      %v7844 = vlaneseq
      %v7845 = vshrl.u32 %v7844, 7
      %v7846 = vsub.s32 %v7843, %v7845
      %v7847 = vrot.slane %v7839, %v7846
      %v7849 = vunpack.c.l.s4 1934713408
      %v7850 = vunpack.c.0.s8 %v7849
      %v7851 = vlaneseq
      %v7852 = vshrl.u32 %v7851, 7
      %v7853 = vsub.s32 %v7850, %v7852
      %v7854 = vrot.slane %v7840, %v7853
      %v7855 = vcombine.high %v7831, 0
      %v7856 = vcombine.high %v7838, 0
      %v7857 = vcombine.high %v7847, 0
      %v7858 = vcombine.high %v7854, 0
      %v7859 = vcombine.high %v7417, %v1094
      %v7861 = vunpack.c.l.s4 1983009808
      %v7862 = vunpack.c.0.s8 %v7861
      %v7863 = vlaneseq
      %v7864 = vshrl.u32 %v7863, 7
      %v7865 = vsub.s32 %v7862, %v7864
      %v7866 = vrot.slane %v7417, %v7865
      %v7868 = vunpack.c.l.s4 1983009808
      %v7869 = vunpack.c.0.s8 %v7868
      %v7870 = vlaneseq
      %v7871 = vshrl.u32 %v7870, 7
      %v7872 = vsub.s32 %v7869, %v7871
      %v7873 = vrot.slane %v7859, %v7872
      %v7874 = vcombine.high %v7425, %v1094
      %v7876 = vunpack.c.l.s4 1983009808
      %v7877 = vunpack.c.0.s8 %v7876
      %v7878 = vlaneseq
      %v7879 = vshrl.u32 %v7878, 7
      %v7880 = vsub.s32 %v7877, %v7879
      %v7881 = vrot.slane %v7425, %v7880
      %v7883 = vunpack.c.l.s4 1983009808
      %v7884 = vunpack.c.0.s8 %v7883
      %v7885 = vlaneseq
      %v7886 = vshrl.u32 %v7885, 7
      %v7887 = vsub.s32 %v7884, %v7886
      %v7888 = vrot.slane %v7874, %v7887
      %v7889 = vcombine.low %v7866, %v7881
      %v7890 = vcombine.high %v7866, %v7881
      %v7892 = vunpack.c.l.s4 1934713408
      %v7893 = vunpack.c.0.s8 %v7892
      %v7894 = vlaneseq
      %v7895 = vshrl.u32 %v7894, 7
      %v7896 = vsub.s32 %v7893, %v7895
      %v7897 = vrot.slane %v7889, %v7896
      %v7899 = vunpack.c.l.s4 1934713408
      %v7900 = vunpack.c.0.s8 %v7899
      %v7901 = vlaneseq
      %v7902 = vshrl.u32 %v7901, 7
      %v7903 = vsub.s32 %v7900, %v7902
      %v7904 = vrot.slane %v7890, %v7903
      %v7905 = vcombine.low %v7873, %v7888
      %v7906 = vcombine.high %v7873, %v7888
      %v7908 = vunpack.c.l.s4 1934713408
      %v7909 = vunpack.c.0.s8 %v7908
      %v7910 = vlaneseq
      %v7911 = vshrl.u32 %v7910, 7
      %v7912 = vsub.s32 %v7909, %v7911
      %v7913 = vrot.slane %v7905, %v7912
      %v7915 = vunpack.c.l.s4 1934713408
      %v7916 = vunpack.c.0.s8 %v7915
      %v7917 = vlaneseq
      %v7918 = vshrl.u32 %v7917, 7
      %v7919 = vsub.s32 %v7916, %v7918
      %v7920 = vrot.slane %v7906, %v7919
      %v7921 = vcombine.high %v7897, 0
      %v7922 = vcombine.high %v7904, 0
      %v7923 = vcombine.high %v7913, 0
      %v7924 = vcombine.high %v7920, 0
      %v7925 = vcombine.high %v7421, %v1097
      %v7927 = vunpack.c.l.s4 1983009808
      %v7928 = vunpack.c.0.s8 %v7927
      %v7929 = vlaneseq
      %v7930 = vshrl.u32 %v7929, 7
      %v7931 = vsub.s32 %v7928, %v7930
      %v7932 = vrot.slane %v7421, %v7931
      %v7934 = vunpack.c.l.s4 1983009808
      %v7935 = vunpack.c.0.s8 %v7934
      %v7936 = vlaneseq
      %v7937 = vshrl.u32 %v7936, 7
      %v7938 = vsub.s32 %v7935, %v7937
      %v7939 = vrot.slane %v7925, %v7938
      %v7940 = vcombine.high %v7429, %v1097
      %v7942 = vunpack.c.l.s4 1983009808
      %v7943 = vunpack.c.0.s8 %v7942
      %v7944 = vlaneseq
      %v7945 = vshrl.u32 %v7944, 7
      %v7946 = vsub.s32 %v7943, %v7945
      %v7947 = vrot.slane %v7429, %v7946
      %v7949 = vunpack.c.l.s4 1983009808
      %v7950 = vunpack.c.0.s8 %v7949
      %v7951 = vlaneseq
      %v7952 = vshrl.u32 %v7951, 7
      %v7953 = vsub.s32 %v7950, %v7952
      %v7954 = vrot.slane %v7940, %v7953
      %v7955 = vcombine.low %v7932, %v7947
      %v7956 = vcombine.high %v7932, %v7947
      %v7958 = vunpack.c.l.s4 1934713408
      %v7959 = vunpack.c.0.s8 %v7958
      %v7960 = vlaneseq
      %v7961 = vshrl.u32 %v7960, 7
      %v7962 = vsub.s32 %v7959, %v7961
      %v7963 = vrot.slane %v7955, %v7962
      %v7965 = vunpack.c.l.s4 1934713408
      %v7966 = vunpack.c.0.s8 %v7965
      %v7967 = vlaneseq
      %v7968 = vshrl.u32 %v7967, 7
      %v7969 = vsub.s32 %v7966, %v7968
      %v7970 = vrot.slane %v7956, %v7969
      %v7971 = vcombine.low %v7939, %v7954
      %v7972 = vcombine.high %v7939, %v7954
      %v7974 = vunpack.c.l.s4 1934713408
      %v7975 = vunpack.c.0.s8 %v7974
      %v7976 = vlaneseq
      %v7977 = vshrl.u32 %v7976, 7
      %v7978 = vsub.s32 %v7975, %v7977
      %v7979 = vrot.slane %v7971, %v7978
      %v7981 = vunpack.c.l.s4 1934713408
      %v7982 = vunpack.c.0.s8 %v7981
      %v7983 = vlaneseq
      %v7984 = vshrl.u32 %v7983, 7
      %v7985 = vsub.s32 %v7982, %v7984
      %v7986 = vrot.slane %v7972, %v7985
      %v7987 = vcombine.high %v7963, 0
      %v7988 = vcombine.high %v7970, 0
      %v7989 = vcombine.high %v7979, 0
      %v7990 = vcombine.high %v7986, 0
      %v7991 = vcombine.high %v7433, %v1094
      %v7993 = vunpack.c.l.s4 1983009808
      %v7994 = vunpack.c.0.s8 %v7993
      %v7995 = vlaneseq
      %v7996 = vshrl.u32 %v7995, 7
      %v7997 = vsub.s32 %v7994, %v7996
      %v7998 = vrot.slane %v7433, %v7997
      %v8000 = vunpack.c.l.s4 1983009808
      %v8001 = vunpack.c.0.s8 %v8000
      %v8002 = vlaneseq
      %v8003 = vshrl.u32 %v8002, 7
      %v8004 = vsub.s32 %v8001, %v8003
      %v8005 = vrot.slane %v7991, %v8004
      %v8006 = vcombine.high %v7441, %v1094
      %v8008 = vunpack.c.l.s4 1983009808
      %v8009 = vunpack.c.0.s8 %v8008
      %v8010 = vlaneseq
      %v8011 = vshrl.u32 %v8010, 7
      %v8012 = vsub.s32 %v8009, %v8011
      %v8013 = vrot.slane %v7441, %v8012
      %v8015 = vunpack.c.l.s4 1983009808
      %v8016 = vunpack.c.0.s8 %v8015
      %v8017 = vlaneseq
      %v8018 = vshrl.u32 %v8017, 7
      %v8019 = vsub.s32 %v8016, %v8018
      %v8020 = vrot.slane %v8006, %v8019
      %v8021 = vcombine.low %v7998, %v8013
      %v8022 = vcombine.high %v7998, %v8013
      %v8024 = vunpack.c.l.s4 1934713408
      %v8025 = vunpack.c.0.s8 %v8024
      %v8026 = vlaneseq
      %v8027 = vshrl.u32 %v8026, 7
      %v8028 = vsub.s32 %v8025, %v8027
      %v8029 = vrot.slane %v8021, %v8028
      %v8031 = vunpack.c.l.s4 1934713408
      %v8032 = vunpack.c.0.s8 %v8031
      %v8033 = vlaneseq
      %v8034 = vshrl.u32 %v8033, 7
      %v8035 = vsub.s32 %v8032, %v8034
      %v8036 = vrot.slane %v8022, %v8035
      %v8037 = vcombine.low %v8005, %v8020
      %v8038 = vcombine.high %v8005, %v8020
      %v8040 = vunpack.c.l.s4 1934713408
      %v8041 = vunpack.c.0.s8 %v8040
      %v8042 = vlaneseq
      %v8043 = vshrl.u32 %v8042, 7
      %v8044 = vsub.s32 %v8041, %v8043
      %v8045 = vrot.slane %v8037, %v8044
      %v8047 = vunpack.c.l.s4 1934713408
      %v8048 = vunpack.c.0.s8 %v8047
      %v8049 = vlaneseq
      %v8050 = vshrl.u32 %v8049, 7
      %v8051 = vsub.s32 %v8048, %v8050
      %v8052 = vrot.slane %v8038, %v8051
      %v8053 = vcombine.high %v8029, 0
      %v8054 = vcombine.high %v8036, 0
      %v8055 = vcombine.high %v8045, 0
      %v8056 = vcombine.high %v8052, 0
      %v8057 = vcombine.high %v7437, %v1097
      %v8059 = vunpack.c.l.s4 1983009808
      %v8060 = vunpack.c.0.s8 %v8059
      %v8061 = vlaneseq
      %v8062 = vshrl.u32 %v8061, 7
      %v8063 = vsub.s32 %v8060, %v8062
      %v8064 = vrot.slane %v7437, %v8063
      %v8066 = vunpack.c.l.s4 1983009808
      %v8067 = vunpack.c.0.s8 %v8066
      %v8068 = vlaneseq
      %v8069 = vshrl.u32 %v8068, 7
      %v8070 = vsub.s32 %v8067, %v8069
      %v8071 = vrot.slane %v8057, %v8070
      %v8072 = vcombine.high %v7445, %v1097
      %v8074 = vunpack.c.l.s4 1983009808
      %v8075 = vunpack.c.0.s8 %v8074
      %v8076 = vlaneseq
      %v8077 = vshrl.u32 %v8076, 7
      %v8078 = vsub.s32 %v8075, %v8077
      %v8079 = vrot.slane %v7445, %v8078
      %v8081 = vunpack.c.l.s4 1983009808
      %v8082 = vunpack.c.0.s8 %v8081
      %v8083 = vlaneseq
      %v8084 = vshrl.u32 %v8083, 7
      %v8085 = vsub.s32 %v8082, %v8084
      %v8086 = vrot.slane %v8072, %v8085
      %v8087 = vcombine.low %v8064, %v8079
      %v8088 = vcombine.high %v8064, %v8079
      %v8090 = vunpack.c.l.s4 1934713408
      %v8091 = vunpack.c.0.s8 %v8090
      %v8092 = vlaneseq
      %v8093 = vshrl.u32 %v8092, 7
      %v8094 = vsub.s32 %v8091, %v8093
      %v8095 = vrot.slane %v8087, %v8094
      %v8097 = vunpack.c.l.s4 1934713408
      %v8098 = vunpack.c.0.s8 %v8097
      %v8099 = vlaneseq
      %v8100 = vshrl.u32 %v8099, 7
      %v8101 = vsub.s32 %v8098, %v8100
      %v8102 = vrot.slane %v8088, %v8101
      %v8103 = vcombine.low %v8071, %v8086
      %v8104 = vcombine.high %v8071, %v8086
      %v8106 = vunpack.c.l.s4 1934713408
      %v8107 = vunpack.c.0.s8 %v8106
      %v8108 = vlaneseq
      %v8109 = vshrl.u32 %v8108, 7
      %v8110 = vsub.s32 %v8107, %v8109
      %v8111 = vrot.slane %v8103, %v8110
      %v8113 = vunpack.c.l.s4 1934713408
      %v8114 = vunpack.c.0.s8 %v8113
      %v8115 = vlaneseq
      %v8116 = vshrl.u32 %v8115, 7
      %v8117 = vsub.s32 %v8114, %v8116
      %v8118 = vrot.slane %v8104, %v8117
      %v8119 = vcombine.high %v8095, 0
      %v8120 = vcombine.high %v8102, 0
      %v8121 = vcombine.high %v8111, 0
      %v8122 = vcombine.high %v8118, 0
      %v8123 = vcombine.high %v7449, %v1094
      %v8125 = vunpack.c.l.s4 1983009808
      %v8126 = vunpack.c.0.s8 %v8125
      %v8127 = vlaneseq
      %v8128 = vshrl.u32 %v8127, 7
      %v8129 = vsub.s32 %v8126, %v8128
      %v8130 = vrot.slane %v7449, %v8129
      %v8132 = vunpack.c.l.s4 1983009808
      %v8133 = vunpack.c.0.s8 %v8132
      %v8134 = vlaneseq
      %v8135 = vshrl.u32 %v8134, 7
      %v8136 = vsub.s32 %v8133, %v8135
      %v8137 = vrot.slane %v8123, %v8136
      %v8138 = vcombine.high %v7457, %v1094
      %v8140 = vunpack.c.l.s4 1983009808
      %v8141 = vunpack.c.0.s8 %v8140
      %v8142 = vlaneseq
      %v8143 = vshrl.u32 %v8142, 7
      %v8144 = vsub.s32 %v8141, %v8143
      %v8145 = vrot.slane %v7457, %v8144
      %v8147 = vunpack.c.l.s4 1983009808
      %v8148 = vunpack.c.0.s8 %v8147
      %v8149 = vlaneseq
      %v8150 = vshrl.u32 %v8149, 7
      %v8151 = vsub.s32 %v8148, %v8150
      %v8152 = vrot.slane %v8138, %v8151
      %v8153 = vcombine.low %v8130, %v8145
      %v8154 = vcombine.high %v8130, %v8145
      %v8156 = vunpack.c.l.s4 1934713408
      %v8157 = vunpack.c.0.s8 %v8156
      %v8158 = vlaneseq
      %v8159 = vshrl.u32 %v8158, 7
      %v8160 = vsub.s32 %v8157, %v8159
      %v8161 = vrot.slane %v8153, %v8160
      %v8163 = vunpack.c.l.s4 1934713408
      %v8164 = vunpack.c.0.s8 %v8163
      %v8165 = vlaneseq
      %v8166 = vshrl.u32 %v8165, 7
      %v8167 = vsub.s32 %v8164, %v8166
      %v8168 = vrot.slane %v8154, %v8167
      %v8169 = vcombine.low %v8137, %v8152
      %v8170 = vcombine.high %v8137, %v8152
      %v8172 = vunpack.c.l.s4 1934713408
      %v8173 = vunpack.c.0.s8 %v8172
      %v8174 = vlaneseq
      %v8175 = vshrl.u32 %v8174, 7
      %v8176 = vsub.s32 %v8173, %v8175
      %v8177 = vrot.slane %v8169, %v8176
      %v8179 = vunpack.c.l.s4 1934713408
      %v8180 = vunpack.c.0.s8 %v8179
      %v8181 = vlaneseq
      %v8182 = vshrl.u32 %v8181, 7
      %v8183 = vsub.s32 %v8180, %v8182
      %v8184 = vrot.slane %v8170, %v8183
      %v8185 = vcombine.high %v8161, 0
      %v8186 = vcombine.high %v8168, 0
      %v8187 = vcombine.high %v8177, 0
      %v8188 = vcombine.high %v8184, 0
      %v8189 = vcombine.high %v7453, %v1097
      %v8191 = vunpack.c.l.s4 1983009808
      %v8192 = vunpack.c.0.s8 %v8191
      %v8193 = vlaneseq
      %v8194 = vshrl.u32 %v8193, 7
      %v8195 = vsub.s32 %v8192, %v8194
      %v8196 = vrot.slane %v7453, %v8195
      %v8198 = vunpack.c.l.s4 1983009808
      %v8199 = vunpack.c.0.s8 %v8198
      %v8200 = vlaneseq
      %v8201 = vshrl.u32 %v8200, 7
      %v8202 = vsub.s32 %v8199, %v8201
      %v8203 = vrot.slane %v8189, %v8202
      %v8204 = vcombine.high %v7461, %v1097
      %v8206 = vunpack.c.l.s4 1983009808
      %v8207 = vunpack.c.0.s8 %v8206
      %v8208 = vlaneseq
      %v8209 = vshrl.u32 %v8208, 7
      %v8210 = vsub.s32 %v8207, %v8209
      %v8211 = vrot.slane %v7461, %v8210
      %v8213 = vunpack.c.l.s4 1983009808
      %v8214 = vunpack.c.0.s8 %v8213
      %v8215 = vlaneseq
      %v8216 = vshrl.u32 %v8215, 7
      %v8217 = vsub.s32 %v8214, %v8216
      %v8218 = vrot.slane %v8204, %v8217
      %v8219 = vcombine.low %v8196, %v8211
      %v8220 = vcombine.high %v8196, %v8211
      %v8222 = vunpack.c.l.s4 1934713408
      %v8223 = vunpack.c.0.s8 %v8222
      %v8224 = vlaneseq
      %v8225 = vshrl.u32 %v8224, 7
      %v8226 = vsub.s32 %v8223, %v8225
      %v8227 = vrot.slane %v8219, %v8226
      %v8229 = vunpack.c.l.s4 1934713408
      %v8230 = vunpack.c.0.s8 %v8229
      %v8231 = vlaneseq
      %v8232 = vshrl.u32 %v8231, 7
      %v8233 = vsub.s32 %v8230, %v8232
      %v8234 = vrot.slane %v8220, %v8233
      %v8235 = vcombine.low %v8203, %v8218
      %v8236 = vcombine.high %v8203, %v8218
      %v8238 = vunpack.c.l.s4 1934713408
      %v8239 = vunpack.c.0.s8 %v8238
      %v8240 = vlaneseq
      %v8241 = vshrl.u32 %v8240, 7
      %v8242 = vsub.s32 %v8239, %v8241
      %v8243 = vrot.slane %v8235, %v8242
      %v8245 = vunpack.c.l.s4 1934713408
      %v8246 = vunpack.c.0.s8 %v8245
      %v8247 = vlaneseq
      %v8248 = vshrl.u32 %v8247, 7
      %v8249 = vsub.s32 %v8246, %v8248
      %v8250 = vrot.slane %v8236, %v8249
      %v8251 = vcombine.high %v8227, 0
      %v8252 = vcombine.high %v8234, 0
      %v8253 = vcombine.high %v8243, 0
      %v8254 = vcombine.high %v8250, 0
      %v8255 = vcombine.low %v7501, %v7508
      %v8257 = vunpack.c.l.s4 1983009808
      %v8258 = vunpack.c.0.s8 %v8257
      %v8259 = vlaneseq
      %v8260 = vshrl.u32 %v8259, 7
      %v8261 = vsub.s32 %v8258, %v8260
      %v8262 = vrot.slane %v8255, %v8261
      %v8263 = vcombine.low %v7525, %v7526
      %v8265 = vunpack.c.l.s4 1983009808
      %v8266 = vunpack.c.0.s8 %v8265
      %v8267 = vlaneseq
      %v8268 = vshrl.u32 %v8267, 7
      %v8269 = vsub.s32 %v8266, %v8268
      %v8270 = vrot.slane %v8263, %v8269
      %v8271 = vcombine.low %v7517, %v7524
      %v8273 = vunpack.c.l.s4 1983009808
      %v8274 = vunpack.c.0.s8 %v8273
      %v8275 = vlaneseq
      %v8276 = vshrl.u32 %v8275, 7
      %v8277 = vsub.s32 %v8274, %v8276
      %v8278 = vrot.slane %v8271, %v8277
      %v8279 = vcombine.low %v7527, %v7528
      %v8281 = vunpack.c.l.s4 1983009808
      %v8282 = vunpack.c.0.s8 %v8281
      %v8283 = vlaneseq
      %v8284 = vshrl.u32 %v8283, 7
      %v8285 = vsub.s32 %v8282, %v8284
      %v8286 = vrot.slane %v8279, %v8285
      %v8287 = vcombine.low %v8262, %v8270
      %v8289 = vunpack.c.l.s4 1934713408
      %v8290 = vunpack.c.0.s8 %v8289
      %v8291 = vlaneseq
      %v8292 = vshrl.u32 %v8291, 7
      %v8293 = vsub.s32 %v8290, %v8292
      %v8294 = vrot.slane %v8287, %v8293
      %v8295 = vcombine.low %v8278, %v8286
      %v8297 = vunpack.c.l.s4 1934713408
      %v8298 = vunpack.c.0.s8 %v8297
      %v8299 = vlaneseq
      %v8300 = vshrl.u32 %v8299, 7
      %v8301 = vsub.s32 %v8298, %v8300
      %v8302 = vrot.slane %v8295, %v8301
      %v8303 = vcombine.low %v8294, %v8302
      %v8304 = vcombine.high %v8294, %v8302
      %v8305 = vcombine.low %v7567, %v7574
      %v8307 = vunpack.c.l.s4 1983009808
      %v8308 = vunpack.c.0.s8 %v8307
      %v8309 = vlaneseq
      %v8310 = vshrl.u32 %v8309, 7
      %v8311 = vsub.s32 %v8308, %v8310
      %v8312 = vrot.slane %v8305, %v8311
      %v8313 = vcombine.low %v7591, %v7592
      %v8315 = vunpack.c.l.s4 1983009808
      %v8316 = vunpack.c.0.s8 %v8315
      %v8317 = vlaneseq
      %v8318 = vshrl.u32 %v8317, 7
      %v8319 = vsub.s32 %v8316, %v8318
      %v8320 = vrot.slane %v8313, %v8319
      %v8321 = vcombine.low %v7583, %v7590
      %v8323 = vunpack.c.l.s4 1983009808
      %v8324 = vunpack.c.0.s8 %v8323
      %v8325 = vlaneseq
      %v8326 = vshrl.u32 %v8325, 7
      %v8327 = vsub.s32 %v8324, %v8326
      %v8328 = vrot.slane %v8321, %v8327
      %v8329 = vcombine.low %v7593, %v7594
      %v8331 = vunpack.c.l.s4 1983009808
      %v8332 = vunpack.c.0.s8 %v8331
      %v8333 = vlaneseq
      %v8334 = vshrl.u32 %v8333, 7
      %v8335 = vsub.s32 %v8332, %v8334
      %v8336 = vrot.slane %v8329, %v8335
      %v8337 = vcombine.low %v8312, %v8320
      %v8339 = vunpack.c.l.s4 1934713408
      %v8340 = vunpack.c.0.s8 %v8339
      %v8341 = vlaneseq
      %v8342 = vshrl.u32 %v8341, 7
      %v8343 = vsub.s32 %v8340, %v8342
      %v8344 = vrot.slane %v8337, %v8343
      %v8345 = vcombine.low %v8328, %v8336
      %v8347 = vunpack.c.l.s4 1934713408
      %v8348 = vunpack.c.0.s8 %v8347
      %v8349 = vlaneseq
      %v8350 = vshrl.u32 %v8349, 7
      %v8351 = vsub.s32 %v8348, %v8350
      %v8352 = vrot.slane %v8345, %v8351
      %v8353 = vcombine.low %v8344, %v8352
      %v8354 = vcombine.high %v8344, %v8352
      %v8355 = vcombine.low %v7633, %v7640
      %v8357 = vunpack.c.l.s4 1983009808
      %v8358 = vunpack.c.0.s8 %v8357
      %v8359 = vlaneseq
      %v8360 = vshrl.u32 %v8359, 7
      %v8361 = vsub.s32 %v8358, %v8360
      %v8362 = vrot.slane %v8355, %v8361
      %v8363 = vcombine.low %v7657, %v7658
      %v8365 = vunpack.c.l.s4 1983009808
      %v8366 = vunpack.c.0.s8 %v8365
      %v8367 = vlaneseq
      %v8368 = vshrl.u32 %v8367, 7
      %v8369 = vsub.s32 %v8366, %v8368
      %v8370 = vrot.slane %v8363, %v8369
      %v8371 = vcombine.low %v7649, %v7656
      %v8373 = vunpack.c.l.s4 1983009808
      %v8374 = vunpack.c.0.s8 %v8373
      %v8375 = vlaneseq
      %v8376 = vshrl.u32 %v8375, 7
      %v8377 = vsub.s32 %v8374, %v8376
      %v8378 = vrot.slane %v8371, %v8377
      %v8379 = vcombine.low %v7659, %v7660
      %v8381 = vunpack.c.l.s4 1983009808
      %v8382 = vunpack.c.0.s8 %v8381
      %v8383 = vlaneseq
      %v8384 = vshrl.u32 %v8383, 7
      %v8385 = vsub.s32 %v8382, %v8384
      %v8386 = vrot.slane %v8379, %v8385
      %v8387 = vcombine.low %v8362, %v8370
      %v8389 = vunpack.c.l.s4 1934713408
      %v8390 = vunpack.c.0.s8 %v8389
      %v8391 = vlaneseq
      %v8392 = vshrl.u32 %v8391, 7
      %v8393 = vsub.s32 %v8390, %v8392
      %v8394 = vrot.slane %v8387, %v8393
      %v8395 = vcombine.low %v8378, %v8386
      %v8397 = vunpack.c.l.s4 1934713408
      %v8398 = vunpack.c.0.s8 %v8397
      %v8399 = vlaneseq
      %v8400 = vshrl.u32 %v8399, 7
      %v8401 = vsub.s32 %v8398, %v8400
      %v8402 = vrot.slane %v8395, %v8401
      %v8403 = vcombine.low %v8394, %v8402
      %v8404 = vcombine.high %v8394, %v8402
      %v8405 = vcombine.low %v7699, %v7706
      %v8407 = vunpack.c.l.s4 1983009808
      %v8408 = vunpack.c.0.s8 %v8407
      %v8409 = vlaneseq
      %v8410 = vshrl.u32 %v8409, 7
      %v8411 = vsub.s32 %v8408, %v8410
      %v8412 = vrot.slane %v8405, %v8411
      %v8413 = vcombine.low %v7723, %v7724
      %v8415 = vunpack.c.l.s4 1983009808
      %v8416 = vunpack.c.0.s8 %v8415
      %v8417 = vlaneseq
      %v8418 = vshrl.u32 %v8417, 7
      %v8419 = vsub.s32 %v8416, %v8418
      %v8420 = vrot.slane %v8413, %v8419
      %v8421 = vcombine.low %v7715, %v7722
      %v8423 = vunpack.c.l.s4 1983009808
      %v8424 = vunpack.c.0.s8 %v8423
      %v8425 = vlaneseq
      %v8426 = vshrl.u32 %v8425, 7
      %v8427 = vsub.s32 %v8424, %v8426
      %v8428 = vrot.slane %v8421, %v8427
      %v8429 = vcombine.low %v7725, %v7726
      %v8431 = vunpack.c.l.s4 1983009808
      %v8432 = vunpack.c.0.s8 %v8431
      %v8433 = vlaneseq
      %v8434 = vshrl.u32 %v8433, 7
      %v8435 = vsub.s32 %v8432, %v8434
      %v8436 = vrot.slane %v8429, %v8435
      %v8437 = vcombine.low %v8412, %v8420
      %v8439 = vunpack.c.l.s4 1934713408
      %v8440 = vunpack.c.0.s8 %v8439
      %v8441 = vlaneseq
      %v8442 = vshrl.u32 %v8441, 7
      %v8443 = vsub.s32 %v8440, %v8442
      %v8444 = vrot.slane %v8437, %v8443
      %v8445 = vcombine.low %v8428, %v8436
      %v8447 = vunpack.c.l.s4 1934713408
      %v8448 = vunpack.c.0.s8 %v8447
      %v8449 = vlaneseq
      %v8450 = vshrl.u32 %v8449, 7
      %v8451 = vsub.s32 %v8448, %v8450
      %v8452 = vrot.slane %v8445, %v8451
      %v8453 = vcombine.low %v8444, %v8452
      %v8454 = vcombine.high %v8444, %v8452
      %v8455 = vcombine.low %v7765, %v7772
      %v8457 = vunpack.c.l.s4 1983009808
      %v8458 = vunpack.c.0.s8 %v8457
      %v8459 = vlaneseq
      %v8460 = vshrl.u32 %v8459, 7
      %v8461 = vsub.s32 %v8458, %v8460
      %v8462 = vrot.slane %v8455, %v8461
      %v8463 = vcombine.low %v7789, %v7790
      %v8465 = vunpack.c.l.s4 1983009808
      %v8466 = vunpack.c.0.s8 %v8465
      %v8467 = vlaneseq
      %v8468 = vshrl.u32 %v8467, 7
      %v8469 = vsub.s32 %v8466, %v8468
      %v8470 = vrot.slane %v8463, %v8469
      %v8471 = vcombine.low %v7781, %v7788
      %v8473 = vunpack.c.l.s4 1983009808
      %v8474 = vunpack.c.0.s8 %v8473
      %v8475 = vlaneseq
      %v8476 = vshrl.u32 %v8475, 7
      %v8477 = vsub.s32 %v8474, %v8476
      %v8478 = vrot.slane %v8471, %v8477
      %v8479 = vcombine.low %v7791, %v7792
      %v8481 = vunpack.c.l.s4 1983009808
      %v8482 = vunpack.c.0.s8 %v8481
      %v8483 = vlaneseq
      %v8484 = vshrl.u32 %v8483, 7
      %v8485 = vsub.s32 %v8482, %v8484
      %v8486 = vrot.slane %v8479, %v8485
      %v8487 = vcombine.low %v8462, %v8470
      %v8489 = vunpack.c.l.s4 1934713408
      %v8490 = vunpack.c.0.s8 %v8489
      %v8491 = vlaneseq
      %v8492 = vshrl.u32 %v8491, 7
      %v8493 = vsub.s32 %v8490, %v8492
      %v8494 = vrot.slane %v8487, %v8493
      %v8495 = vcombine.low %v8478, %v8486
      %v8497 = vunpack.c.l.s4 1934713408
      %v8498 = vunpack.c.0.s8 %v8497
      %v8499 = vlaneseq
      %v8500 = vshrl.u32 %v8499, 7
      %v8501 = vsub.s32 %v8498, %v8500
      %v8502 = vrot.slane %v8495, %v8501
      %v8503 = vcombine.low %v8494, %v8502
      %v8504 = vcombine.high %v8494, %v8502
      %v8505 = vcombine.low %v7831, %v7838
      %v8507 = vunpack.c.l.s4 1983009808
      %v8508 = vunpack.c.0.s8 %v8507
      %v8509 = vlaneseq
      %v8510 = vshrl.u32 %v8509, 7
      %v8511 = vsub.s32 %v8508, %v8510
      %v8512 = vrot.slane %v8505, %v8511
      %v8513 = vcombine.low %v7855, %v7856
      %v8515 = vunpack.c.l.s4 1983009808
      %v8516 = vunpack.c.0.s8 %v8515
      %v8517 = vlaneseq
      %v8518 = vshrl.u32 %v8517, 7
      %v8519 = vsub.s32 %v8516, %v8518
      %v8520 = vrot.slane %v8513, %v8519
      %v8521 = vcombine.low %v7847, %v7854
      %v8523 = vunpack.c.l.s4 1983009808
      %v8524 = vunpack.c.0.s8 %v8523
      %v8525 = vlaneseq
      %v8526 = vshrl.u32 %v8525, 7
      %v8527 = vsub.s32 %v8524, %v8526
      %v8528 = vrot.slane %v8521, %v8527
      %v8529 = vcombine.low %v7857, %v7858
      %v8531 = vunpack.c.l.s4 1983009808
      %v8532 = vunpack.c.0.s8 %v8531
      %v8533 = vlaneseq
      %v8534 = vshrl.u32 %v8533, 7
      %v8535 = vsub.s32 %v8532, %v8534
      %v8536 = vrot.slane %v8529, %v8535
      %v8537 = vcombine.low %v8512, %v8520
      %v8539 = vunpack.c.l.s4 1934713408
      %v8540 = vunpack.c.0.s8 %v8539
      %v8541 = vlaneseq
      %v8542 = vshrl.u32 %v8541, 7
      %v8543 = vsub.s32 %v8540, %v8542
      %v8544 = vrot.slane %v8537, %v8543
      %v8545 = vcombine.low %v8528, %v8536
      %v8547 = vunpack.c.l.s4 1934713408
      %v8548 = vunpack.c.0.s8 %v8547
      %v8549 = vlaneseq
      %v8550 = vshrl.u32 %v8549, 7
      %v8551 = vsub.s32 %v8548, %v8550
      %v8552 = vrot.slane %v8545, %v8551
      %v8553 = vcombine.low %v8544, %v8552
      %v8554 = vcombine.high %v8544, %v8552
      %v8555 = vcombine.low %v7897, %v7904
      %v8557 = vunpack.c.l.s4 1983009808
      %v8558 = vunpack.c.0.s8 %v8557
      %v8559 = vlaneseq
      %v8560 = vshrl.u32 %v8559, 7
      %v8561 = vsub.s32 %v8558, %v8560
      %v8562 = vrot.slane %v8555, %v8561
      %v8563 = vcombine.low %v7921, %v7922
      %v8565 = vunpack.c.l.s4 1983009808
      %v8566 = vunpack.c.0.s8 %v8565
      %v8567 = vlaneseq
      %v8568 = vshrl.u32 %v8567, 7
      %v8569 = vsub.s32 %v8566, %v8568
      %v8570 = vrot.slane %v8563, %v8569
      %v8571 = vcombine.low %v7913, %v7920
      %v8573 = vunpack.c.l.s4 1983009808
      %v8574 = vunpack.c.0.s8 %v8573
      %v8575 = vlaneseq
      %v8576 = vshrl.u32 %v8575, 7
      %v8577 = vsub.s32 %v8574, %v8576
      %v8578 = vrot.slane %v8571, %v8577
      %v8579 = vcombine.low %v7923, %v7924
      %v8581 = vunpack.c.l.s4 1983009808
      %v8582 = vunpack.c.0.s8 %v8581
      %v8583 = vlaneseq
      %v8584 = vshrl.u32 %v8583, 7
      %v8585 = vsub.s32 %v8582, %v8584
      %v8586 = vrot.slane %v8579, %v8585
      %v8587 = vcombine.low %v8562, %v8570
      %v8589 = vunpack.c.l.s4 1934713408
      %v8590 = vunpack.c.0.s8 %v8589
      %v8591 = vlaneseq
      %v8592 = vshrl.u32 %v8591, 7
      %v8593 = vsub.s32 %v8590, %v8592
      %v8594 = vrot.slane %v8587, %v8593
      %v8595 = vcombine.low %v8578, %v8586
      %v8597 = vunpack.c.l.s4 1934713408
      %v8598 = vunpack.c.0.s8 %v8597
      %v8599 = vlaneseq
      %v8600 = vshrl.u32 %v8599, 7
      %v8601 = vsub.s32 %v8598, %v8600
      %v8602 = vrot.slane %v8595, %v8601
      %v8603 = vcombine.low %v8594, %v8602
      %v8604 = vcombine.high %v8594, %v8602
      %v8605 = vcombine.low %v7963, %v7970
      %v8607 = vunpack.c.l.s4 1983009808
      %v8608 = vunpack.c.0.s8 %v8607
      %v8609 = vlaneseq
      %v8610 = vshrl.u32 %v8609, 7
      %v8611 = vsub.s32 %v8608, %v8610
      %v8612 = vrot.slane %v8605, %v8611
      %v8613 = vcombine.low %v7987, %v7988
      %v8615 = vunpack.c.l.s4 1983009808
      %v8616 = vunpack.c.0.s8 %v8615
      %v8617 = vlaneseq
      %v8618 = vshrl.u32 %v8617, 7
      %v8619 = vsub.s32 %v8616, %v8618
      %v8620 = vrot.slane %v8613, %v8619
      %v8621 = vcombine.low %v7979, %v7986
      %v8623 = vunpack.c.l.s4 1983009808
      %v8624 = vunpack.c.0.s8 %v8623
      %v8625 = vlaneseq
      %v8626 = vshrl.u32 %v8625, 7
      %v8627 = vsub.s32 %v8624, %v8626
      %v8628 = vrot.slane %v8621, %v8627
      %v8629 = vcombine.low %v7989, %v7990
      %v8631 = vunpack.c.l.s4 1983009808
      %v8632 = vunpack.c.0.s8 %v8631
      %v8633 = vlaneseq
      %v8634 = vshrl.u32 %v8633, 7
      %v8635 = vsub.s32 %v8632, %v8634
      %v8636 = vrot.slane %v8629, %v8635
      %v8637 = vcombine.low %v8612, %v8620
      %v8639 = vunpack.c.l.s4 1934713408
      %v8640 = vunpack.c.0.s8 %v8639
      %v8641 = vlaneseq
      %v8642 = vshrl.u32 %v8641, 7
      %v8643 = vsub.s32 %v8640, %v8642
      %v8644 = vrot.slane %v8637, %v8643
      %v8645 = vcombine.low %v8628, %v8636
      %v8647 = vunpack.c.l.s4 1934713408
      %v8648 = vunpack.c.0.s8 %v8647
      %v8649 = vlaneseq
      %v8650 = vshrl.u32 %v8649, 7
      %v8651 = vsub.s32 %v8648, %v8650
      %v8652 = vrot.slane %v8645, %v8651
      %v8653 = vcombine.low %v8644, %v8652
      %v8654 = vcombine.high %v8644, %v8652
      %v8655 = vcombine.low %v8029, %v8036
      %v8657 = vunpack.c.l.s4 1983009808
      %v8658 = vunpack.c.0.s8 %v8657
      %v8659 = vlaneseq
      %v8660 = vshrl.u32 %v8659, 7
      %v8661 = vsub.s32 %v8658, %v8660
      %v8662 = vrot.slane %v8655, %v8661
      %v8663 = vcombine.low %v8053, %v8054
      %v8665 = vunpack.c.l.s4 1983009808
      %v8666 = vunpack.c.0.s8 %v8665
      %v8667 = vlaneseq
      %v8668 = vshrl.u32 %v8667, 7
      %v8669 = vsub.s32 %v8666, %v8668
      %v8670 = vrot.slane %v8663, %v8669
      %v8671 = vcombine.low %v8045, %v8052
      %v8673 = vunpack.c.l.s4 1983009808
      %v8674 = vunpack.c.0.s8 %v8673
      %v8675 = vlaneseq
      %v8676 = vshrl.u32 %v8675, 7
      %v8677 = vsub.s32 %v8674, %v8676
      %v8678 = vrot.slane %v8671, %v8677
      %v8679 = vcombine.low %v8055, %v8056
      %v8681 = vunpack.c.l.s4 1983009808
      %v8682 = vunpack.c.0.s8 %v8681
      %v8683 = vlaneseq
      %v8684 = vshrl.u32 %v8683, 7
      %v8685 = vsub.s32 %v8682, %v8684
      %v8686 = vrot.slane %v8679, %v8685
      %v8687 = vcombine.low %v8662, %v8670
      %v8689 = vunpack.c.l.s4 1934713408
      %v8690 = vunpack.c.0.s8 %v8689
      %v8691 = vlaneseq
      %v8692 = vshrl.u32 %v8691, 7
      %v8693 = vsub.s32 %v8690, %v8692
      %v8694 = vrot.slane %v8687, %v8693
      %v8695 = vcombine.low %v8678, %v8686
      %v8697 = vunpack.c.l.s4 1934713408
      %v8698 = vunpack.c.0.s8 %v8697
      %v8699 = vlaneseq
      %v8700 = vshrl.u32 %v8699, 7
      %v8701 = vsub.s32 %v8698, %v8700
      %v8702 = vrot.slane %v8695, %v8701
      %v8703 = vcombine.low %v8694, %v8702
      %v8704 = vcombine.high %v8694, %v8702
      %v8705 = vcombine.low %v8095, %v8102
      %v8707 = vunpack.c.l.s4 1983009808
      %v8708 = vunpack.c.0.s8 %v8707
      %v8709 = vlaneseq
      %v8710 = vshrl.u32 %v8709, 7
      %v8711 = vsub.s32 %v8708, %v8710
      %v8712 = vrot.slane %v8705, %v8711
      %v8713 = vcombine.low %v8119, %v8120
      %v8715 = vunpack.c.l.s4 1983009808
      %v8716 = vunpack.c.0.s8 %v8715
      %v8717 = vlaneseq
      %v8718 = vshrl.u32 %v8717, 7
      %v8719 = vsub.s32 %v8716, %v8718
      %v8720 = vrot.slane %v8713, %v8719
      %v8721 = vcombine.low %v8111, %v8118
      %v8723 = vunpack.c.l.s4 1983009808
      %v8724 = vunpack.c.0.s8 %v8723
      %v8725 = vlaneseq
      %v8726 = vshrl.u32 %v8725, 7
      %v8727 = vsub.s32 %v8724, %v8726
      %v8728 = vrot.slane %v8721, %v8727
      %v8729 = vcombine.low %v8121, %v8122
      %v8731 = vunpack.c.l.s4 1983009808
      %v8732 = vunpack.c.0.s8 %v8731
      %v8733 = vlaneseq
      %v8734 = vshrl.u32 %v8733, 7
      %v8735 = vsub.s32 %v8732, %v8734
      %v8736 = vrot.slane %v8729, %v8735
      %v8737 = vcombine.low %v8712, %v8720
      %v8739 = vunpack.c.l.s4 1934713408
      %v8740 = vunpack.c.0.s8 %v8739
      %v8741 = vlaneseq
      %v8742 = vshrl.u32 %v8741, 7
      %v8743 = vsub.s32 %v8740, %v8742
      %v8744 = vrot.slane %v8737, %v8743
      %v8745 = vcombine.low %v8728, %v8736
      %v8747 = vunpack.c.l.s4 1934713408
      %v8748 = vunpack.c.0.s8 %v8747
      %v8749 = vlaneseq
      %v8750 = vshrl.u32 %v8749, 7
      %v8751 = vsub.s32 %v8748, %v8750
      %v8752 = vrot.slane %v8745, %v8751
      %v8753 = vcombine.low %v8744, %v8752
      %v8754 = vcombine.high %v8744, %v8752
      %v8755 = vcombine.low %v8161, %v8168
      %v8757 = vunpack.c.l.s4 1983009808
      %v8758 = vunpack.c.0.s8 %v8757
      %v8759 = vlaneseq
      %v8760 = vshrl.u32 %v8759, 7
      %v8761 = vsub.s32 %v8758, %v8760
      %v8762 = vrot.slane %v8755, %v8761
      %v8763 = vcombine.low %v8185, %v8186
      %v8765 = vunpack.c.l.s4 1983009808
      %v8766 = vunpack.c.0.s8 %v8765
      %v8767 = vlaneseq
      %v8768 = vshrl.u32 %v8767, 7
      %v8769 = vsub.s32 %v8766, %v8768
      %v8770 = vrot.slane %v8763, %v8769
      %v8771 = vcombine.low %v8177, %v8184
      %v8773 = vunpack.c.l.s4 1983009808
      %v8774 = vunpack.c.0.s8 %v8773
      %v8775 = vlaneseq
      %v8776 = vshrl.u32 %v8775, 7
      %v8777 = vsub.s32 %v8774, %v8776
      %v8778 = vrot.slane %v8771, %v8777
      %v8779 = vcombine.low %v8187, %v8188
      %v8781 = vunpack.c.l.s4 1983009808
      %v8782 = vunpack.c.0.s8 %v8781
      %v8783 = vlaneseq
      %v8784 = vshrl.u32 %v8783, 7
      %v8785 = vsub.s32 %v8782, %v8784
      %v8786 = vrot.slane %v8779, %v8785
      %v8787 = vcombine.low %v8762, %v8770
      %v8789 = vunpack.c.l.s4 1934713408
      %v8790 = vunpack.c.0.s8 %v8789
      %v8791 = vlaneseq
      %v8792 = vshrl.u32 %v8791, 7
      %v8793 = vsub.s32 %v8790, %v8792
      %v8794 = vrot.slane %v8787, %v8793
      %v8795 = vcombine.low %v8778, %v8786
      %v8797 = vunpack.c.l.s4 1934713408
      %v8798 = vunpack.c.0.s8 %v8797
      %v8799 = vlaneseq
      %v8800 = vshrl.u32 %v8799, 7
      %v8801 = vsub.s32 %v8798, %v8800
      %v8802 = vrot.slane %v8795, %v8801
      %v8803 = vcombine.low %v8794, %v8802
      %v8804 = vcombine.high %v8794, %v8802
      %v8805 = vcombine.low %v8227, %v8234
      %v8807 = vunpack.c.l.s4 1983009808
      %v8808 = vunpack.c.0.s8 %v8807
      %v8809 = vlaneseq
      %v8810 = vshrl.u32 %v8809, 7
      %v8811 = vsub.s32 %v8808, %v8810
      %v8812 = vrot.slane %v8805, %v8811
      %v8813 = vcombine.low %v8251, %v8252
      %v8815 = vunpack.c.l.s4 1983009808
      %v8816 = vunpack.c.0.s8 %v8815
      %v8817 = vlaneseq
      %v8818 = vshrl.u32 %v8817, 7
      %v8819 = vsub.s32 %v8816, %v8818
      %v8820 = vrot.slane %v8813, %v8819
      %v8821 = vcombine.low %v8243, %v8250
      %v8823 = vunpack.c.l.s4 1983009808
      %v8824 = vunpack.c.0.s8 %v8823
      %v8825 = vlaneseq
      %v8826 = vshrl.u32 %v8825, 7
      %v8827 = vsub.s32 %v8824, %v8826
      %v8828 = vrot.slane %v8821, %v8827
      %v8829 = vcombine.low %v8253, %v8254
      %v8831 = vunpack.c.l.s4 1983009808
      %v8832 = vunpack.c.0.s8 %v8831
      %v8833 = vlaneseq
      %v8834 = vshrl.u32 %v8833, 7
      %v8835 = vsub.s32 %v8832, %v8834
      %v8836 = vrot.slane %v8829, %v8835
      %v8837 = vcombine.low %v8812, %v8820
      %v8839 = vunpack.c.l.s4 1934713408
      %v8840 = vunpack.c.0.s8 %v8839
      %v8841 = vlaneseq
      %v8842 = vshrl.u32 %v8841, 7
      %v8843 = vsub.s32 %v8840, %v8842
      %v8844 = vrot.slane %v8837, %v8843
      %v8845 = vcombine.low %v8828, %v8836
      %v8847 = vunpack.c.l.s4 1934713408
      %v8848 = vunpack.c.0.s8 %v8847
      %v8849 = vlaneseq
      %v8850 = vshrl.u32 %v8849, 7
      %v8851 = vsub.s32 %v8848, %v8850
      %v8852 = vrot.slane %v8845, %v8851
      %v8853 = vcombine.low %v8844, %v8852
      %v8854 = vcombine.high %v8844, %v8852
      %v8857 = vpack.i.b16 %v8353, %v8303
      %v8858 = vshrl.u32 %v8303, 16
      %v8859 = vshrl.u32 %v8353, 16
      %v8860 = vpack.i.b16 %v8859, %v8858
      %v8863 = vpack.i.b16 %v8354, %v8304
      %v8864 = vshrl.u32 %v8304, 16
      %v8865 = vshrl.u32 %v8354, 16
      %v8866 = vpack.i.b16 %v8865, %v8864
      %v8869 = vpack.i.b16 %v8453, %v8403
      %v8870 = vshrl.u32 %v8403, 16
      %v8871 = vshrl.u32 %v8453, 16
      %v8872 = vpack.i.b16 %v8871, %v8870
      %v8875 = vpack.i.b16 %v8454, %v8404
      %v8876 = vshrl.u32 %v8404, 16
      %v8877 = vshrl.u32 %v8454, 16
      %v8878 = vpack.i.b16 %v8877, %v8876
      %v8881 = vpack.i.b16 %v8553, %v8503
      %v8882 = vshrl.u32 %v8503, 16
      %v8883 = vshrl.u32 %v8553, 16
      %v8884 = vpack.i.b16 %v8883, %v8882
      %v8887 = vpack.i.b16 %v8554, %v8504
      %v8888 = vshrl.u32 %v8504, 16
      %v8889 = vshrl.u32 %v8554, 16
      %v8890 = vpack.i.b16 %v8889, %v8888
      %v8893 = vpack.i.b16 %v8653, %v8603
      %v8894 = vshrl.u32 %v8603, 16
      %v8895 = vshrl.u32 %v8653, 16
      %v8896 = vpack.i.b16 %v8895, %v8894
      %v8899 = vpack.i.b16 %v8654, %v8604
      %v8900 = vshrl.u32 %v8604, 16
      %v8901 = vshrl.u32 %v8654, 16
      %v8902 = vpack.i.b16 %v8901, %v8900
      %v8905 = vpack.i.b16 %v8753, %v8703
      %v8906 = vshrl.u32 %v8703, 16
      %v8907 = vshrl.u32 %v8753, 16
      %v8908 = vpack.i.b16 %v8907, %v8906
      %v8911 = vpack.i.b16 %v8754, %v8704
      %v8912 = vshrl.u32 %v8704, 16
      %v8913 = vshrl.u32 %v8754, 16
      %v8914 = vpack.i.b16 %v8913, %v8912
      %v8917 = vpack.i.b16 %v8853, %v8803
      %v8918 = vshrl.u32 %v8803, 16
      %v8919 = vshrl.u32 %v8853, 16
      %v8920 = vpack.i.b16 %v8919, %v8918
      %v8923 = vpack.i.b16 %v8854, %v8804
      %v8924 = vshrl.u32 %v8804, 16
      %v8925 = vshrl.u32 %v8854, 16
      %v8926 = vpack.i.b16 %v8925, %v8924
      %8927 = vrot.lane.b32.xlu0 %v8860, 8
      %v8928 = vpop.permute.xlu0 %8927
      %8929 = vrot.lane.b32.xlu0 %v8872, 8
      %v8930 = vpop.permute.xlu0 %8929
      %8931 = vrot.lane.b32.xlu0 %v8884, 8
      %v8932 = vpop.permute.xlu0 %8931
      %8933 = vrot.lane.b32.xlu0 %v8896, 8
      %v8934 = vpop.permute.xlu0 %8933
      %8935 = vrot.lane.b32.xlu0 %v8908, 8
      %v8936 = vpop.permute.xlu0 %8935
      %8937 = vrot.lane.b32.xlu0 %v8920, 8
      %v8938 = vpop.permute.xlu0 %8937
      %8939 = vrot.lane.b32.xlu0 %v8863, 16
      %v8940 = vpop.permute.xlu0 %8939
      %8941 = vrot.lane.b32.xlu0 %v8875, 16
      %v8942 = vpop.permute.xlu0 %8941
      %8943 = vrot.lane.b32.xlu0 %v8887, 16
      %v8944 = vpop.permute.xlu0 %8943
      %8945 = vrot.lane.b32.xlu0 %v8899, 16
      %v8946 = vpop.permute.xlu0 %8945
      %8947 = vrot.lane.b32.xlu0 %v8911, 16
      %v8948 = vpop.permute.xlu0 %8947
      %8949 = vrot.lane.b32.xlu0 %v8923, 16
      %v8950 = vpop.permute.xlu0 %8949
      %8951 = vrot.lane.b32.xlu0 %v8866, 24
      %v8952 = vpop.permute.xlu0 %8951
      %8953 = vrot.lane.b32.xlu0 %v8878, 24
      %v8954 = vpop.permute.xlu0 %8953
      %8955 = vrot.lane.b32.xlu0 %v8890, 24
      %v8956 = vpop.permute.xlu0 %8955
      %8957 = vrot.lane.b32.xlu0 %v8902, 24
      %v8958 = vpop.permute.xlu0 %8957
      %8959 = vrot.lane.b32.xlu0 %v8914, 24
      %v8960 = vpop.permute.xlu0 %8959
      %8961 = vrot.lane.b32.xlu0 %v8926, 24
      %v8962 = vpop.permute.xlu0 %8961
      %v8965 = vsel %vm5925, %v8857, %v8928
      %v8968 = vsel %vm5925, %v8869, %v8930
      %v8971 = vsel %vm5925, %v8881, %v8932
      %v8974 = vsel %vm5925, %v8893, %v8934
      %v8977 = vsel %vm5925, %v8905, %v8936
      %v8980 = vsel %vm5925, %v8917, %v8938
      %vm8981 = vcmask 130048
      %v8983 = vsel %vm8981, %v8965, %v8940
      %v8985 = vsel %vm8981, %v8968, %v8942
      %v8987 = vsel %vm8981, %v8971, %v8944
      %v8989 = vsel %vm8981, %v8974, %v8946
      %v8991 = vsel %vm8981, %v8977, %v8948
      %v8993 = vsel %vm8981, %v8980, %v8950
      %vm8994 = vcmask 195584
      %v8996 = vsel %vm8994, %v8983, %v8952
      %v8998 = vsel %vm8994, %v8985, %v8954
      %v9000 = vsel %vm8994, %v8987, %v8956
      %v9002 = vsel %vm8994, %v8989, %v8958
      %v9004 = vsel %vm8994, %v8991, %v8960
      %v9006 = vsel %vm8994, %v8993, %v8962
      %v9007 = vld [vmem:[%s614] sm:$0xf]
      %v9008 = vld [vmem:[%s614 + $0x4] sm:$0xf]
      %v9009 = vld [vmem:[%s614 + $0x8] sm:$0xf]
      %v9010 = vld [vmem:[%s614 + $0xc] sm:$0xf]
      %v9015 = vunpack.c.l.b16 %v9007
      %v9016 = vunpack.c.l.b16 %v9008
      %v9017 = vunpack.c.l.b16 %v9009
      %v9018 = vunpack.c.l.b16 %v9010
      %v9019 = vpack.c.b16 %v9016, %v9015
      %v9020 = vpack.c.b16 %v9018, %v9017
      %v9023 = vsel %vm689, %v8996, 0
      %v9025 = vsel %vm689, %v8998, 0
      %v9027 = vsel %vm689, %v9000, 0
      %v9029 = vsel %vm689, %v9002, 0
      %v9031 = vsel %vm689, %v9004, 0
      %v9033 = vsel %vm689, %v9006, 0
      %9035 = vmatprep.subr.bf16.mxu0 0
      %9036 = vmatpush1.bf16.msra.mxu0 0
      %9037 = vmatprep.subr.bf16.mxu0 0
      %9038 = vmatpush1.bf16.msra.mxu0 0
      %9039 = vmatprep.subr.bf16.mxu0 0
      %9040 = vmatpush1.bf16.msra.mxu0 0
      %9041 = vmatprep.subr.bf16.mxu0 0
      %9042 = vmatpush1.bf16.msra.mxu0 0
      %9043 = vmatprep.subr.bf16.mxu0 0
      %9044 = vmatpush1.bf16.msra.mxu0 0
      %9045 = vmatprep.subr.bf16.mxu0 0
      %9046 = vmatpush1.bf16.msra.mxu0 0
      %9047 = vmatprep.subr.bf16.mxu0 0
      %9048 = vmatpush1.bf16.msra.mxu0 %v9020
      %9049 = vmatprep.subr.bf16.mxu0 0
      %9050 = vmatpush1.bf16.msra.mxu0 %v9019
      %9051 = vmatprep.subr.bf16.mxu0 0
      %9052 = vmatpush2.bf16.msra.mxu0 0
      %9053 = vmatprep.subr.bf16.mxu0 0
      %9054 = vmatpush2.bf16.msra.mxu0 0
      %9055 = vmatprep.subr.bf16.mxu0 0
      %9056 = vmatpush2.bf16.msra.mxu0 0
      %9057 = vmatprep.subr.bf16.mxu0 0
      %9058 = vmatpush2.bf16.msra.mxu0 0
      %9059 = vmatprep.subr.bf16.mxu0 0
      %9060 = vmatpush2.bf16.msra.mxu0 0
      %9061 = vmatprep.subr.bf16.mxu0 0
      %9062 = vmatpush2.bf16.msra.mxu0 0
      %9063 = vmatprep.subr.bf16.mxu0 0
      %9064 = vmatpush2.bf16.msra.mxu0 0
      %9065 = vmatprep.subr.bf16.mxu0 0
      %9066 = vmatpush2.bf16.msra.mxu0 0
      %9067 = vmatprep.mubr.bf16.mxu0 0
      %9068 = vmatmul.mubr.bf16.gmra.mxu0 %v9023
      %v9069 = vpop.f32.mrf.mxu0
      %v9070 = vadd.f32 0.0, %v9069
      %v9071 = vpop.f32.mrf.mxu0
      %v9072 = vpop.f32.mrf.mxu0
      %v9073 = vadd.f32 0.0, %v9072
      %v9074 = vpop.f32.mrf.mxu0
      %9075 = vmatprep.mubr.bf16.mxu0 0
      %9076 = vmatmul.mubr.bf16.gmra.mxu0 %v9025
      %v9077 = vpop.f32.mrf.mxu0
      %v9078 = vadd.f32 0.0, %v9077
      %v9079 = vpop.f32.mrf.mxu0
      %v9080 = vpop.f32.mrf.mxu0
      %v9081 = vadd.f32 0.0, %v9080
      %v9082 = vpop.f32.mrf.mxu0
      %9083 = vmatprep.mubr.bf16.mxu0 0
      %9084 = vmatmul.mubr.bf16.gmra.mxu0 %v9027
      %v9085 = vpop.f32.mrf.mxu0
      %v9086 = vadd.f32 0.0, %v9085
      %v9087 = vpop.f32.mrf.mxu0
      %v9088 = vpop.f32.mrf.mxu0
      %v9089 = vadd.f32 0.0, %v9088
      %v9090 = vpop.f32.mrf.mxu0
      %9091 = vmatprep.mubr.bf16.mxu0 0
      %9092 = vmatmul.mubr.bf16.gmra.mxu0 %v9029
      %v9093 = vpop.f32.mrf.mxu0
      %v9094 = vadd.f32 0.0, %v9093
      %v9095 = vpop.f32.mrf.mxu0
      %v9096 = vpop.f32.mrf.mxu0
      %v9097 = vadd.f32 0.0, %v9096
      %v9098 = vpop.f32.mrf.mxu0
      %9099 = vmatprep.mubr.bf16.mxu0 0
      %9100 = vmatmul.mubr.bf16.gmra.mxu0 %v9031
      %v9101 = vpop.f32.mrf.mxu0
      %v9102 = vadd.f32 0.0, %v9101
      %v9103 = vpop.f32.mrf.mxu0
      %v9104 = vpop.f32.mrf.mxu0
      %v9105 = vadd.f32 0.0, %v9104
      %v9106 = vpop.f32.mrf.mxu0
      %9107 = vmatprep.mubr.bf16.mxu0 0
      %9108 = vmatmul.mubr.bf16.gmra.mxu0 %v9033
      %v9109 = vpop.f32.mrf.mxu0
      %v9110 = vadd.f32 0.0, %v9109
      %v9111 = vpop.f32.mrf.mxu0
      %v9112 = vpop.f32.mrf.mxu0
      %v9113 = vadd.f32 0.0, %v9112
      %v9114 = vpop.f32.mrf.mxu0
      %9115 = vdwg.mxu0
      %v9116 = vadd.f32 %v675, %v9070
      %v9117 = vadd.f32 %v676, %v9073
      %v9118 = vadd.f32 %v677, %v9078
      %v9119 = vadd.f32 %v678, %v9081
      %v9120 = vadd.f32 %v679, %v9086
      %v9121 = vadd.f32 %v680, %v9089
      %v9122 = vadd.f32 %v681, %v9094
      %v9123 = vadd.f32 %v682, %v9097
      %v9124 = vadd.f32 %v683, %v9102
      %v9125 = vadd.f32 %v684, %v9105
      %v9126 = vadd.f32 %v685, %v9110
      %v9127 = vadd.f32 %v686, %v9113
      %v9128 = vld [vmem:[%s617] sm:$0x1]
      %v9130 = vlaneseq
      %v9131 = vshrl.u32 %v9130, 7
      %v9132 = vsub.s32 0, %v9131
      %v9133 = vrot.slane %v9128, %v9132
      %v9135 = vadd.f32 %v9116, %v9133
      %v9136 = vadd.f32 %v9117, %v9133
      %v9137 = vadd.f32 %v9118, %v9133
      %v9138 = vadd.f32 %v9119, %v9133
      %v9139 = vadd.f32 %v9120, %v9133
      %v9140 = vadd.f32 %v9121, %v9133
      %v9141 = vadd.f32 %v9122, %v9133
      %v9142 = vadd.f32 %v9123, %v9133
      %v9143 = vadd.f32 %v9124, %v9133
      %v9144 = vadd.f32 %v9125, %v9133
      %v9145 = vadd.f32 %v9126, %v9133
      %v9146 = vadd.f32 %v9127, %v9133
      %v9147 = vld [vmem:[%s620] sm:$0x1]
      %v9148 = vld [vmem:[%s623] sm:$0x1]
      %v9149 = vsel %vm689, %v9135, 0.0
      %9150 = vadd.xlane.f32.xlu0 %v9149
      %v9151 = vpop.xlane.xlu0 %9150
      %v9152 = vsel %vm689, %v9136, 0.0
      %9153 = vadd.xlane.f32.xlu0 %v9152
      %v9154 = vpop.xlane.xlu0 %9153
      %v9155 = vsel %vm689, %v9137, 0.0
      %9156 = vadd.xlane.f32.xlu0 %v9155
      %v9157 = vpop.xlane.xlu0 %9156
      %v9158 = vsel %vm689, %v9138, 0.0
      %9159 = vadd.xlane.f32.xlu0 %v9158
      %v9160 = vpop.xlane.xlu0 %9159
      %v9161 = vsel %vm689, %v9139, 0.0
      %9162 = vadd.xlane.f32.xlu0 %v9161
      %v9163 = vpop.xlane.xlu0 %9162
      %v9164 = vsel %vm689, %v9140, 0.0
      %9165 = vadd.xlane.f32.xlu0 %v9164
      %v9166 = vpop.xlane.xlu0 %9165
      %v9167 = vsel %vm689, %v9141, 0.0
      %9168 = vadd.xlane.f32.xlu0 %v9167
      %v9169 = vpop.xlane.xlu0 %9168
      %v9170 = vsel %vm689, %v9142, 0.0
      %9171 = vadd.xlane.f32.xlu0 %v9170
      %v9172 = vpop.xlane.xlu0 %9171
      %v9173 = vsel %vm689, %v9143, 0.0
      %9174 = vadd.xlane.f32.xlu0 %v9173
      %v9175 = vpop.xlane.xlu0 %9174
      %v9176 = vsel %vm689, %v9144, 0.0
      %9177 = vadd.xlane.f32.xlu0 %v9176
      %v9178 = vpop.xlane.xlu0 %9177
      %v9179 = vsel %vm689, %v9145, 0.0
      %9180 = vadd.xlane.f32.xlu0 %v9179
      %v9181 = vpop.xlane.xlu0 %9180
      %v9182 = vsel %vm689, %v9146, 0.0
      %9183 = vadd.xlane.f32.xlu0 %v9182
      %v9184 = vpop.xlane.xlu0 %9183
      %v9185 = vmul.f32 %v9151, %v726
      %v9186 = vmul.f32 %v9154, %v726
      %v9187 = vmul.f32 %v9157, %v726
      %v9188 = vmul.f32 %v9160, %v726
      %v9189 = vmul.f32 %v9163, %v726
      %v9190 = vmul.f32 %v9166, %v726
      %v9191 = vmul.f32 %v9169, %v726
      %v9192 = vmul.f32 %v9172, %v726
      %v9193 = vmul.f32 %v9175, %v726
      %v9194 = vmul.f32 %v9178, %v726
      %v9195 = vmul.f32 %v9181, %v726
      %v9196 = vmul.f32 %v9184, %v726
      %v9197 = vsub.f32 %v9135, %v9185
      %v9198 = vsub.f32 %v9136, %v9186
      %v9199 = vsub.f32 %v9137, %v9187
      %v9200 = vsub.f32 %v9138, %v9188
      %v9201 = vsub.f32 %v9139, %v9189
      %v9202 = vsub.f32 %v9140, %v9190
      %v9203 = vsub.f32 %v9141, %v9191
      %v9204 = vsub.f32 %v9142, %v9192
      %v9205 = vsub.f32 %v9143, %v9193
      %v9206 = vsub.f32 %v9144, %v9194
      %v9207 = vsub.f32 %v9145, %v9195
      %v9208 = vsub.f32 %v9146, %v9196
      %v9209 = vmul.f32 %v9197, %v9197
      %v9210 = vmul.f32 %v9198, %v9198
      %v9211 = vmul.f32 %v9199, %v9199
      %v9212 = vmul.f32 %v9200, %v9200
      %v9213 = vmul.f32 %v9201, %v9201
      %v9214 = vmul.f32 %v9202, %v9202
      %v9215 = vmul.f32 %v9203, %v9203
      %v9216 = vmul.f32 %v9204, %v9204
      %v9217 = vmul.f32 %v9205, %v9205
      %v9218 = vmul.f32 %v9206, %v9206
      %v9219 = vmul.f32 %v9207, %v9207
      %v9220 = vmul.f32 %v9208, %v9208
      %v9221 = vsel %vm689, %v9209, 0.0
      %9222 = vadd.xlane.f32.xlu0 %v9221
      %v9223 = vpop.xlane.xlu0 %9222
      %v9224 = vsel %vm689, %v9210, 0.0
      %9225 = vadd.xlane.f32.xlu0 %v9224
      %v9226 = vpop.xlane.xlu0 %9225
      %v9227 = vsel %vm689, %v9211, 0.0
      %9228 = vadd.xlane.f32.xlu0 %v9227
      %v9229 = vpop.xlane.xlu0 %9228
      %v9230 = vsel %vm689, %v9212, 0.0
      %9231 = vadd.xlane.f32.xlu0 %v9230
      %v9232 = vpop.xlane.xlu0 %9231
      %v9233 = vsel %vm689, %v9213, 0.0
      %9234 = vadd.xlane.f32.xlu0 %v9233
      %v9235 = vpop.xlane.xlu0 %9234
      %v9236 = vsel %vm689, %v9214, 0.0
      %9237 = vadd.xlane.f32.xlu0 %v9236
      %v9238 = vpop.xlane.xlu0 %9237
      %v9239 = vsel %vm689, %v9215, 0.0
      %9240 = vadd.xlane.f32.xlu0 %v9239
      %v9241 = vpop.xlane.xlu0 %9240
      %v9242 = vsel %vm689, %v9216, 0.0
      %9243 = vadd.xlane.f32.xlu0 %v9242
      %v9244 = vpop.xlane.xlu0 %9243
      %v9245 = vsel %vm689, %v9217, 0.0
      %9246 = vadd.xlane.f32.xlu0 %v9245
      %v9247 = vpop.xlane.xlu0 %9246
      %v9248 = vsel %vm689, %v9218, 0.0
      %9249 = vadd.xlane.f32.xlu0 %v9248
      %v9250 = vpop.xlane.xlu0 %9249
      %v9251 = vsel %vm689, %v9219, 0.0
      %9252 = vadd.xlane.f32.xlu0 %v9251
      %v9253 = vpop.xlane.xlu0 %9252
      %v9254 = vsel %vm689, %v9220, 0.0
      %9255 = vadd.xlane.f32.xlu0 %v9254
      %v9256 = vpop.xlane.xlu0 %9255
      %v9257 = vmul.f32 %v9223, %v726
      %v9258 = vmul.f32 %v9226, %v726
      %v9259 = vmul.f32 %v9229, %v726
      %v9260 = vmul.f32 %v9232, %v726
      %v9261 = vmul.f32 %v9235, %v726
      %v9262 = vmul.f32 %v9238, %v726
      %v9263 = vmul.f32 %v9241, %v726
      %v9264 = vmul.f32 %v9244, %v726
      %v9265 = vmul.f32 %v9247, %v726
      %v9266 = vmul.f32 %v9250, %v726
      %v9267 = vmul.f32 %v9253, %v726
      %v9268 = vmul.f32 %v9256, %v726
      %v9269 = vadd.f32 %v9257, 1e-06
      %v9270 = vadd.f32 %v9258, 1e-06
      %v9271 = vadd.f32 %v9259, 1e-06
      %v9272 = vadd.f32 %v9260, 1e-06
      %v9273 = vadd.f32 %v9261, 1e-06
      %v9274 = vadd.f32 %v9262, 1e-06
      %v9275 = vadd.f32 %v9263, 1e-06
      %v9276 = vadd.f32 %v9264, 1e-06
      %v9277 = vadd.f32 %v9265, 1e-06
      %v9278 = vadd.f32 %v9266, 1e-06
      %v9279 = vadd.f32 %v9267, 1e-06
      %v9280 = vadd.f32 %v9268, 1e-06
      %v9281 = vrsqrt.pop %v9269
      %v9282 = vrsqrt.pop %v9270
      %v9283 = vrsqrt.pop %v9271
      %v9284 = vrsqrt.pop %v9272
      %v9285 = vrsqrt.pop %v9273
      %v9286 = vrsqrt.pop %v9274
      %v9287 = vrsqrt.pop %v9275
      %v9288 = vrsqrt.pop %v9276
      %v9289 = vrsqrt.pop %v9277
      %v9290 = vrsqrt.pop %v9278
      %v9291 = vrsqrt.pop %v9279
      %v9292 = vrsqrt.pop %v9280
      %v9293 = vmul.f32 %v9197, %v9281
      %v9294 = vmul.f32 %v9198, %v9282
      %v9295 = vmul.f32 %v9199, %v9283
      %v9296 = vmul.f32 %v9200, %v9284
      %v9297 = vmul.f32 %v9201, %v9285
      %v9298 = vmul.f32 %v9202, %v9286
      %v9299 = vmul.f32 %v9203, %v9287
      %v9300 = vmul.f32 %v9204, %v9288
      %v9301 = vmul.f32 %v9205, %v9289
      %v9302 = vmul.f32 %v9206, %v9290
      %v9303 = vmul.f32 %v9207, %v9291
      %v9304 = vmul.f32 %v9208, %v9292
      %v9306 = vlaneseq
      %v9307 = vshrl.u32 %v9306, 7
      %v9308 = vsub.s32 0, %v9307
      %v9309 = vrot.slane %v9147, %v9308
      %v9311 = vmul.f32 %v9293, %v9309
      %v9312 = vmul.f32 %v9294, %v9309
      %v9313 = vmul.f32 %v9295, %v9309
      %v9314 = vmul.f32 %v9296, %v9309
      %v9315 = vmul.f32 %v9297, %v9309
      %v9316 = vmul.f32 %v9298, %v9309
      %v9317 = vmul.f32 %v9299, %v9309
      %v9318 = vmul.f32 %v9300, %v9309
      %v9319 = vmul.f32 %v9301, %v9309
      %v9320 = vmul.f32 %v9302, %v9309
      %v9321 = vmul.f32 %v9303, %v9309
      %v9322 = vmul.f32 %v9304, %v9309
      %v9324 = vlaneseq
      %v9325 = vshrl.u32 %v9324, 7
      %v9326 = vsub.s32 0, %v9325
      %v9327 = vrot.slane %v9148, %v9326
      %v9329 = vadd.f32 %v9311, %v9327
      %v9330 = vadd.f32 %v9312, %v9327
      %v9331 = vadd.f32 %v9313, %v9327
      %v9332 = vadd.f32 %v9314, %v9327
      %v9333 = vadd.f32 %v9315, %v9327
      %v9334 = vadd.f32 %v9316, %v9327
      %v9335 = vadd.f32 %v9317, %v9327
      %v9336 = vadd.f32 %v9318, %v9327
      %v9337 = vadd.f32 %v9319, %v9327
      %v9338 = vadd.f32 %v9320, %v9327
      %v9339 = vadd.f32 %v9321, %v9327
      %v9340 = vadd.f32 %v9322, %v9327
      %v9341 = vpack.c.bf16 %v9330, %v9329
      %v9342 = vpack.c.bf16 %v9332, %v9331
      %v9343 = vpack.c.bf16 %v9334, %v9333
      %v9344 = vpack.c.bf16 %v9336, %v9335
      %v9345 = vpack.c.bf16 %v9338, %v9337
      %v9346 = vpack.c.bf16 %v9340, %v9339
      %v9347 = vld [vmem:[%s628] sm:$0xf]
      %v9348 = vld [vmem:[%s628 + $0x4] sm:$0xf]
      %v9349 = vld [vmem:[%s628 + $0x8] sm:$0xf]
      %v9350 = vld [vmem:[%s628 + $0xc] sm:$0xf]
      %v9351 = vld [vmem:[%s631] sm:$0x1]
      %v9353 = vlaneseq
      %v9354 = vshrl.u32 %v9353, 7
      %v9355 = vsub.s32 0, %v9354
      %v9356 = vrot.slane %v9351, %v9355
      %v9362 = vunpack.c.l.b16 %v9347
      %v9363 = vunpack.c.l.b16 %v9348
      %v9364 = vunpack.c.l.b16 %v9349
      %v9365 = vunpack.c.l.b16 %v9350
      %v9366 = vpack.c.b16 %v9363, %v9362
      %v9367 = vpack.c.b16 %v9365, %v9364
      %v9371 = vsel %vm689, %v9341, 0
      %v9374 = vsel %vm689, %v9342, 0
      %v9377 = vsel %vm689, %v9343, 0
      %v9380 = vsel %vm689, %v9344, 0
      %v9383 = vsel %vm689, %v9345, 0
      %v9386 = vsel %vm689, %v9346, 0
      %9388 = vmatprep.subr.bf16.mxu0 0
      %9389 = vmatpush1.bf16.msra.mxu0 0
      %9390 = vmatprep.subr.bf16.mxu0 0
      %9391 = vmatpush1.bf16.msra.mxu0 0
      %9392 = vmatprep.subr.bf16.mxu0 0
      %9393 = vmatpush1.bf16.msra.mxu0 0
      %9394 = vmatprep.subr.bf16.mxu0 0
      %9395 = vmatpush1.bf16.msra.mxu0 0
      %9396 = vmatprep.subr.bf16.mxu0 0
      %9397 = vmatpush1.bf16.msra.mxu0 0
      %9398 = vmatprep.subr.bf16.mxu0 0
      %9399 = vmatpush1.bf16.msra.mxu0 0
      %9400 = vmatprep.subr.bf16.mxu0 0
      %9401 = vmatpush1.bf16.msra.mxu0 %v9367
      %9402 = vmatprep.subr.bf16.mxu0 0
      %9403 = vmatpush1.bf16.msra.mxu0 %v9366
      %9404 = vmatprep.subr.bf16.mxu0 0
      %9405 = vmatpush2.bf16.msra.mxu0 0
      %9406 = vmatprep.subr.bf16.mxu0 0
      %9407 = vmatpush2.bf16.msra.mxu0 0
      %9408 = vmatprep.subr.bf16.mxu0 0
      %9409 = vmatpush2.bf16.msra.mxu0 0
      %9410 = vmatprep.subr.bf16.mxu0 0
      %9411 = vmatpush2.bf16.msra.mxu0 0
      %9412 = vmatprep.subr.bf16.mxu0 0
      %9413 = vmatpush2.bf16.msra.mxu0 0
      %9414 = vmatprep.subr.bf16.mxu0 0
      %9415 = vmatpush2.bf16.msra.mxu0 0
      %9416 = vmatprep.subr.bf16.mxu0 0
      %9417 = vmatpush2.bf16.msra.mxu0 0
      %9418 = vmatprep.subr.bf16.mxu0 0
      %9419 = vmatpush2.bf16.msra.mxu0 0
      %9420 = vmatprep.mubr.bf16.mxu0 0
      %9421 = vmatmul.mubr.bf16.gmra.mxu0 %v9371
      %v9422 = vpop.f32.mrf.mxu0
      %v9423 = vadd.f32 %v9356, %v9422
      %v9424 = vpop.f32.mrf.mxu0
      %v9425 = vpop.f32.mrf.mxu0
      %v9426 = vadd.f32 %v9356, %v9425
      %v9427 = vpop.f32.mrf.mxu0
      %9428 = vmatprep.mubr.bf16.mxu0 0
      %9429 = vmatmul.mubr.bf16.gmra.mxu0 %v9374
      %v9430 = vpop.f32.mrf.mxu0
      %v9431 = vadd.f32 %v9356, %v9430
      %v9432 = vpop.f32.mrf.mxu0
      %v9433 = vpop.f32.mrf.mxu0
      %v9434 = vadd.f32 %v9356, %v9433
      %v9435 = vpop.f32.mrf.mxu0
      %9436 = vmatprep.mubr.bf16.mxu0 0
      %9437 = vmatmul.mubr.bf16.gmra.mxu0 %v9377
      %v9438 = vpop.f32.mrf.mxu0
      %v9439 = vadd.f32 %v9356, %v9438
      %v9440 = vpop.f32.mrf.mxu0
      %v9441 = vpop.f32.mrf.mxu0
      %v9442 = vadd.f32 %v9356, %v9441
      %v9443 = vpop.f32.mrf.mxu0
      %9444 = vmatprep.mubr.bf16.mxu0 0
      %9445 = vmatmul.mubr.bf16.gmra.mxu0 %v9380
      %v9446 = vpop.f32.mrf.mxu0
      %v9447 = vadd.f32 %v9356, %v9446
      %v9448 = vpop.f32.mrf.mxu0
      %v9449 = vpop.f32.mrf.mxu0
      %v9450 = vadd.f32 %v9356, %v9449
      %v9451 = vpop.f32.mrf.mxu0
      %9452 = vmatprep.mubr.bf16.mxu0 0
      %9453 = vmatmul.mubr.bf16.gmra.mxu0 %v9383
      %v9454 = vpop.f32.mrf.mxu0
      %v9455 = vadd.f32 %v9356, %v9454
      %v9456 = vpop.f32.mrf.mxu0
      %v9457 = vpop.f32.mrf.mxu0
      %v9458 = vadd.f32 %v9356, %v9457
      %v9459 = vpop.f32.mrf.mxu0
      %9460 = vmatprep.mubr.bf16.mxu0 0
      %9461 = vmatmul.mubr.bf16.gmra.mxu0 %v9386
      %v9462 = vpop.f32.mrf.mxu0
      %v9463 = vadd.f32 %v9356, %v9462
      %v9464 = vpop.f32.mrf.mxu0
      %v9465 = vpop.f32.mrf.mxu0
      %v9466 = vadd.f32 %v9356, %v9465
      %v9467 = vpop.f32.mrf.mxu0
      %9468 = vdwg.mxu0
      %v9469 = vmul.f32 %v9423, %v9423
      %v9470 = vmul.f32 %v9426, %v9426
      %v9471 = vmul.f32 %v9431, %v9431
      %v9472 = vmul.f32 %v9434, %v9434
      %v9473 = vmul.f32 %v9439, %v9439
      %v9474 = vmul.f32 %v9442, %v9442
      %v9475 = vmul.f32 %v9447, %v9447
      %v9476 = vmul.f32 %v9450, %v9450
      %v9477 = vmul.f32 %v9455, %v9455
      %v9478 = vmul.f32 %v9458, %v9458
      %v9479 = vmul.f32 %v9463, %v9463
      %v9480 = vmul.f32 %v9466, %v9466
      %v9481 = vmul.f32 %v9423, %v9469
      %v9482 = vmul.f32 %v9426, %v9470
      %v9483 = vmul.f32 %v9431, %v9471
      %v9484 = vmul.f32 %v9434, %v9472
      %v9485 = vmul.f32 %v9439, %v9473
      %v9486 = vmul.f32 %v9442, %v9474
      %v9487 = vmul.f32 %v9447, %v9475
      %v9488 = vmul.f32 %v9450, %v9476
      %v9489 = vmul.f32 %v9455, %v9477
      %v9490 = vmul.f32 %v9458, %v9478
      %v9491 = vmul.f32 %v9463, %v9479
      %v9492 = vmul.f32 %v9466, %v9480
      %v9493 = vmul.f32 %v9481, 0.044715
      %v9494 = vmul.f32 %v9482, 0.044715
      %v9495 = vmul.f32 %v9483, 0.044715
      %v9496 = vmul.f32 %v9484, 0.044715
      %v9497 = vmul.f32 %v9485, 0.044715
      %v9498 = vmul.f32 %v9486, 0.044715
      %v9499 = vmul.f32 %v9487, 0.044715
      %v9500 = vmul.f32 %v9488, 0.044715
      %v9501 = vmul.f32 %v9489, 0.044715
      %v9502 = vmul.f32 %v9490, 0.044715
      %v9503 = vmul.f32 %v9491, 0.044715
      %v9504 = vmul.f32 %v9492, 0.044715
      %v9505 = vadd.f32 %v9423, %v9493
      %v9506 = vadd.f32 %v9426, %v9494
      %v9507 = vadd.f32 %v9431, %v9495
      %v9508 = vadd.f32 %v9434, %v9496
      %v9509 = vadd.f32 %v9439, %v9497
      %v9510 = vadd.f32 %v9442, %v9498
      %v9511 = vadd.f32 %v9447, %v9499
      %v9512 = vadd.f32 %v9450, %v9500
      %v9513 = vadd.f32 %v9455, %v9501
      %v9514 = vadd.f32 %v9458, %v9502
      %v9515 = vadd.f32 %v9463, %v9503
      %v9516 = vadd.f32 %v9466, %v9504
      %v9517 = vmul.f32 %v9505, 0.7978846
      %v9518 = vmul.f32 %v9506, 0.7978846
      %v9519 = vmul.f32 %v9507, 0.7978846
      %v9520 = vmul.f32 %v9508, 0.7978846
      %v9521 = vmul.f32 %v9509, 0.7978846
      %v9522 = vmul.f32 %v9510, 0.7978846
      %v9523 = vmul.f32 %v9511, 0.7978846
      %v9524 = vmul.f32 %v9512, 0.7978846
      %v9525 = vmul.f32 %v9513, 0.7978846
      %v9526 = vmul.f32 %v9514, 0.7978846
      %v9527 = vmul.f32 %v9515, 0.7978846
      %v9528 = vmul.f32 %v9516, 0.7978846
      %v9529 = vtanh.pop %v9517
      %v9530 = vtanh.pop %v9518
      %v9531 = vtanh.pop %v9519
      %v9532 = vtanh.pop %v9520
      %v9533 = vtanh.pop %v9521
      %v9534 = vtanh.pop %v9522
      %v9535 = vtanh.pop %v9523
      %v9536 = vtanh.pop %v9524
      %v9537 = vtanh.pop %v9525
      %v9538 = vtanh.pop %v9526
      %v9539 = vtanh.pop %v9527
      %v9540 = vtanh.pop %v9528
      %v9541 = vadd.f32 %v9529, 1.0
      %v9542 = vadd.f32 %v9530, 1.0
      %v9543 = vadd.f32 %v9531, 1.0
      %v9544 = vadd.f32 %v9532, 1.0
      %v9545 = vadd.f32 %v9533, 1.0
      %v9546 = vadd.f32 %v9534, 1.0
      %v9547 = vadd.f32 %v9535, 1.0
      %v9548 = vadd.f32 %v9536, 1.0
      %v9549 = vadd.f32 %v9537, 1.0
      %v9550 = vadd.f32 %v9538, 1.0
      %v9551 = vadd.f32 %v9539, 1.0
      %v9552 = vadd.f32 %v9540, 1.0
      %v9553 = vmul.f32 %v9541, 0.5
      %v9554 = vmul.f32 %v9542, 0.5
      %v9555 = vmul.f32 %v9543, 0.5
      %v9556 = vmul.f32 %v9544, 0.5
      %v9557 = vmul.f32 %v9545, 0.5
      %v9558 = vmul.f32 %v9546, 0.5
      %v9559 = vmul.f32 %v9547, 0.5
      %v9560 = vmul.f32 %v9548, 0.5
      %v9561 = vmul.f32 %v9549, 0.5
      %v9562 = vmul.f32 %v9550, 0.5
      %v9563 = vmul.f32 %v9551, 0.5
      %v9564 = vmul.f32 %v9552, 0.5
      %v9565 = vmul.f32 %v9423, %v9553
      %v9566 = vmul.f32 %v9426, %v9554
      %v9567 = vmul.f32 %v9431, %v9555
      %v9568 = vmul.f32 %v9434, %v9556
      %v9569 = vmul.f32 %v9439, %v9557
      %v9570 = vmul.f32 %v9442, %v9558
      %v9571 = vmul.f32 %v9447, %v9559
      %v9572 = vmul.f32 %v9450, %v9560
      %v9573 = vmul.f32 %v9455, %v9561
      %v9574 = vmul.f32 %v9458, %v9562
      %v9575 = vmul.f32 %v9463, %v9563
      %v9576 = vmul.f32 %v9466, %v9564
      %v9577 = vpack.c.bf16 %v9566, %v9565
      %v9578 = vpack.c.bf16 %v9568, %v9567
      %v9579 = vpack.c.bf16 %v9570, %v9569
      %v9580 = vpack.c.bf16 %v9572, %v9571
      %v9581 = vpack.c.bf16 %v9574, %v9573
      %v9582 = vpack.c.bf16 %v9576, %v9575
      %v9583 = vld [vmem:[%s636] sm:$0xf]
      %v9584 = vld [vmem:[%s636 + $0x4] sm:$0xf]
      %v9585 = vld [vmem:[%s636 + $0x8] sm:$0xf]
      %v9586 = vld [vmem:[%s636 + $0xc] sm:$0xf]
      %v9587 = vld [vmem:[%s636 + $0x10] sm:$0xf]
      %v9588 = vld [vmem:[%s636 + $0x14] sm:$0xf]
      %v9589 = vld [vmem:[%s636 + $0x18] sm:$0xf]
      %v9590 = vld [vmem:[%s636 + $0x1c] sm:$0xf]
      %v9591 = vld [vmem:[%s636 + $0x20] sm:$0xf]
      %v9592 = vld [vmem:[%s636 + $0x24] sm:$0xf]
      %v9593 = vld [vmem:[%s636 + $0x28] sm:$0xf]
      %v9594 = vld [vmem:[%s636 + $0x2c] sm:$0xf]
      %v9595 = vld [vmem:[%s636 + $0x30] sm:$0xf]
      %v9596 = vld [vmem:[%s636 + $0x34] sm:$0xf]
      %v9597 = vld [vmem:[%s636 + $0x38] sm:$0xf]
      %v9598 = vld [vmem:[%s636 + $0x3c] sm:$0xf]
      %v9615 = vunpack.c.l.b16 %v9583
      %v9616 = vunpack.c.l.b16 %v9584
      %v9617 = vunpack.c.l.b16 %v9585
      %v9618 = vunpack.c.l.b16 %v9586
      %v9619 = vunpack.c.l.b16 %v9587
      %v9620 = vunpack.c.l.b16 %v9588
      %v9621 = vunpack.c.l.b16 %v9589
      %v9622 = vunpack.c.l.b16 %v9590
      %v9623 = vunpack.c.l.b16 %v9591
      %v9624 = vunpack.c.l.b16 %v9592
      %v9625 = vunpack.c.l.b16 %v9593
      %v9626 = vunpack.c.l.b16 %v9594
      %v9627 = vunpack.c.l.b16 %v9595
      %v9628 = vunpack.c.l.b16 %v9596
      %v9629 = vunpack.c.l.b16 %v9597
      %v9630 = vunpack.c.l.b16 %v9598
      %v9631 = vpack.c.b16 %v9616, %v9615
      %v9632 = vpack.c.b16 %v9618, %v9617
      %v9633 = vpack.c.b16 %v9620, %v9619
      %v9634 = vpack.c.b16 %v9622, %v9621
      %v9635 = vpack.c.b16 %v9624, %v9623
      %v9636 = vpack.c.b16 %v9626, %v9625
      %v9637 = vpack.c.b16 %v9628, %v9627
      %v9638 = vpack.c.b16 %v9630, %v9629
      %9647 = vmatprep.subr.bf16.mxu0 0
      %9648 = vmatpush1.bf16.msra.mxu0 %v9638
      %9649 = vmatprep.subr.bf16.mxu0 0
      %9650 = vmatpush1.bf16.msra.mxu0 %v9637
      %9651 = vmatprep.subr.bf16.mxu0 0
      %9652 = vmatpush1.bf16.msra.mxu0 %v9636
      %9653 = vmatprep.subr.bf16.mxu0 0
      %9654 = vmatpush1.bf16.msra.mxu0 %v9635
      %9655 = vmatprep.subr.bf16.mxu0 0
      %9656 = vmatpush1.bf16.msra.mxu0 %v9634
      %9657 = vmatprep.subr.bf16.mxu0 0
      %9658 = vmatpush1.bf16.msra.mxu0 %v9633
      %9659 = vmatprep.subr.bf16.mxu0 0
      %9660 = vmatpush1.bf16.msra.mxu0 %v9632
      %9661 = vmatprep.subr.bf16.mxu0 0
      %9662 = vmatpush1.bf16.msra.mxu0 %v9631
      %9663 = vmatprep.subr.bf16.mxu0 0
      %9664 = vmatpush2.bf16.msra.mxu0 0
      %9665 = vmatprep.subr.bf16.mxu0 0
      %9666 = vmatpush2.bf16.msra.mxu0 0
      %9667 = vmatprep.subr.bf16.mxu0 0
      %9668 = vmatpush2.bf16.msra.mxu0 0
      %9669 = vmatprep.subr.bf16.mxu0 0
      %9670 = vmatpush2.bf16.msra.mxu0 0
      %9671 = vmatprep.subr.bf16.mxu0 0
      %9672 = vmatpush2.bf16.msra.mxu0 0
      %9673 = vmatprep.subr.bf16.mxu0 0
      %9674 = vmatpush2.bf16.msra.mxu0 0
      %9675 = vmatprep.subr.bf16.mxu0 0
      %9676 = vmatpush2.bf16.msra.mxu0 0
      %9677 = vmatprep.subr.bf16.mxu0 0
      %9678 = vmatpush2.bf16.msra.mxu0 0
      %9679 = vmatprep.mubr.bf16.mxu0 0
      %9680 = vmatmul.mubr.bf16.gmra.mxu0 %v9577
      %v9681 = vpop.f32.mrf.mxu0
      %v9682 = vadd.f32 0.0, %v9681
      %v9683 = vpop.f32.mrf.mxu0
      %v9684 = vpop.f32.mrf.mxu0
      %v9685 = vadd.f32 0.0, %v9684
      %v9686 = vpop.f32.mrf.mxu0
      %9687 = vmatprep.mubr.bf16.mxu0 0
      %9688 = vmatmul.mubr.bf16.gmra.mxu0 %v9578
      %v9689 = vpop.f32.mrf.mxu0
      %v9690 = vadd.f32 0.0, %v9689
      %v9691 = vpop.f32.mrf.mxu0
      %v9692 = vpop.f32.mrf.mxu0
      %v9693 = vadd.f32 0.0, %v9692
      %v9694 = vpop.f32.mrf.mxu0
      %9695 = vmatprep.mubr.bf16.mxu0 0
      %9696 = vmatmul.mubr.bf16.gmra.mxu0 %v9579
      %v9697 = vpop.f32.mrf.mxu0
      %v9698 = vadd.f32 0.0, %v9697
      %v9699 = vpop.f32.mrf.mxu0
      %v9700 = vpop.f32.mrf.mxu0
      %v9701 = vadd.f32 0.0, %v9700
      %v9702 = vpop.f32.mrf.mxu0
      %9703 = vmatprep.mubr.bf16.mxu0 0
      %9704 = vmatmul.mubr.bf16.gmra.mxu0 %v9580
      %v9705 = vpop.f32.mrf.mxu0
      %v9706 = vadd.f32 0.0, %v9705
      %v9707 = vpop.f32.mrf.mxu0
      %v9708 = vpop.f32.mrf.mxu0
      %v9709 = vadd.f32 0.0, %v9708
      %v9710 = vpop.f32.mrf.mxu0
      %9711 = vmatprep.mubr.bf16.mxu0 0
      %9712 = vmatmul.mubr.bf16.gmra.mxu0 %v9581
      %v9713 = vpop.f32.mrf.mxu0
      %v9714 = vadd.f32 0.0, %v9713
      %v9715 = vpop.f32.mrf.mxu0
      %v9716 = vpop.f32.mrf.mxu0
      %v9717 = vadd.f32 0.0, %v9716
      %v9718 = vpop.f32.mrf.mxu0
      %9719 = vmatprep.mubr.bf16.mxu0 0
      %9720 = vmatmul.mubr.bf16.gmra.mxu0 %v9582
      %v9721 = vpop.f32.mrf.mxu0
      %v9722 = vadd.f32 0.0, %v9721
      %v9723 = vpop.f32.mrf.mxu0
      %v9724 = vpop.f32.mrf.mxu0
      %v9725 = vadd.f32 0.0, %v9724
      %v9726 = vpop.f32.mrf.mxu0
      %9727 = vdwg.mxu0
      %v9728 = vadd.f32 %v9135, %v9682
      %v9729 = vadd.f32 %v9136, %v9685
      %v9730 = vadd.f32 %v9137, %v9690
      %v9731 = vadd.f32 %v9138, %v9693
      %v9732 = vadd.f32 %v9139, %v9698
      %v9733 = vadd.f32 %v9140, %v9701
      %v9734 = vadd.f32 %v9141, %v9706
      %v9735 = vadd.f32 %v9142, %v9709
      %v9736 = vadd.f32 %v9143, %v9714
      %v9737 = vadd.f32 %v9144, %v9717
      %v9738 = vadd.f32 %v9145, %v9722
      %v9739 = vadd.f32 %v9146, %v9725
      %v9740 = vld [vmem:[%s639] sm:$0x1]
      %v9742 = vlaneseq
      %v9743 = vshrl.u32 %v9742, 7
      %v9744 = vsub.s32 0, %v9743
      %v9745 = vrot.slane %v9740, %v9744
      %v9747 = vadd.f32 %v9728, %v9745
      %v9748 = vadd.f32 %v9729, %v9745
      %v9749 = vadd.f32 %v9730, %v9745
      %v9750 = vadd.f32 %v9731, %v9745
      %v9751 = vadd.f32 %v9732, %v9745
      %v9752 = vadd.f32 %v9733, %v9745
      %v9753 = vadd.f32 %v9734, %v9745
      %v9754 = vadd.f32 %v9735, %v9745
      %v9755 = vadd.f32 %v9736, %v9745
      %v9756 = vadd.f32 %v9737, %v9745
      %v9757 = vadd.f32 %v9738, %v9745
      %v9758 = vadd.f32 %v9739, %v9745
      %9759 = vst.msk [vmem:[#allocation2] sm:$0xff] %vm689, %v9747
      %9760 = vst.msk [vmem:[#allocation2 + $0x8] sm:$0xff] %vm689, %v9748
      %9761 = vst.msk [vmem:[#allocation2 + $0x10] sm:$0xff] %vm689, %v9749
      %9762 = vst.msk [vmem:[#allocation2 + $0x18] sm:$0xff] %vm689, %v9750
      %9763 = vst.msk [vmem:[#allocation2 + $0x20] sm:$0xff] %vm689, %v9751
      %9764 = vst.msk [vmem:[#allocation2 + $0x28] sm:$0xff] %vm689, %v9752
      %9765 = vst.msk [vmem:[#allocation2 + $0x30] sm:$0xff] %vm689, %v9753
      %9766 = vst.msk [vmem:[#allocation2 + $0x38] sm:$0xff] %vm689, %v9754
      %9767 = vst.msk [vmem:[#allocation2 + $0x40] sm:$0xff] %vm689, %v9755
      %9768 = vst.msk [vmem:[#allocation2 + $0x48] sm:$0xff] %vm689, %v9756
      %9769 = vst.msk [vmem:[#allocation2 + $0x50] sm:$0xff] %vm689, %v9757
      %9770 = vst.msk [vmem:[#allocation2 + $0x58] sm:$0xff] %vm689, %v9758
      %p9771 = scmp.eq.s32.totalorder %s29, 1
      // Predicated region
      $region77: #{tpu_custom_call.1} parent=71 // pred_check
        %p9772 = pneg %p9771
      $region78: #{tpu_custom_call.1} parent=71 // pred_check_branch
        %9774 = sbr.rel (%p9772) target = $region80
      $region79: #{tpu_custom_call.1} parent=71 // pred_region
        %9775 = vst.msk [vmem:[%s644] sm:$0xff] %vm689, %v9747
        %9776 = vst.msk [vmem:[%s644 + $0x8] sm:$0xff] %vm689, %v9748
        %9777 = vst.msk [vmem:[%s644 + $0x10] sm:$0xff] %vm689, %v9749
        %9778 = vst.msk [vmem:[%s644 + $0x18] sm:$0xff] %vm689, %v9750
        %9779 = vst.msk [vmem:[%s644 + $0x20] sm:$0xff] %vm689, %v9751
        %9780 = vst.msk [vmem:[%s644 + $0x28] sm:$0xff] %vm689, %v9752
        %9781 = vst.msk [vmem:[%s644 + $0x30] sm:$0xff] %vm689, %v9753
        %9782 = vst.msk [vmem:[%s644 + $0x38] sm:$0xff] %vm689, %v9754
        %9783 = vst.msk [vmem:[%s644 + $0x40] sm:$0xff] %vm689, %v9755
        %9784 = vst.msk [vmem:[%s644 + $0x48] sm:$0xff] %vm689, %v9756
        %9785 = vst.msk [vmem:[%s644 + $0x50] sm:$0xff] %vm689, %v9757
        %9786 = vst.msk [vmem:[%s644 + $0x58] sm:$0xff] %vm689, %v9758
      $region80: #{tpu_custom_call.1} parent=71 // pred_fallthru
        _
      %p9787 = scmp.lt.s32.totalorder %s28, 1
      %s9788 = scalar_select %p9787, %s28, 1
      %s9789 = smul.addr %s9788, 12
      %s9790 = smul.addr %s9789, 8
      %s9791 = scalar_lea.vmem %s13, %s9790
      // Predicated region
      $region81: #{tpu_custom_call.1} parent=71 // pred_check
        %p9792 = pneg %p392
      $region82: #{tpu_custom_call.1} parent=71 // pred_check_branch
        %9794 = sbr.rel (%p9792) target = $region84
      $region83: #{tpu_custom_call.1} parent=71 // pred_region
        _
      $region84: #{tpu_custom_call.1} parent=71 // pred_fallthru
        _
    $region72: #{tpu_custom_call.1} parent=5 // pred_fallthru
      _
    %p9795 = scmp.le.s32.totalorder 2, %s19
    // Predicated region
    $region85: #{tpu_custom_call.1} parent=5 // pred_check
      %p9796 = pneg %p9795
    $region86: #{tpu_custom_call.1} parent=5 // pred_check_branch
      %9798 = sbr.rel (%p9796) target = $region88
    $region87: #{tpu_custom_call.1} parent=5 // pred_region
      %s9799 = ssub.s32 %s19, 2
      // Predicated region
      $region89: #{tpu_custom_call.1} parent=87 // pred_check
        %p9800 = pneg %p398
      $region90: #{tpu_custom_call.1} parent=87 // pred_check_branch
        %9802 = sbr.rel (%p9800) target = $region92
      $region91: #{tpu_custom_call.1} parent=87 // pred_region
        %p9803 = scmp.lt.s32.totalorder %s30, 1
        %s9804 = scalar_select %p9803, %s30, 1
        %s9805 = smul.addr %s9804, 12
        %s9806 = smul.addr %s9805, 8
        %s9807 = scalar_lea.vmem %s13, %s9806
      $region92: #{tpu_custom_call.1} parent=87 // pred_fallthru
        _
    $region88: #{tpu_custom_call.1} parent=5 // pred_fallthru
      _
  $region6: #{tpu_custom_call.1} parent=0 // loop_footer
    %s23 = sadd.s32 1, %s19
  $region7: #{tpu_custom_call.1} parent=0 // loop_footer_branch
    %18 = sbr.rel target = $region3
  $region8: #{tpu_custom_call.1} parent=0 // loop_exit
    _

</llo_original>
